<compile_context>
chip_gen: v7x
topology: tpu7x:2x2x1
jax: 0.10.0
libtpu: 0.0.40
codegen_flags: <defaults>
</compile_context>

<pallas_src>
import functools
import math

import jax
import jax.numpy as jnp
from jax.experimental import pallas as pl
from jax.experimental.pallas import tpu as pltpu


def _round_up(x, m):
    return (x + m - 1) // m * m


# ----------------------------------------------------------------------------
# Per-generation VMEM budget (review: do not hard-code 64 MiB)
# ----------------------------------------------------------------------------

_VMEM_LIMIT = None


def _vmem_limit_bytes():
    global _VMEM_LIMIT
    if _VMEM_LIMIT is None:
        limit = 48 * 1024 * 1024  # conservative fallback, safe on v7x
        try:
            cap = getattr(pltpu.get_tpu_info(), "vmem_capacity_bytes", None)
            if cap:
                # ~75% of physical, capped at 100 MiB (v5e/v6e: 96 MiB, v7x: 48 MiB)
                limit = int(min(cap * 3 // 4, 100 * 1024 * 1024))
        except Exception:
            pass
        _VMEM_LIMIT = limit
    return _VMEM_LIMIT


def _compiler_params(dims):
    return pltpu.CompilerParams(dimension_semantics=dims,
                                vmem_limit_bytes=_vmem_limit_bytes())


def _const_spec(shape):
    zeros = (0,) * len(shape)
    return pl.BlockSpec(shape, lambda *_: zeros)


# ----------------------------------------------------------------------------
# In-kernel helpers
# ----------------------------------------------------------------------------

_SQRT_2_OVER_PI = 0.7978845608028654


def _gelu_tanh(x):
    # tanh-approx GELU: tanh goes to the EUP slot (review: cheaper than the
    # erf polynomial + divide on v6e/v7x where VALU is the co-bottleneck).
    return 0.5 * x * (1.0 + jnp.tanh(_SQRT_2_OVER_PI * (x + 0.044715 * x * x * x)))


# ----------------------------------------------------------------------------
# Kernel 1: adaLN (LayerNorm + per-part scale/shift) + QKV proj + QK-RMSNorm.
# Emits q/k/v as (H, N, head_dim) so the attention hot loop never slices lanes.
# ----------------------------------------------------------------------------

def _prenorm_qkv_kernel(x_ref, pid_ref, tab_ref, w_ref, b_ref, gq_ref, gk_ref,
                        q_ref, k_ref, v_ref, *, dim, num_heads, head_dim,
                        ln_eps, rms_eps):
    x = x_ref[...].astype(jnp.float32)                     # (bn, D)
    mu = jnp.mean(x, axis=-1, keepdims=True)
    var = jnp.mean(jnp.square(x - mu), axis=-1, keepdims=True)
    xn = (x - mu) * jax.lax.rsqrt(var + ln_eps)

    # Gather the per-part (1+scale, shift) rows via a one-hot matmul.
    rows = x.shape[0]
    parts = tab_ref.shape[0]
    iota = jax.lax.broadcasted_iota(jnp.int32, (rows, parts), 1)
    onehot = (pid_ref[...] == iota).astype(jnp.float32)    # (bn, Pp)
    mod = jnp.dot(onehot, tab_ref[...], preferred_element_type=jnp.float32)
    y = xn * mod[:, :dim] + mod[:, dim:]                   # modulated LN

    qkv = jnp.dot(y.astype(jnp.bfloat16), w_ref[...],
                  preferred_element_type=jnp.float32) + b_ref[...]

    # Per-head RMSNorm + head split; column slicing happens once per row tile
    # here (not in the attention inner loop). softmax scale is pre-folded
    # into gq by the wrapper.
    for h in range(num_heads):
        lo = h * head_dim
        qh = qkv[:, lo:lo + head_dim]
        kh = qkv[:, dim + lo:dim + lo + head_dim]
        vh = qkv[:, 2 * dim + lo:2 * dim + lo + head_dim]
        q_rstd = jax.lax.rsqrt(jnp.mean(qh * qh, axis=-1, keepdims=True) + rms_eps)
        k_rstd = jax.lax.rsqrt(jnp.mean(kh * kh, axis=-1, keepdims=True) + rms_eps)
        q_ref[h] = (qh * q_rstd * gq_ref[h]).astype(q_ref.dtype)
        k_ref[h] = (kh * k_rstd * gk_ref[h]).astype(k_ref.dtype)
        v_ref[h] = vh.astype(v_ref.dtype)


def prenorm_qkv(x, part_col, table, w, b, gq, gk, *, num_heads, head_dim,
                row_block, ln_eps=1e-5, rms_eps=1e-6):
    n_pad, d = x.shape
    w_bf = w.astype(jnp.bfloat16)
    b2 = b.reshape(1, -1).astype(jnp.float32)
    gq = gq.astype(jnp.float32)
    gk = gk.astype(jnp.float32)
    kernel = functools.partial(_prenorm_qkv_kernel, dim=d, num_heads=num_heads,
                               head_dim=head_dim, ln_eps=ln_eps, rms_eps=rms_eps)
    row_spec = pl.BlockSpec((row_block, d), lambda i: (i, 0))
    head_spec = pl.BlockSpec((num_heads, row_block, head_dim),
                             lambda i: (0, i, 0))
    out_sd = jax.ShapeDtypeStruct((num_heads, n_pad, head_dim), jnp.bfloat16)
    return pl.pallas_call(
        kernel,
        out_shape=(out_sd, out_sd, out_sd),
        grid=(n_pad // row_block,),
        in_specs=[
            row_spec,
            pl.BlockSpec((row_block, 1), lambda i: (i, 0)),
            _const_spec(table.shape),
            _const_spec(w_bf.shape),
            _const_spec(b2.shape),
            _const_spec(gq.shape),
            _const_spec(gk.shape),
        ],
        out_specs=(head_spec, head_spec, head_spec),
        compiler_params=_compiler_params(("parallel",)),
    )(x, part_col, table, w_bf, b2, gq, gk)


# ----------------------------------------------------------------------------
# Kernel 2: flash (online-softmax) segment attention, batched over heads,
# fused with out-projection + bias + residual add.
# Off-diagonal K/V tiles are skipped via a scalar-prefetched k-tile schedule.
# ----------------------------------------------------------------------------

def _attn_kernel(kidx_ref, knum_ref, segq_ref, segk_ref, q_ref, k_ref, v_ref,
                 res_ref, wout_ref, bout_ref, o_ref, m_sc, l_sc, acc_sc,
                 *, num_heads):
    i = pl.program_id(0)
    j = pl.program_id(1)

    @pl.when(j == 0)
    def _():
        m_sc[...] = jnp.full_like(m_sc, -1e30)
        l_sc[...] = jnp.zeros_like(l_sc)
        acc_sc[...] = jnp.zeros_like(acc_sc)

    @pl.when(j < knum_ref[i])                       # skip clamped extra steps
    def _():
        q = q_ref[...]                              # (H, tq, hd) bf16
        k = k_ref[...]                              # (H, tk, hd) bf16
        # additive block-diagonal mask bias, built once per (i, j)
        bias = jnp.where(segq_ref[...] == segk_ref[...], 0.0, -1e30)  # (tq,tk)
        s = jax.lax.dot_general(q, k, (((2,), (2,)), ((0,), (0,))),
                                preferred_element_type=jnp.float32)   # (H,tq,tk)
        s = s + bias[None, :, :]
        m_prev = m_sc[...]                                            # (H,tq,1)
        m_new = jnp.maximum(m_prev, jnp.max(s, axis=-1, keepdims=True))
        alpha = jnp.exp(m_prev - m_new)
        p = jnp.exp(s - m_new)
        l_sc[...] = alpha * l_sc[...] + jnp.sum(p, axis=-1, keepdims=True)
        acc_sc[...] = alpha * acc_sc[...] + jax.lax.dot_general(
            p.astype(v_ref.dtype), v_ref[...], (((2,), (1,)), ((0,), (0,))),
            preferred_element_type=jnp.float32)                       # (H,tq,hd)
        m_sc[...] = m_new

    @pl.when(j == pl.num_programs(1) - 1)
    def _():
        # fused out-projection + bias + residual (no (N, D) HBM round trip)
        inv_l = pl.reciprocal(jnp.maximum(l_sc[...], 1e-30), approx=True)
        nacc = (acc_sc[...] * inv_l).astype(jnp.bfloat16)             # (H,tq,hd)
        out = res_ref[...].astype(jnp.float32) + bout_ref[...]        # (tq, D)
        for h in range(num_heads):
            out = out + jnp.dot(nacc[h], wout_ref[h],
                                preferred_element_type=jnp.float32)
        o_ref[...] = out.astype(o_ref.dtype)


def _max_k_tiles(max_seqlen, tq, tk, nk):
    # Upper bound on the number of k tiles any q tile can touch, given that
    # segments are contiguous and at most max_seqlen long.
    if max_seqlen is None:
        return nk
    span = tq + 2 * int(max_seqlen) - 2
    return max(1, min(nk, -(-span // tk) + 1))


def _k_tile_schedule(seg, nq, tq, tk, max_knum):
    # Per q tile: contiguous range of k tiles overlapping its segments.
    seg_t = seg.reshape(nq, tq)
    seg_min = seg_t[:, 0]                    # seg is nondecreasing
    seg_max = seg_t[:, -1]
    k_lo = jnp.searchsorted(seg, seg_min, side="left")
    k_hi = jnp.searchsorted(seg, seg_max, side="right") - 1
    kstart = (k_lo // tk).astype(jnp.int32)
    kend = (k_hi // tk).astype(jnp.int32)
    knum = (kend - kstart + 1).astype(jnp.int32)
    steps = jnp.arange(max_knum, dtype=jnp.int32)[None, :]
    kidx = jnp.minimum(kstart[:, None] + steps, kend[:, None]).astype(jnp.int32)
    return kidx, knum


def attention_outproj_residual(q, k, v, seg, residual, w_out, b_out,
                               *, num_heads, head_dim, tq, tk, max_seqlen):
    n_pad, d = residual.shape
    nq = n_pad // tq
    nk = n_pad // tk
    max_knum = _max_k_tiles(max_seqlen, tq, tk, nk)
    kidx, knum = _k_tile_schedule(seg, nq, tq, tk, max_knum)

    seg_col = seg.reshape(n_pad, 1)
    seg_row = seg.reshape(1, n_pad)
    wout = w_out.reshape(num_heads, head_dim, d).astype(jnp.bfloat16)
    bout = b_out.reshape(1, d).astype(jnp.float32)

    kernel = functools.partial(_attn_kernel, num_heads=num_heads)

    def kv_map(i, j, kidx_ref, knum_ref):
        return (0, kidx_ref[i, j], 0)

    grid_spec = pltpu.PrefetchScalarGridSpec(
        num_scalar_prefetch=2,
        grid=(nq, max_knum),
        in_specs=[
            pl.BlockSpec((tq, 1), lambda i, j, ki, kn: (i, 0)),       # seg q
            pl.BlockSpec((1, tk), lambda i, j, ki, kn: (0, ki[i, j])),  # seg k
            pl.BlockSpec((num_heads, tq, head_dim),
                         lambda i, j, ki, kn: (0, i, 0)),             # q
            pl.BlockSpec((num_heads, tk, head_dim), kv_map),          # k
            pl.BlockSpec((num_heads, tk, head_dim), kv_map),          # v
            pl.BlockSpec((tq, d), lambda i, j, ki, kn: (i, 0)),       # residual
            _const_spec(wout.shape),                                  # W_out
            _const_spec(bout.shape),                                  # b_out
        ],
        out_specs=pl.BlockSpec((tq, d), lambda i, j, ki, kn: (i, 0)),
        scratch_shapes=[
            pltpu.VMEM((num_heads, tq, 1), jnp.float32),              # m
            pltpu.VMEM((num_heads, tq, 1), jnp.float32),              # l
            pltpu.VMEM((num_heads, tq, head_dim), jnp.float32),       # acc
        ])
    return pl.pallas_call(
        kernel,
        out_shape=jax.ShapeDtypeStruct((n_pad, d), jnp.bfloat16),
        grid_spec=grid_spec,
        compiler_params=_compiler_params(("parallel", "arbitrary")),
    )(kidx, knum, seg_col, seg_row, q, k, v, residual, wout, bout)


# ----------------------------------------------------------------------------
# Kernel 3: LayerNorm + GEGLU FF + residual, GEGLU inner dim tiled as a grid
# axis (VMEM-safe on v7x at real DiT dims).
# ----------------------------------------------------------------------------

def _ff_kernel(x_ref, g_ref, beta_ref, w1a_ref, b1a_ref, w1b_ref, b1b_ref,
               w2_ref, b2_ref, o_ref, xn_sc, acc_sc, *, ln_eps):
    c = pl.program_id(1)

    @pl.when(c == 0)
    def _():
        x = x_ref[...].astype(jnp.float32)
        mu = jnp.mean(x, axis=-1, keepdims=True)
        var = jnp.mean(jnp.square(x - mu), axis=-1, keepdims=True)
        xn = (x - mu) * jax.lax.rsqrt(var + ln_eps) * g_ref[...] + beta_ref[...]
        xn_sc[...] = xn.astype(jnp.bfloat16)
        acc_sc[...] = jnp.zeros_like(acc_sc)

    xn = xn_sc[...]
    xg = jnp.dot(xn, w1a_ref[...], preferred_element_type=jnp.float32) + b1a_ref[...]
    gate = jnp.dot(xn, w1b_ref[...], preferred_element_type=jnp.float32) + b1b_ref[...]
    acc_sc[...] += jnp.dot((xg * _gelu_tanh(gate)).astype(jnp.bfloat16),
                           w2_ref[...], preferred_element_type=jnp.float32)

    @pl.when(c == pl.num_programs(1) - 1)
    def _():
        out = x_ref[...].astype(jnp.float32) + acc_sc[...] + b2_ref[...]
        o_ref[...] = out.astype(o_ref.dtype)


def _pick_inner_tile(inner):
    for ti in (512, 256, 128):
        if inner % ti == 0:
            return ti
    return inner


def feedforward_residual(hidden, g, beta, w1, b1, w2, b2, *, row_block,
                         ln_eps=1e-5):
    n_pad, d = hidden.shape
    inner = w2.shape[0]
    ti = _pick_inner_tile(inner)
    nc = inner // ti
    w1a = w1[:, :inner].astype(jnp.bfloat16)
    w1b = w1[:, inner:].astype(jnp.bfloat16)
    b1a = b1[:inner].reshape(1, inner).astype(jnp.float32)
    b1b = b1[inner:].reshape(1, inner).astype(jnp.float32)
    w2_bf = w2.astype(jnp.bfloat16)
    b2_2 = b2.reshape(1, d).astype(jnp.float32)
    g2 = g.reshape(1, d).astype(jnp.float32)
    beta2 = beta.reshape(1, d).astype(jnp.float32)
    kernel = functools.partial(_ff_kernel, ln_eps=ln_eps)
    row_spec = pl.BlockSpec((row_block, d), lambda i, c: (i, 0))
    return pl.pallas_call(
        kernel,
        out_shape=jax.ShapeDtypeStruct((n_pad, d), jnp.bfloat16),
        grid=(n_pad // row_block, nc),
        in_specs=[
            row_spec,
            _const_spec(g2.shape), _const_spec(beta2.shape),
            pl.BlockSpec((d, ti), lambda i, c: (0, c)),
            pl.BlockSpec((1, ti), lambda i, c: (0, c)),
            pl.BlockSpec((d, ti), lambda i, c: (0, c)),
            pl.BlockSpec((1, ti), lambda i, c: (0, c)),
            pl.BlockSpec((ti, d), lambda i, c: (c, 0)),
            _const_spec(b2_2.shape),
        ],
        out_specs=row_spec,
        scratch_shapes=[pltpu.VMEM((row_block, d), jnp.bfloat16),   # LN(x)
                        pltpu.VMEM((row_block, d), jnp.float32)],   # acc
        compiler_params=_compiler_params(("parallel", "arbitrary")),
    )(hidden, g2, beta2, w1a, b1a, w1b, b1b, w2_bf, b2_2)


# ----------------------------------------------------------------------------
# Glue (embeddings, segment ids, schedules) — plain JAX, O(N) or O(P)
# ----------------------------------------------------------------------------

def timestep_embedding(t, dim, max_period=10000.0):
    half = dim // 2
    freqs = jnp.exp(-math.log(max_period) *
                    jnp.arange(half, dtype=jnp.float32) / half)
    args = t.astype(jnp.float32)[:, None] * freqs[None, :]
    return jnp.concatenate([jnp.cos(args), jnp.sin(args)], axis=-1)


def init_params(key, dim, heads, head_dim):
    inner = 4 * dim  # FeedForward mult=4 (diffusers default)
    ks = jax.random.split(key, 16)
    std = 0.02
    p = {
        "self_ada_w": jax.random.normal(ks[0], (dim, 2 * dim)) * std,
        "self_ada_b": jnp.zeros((2 * dim,)),
        "self_qkv_w": jax.random.normal(ks[1], (dim, 3 * dim)) * std,
        "self_qkv_b": jnp.zeros((3 * dim,)),          # qkv_proj_bias=False
        "self_out_w": jax.random.normal(ks[2], (dim, dim)) * std,
        "self_out_b": jnp.zeros((dim,)),
        "self_q_gamma": jnp.ones((heads, head_dim)),
        "self_k_gamma": jnp.ones((heads, head_dim)),
        "glob_ada_w": jax.random.normal(ks[3], (dim, 2 * dim)) * std,
        "glob_ada_b": jnp.zeros((2 * dim,)),
        "glob_qkv_w": jax.random.normal(ks[4], (dim, 3 * dim)) * std,
        "glob_qkv_b": jnp.zeros((3 * dim,)),
        "glob_out_w": jax.random.normal(ks[5], (dim, dim)) * std,
        "glob_out_b": jnp.zeros((dim,)),
        "glob_q_gamma": jnp.ones((heads, head_dim)),
        "glob_k_gamma": jnp.ones((heads, head_dim)),
        "ff_norm_g": jnp.ones((dim,)),
        "ff_norm_b": jnp.zeros((dim,)),
        "ff_geglu_w": jax.random.normal(ks[6], (dim, 2 * inner)) * std,
        "ff_geglu_b": jnp.zeros((2 * inner,)),
        "ff_out_w": jax.random.normal(ks[7], (inner, dim)) * std,
        "ff_out_b": jnp.zeros((dim,)),
    }
    return jax.tree_util.tree_map(lambda a: a.astype(jnp.float32), p)


def _static_or_none(x):
    try:
        return int(x)
    except Exception:           # traced -> fall back to dense k-tile range
        return None


def dit_layer_forward(params, hidden_states, timestep, batch,
                      self_attn_cu_seqlens, self_attn_max_seqlen,
                      global_attn_cu_seqlens, global_attn_max_seqlen,
                      *, num_heads, head_dim):
    # TODO(synk): `batch` is accepted but unused (see header notes).
    del batch
    n, d = hidden_states.shape
    assert d == num_heads * head_dim
    n_parts = timestep.shape[0]

    # Row tiling: 256-row tiles when possible (MXU-friendly on v6e/v7x),
    # otherwise one full tile padded to a multiple of 8.
    row_block = min(256, _round_up(n, 8))
    n_pad = _round_up(n, row_block)
    pad = n_pad - n
    nq = n_pad // row_block

    # Residual / activation stream kept bf16 in HBM (review item).
    x = jnp.pad(hidden_states, ((0, pad), (0, 0))).astype(jnp.bfloat16)

    idx = jnp.arange(n_pad)
    idx_c = jnp.minimum(idx, n - 1)

    def _segments(cu):
        s = (jnp.searchsorted(cu, idx_c, side="right") - 1).astype(jnp.int32)
        # padded rows get unique segment ids -> they only attend to themselves
        return jnp.where(idx < n, s,
                         jnp.int32(1_000_000) + idx.astype(jnp.int32))

    seg_self = _segments(self_attn_cu_seqlens)
    seg_glob = _segments(global_attn_cu_seqlens)
    part_col = jnp.clip(
        jnp.searchsorted(self_attn_cu_seqlens, idx_c, side="right") - 1,
        0, n_parts - 1).astype(jnp.int32).reshape(n_pad, 1)

    # adaLN modulation tables, (n_parts, 2D): tiny, computed once in JAX.
    t_emb = jax.nn.silu(timestep_embedding(timestep, d))
    pp = _round_up(max(n_parts, 8), 8)

    def _ada_table(w, b):
        mod = t_emb @ w + b
        tab = jnp.concatenate([1.0 + mod[:, :d], mod[:, d:]], axis=-1)
        return jnp.pad(tab, ((0, pp - n_parts), (0, 0))).astype(jnp.float32)

    scale = 1.0 / math.sqrt(head_dim)
    msl_self = _static_or_none(self_attn_max_seqlen)
    msl_glob = _static_or_none(global_attn_max_seqlen)

    def branch(h_bf, pfx, seg, msl):
        table = _ada_table(params[pfx + "_ada_w"], params[pfx + "_ada_b"])
        # fold the softmax scale into the q RMSNorm gamma (review item)
        gq = (params[pfx + "_q_gamma"] * scale).reshape(num_heads, 1, head_dim)
        gk = params[pfx + "_k_gamma"].reshape(num_heads, 1, head_dim)
        q, k, v = prenorm_qkv(h_bf, part_col, table,
                              params[pfx + "_qkv_w"], params[pfx + "_qkv_b"],
                              gq, gk, num_heads=num_heads, head_dim=head_dim,
                              row_block=row_block)
        return attention_outproj_residual(
            q, k, v, seg, h_bf,
            params[pfx + "_out_w"], params[pfx + "_out_b"],
            num_heads=num_heads, head_dim=head_dim,
            tq=row_block, tk=row_block, max_seqlen=msl)

    x = branch(x, "self", seg_self, msl_self)   # 1) part-wise attention
    x = branch(x, "glob", seg_glob, msl_glob)   # 2) global attention
    x = feedforward_residual(x, params["ff_norm_g"], params["ff_norm_b"],
                             params["ff_geglu_w"], params["ff_geglu_b"],
                             params["ff_out_w"], params["ff_out_b"],
                             row_block=row_block)            # 3) feed-forward
    return x[:n].astype(hidden_states.dtype)


# ----------------------------------------------------------------------------
# Example run
# ----------------------------------------------------------------------------

if __name__ == "__main__":
    DIM = 32
    HEADS = 4
    HEAD_DIM = 8          # dim == heads * head_dim
    N_POINTS = 64
    # four parts of 16 points each (varlen-packed); two scenes of 2 parts

    key = jax.random.PRNGKey(0)
    k_param, k_x = jax.random.split(key)
    params = init_params(k_param, DIM, HEADS, HEAD_DIM)

    hidden = jax.random.normal(k_x, (N_POINTS, DIM), dtype=jnp.float32)
    timestep = jnp.array([10, 250, 500, 900], dtype=jnp.int32)       # per part
    batch = jnp.array([0, 0, 1, 1], dtype=jnp.int32)                 # part->scene
    self_cu = jnp.array([0, 16, 32, 48, 64], dtype=jnp.int32)
    glob_cu = jnp.array([0, 32, 64], dtype=jnp.int32)

    # max_seqlens are static (as the CUDA flash-attn launch also requires).
    fwd = jax.jit(functools.partial(dit_layer_forward,
                                    num_heads=HEADS, head_dim=HEAD_DIM),
                  static_argnums=(5, 7))
    out = fwd(params, hidden, timestep, batch, self_cu, 16, glob_cu, 32)
    out = jax.block_until_ready(out)
    assert out.shape == (N_POINTS, DIM) and out.dtype == jnp.float32
    assert bool(jnp.all(jnp.isfinite(out)))
    print("KERNEL_OK")
</pallas_src>

<mosaic_0001>
module attributes {stable_mosaic.version = 11 : i64} {
  func.func @_attn_kernel(%arg0: i32, %arg1: i32, %arg2: memref<1x1xi32, #tpu.memory_space<smem>>, %arg3: memref<1xi32, #tpu.memory_space<smem>>, %arg4: memref<64x1xi32, #tpu.memory_space<vmem>>, %arg5: memref<1x64xi32, #tpu.memory_space<vmem>>, %arg6: memref<4x64x8xbf16, #tpu.memory_space<vmem>>, %arg7: memref<4x64x8xbf16, #tpu.memory_space<vmem>>, %arg8: memref<4x64x8xbf16, #tpu.memory_space<vmem>>, %arg9: memref<64x32xbf16, #tpu.memory_space<vmem>>, %arg10: memref<4x8x32xbf16, #tpu.memory_space<vmem>>, %arg11: memref<1x32xf32, #tpu.memory_space<vmem>>, %arg12: memref<64x32xbf16, #tpu.memory_space<vmem>>, %arg13: memref<4x64x1xf32, #tpu.memory_space<vmem>>, %arg14: memref<4x64x1xf32, #tpu.memory_space<vmem>>, %arg15: memref<4x64x8xf32, #tpu.memory_space<vmem>>) attributes {dimension_semantics = [#tpu.dimension_semantics<parallel>, #tpu.dimension_semantics<arbitrary>], iteration_bounds = array<i64: 1, 1>, scalar_prefetch = 2 : i64, scratch_operands = 3 : i64, tpu.core_type = #tpu.core_type<tc>, window_params = [{transform_indices = @transform_0, window_bounds = array<i64: 64, 1>}, {transform_indices = @transform_1, window_bounds = array<i64: 1, 64>}, {transform_indices = @transform_2, window_bounds = array<i64: 4, 64, 8>}, {transform_indices = @transform_3, window_bounds = array<i64: 4, 64, 8>}, {transform_indices = @transform_4, window_bounds = array<i64: 4, 64, 8>}, {transform_indices = @transform_5, window_bounds = array<i64: 64, 32>}, {pipeline_mode = #tpu.pipeline_mode<synchronous>, transform_indices = @transform_6, window_bounds = array<i64: 4, 8, 32>}, {pipeline_mode = #tpu.pipeline_mode<synchronous>, transform_indices = @transform_7, window_bounds = array<i64: 1, 32>}, {transform_indices = @transform_8, window_bounds = array<i64: 64, 32>}]} {
    %c0_i32 = arith.constant 0 : i32
    %0 = arith.cmpi eq, %arg1, %c0_i32 : i32
    %1 = arith.extui %0 : i1 to i32
    %c0_i32_0 = arith.constant 0 : i32
    %2 = arith.cmpi ne, %1, %c0_i32_0 : i32
    scf.if %2 {
      %cst = arith.constant -1.000000e+30 : f32
      %11 = vector.broadcast %cst : f32 to vector<4x64x1xf32>
      %c0 = arith.constant 0 : index
      %c0_4 = arith.constant 0 : index
      %c0_5 = arith.constant 0 : index
      %12 = vector.load %arg13[%c0, %c0_4, %c0_5] : memref<4x64x1xf32, #tpu.memory_space<vmem>>, vector<4x64x1xf32>
      tpu.vector_store %arg13[%c0, %c0_4, %c0_5], %11 {strides = array<i32>} : memref<4x64x1xf32, #tpu.memory_space<vmem>>, vector<4x64x1xf32>,
      %cst_6 = arith.constant 0.000000e+00 : f32
      %13 = vector.broadcast %cst_6 : f32 to vector<4x64x1xf32>
      %c0_7 = arith.constant 0 : index
      %c0_8 = arith.constant 0 : index
      %c0_9 = arith.constant 0 : index
      %14 = vector.load %arg14[%c0_7, %c0_8, %c0_9] : memref<4x64x1xf32, #tpu.memory_space<vmem>>, vector<4x64x1xf32>
      tpu.vector_store %arg14[%c0_7, %c0_8, %c0_9], %13 {strides = array<i32>} : memref<4x64x1xf32, #tpu.memory_space<vmem>>, vector<4x64x1xf32>,
      %cst_10 = arith.constant 0.000000e+00 : f32
      %15 = vector.broadcast %cst_10 : f32 to vector<4x64x8xf32>
      %c0_11 = arith.constant 0 : index
      %c0_12 = arith.constant 0 : index
      %c0_13 = arith.constant 0 : index
      %16 = vector.load %arg15[%c0_11, %c0_12, %c0_13] : memref<4x64x8xf32, #tpu.memory_space<vmem>>, vector<4x64x8xf32>
      tpu.vector_store %arg15[%c0_11, %c0_12, %c0_13], %15 {strides = array<i32>} : memref<4x64x8xf32, #tpu.memory_space<vmem>>, vector<4x64x8xf32>,
    } else {
    }
    %3 = arith.index_cast %arg0 : i32 to index
    %4 = memref.load %arg3[%3] : memref<1xi32, #tpu.memory_space<smem>>
    %5 = arith.cmpi slt, %arg1, %4 : i32
    %6 = arith.extui %5 : i1 to i32
    %c0_i32_1 = arith.constant 0 : i32
    %7 = arith.cmpi ne, %6, %c0_i32_1 : i32
    scf.if %7 {
      %c0 = arith.constant 0 : index
      %c0_4 = arith.constant 0 : index
      %c0_5 = arith.constant 0 : index
      %11 = vector.load %arg6[%c0, %c0_4, %c0_5] : memref<4x64x8xbf16, #tpu.memory_space<vmem>>, vector<4x64x8xbf16>
      %c0_6 = arith.constant 0 : index
      %c0_7 = arith.constant 0 : index
      %c0_8 = arith.constant 0 : index
      %12 = vector.load %arg7[%c0_6, %c0_7, %c0_8] : memref<4x64x8xbf16, #tpu.memory_space<vmem>>, vector<4x64x8xbf16>
      %c0_9 = arith.constant 0 : index
      %c0_10 = arith.constant 0 : index
      %13 = vector.load %arg4[%c0_9, %c0_10] : memref<64x1xi32, #tpu.memory_space<vmem>>, vector<64x1xi32>
      %c0_11 = arith.constant 0 : index
      %c0_12 = arith.constant 0 : index
      %14 = vector.load %arg5[%c0_11, %c0_12] : memref<1x64xi32, #tpu.memory_space<vmem>>, vector<1x64xi32>
      %15 = vector.broadcast %13 : vector<64x1xi32> to vector<64x64xi32>
      %16 = vector.broadcast %14 : vector<1x64xi32> to vector<64x64xi32>
      %17 = arith.cmpi eq, %15, %16 : vector<64x64xi32>
      %cst = arith.constant 0.000000e+00 : f32
      %cst_13 = arith.constant -1.000000e+30 : f32
      %18 = vector.broadcast %cst : f32 to vector<64x64xf32>
      %19 = vector.broadcast %cst_13 : f32 to vector<64x64xf32>
      %20 = arith.select %17, %18, %19 : vector<64x64xi1>, vector<64x64xf32>
      %cst_14 = arith.constant dense<0.000000e+00> : vector<4x64x64xf32>
      %21 = tpu.matmul %11, %12, %cst_14 {dimension_numbers = #tpu.dot_dimension_numbers<[2], [2], [1], [1], [0, 0, 0, 1, 1, 1], [0], [0]>} : vector<4x64x8xbf16>, vector<4x64x8xbf16>, vector<4x64x64xf32> -> vector<4x64x64xf32>
      %22 = vector.shape_cast %20 : vector<64x64xf32> to vector<1x64x64xf32>
      %23 = vector.broadcast %22 : vector<1x64x64xf32> to vector<4x64x64xf32>
      %24 = arith.addf %21, %23 : vector<4x64x64xf32>
      %c0_15 = arith.constant 0 : index
      %c0_16 = arith.constant 0 : index
      %c0_17 = arith.constant 0 : index
      %25 = vector.load %arg13[%c0_15, %c0_16, %c0_17] : memref<4x64x1xf32, #tpu.memory_space<vmem>>, vector<4x64x1xf32>
      %cst_18 = arith.constant dense<0xFF800000> : vector<4x64xf32>
      %26 = vector.multi_reduction <maximumf>, %24, %cst_18 [2] : vector<4x64x64xf32> to vector<4x64xf32>
      %27 = vector.shape_cast %26 : vector<4x64xf32> to vector<4x64x1xf32>
      %28 = arith.maximumf %25, %27 : vector<4x64x1xf32>
      %29 = arith.subf %25, %28 : vector<4x64x1xf32>
      %30 = math.exp %29 : vector<4x64x1xf32>
      %31 = vector.broadcast %28 : vector<4x64x1xf32> to vector<4x64x64xf32>
      %32 = arith.subf %24, %31 : vector<4x64x64xf32>
      %33 = math.exp %32 : vector<4x64x64xf32>
      %c0_19 = arith.constant 0 : index
      %c0_20 = arith.constant 0 : index
      %c0_21 = arith.constant 0 : index
      %34 = vector.load %arg14[%c0_19, %c0_20, %c0_21] : memref<4x64x1xf32, #tpu.memory_space<vmem>>, vector<4x64x1xf32>
      %35 = arith.mulf %30, %34 : vector<4x64x1xf32>
      %cst_22 = arith.constant dense<0.000000e+00> : vector<4x64xf32>
      %36 = vector.multi_reduction <add>, %33, %cst_22 [2] : vector<4x64x64xf32> to vector<4x64xf32>
      %37 = vector.shape_cast %36 : vector<4x64xf32> to vector<4x64x1xf32>
      %38 = arith.addf %35, %37 : vector<4x64x1xf32>
      %c0_23 = arith.constant 0 : index
      %c0_24 = arith.constant 0 : index
      %c0_25 = arith.constant 0 : index
      %39 = vector.load %arg14[%c0_23, %c0_24, %c0_25] : memref<4x64x1xf32, #tpu.memory_space<vmem>>, vector<4x64x1xf32>
      tpu.vector_store %arg14[%c0_23, %c0_24, %c0_25], %38 {strides = array<i32>} : memref<4x64x1xf32, #tpu.memory_space<vmem>>, vector<4x64x1xf32>,
      %c0_26 = arith.constant 0 : index
      %c0_27 = arith.constant 0 : index
      %c0_28 = arith.constant 0 : index
      %40 = vector.load %arg15[%c0_26, %c0_27, %c0_28] : memref<4x64x8xf32, #tpu.memory_space<vmem>>, vector<4x64x8xf32>
      %41 = vector.broadcast %30 : vector<4x64x1xf32> to vector<4x64x8xf32>
      %42 = arith.mulf %41, %40 : vector<4x64x8xf32>
      %43 = arith.truncf %33 : vector<4x64x64xf32> to vector<4x64x64xbf16>
      %c0_29 = arith.constant 0 : index
      %c0_30 = arith.constant 0 : index
      %c0_31 = arith.constant 0 : index
      %44 = vector.load %arg8[%c0_29, %c0_30, %c0_31] : memref<4x64x8xbf16, #tpu.memory_space<vmem>>, vector<4x64x8xbf16>
      %cst_32 = arith.constant dense<0.000000e+00> : vector<4x64x8xf32>
      %45 = tpu.matmul %43, %44, %cst_32 {dimension_numbers = #tpu.dot_dimension_numbers<[2], [1], [1], [2], [0, 0, 0, 1, 1, 2], [0], [0]>} : vector<4x64x64xbf16>, vector<4x64x8xbf16>, vector<4x64x8xf32> -> vector<4x64x8xf32>
      %46 = arith.addf %42, %45 : vector<4x64x8xf32>
      %c0_33 = arith.constant 0 : index
      %c0_34 = arith.constant 0 : index
      %c0_35 = arith.constant 0 : index
      %47 = vector.load %arg15[%c0_33, %c0_34, %c0_35] : memref<4x64x8xf32, #tpu.memory_space<vmem>>, vector<4x64x8xf32>
      tpu.vector_store %arg15[%c0_33, %c0_34, %c0_35], %46 {strides = array<i32>} : memref<4x64x8xf32, #tpu.memory_space<vmem>>, vector<4x64x8xf32>,
      %c0_36 = arith.constant 0 : index
      %c0_37 = arith.constant 0 : index
      %c0_38 = arith.constant 0 : index
      %48 = vector.load %arg13[%c0_36, %c0_37, %c0_38] : memref<4x64x1xf32, #tpu.memory_space<vmem>>, vector<4x64x1xf32>
      tpu.vector_store %arg13[%c0_36, %c0_37, %c0_38], %28 {strides = array<i32>} : memref<4x64x1xf32, #tpu.memory_space<vmem>>, vector<4x64x1xf32>,
    } else {
    }
    %c0_i32_2 = arith.constant 0 : i32
    %8 = arith.cmpi eq, %arg1, %c0_i32_2 : i32
    %9 = arith.extui %8 : i1 to i32
    %c0_i32_3 = arith.constant 0 : i32
    %10 = arith.cmpi ne, %9, %c0_i32_3 : i32
    scf.if %10 {
      %c0 = arith.constant 0 : index
      %c0_4 = arith.constant 0 : index
      %c0_5 = arith.constant 0 : index
      %11 = vector.load %arg14[%c0, %c0_4, %c0_5] : memref<4x64x1xf32, #tpu.memory_space<vmem>>, vector<4x64x1xf32>
      %cst = arith.constant 1.000000e-30 : f32
      %12 = vector.broadcast %cst : f32 to vector<4x64x1xf32>
      %13 = arith.maximumf %11, %12 : vector<4x64x1xf32>
      %14 = tpu.reciprocal %13 {approx = true} : vector<4x64x1xf32> -> vector<4x64x1xf32>
      %c0_6 = arith.constant 0 : index
      %c0_7 = arith.constant 0 : index
      %c0_8 = arith.constant 0 : index
      %15 = vector.load %arg15[%c0_6, %c0_7, %c0_8] : memref<4x64x8xf32, #tpu.memory_space<vmem>>, vector<4x64x8xf32>
      %16 = vector.broadcast %14 : vector<4x64x1xf32> to vector<4x64x8xf32>
      %17 = arith.mulf %15, %16 : vector<4x64x8xf32>
      %18 = arith.truncf %17 : vector<4x64x8xf32> to vector<4x64x8xbf16>
      %c0_9 = arith.constant 0 : index
      %c0_10 = arith.constant 0 : index
      %19 = vector.load %arg9[%c0_9, %c0_10] : memref<64x32xbf16, #tpu.memory_space<vmem>>, vector<64x32xbf16>
      %20 = arith.extf %19 : vector<64x32xbf16> to vector<64x32xf32>
      %c0_11 = arith.constant 0 : index
      %c0_12 = arith.constant 0 : index
      %21 = vector.load %arg11[%c0_11, %c0_12] : memref<1x32xf32, #tpu.memory_space<vmem>>, vector<1x32xf32>
      %22 = vector.broadcast %21 : vector<1x32xf32> to vector<64x32xf32>
      %23 = arith.addf %20, %22 : vector<64x32xf32>
      %24 = vector.extract_strided_slice %18 {offsets = [0, 0, 0], sizes = [1, 64, 8], strides = [1, 1, 1]} : vector<4x64x8xbf16> to vector<1x64x8xbf16>
      %25 = vector.shape_cast %24 : vector<1x64x8xbf16> to vector<64x8xbf16>
      %c0_13 = arith.constant 0 : index
      %c0_14 = arith.constant 0 : index
      %c0_15 = arith.constant 0 : index
      %26 = vector.load %arg10[%c0_13, %c0_14, %c0_15] : memref<4x8x32xbf16, #tpu.memory_space<vmem>>, vector<1x8x32xbf16>
      %27 = vector.shape_cast %26 : vector<1x8x32xbf16> to vector<8x32xbf16>
      %cst_16 = arith.constant dense<0.000000e+00> : vector<64x32xf32>
      %28 = tpu.matmul %25, %27, %cst_16 {dimension_numbers = #tpu.dot_dimension_numbers<[1], [0], [0], [1], [0, 0, 1, 1], [], []>} : vector<64x8xbf16>, vector<8x32xbf16>, vector<64x32xf32> -> vector<64x32xf32>
      %29 = arith.addf %23, %28 : vector<64x32xf32>
      %30 = vector.extract_strided_slice %18 {offsets = [1, 0, 0], sizes = [1, 64, 8], strides = [1, 1, 1]} : vector<4x64x8xbf16> to vector<1x64x8xbf16>
      %31 = vector.shape_cast %30 : vector<1x64x8xbf16> to vector<64x8xbf16>
      %c1 = arith.constant 1 : index
      %c0_17 = arith.constant 0 : index
      %c0_18 = arith.constant 0 : index
      %32 = vector.load %arg10[%c1, %c0_17, %c0_18] : memref<4x8x32xbf16, #tpu.memory_space<vmem>>, vector<1x8x32xbf16>
      %33 = vector.shape_cast %32 : vector<1x8x32xbf16> to vector<8x32xbf16>
      %cst_19 = arith.constant dense<0.000000e+00> : vector<64x32xf32>
      %34 = tpu.matmul %31, %33, %cst_19 {dimension_numbers = #tpu.dot_dimension_numbers<[1], [0], [0], [1], [0, 0, 1, 1], [], []>} : vector<64x8xbf16>, vector<8x32xbf16>, vector<64x32xf32> -> vector<64x32xf32>
      %35 = arith.addf %29, %34 : vector<64x32xf32>
      %36 = vector.extract_strided_slice %18 {offsets = [2, 0, 0], sizes = [1, 64, 8], strides = [1, 1, 1]} : vector<4x64x8xbf16> to vector<1x64x8xbf16>
      %37 = vector.shape_cast %36 : vector<1x64x8xbf16> to vector<64x8xbf16>
      %c2 = arith.constant 2 : index
      %c0_20 = arith.constant 0 : index
      %c0_21 = arith.constant 0 : index
      %38 = vector.load %arg10[%c2, %c0_20, %c0_21] : memref<4x8x32xbf16, #tpu.memory_space<vmem>>, vector<1x8x32xbf16>
      %39 = vector.shape_cast %38 : vector<1x8x32xbf16> to vector<8x32xbf16>
      %cst_22 = arith.constant dense<0.000000e+00> : vector<64x32xf32>
      %40 = tpu.matmul %37, %39, %cst_22 {dimension_numbers = #tpu.dot_dimension_numbers<[1], [0], [0], [1], [0, 0, 1, 1], [], []>} : vector<64x8xbf16>, vector<8x32xbf16>, vector<64x32xf32> -> vector<64x32xf32>
      %41 = arith.addf %35, %40 : vector<64x32xf32>
      %42 = vector.extract_strided_slice %18 {offsets = [3, 0, 0], sizes = [1, 64, 8], strides = [1, 1, 1]} : vector<4x64x8xbf16> to vector<1x64x8xbf16>
      %43 = vector.shape_cast %42 : vector<1x64x8xbf16> to vector<64x8xbf16>
      %c3 = arith.constant 3 : index
      %c0_23 = arith.constant 0 : index
      %c0_24 = arith.constant 0 : index
      %44 = vector.load %arg10[%c3, %c0_23, %c0_24] : memref<4x8x32xbf16, #tpu.memory_space<vmem>>, vector<1x8x32xbf16>
      %45 = vector.shape_cast %44 : vector<1x8x32xbf16> to vector<8x32xbf16>
      %cst_25 = arith.constant dense<0.000000e+00> : vector<64x32xf32>
      %46 = tpu.matmul %43, %45, %cst_25 {dimension_numbers = #tpu.dot_dimension_numbers<[1], [0], [0], [1], [0, 0, 1, 1], [], []>} : vector<64x8xbf16>, vector<8x32xbf16>, vector<64x32xf32> -> vector<64x32xf32>
      %47 = arith.addf %41, %46 : vector<64x32xf32>
      %48 = arith.truncf %47 : vector<64x32xf32> to vector<64x32xbf16>
      %c0_26 = arith.constant 0 : index
      %c0_27 = arith.constant 0 : index
      %49 = vector.load %arg12[%c0_26, %c0_27] : memref<64x32xbf16, #tpu.memory_space<vmem>>, vector<64x32xbf16>
      tpu.vector_store %arg12[%c0_26, %c0_27], %48 {strides = array<i32>} : memref<64x32xbf16, #tpu.memory_space<vmem>>, vector<64x32xbf16>,
    } else {
    }
    return
  }
  func.func @transform_0(%arg0: i32, %arg1: i32, %arg2: memref<1x1xi32, #tpu.memory_space<smem>>, %arg3: memref<1xi32, #tpu.memory_space<smem>>) -> (i32, i32) {
    %c0_i32 = arith.constant 0 : i32
    %c0_i32_0 = arith.constant 0 : i32
    return %arg0, %c0_i32 : i32, i32
  }
  func.func @transform_1(%arg0: i32, %arg1: i32, %arg2: memref<1x1xi32, #tpu.memory_space<smem>>, %arg3: memref<1xi32, #tpu.memory_space<smem>>) -> (i32, i32) {
    %0 = arith.index_cast %arg0 : i32 to index
    %1 = arith.index_cast %arg1 : i32 to index
    %2 = memref.load %arg2[%0, %1] : memref<1x1xi32, #tpu.memory_space<smem>>
    %c0_i32 = arith.constant 0 : i32
    %c0_i32_0 = arith.constant 0 : i32
    return %c0_i32, %2 : i32, i32
  }
  func.func @transform_2(%arg0: i32, %arg1: i32, %arg2: memref<1x1xi32, #tpu.memory_space<smem>>, %arg3: memref<1xi32, #tpu.memory_space<smem>>) -> (i32, i32, i32) {
    %c0_i32 = arith.constant 0 : i32
    %c0_i32_0 = arith.constant 0 : i32
    %c0_i32_1 = arith.constant 0 : i32
    return %c0_i32, %arg0, %c0_i32_0 : i32, i32, i32
  }
  func.func @transform_3(%arg0: i32, %arg1: i32, %arg2: memref<1x1xi32, #tpu.memory_space<smem>>, %arg3: memref<1xi32, #tpu.memory_space<smem>>) -> (i32, i32, i32) {
    %0 = arith.index_cast %arg0 : i32 to index
    %1 = arith.index_cast %arg1 : i32 to index
    %2 = memref.load %arg2[%0, %1] : memref<1x1xi32, #tpu.memory_space<smem>>
    %c0_i32 = arith.constant 0 : i32
    %c0_i32_0 = arith.constant 0 : i32
    %c0_i32_1 = arith.constant 0 : i32
    return %c0_i32, %2, %c0_i32_0 : i32, i32, i32
  }
  func.func @transform_4(%arg0: i32, %arg1: i32, %arg2: memref<1x1xi32, #tpu.memory_space<smem>>, %arg3: memref<1xi32, #tpu.memory_space<smem>>) -> (i32, i32, i32) {
    %0 = arith.index_cast %arg0 : i32 to index
    %1 = arith.index_cast %arg1 : i32 to index
    %2 = memref.load %arg2[%0, %1] : memref<1x1xi32, #tpu.memory_space<smem>>
    %c0_i32 = arith.constant 0 : i32
    %c0_i32_0 = arith.constant 0 : i32
    %c0_i32_1 = arith.constant 0 : i32
    return %c0_i32, %2, %c0_i32_0 : i32, i32, i32
  }
  func.func @transform_5(%arg0: i32, %arg1: i32, %arg2: memref<1x1xi32, #tpu.memory_space<smem>>, %arg3: memref<1xi32, #tpu.memory_space<smem>>) -> (i32, i32) {
    %c0_i32 = arith.constant 0 : i32
    %c0_i32_0 = arith.constant 0 : i32
    return %arg0, %c0_i32 : i32, i32
  }
  func.func @transform_6(%arg0: i32, %arg1: i32, %arg2: memref<1x1xi32, #tpu.memory_space<smem>>, %arg3: memref<1xi32, #tpu.memory_space<smem>>) -> (i32, i32, i32) {
    %c0_i32 = arith.constant 0 : i32
    %c0_i32_0 = arith.constant 0 : i32
    %c0_i32_1 = arith.constant 0 : i32
    %c0_i32_2 = arith.constant 0 : i32
    return %c0_i32, %c0_i32_0, %c0_i32_1 : i32, i32, i32
  }
  func.func @transform_7(%arg0: i32, %arg1: i32, %arg2: memref<1x1xi32, #tpu.memory_space<smem>>, %arg3: memref<1xi32, #tpu.memory_space<smem>>) -> (i32, i32) {
    %c0_i32 = arith.constant 0 : i32
    %c0_i32_0 = arith.constant 0 : i32
    %c0_i32_1 = arith.constant 0 : i32
    return %c0_i32, %c0_i32_0 : i32, i32
  }
  func.func @transform_8(%arg0: i32, %arg1: i32, %arg2: memref<1x1xi32, #tpu.memory_space<smem>>, %arg3: memref<1xi32, #tpu.memory_space<smem>>) -> (i32, i32) {
    %c0_i32 = arith.constant 0 : i32
    %c0_i32_0 = arith.constant 0 : i32
    return %arg0, %c0_i32 : i32, i32
  }
}

module attributes {stable_mosaic.version = 11 : i64} {
  func.func @_prenorm_qkv_kernel(%arg0: i32, %arg1: memref<64x32xbf16, #tpu.memory_space<vmem>>, %arg2: memref<64x1xi32, #tpu.memory_space<vmem>>, %arg3: memref<8x64xf32, #tpu.memory_space<vmem>>, %arg4: memref<32x96xbf16, #tpu.memory_space<vmem>>, %arg5: memref<1x96xf32, #tpu.memory_space<vmem>>, %arg6: memref<4x1x8xf32, #tpu.memory_space<vmem>>, %arg7: memref<4x1x8xf32, #tpu.memory_space<vmem>>, %arg8: memref<4x64x8xbf16, #tpu.memory_space<vmem>>, %arg9: memref<4x64x8xbf16, #tpu.memory_space<vmem>>, %arg10: memref<4x64x8xbf16, #tpu.memory_space<vmem>>) attributes {dimension_semantics = [#tpu.dimension_semantics<parallel>], iteration_bounds = array<i64: 1>, scalar_prefetch = 0 : i64, scratch_operands = 0 : i64, tpu.core_type = #tpu.core_type<tc>, window_params = [{transform_indices = @transform_0, window_bounds = array<i64: 64, 32>}, {transform_indices = @transform_1, window_bounds = array<i64: 64, 1>}, {pipeline_mode = #tpu.pipeline_mode<synchronous>, transform_indices = @transform_2, window_bounds = array<i64: 8, 64>}, {pipeline_mode = #tpu.pipeline_mode<synchronous>, transform_indices = @transform_3, window_bounds = array<i64: 32, 96>}, {pipeline_mode = #tpu.pipeline_mode<synchronous>, transform_indices = @transform_4, window_bounds = array<i64: 1, 96>}, {pipeline_mode = #tpu.pipeline_mode<synchronous>, transform_indices = @transform_5, window_bounds = array<i64: 4, 1, 8>}, {pipeline_mode = #tpu.pipeline_mode<synchronous>, transform_indices = @transform_6, window_bounds = array<i64: 4, 1, 8>}, {transform_indices = @transform_7, window_bounds = array<i64: 4, 64, 8>}, {transform_indices = @transform_8, window_bounds = array<i64: 4, 64, 8>}, {transform_indices = @transform_9, window_bounds = array<i64: 4, 64, 8>}]} {
    %c0 = arith.constant 0 : index
    %c0_0 = arith.constant 0 : index
    %0 = vector.load %arg1[%c0, %c0_0] : memref<64x32xbf16, #tpu.memory_space<vmem>>, vector<64x32xbf16>
    %1 = arith.extf %0 : vector<64x32xbf16> to vector<64x32xf32>
    %cst = arith.constant dense<0.000000e+00> : vector<64xf32>
    %2 = vector.multi_reduction <add>, %1, %cst [1] : vector<64x32xf32> to vector<64xf32>
    %3 = vector.shape_cast %2 : vector<64xf32> to vector<64x1xf32>
    %cst_1 = arith.constant 3.200000e+01 : f32
    %4 = vector.broadcast %cst_1 : f32 to vector<64x1xf32>
    %5 = arith.divf %3, %4 : vector<64x1xf32>
    %6 = vector.broadcast %5 : vector<64x1xf32> to vector<64x32xf32>
    %7 = arith.subf %1, %6 : vector<64x32xf32>
    %8 = arith.mulf %7, %7 : vector<64x32xf32>
    %cst_2 = arith.constant dense<0.000000e+00> : vector<64xf32>
    %9 = vector.multi_reduction <add>, %8, %cst_2 [1] : vector<64x32xf32> to vector<64xf32>
    %10 = vector.shape_cast %9 : vector<64xf32> to vector<64x1xf32>
    %cst_3 = arith.constant 3.200000e+01 : f32
    %11 = vector.broadcast %cst_3 : f32 to vector<64x1xf32>
    %12 = arith.divf %10, %11 : vector<64x1xf32>
    %13 = vector.broadcast %5 : vector<64x1xf32> to vector<64x32xf32>
    %14 = arith.subf %1, %13 : vector<64x32xf32>
    %cst_4 = arith.constant 9.99999974E-6 : f32
    %15 = vector.broadcast %cst_4 : f32 to vector<64x1xf32>
    %16 = arith.addf %12, %15 : vector<64x1xf32>
    %17 = math.rsqrt %16 : vector<64x1xf32>
    %18 = vector.broadcast %17 : vector<64x1xf32> to vector<64x32xf32>
    %19 = arith.mulf %14, %18 : vector<64x32xf32>
    %20 = tpu.iota {dimensions = array<i32: 1>} : vector<64x8xi32>
    %c0_5 = arith.constant 0 : index
    %c0_6 = arith.constant 0 : index
    %21 = vector.load %arg2[%c0_5, %c0_6] : memref<64x1xi32, #tpu.memory_space<vmem>>, vector<64x1xi32>
    %22 = vector.broadcast %21 : vector<64x1xi32> to vector<64x8xi32>
    %23 = arith.cmpi eq, %22, %20 : vector<64x8xi32>
    %24 = arith.extui %23 : vector<64x8xi1> to vector<64x8xi32>
    %25 = arith.sitofp %24 : vector<64x8xi32> to vector<64x8xf32>
    %c0_7 = arith.constant 0 : index
    %c0_8 = arith.constant 0 : index
    %26 = vector.load %arg3[%c0_7, %c0_8] : memref<8x64xf32, #tpu.memory_space<vmem>>, vector<8x64xf32>
    %cst_9 = arith.constant dense<0.000000e+00> : vector<64x64xf32>
    %27 = tpu.matmul %25, %26, %cst_9 {dimension_numbers = #tpu.dot_dimension_numbers<[1], [0], [0], [1], [0, 0, 1, 1], [], []>} : vector<64x8xf32>, vector<8x64xf32>, vector<64x64xf32> -> vector<64x64xf32>
    %28 = vector.extract_strided_slice %27 {offsets = [0, 0], sizes = [64, 32], strides = [1, 1]} : vector<64x64xf32> to vector<64x32xf32>
    %29 = arith.mulf %19, %28 : vector<64x32xf32>
    %30 = vector.extract_strided_slice %27 {offsets = [0, 32], sizes = [64, 32], strides = [1, 1]} : vector<64x64xf32> to vector<64x32xf32>
    %31 = arith.addf %29, %30 : vector<64x32xf32>
    %32 = arith.truncf %31 : vector<64x32xf32> to vector<64x32xbf16>
    %c0_10 = arith.constant 0 : index
    %c0_11 = arith.constant 0 : index
    %33 = vector.load %arg4[%c0_10, %c0_11] : memref<32x96xbf16, #tpu.memory_space<vmem>>, vector<32x96xbf16>
    %cst_12 = arith.constant dense<0.000000e+00> : vector<64x96xf32>
    %34 = tpu.matmul %32, %33, %cst_12 {dimension_numbers = #tpu.dot_dimension_numbers<[1], [0], [0], [1], [0, 0, 1, 1], [], []>} : vector<64x32xbf16>, vector<32x96xbf16>, vector<64x96xf32> -> vector<64x96xf32>
    %c0_13 = arith.constant 0 : index
    %c0_14 = arith.constant 0 : index
    %35 = vector.load %arg5[%c0_13, %c0_14] : memref<1x96xf32, #tpu.memory_space<vmem>>, vector<1x96xf32>
    %36 = vector.broadcast %35 : vector<1x96xf32> to vector<64x96xf32>
    %37 = arith.addf %34, %36 : vector<64x96xf32>
    %38 = vector.extract_strided_slice %37 {offsets = [0, 0], sizes = [64, 8], strides = [1, 1]} : vector<64x96xf32> to vector<64x8xf32>
    %39 = vector.extract_strided_slice %37 {offsets = [0, 32], sizes = [64, 8], strides = [1, 1]} : vector<64x96xf32> to vector<64x8xf32>
    %40 = vector.extract_strided_slice %37 {offsets = [0, 64], sizes = [64, 8], strides = [1, 1]} : vector<64x96xf32> to vector<64x8xf32>
    %41 = arith.mulf %38, %38 : vector<64x8xf32>
    %cst_15 = arith.constant dense<0.000000e+00> : vector<64xf32>
    %42 = vector.multi_reduction <add>, %41, %cst_15 [1] : vector<64x8xf32> to vector<64xf32>
    %43 = vector.shape_cast %42 : vector<64xf32> to vector<64x1xf32>
    %cst_16 = arith.constant 8.000000e+00 : f32
    %44 = vector.broadcast %cst_16 : f32 to vector<64x1xf32>
    %45 = arith.divf %43, %44 : vector<64x1xf32>
    %cst_17 = arith.constant 9.99999997E-7 : f32
    %46 = vector.broadcast %cst_17 : f32 to vector<64x1xf32>
    %47 = arith.addf %45, %46 : vector<64x1xf32>
    %48 = math.rsqrt %47 : vector<64x1xf32>
    %49 = arith.mulf %39, %39 : vector<64x8xf32>
    %cst_18 = arith.constant dense<0.000000e+00> : vector<64xf32>
    %50 = vector.multi_reduction <add>, %49, %cst_18 [1] : vector<64x8xf32> to vector<64xf32>
    %51 = vector.shape_cast %50 : vector<64xf32> to vector<64x1xf32>
    %cst_19 = arith.constant 8.000000e+00 : f32
    %52 = vector.broadcast %cst_19 : f32 to vector<64x1xf32>
    %53 = arith.divf %51, %52 : vector<64x1xf32>
    %cst_20 = arith.constant 9.99999997E-7 : f32
    %54 = vector.broadcast %cst_20 : f32 to vector<64x1xf32>
    %55 = arith.addf %53, %54 : vector<64x1xf32>
    %56 = math.rsqrt %55 : vector<64x1xf32>
    %57 = vector.broadcast %48 : vector<64x1xf32> to vector<64x8xf32>
    %58 = arith.mulf %38, %57 : vector<64x8xf32>
    %c0_21 = arith.constant 0 : index
    %c0_22 = arith.constant 0 : index
    %c0_23 = arith.constant 0 : index
    %59 = vector.load %arg6[%c0_21, %c0_22, %c0_23] : memref<4x1x8xf32, #tpu.memory_space<vmem>>, vector<1x1x8xf32>
    %60 = vector.shape_cast %59 : vector<1x1x8xf32> to vector<1x8xf32>
    %61 = vector.broadcast %60 : vector<1x8xf32> to vector<64x8xf32>
    %62 = arith.mulf %58, %61 : vector<64x8xf32>
    %63 = arith.truncf %62 : vector<64x8xf32> to vector<64x8xbf16>
    %c0_24 = arith.constant 0 : index
    %c0_25 = arith.constant 0 : index
    %c0_26 = arith.constant 0 : index
    %64 = vector.load %arg8[%c0_24, %c0_25, %c0_26] : memref<4x64x8xbf16, #tpu.memory_space<vmem>>, vector<1x64x8xbf16>
    %65 = vector.shape_cast %64 : vector<1x64x8xbf16> to vector<64x8xbf16>
    %66 = vector.shape_cast %63 : vector<64x8xbf16> to vector<1x64x8xbf16>
    tpu.vector_store %arg8[%c0_24, %c0_25, %c0_26], %66 {strides = array<i32>} : memref<4x64x8xbf16, #tpu.memory_space<vmem>>, vector<1x64x8xbf16>,
    %67 = vector.broadcast %56 : vector<64x1xf32> to vector<64x8xf32>
    %68 = arith.mulf %39, %67 : vector<64x8xf32>
    %c0_27 = arith.constant 0 : index
    %c0_28 = arith.constant 0 : index
    %c0_29 = arith.constant 0 : index
    %69 = vector.load %arg7[%c0_27, %c0_28, %c0_29] : memref<4x1x8xf32, #tpu.memory_space<vmem>>, vector<1x1x8xf32>
    %70 = vector.shape_cast %69 : vector<1x1x8xf32> to vector<1x8xf32>
    %71 = vector.broadcast %70 : vector<1x8xf32> to vector<64x8xf32>
    %72 = arith.mulf %68, %71 : vector<64x8xf32>
    %73 = arith.truncf %72 : vector<64x8xf32> to vector<64x8xbf16>
    %c0_30 = arith.constant 0 : index
    %c0_31 = arith.constant 0 : index
    %c0_32 = arith.constant 0 : index
    %74 = vector.load %arg9[%c0_30, %c0_31, %c0_32] : memref<4x64x8xbf16, #tpu.memory_space<vmem>>, vector<1x64x8xbf16>
    %75 = vector.shape_cast %74 : vector<1x64x8xbf16> to vector<64x8xbf16>
    %76 = vector.shape_cast %73 : vector<64x8xbf16> to vector<1x64x8xbf16>
    tpu.vector_store %arg9[%c0_30, %c0_31, %c0_32], %76 {strides = array<i32>} : memref<4x64x8xbf16, #tpu.memory_space<vmem>>, vector<1x64x8xbf16>,
    %77 = arith.truncf %40 : vector<64x8xf32> to vector<64x8xbf16>
    %c0_33 = arith.constant 0 : index
    %c0_34 = arith.constant 0 : index
    %c0_35 = arith.constant 0 : index
    %78 = vector.load %arg10[%c0_33, %c0_34, %c0_35] : memref<4x64x8xbf16, #tpu.memory_space<vmem>>, vector<1x64x8xbf16>
    %79 = vector.shape_cast %78 : vector<1x64x8xbf16> to vector<64x8xbf16>
    %80 = vector.shape_cast %77 : vector<64x8xbf16> to vector<1x64x8xbf16>
    tpu.vector_store %arg10[%c0_33, %c0_34, %c0_35], %80 {strides = array<i32>} : memref<4x64x8xbf16, #tpu.memory_space<vmem>>, vector<1x64x8xbf16>,
    %81 = vector.extract_strided_slice %37 {offsets = [0, 8], sizes = [64, 8], strides = [1, 1]} : vector<64x96xf32> to vector<64x8xf32>
    %82 = vector.extract_strided_slice %37 {offsets = [0, 40], sizes = [64, 8], strides = [1, 1]} : vector<64x96xf32> to vector<64x8xf32>
    %83 = vector.extract_strided_slice %37 {offsets = [0, 72], sizes = [64, 8], strides = [1, 1]} : vector<64x96xf32> to vector<64x8xf32>
    %84 = arith.mulf %81, %81 : vector<64x8xf32>
    %cst_36 = arith.constant dense<0.000000e+00> : vector<64xf32>
    %85 = vector.multi_reduction <add>, %84, %cst_36 [1] : vector<64x8xf32> to vector<64xf32>
    %86 = vector.shape_cast %85 : vector<64xf32> to vector<64x1xf32>
    %cst_37 = arith.constant 8.000000e+00 : f32
    %87 = vector.broadcast %cst_37 : f32 to vector<64x1xf32>
    %88 = arith.divf %86, %87 : vector<64x1xf32>
    %cst_38 = arith.constant 9.99999997E-7 : f32
    %89 = vector.broadcast %cst_38 : f32 to vector<64x1xf32>
    %90 = arith.addf %88, %89 : vector<64x1xf32>
    %91 = math.rsqrt %90 : vector<64x1xf32>
    %92 = arith.mulf %82, %82 : vector<64x8xf32>
    %cst_39 = arith.constant dense<0.000000e+00> : vector<64xf32>
    %93 = vector.multi_reduction <add>, %92, %cst_39 [1] : vector<64x8xf32> to vector<64xf32>
    %94 = vector.shape_cast %93 : vector<64xf32> to vector<64x1xf32>
    %cst_40 = arith.constant 8.000000e+00 : f32
    %95 = vector.broadcast %cst_40 : f32 to vector<64x1xf32>
    %96 = arith.divf %94, %95 : vector<64x1xf32>
    %cst_41 = arith.constant 9.99999997E-7 : f32
    %97 = vector.broadcast %cst_41 : f32 to vector<64x1xf32>
    %98 = arith.addf %96, %97 : vector<64x1xf32>
    %99 = math.rsqrt %98 : vector<64x1xf32>
    %100 = vector.broadcast %91 : vector<64x1xf32> to vector<64x8xf32>
    %101 = arith.mulf %81, %100 : vector<64x8xf32>
    %c1 = arith.constant 1 : index
    %c0_42 = arith.constant 0 : index
    %c0_43 = arith.constant 0 : index
    %102 = vector.load %arg6[%c1, %c0_42, %c0_43] : memref<4x1x8xf32, #tpu.memory_space<vmem>>, vector<1x1x8xf32>
    %103 = vector.shape_cast %102 : vector<1x1x8xf32> to vector<1x8xf32>
    %104 = vector.broadcast %103 : vector<1x8xf32> to vector<64x8xf32>
    %105 = arith.mulf %101, %104 : vector<64x8xf32>
    %106 = arith.truncf %105 : vector<64x8xf32> to vector<64x8xbf16>
    %c1_44 = arith.constant 1 : index
    %c0_45 = arith.constant 0 : index
    %c0_46 = arith.constant 0 : index
    %107 = vector.load %arg8[%c1_44, %c0_45, %c0_46] : memref<4x64x8xbf16, #tpu.memory_space<vmem>>, vector<1x64x8xbf16>
    %108 = vector.shape_cast %107 : vector<1x64x8xbf16> to vector<64x8xbf16>
    %109 = vector.shape_cast %106 : vector<64x8xbf16> to vector<1x64x8xbf16>
    tpu.vector_store %arg8[%c1_44, %c0_45, %c0_46], %109 {strides = array<i32>} : memref<4x64x8xbf16, #tpu.memory_space<vmem>>, vector<1x64x8xbf16>,
    %110 = vector.broadcast %99 : vector<64x1xf32> to vector<64x8xf32>
    %111 = arith.mulf %82, %110 : vector<64x8xf32>
    %c1_47 = arith.constant 1 : index
    %c0_48 = arith.constant 0 : index
    %c0_49 = arith.constant 0 : index
    %112 = vector.load %arg7[%c1_47, %c0_48, %c0_49] : memref<4x1x8xf32, #tpu.memory_space<vmem>>, vector<1x1x8xf32>
    %113 = vector.shape_cast %112 : vector<1x1x8xf32> to vector<1x8xf32>
    %114 = vector.broadcast %113 : vector<1x8xf32> to vector<64x8xf32>
    %115 = arith.mulf %111, %114 : vector<64x8xf32>
    %116 = arith.truncf %115 : vector<64x8xf32> to vector<64x8xbf16>
    %c1_50 = arith.constant 1 : index
    %c0_51 = arith.constant 0 : index
    %c0_52 = arith.constant 0 : index
    %117 = vector.load %arg9[%c1_50, %c0_51, %c0_52] : memref<4x64x8xbf16, #tpu.memory_space<vmem>>, vector<1x64x8xbf16>
    %118 = vector.shape_cast %117 : vector<1x64x8xbf16> to vector<64x8xbf16>
    %119 = vector.shape_cast %116 : vector<64x8xbf16> to vector<1x64x8xbf16>
    tpu.vector_store %arg9[%c1_50, %c0_51, %c0_52], %119 {strides = array<i32>} : memref<4x64x8xbf16, #tpu.memory_space<vmem>>, vector<1x64x8xbf16>,
    %120 = arith.truncf %83 : vector<64x8xf32> to vector<64x8xbf16>
    %c1_53 = arith.constant 1 : index
    %c0_54 = arith.constant 0 : index
    %c0_55 = arith.constant 0 : index
    %121 = vector.load %arg10[%c1_53, %c0_54, %c0_55] : memref<4x64x8xbf16, #tpu.memory_space<vmem>>, vector<1x64x8xbf16>
    %122 = vector.shape_cast %121 : vector<1x64x8xbf16> to vector<64x8xbf16>
    %123 = vector.shape_cast %120 : vector<64x8xbf16> to vector<1x64x8xbf16>
    tpu.vector_store %arg10[%c1_53, %c0_54, %c0_55], %123 {strides = array<i32>} : memref<4x64x8xbf16, #tpu.memory_space<vmem>>, vector<1x64x8xbf16>,
    %124 = vector.extract_strided_slice %37 {offsets = [0, 16], sizes = [64, 8], strides = [1, 1]} : vector<64x96xf32> to vector<64x8xf32>
    %125 = vector.extract_strided_slice %37 {offsets = [0, 48], sizes = [64, 8], strides = [1, 1]} : vector<64x96xf32> to vector<64x8xf32>
    %126 = vector.extract_strided_slice %37 {offsets = [0, 80], sizes = [64, 8], strides = [1, 1]} : vector<64x96xf32> to vector<64x8xf32>
    %127 = arith.mulf %124, %124 : vector<64x8xf32>
    %cst_56 = arith.constant dense<0.000000e+00> : vector<64xf32>
    %128 = vector.multi_reduction <add>, %127, %cst_56 [1] : vector<64x8xf32> to vector<64xf32>
    %129 = vector.shape_cast %128 : vector<64xf32> to vector<64x1xf32>
    %cst_57 = arith.constant 8.000000e+00 : f32
    %130 = vector.broadcast %cst_57 : f32 to vector<64x1xf32>
    %131 = arith.divf %129, %130 : vector<64x1xf32>
    %cst_58 = arith.constant 9.99999997E-7 : f32
    %132 = vector.broadcast %cst_58 : f32 to vector<64x1xf32>
    %133 = arith.addf %131, %132 : vector<64x1xf32>
    %134 = math.rsqrt %133 : vector<64x1xf32>
    %135 = arith.mulf %125, %125 : vector<64x8xf32>
    %cst_59 = arith.constant dense<0.000000e+00> : vector<64xf32>
    %136 = vector.multi_reduction <add>, %135, %cst_59 [1] : vector<64x8xf32> to vector<64xf32>
    %137 = vector.shape_cast %136 : vector<64xf32> to vector<64x1xf32>
    %cst_60 = arith.constant 8.000000e+00 : f32
    %138 = vector.broadcast %cst_60 : f32 to vector<64x1xf32>
    %139 = arith.divf %137, %138 : vector<64x1xf32>
    %cst_61 = arith.constant 9.99999997E-7 : f32
    %140 = vector.broadcast %cst_61 : f32 to vector<64x1xf32>
    %141 = arith.addf %139, %140 : vector<64x1xf32>
    %142 = math.rsqrt %141 : vector<64x1xf32>
    %143 = vector.broadcast %134 : vector<64x1xf32> to vector<64x8xf32>
    %144 = arith.mulf %124, %143 : vector<64x8xf32>
    %c2 = arith.constant 2 : index
    %c0_62 = arith.constant 0 : index
    %c0_63 = arith.constant 0 : index
    %145 = vector.load %arg6[%c2, %c0_62, %c0_63] : memref<4x1x8xf32, #tpu.memory_space<vmem>>, vector<1x1x8xf32>
    %146 = vector.shape_cast %145 : vector<1x1x8xf32> to vector<1x8xf32>
    %147 = vector.broadcast %146 : vector<1x8xf32> to vector<64x8xf32>
    %148 = arith.mulf %144, %147 : vector<64x8xf32>
    %149 = arith.truncf %148 : vector<64x8xf32> to vector<64x8xbf16>
    %c2_64 = arith.constant 2 : index
    %c0_65 = arith.constant 0 : index
    %c0_66 = arith.constant 0 : index
    %150 = vector.load %arg8[%c2_64, %c0_65, %c0_66] : memref<4x64x8xbf16, #tpu.memory_space<vmem>>, vector<1x64x8xbf16>
    %151 = vector.shape_cast %150 : vector<1x64x8xbf16> to vector<64x8xbf16>
    %152 = vector.shape_cast %149 : vector<64x8xbf16> to vector<1x64x8xbf16>
    tpu.vector_store %arg8[%c2_64, %c0_65, %c0_66], %152 {strides = array<i32>} : memref<4x64x8xbf16, #tpu.memory_space<vmem>>, vector<1x64x8xbf16>,
    %153 = vector.broadcast %142 : vector<64x1xf32> to vector<64x8xf32>
    %154 = arith.mulf %125, %153 : vector<64x8xf32>
    %c2_67 = arith.constant 2 : index
    %c0_68 = arith.constant 0 : index
    %c0_69 = arith.constant 0 : index
    %155 = vector.load %arg7[%c2_67, %c0_68, %c0_69] : memref<4x1x8xf32, #tpu.memory_space<vmem>>, vector<1x1x8xf32>
    %156 = vector.shape_cast %155 : vector<1x1x8xf32> to vector<1x8xf32>
    %157 = vector.broadcast %156 : vector<1x8xf32> to vector<64x8xf32>
    %158 = arith.mulf %154, %157 : vector<64x8xf32>
    %159 = arith.truncf %158 : vector<64x8xf32> to vector<64x8xbf16>
    %c2_70 = arith.constant 2 : index
    %c0_71 = arith.constant 0 : index
    %c0_72 = arith.constant 0 : index
    %160 = vector.load %arg9[%c2_70, %c0_71, %c0_72] : memref<4x64x8xbf16, #tpu.memory_space<vmem>>, vector<1x64x8xbf16>
    %161 = vector.shape_cast %160 : vector<1x64x8xbf16> to vector<64x8xbf16>
    %162 = vector.shape_cast %159 : vector<64x8xbf16> to vector<1x64x8xbf16>
    tpu.vector_store %arg9[%c2_70, %c0_71, %c0_72], %162 {strides = array<i32>} : memref<4x64x8xbf16, #tpu.memory_space<vmem>>, vector<1x64x8xbf16>,
    %163 = arith.truncf %126 : vector<64x8xf32> to vector<64x8xbf16>
    %c2_73 = arith.constant 2 : index
    %c0_74 = arith.constant 0 : index
    %c0_75 = arith.constant 0 : index
    %164 = vector.load %arg10[%c2_73, %c0_74, %c0_75] : memref<4x64x8xbf16, #tpu.memory_space<vmem>>, vector<1x64x8xbf16>
    %165 = vector.shape_cast %164 : vector<1x64x8xbf16> to vector<64x8xbf16>
    %166 = vector.shape_cast %163 : vector<64x8xbf16> to vector<1x64x8xbf16>
    tpu.vector_store %arg10[%c2_73, %c0_74, %c0_75], %166 {strides = array<i32>} : memref<4x64x8xbf16, #tpu.memory_space<vmem>>, vector<1x64x8xbf16>,
    %167 = vector.extract_strided_slice %37 {offsets = [0, 24], sizes = [64, 8], strides = [1, 1]} : vector<64x96xf32> to vector<64x8xf32>
    %168 = vector.extract_strided_slice %37 {offsets = [0, 56], sizes = [64, 8], strides = [1, 1]} : vector<64x96xf32> to vector<64x8xf32>
    %169 = vector.extract_strided_slice %37 {offsets = [0, 88], sizes = [64, 8], strides = [1, 1]} : vector<64x96xf32> to vector<64x8xf32>
    %170 = arith.mulf %167, %167 : vector<64x8xf32>
    %cst_76 = arith.constant dense<0.000000e+00> : vector<64xf32>
    %171 = vector.multi_reduction <add>, %170, %cst_76 [1] : vector<64x8xf32> to vector<64xf32>
    %172 = vector.shape_cast %171 : vector<64xf32> to vector<64x1xf32>
    %cst_77 = arith.constant 8.000000e+00 : f32
    %173 = vector.broadcast %cst_77 : f32 to vector<64x1xf32>
    %174 = arith.divf %172, %173 : vector<64x1xf32>
    %cst_78 = arith.constant 9.99999997E-7 : f32
    %175 = vector.broadcast %cst_78 : f32 to vector<64x1xf32>
    %176 = arith.addf %174, %175 : vector<64x1xf32>
    %177 = math.rsqrt %176 : vector<64x1xf32>
    %178 = arith.mulf %168, %168 : vector<64x8xf32>
    %cst_79 = arith.constant dense<0.000000e+00> : vector<64xf32>
    %179 = vector.multi_reduction <add>, %178, %cst_79 [1] : vector<64x8xf32> to vector<64xf32>
    %180 = vector.shape_cast %179 : vector<64xf32> to vector<64x1xf32>
    %cst_80 = arith.constant 8.000000e+00 : f32
    %181 = vector.broadcast %cst_80 : f32 to vector<64x1xf32>
    %182 = arith.divf %180, %181 : vector<64x1xf32>
    %cst_81 = arith.constant 9.99999997E-7 : f32
    %183 = vector.broadcast %cst_81 : f32 to vector<64x1xf32>
    %184 = arith.addf %182, %183 : vector<64x1xf32>
    %185 = math.rsqrt %184 : vector<64x1xf32>
    %186 = vector.broadcast %177 : vector<64x1xf32> to vector<64x8xf32>
    %187 = arith.mulf %167, %186 : vector<64x8xf32>
    %c3 = arith.constant 3 : index
    %c0_82 = arith.constant 0 : index
    %c0_83 = arith.constant 0 : index
    %188 = vector.load %arg6[%c3, %c0_82, %c0_83] : memref<4x1x8xf32, #tpu.memory_space<vmem>>, vector<1x1x8xf32>
    %189 = vector.shape_cast %188 : vector<1x1x8xf32> to vector<1x8xf32>
    %190 = vector.broadcast %189 : vector<1x8xf32> to vector<64x8xf32>
    %191 = arith.mulf %187, %190 : vector<64x8xf32>
    %192 = arith.truncf %191 : vector<64x8xf32> to vector<64x8xbf16>
    %c3_84 = arith.constant 3 : index
    %c0_85 = arith.constant 0 : index
    %c0_86 = arith.constant 0 : index
    %193 = vector.load %arg8[%c3_84, %c0_85, %c0_86] : memref<4x64x8xbf16, #tpu.memory_space<vmem>>, vector<1x64x8xbf16>
    %194 = vector.shape_cast %193 : vector<1x64x8xbf16> to vector<64x8xbf16>
    %195 = vector.shape_cast %192 : vector<64x8xbf16> to vector<1x64x8xbf16>
    tpu.vector_store %arg8[%c3_84, %c0_85, %c0_86], %195 {strides = array<i32>} : memref<4x64x8xbf16, #tpu.memory_space<vmem>>, vector<1x64x8xbf16>,
    %196 = vector.broadcast %185 : vector<64x1xf32> to vector<64x8xf32>
    %197 = arith.mulf %168, %196 : vector<64x8xf32>
    %c3_87 = arith.constant 3 : index
    %c0_88 = arith.constant 0 : index
    %c0_89 = arith.constant 0 : index
    %198 = vector.load %arg7[%c3_87, %c0_88, %c0_89] : memref<4x1x8xf32, #tpu.memory_space<vmem>>, vector<1x1x8xf32>
    %199 = vector.shape_cast %198 : vector<1x1x8xf32> to vector<1x8xf32>
    %200 = vector.broadcast %199 : vector<1x8xf32> to vector<64x8xf32>
    %201 = arith.mulf %197, %200 : vector<64x8xf32>
    %202 = arith.truncf %201 : vector<64x8xf32> to vector<64x8xbf16>
    %c3_90 = arith.constant 3 : index
    %c0_91 = arith.constant 0 : index
    %c0_92 = arith.constant 0 : index
    %203 = vector.load %arg9[%c3_90, %c0_91, %c0_92] : memref<4x64x8xbf16, #tpu.memory_space<vmem>>, vector<1x64x8xbf16>
    %204 = vector.shape_cast %203 : vector<1x64x8xbf16> to vector<64x8xbf16>
    %205 = vector.shape_cast %202 : vector<64x8xbf16> to vector<1x64x8xbf16>
    tpu.vector_store %arg9[%c3_90, %c0_91, %c0_92], %205 {strides = array<i32>} : memref<4x64x8xbf16, #tpu.memory_space<vmem>>, vector<1x64x8xbf16>,
    %206 = arith.truncf %169 : vector<64x8xf32> to vector<64x8xbf16>
    %c3_93 = arith.constant 3 : index
    %c0_94 = arith.constant 0 : index
    %c0_95 = arith.constant 0 : index
    %207 = vector.load %arg10[%c3_93, %c0_94, %c0_95] : memref<4x64x8xbf16, #tpu.memory_space<vmem>>, vector<1x64x8xbf16>
    %208 = vector.shape_cast %207 : vector<1x64x8xbf16> to vector<64x8xbf16>
    %209 = vector.shape_cast %206 : vector<64x8xbf16> to vector<1x64x8xbf16>
    tpu.vector_store %arg10[%c3_93, %c0_94, %c0_95], %209 {strides = array<i32>} : memref<4x64x8xbf16, #tpu.memory_space<vmem>>, vector<1x64x8xbf16>,
    return
  }
  func.func @transform_0(%arg0: i32) -> (i32, i32) {
    %c0_i32 = arith.constant 0 : i32
    %c0_i32_0 = arith.constant 0 : i32
    return %arg0, %c0_i32 : i32, i32
  }
  func.func @transform_1(%arg0: i32) -> (i32, i32) {
    %c0_i32 = arith.constant 0 : i32
    %c0_i32_0 = arith.constant 0 : i32
    return %arg0, %c0_i32 : i32, i32
  }
  func.func @transform_2(%arg0: i32) -> (i32, i32) {
    %c0_i32 = arith.constant 0 : i32
    %c0_i32_0 = arith.constant 0 : i32
    %c0_i32_1 = arith.constant 0 : i32
    return %c0_i32, %c0_i32_0 : i32, i32
  }
  func.func @transform_3(%arg0: i32) -> (i32, i32) {
    %c0_i32 = arith.constant 0 : i32
    %c0_i32_0 = arith.constant 0 : i32
    %c0_i32_1 = arith.constant 0 : i32
    return %c0_i32, %c0_i32_0 : i32, i32
  }
  func.func @transform_4(%arg0: i32) -> (i32, i32) {
    %c0_i32 = arith.constant 0 : i32
    %c0_i32_0 = arith.constant 0 : i32
    %c0_i32_1 = arith.constant 0 : i32
    return %c0_i32, %c0_i32_0 : i32, i32
  }
  func.func @transform_5(%arg0: i32) -> (i32, i32, i32) {
    %c0_i32 = arith.constant 0 : i32
    %c0_i32_0 = arith.constant 0 : i32
    %c0_i32_1 = arith.constant 0 : i32
    %c0_i32_2 = arith.constant 0 : i32
    return %c0_i32, %c0_i32_0, %c0_i32_1 : i32, i32, i32
  }
  func.func @transform_6(%arg0: i32) -> (i32, i32, i32) {
    %c0_i32 = arith.constant 0 : i32
    %c0_i32_0 = arith.constant 0 : i32
    %c0_i32_1 = arith.constant 0 : i32
    %c0_i32_2 = arith.constant 0 : i32
    return %c0_i32, %c0_i32_0, %c0_i32_1 : i32, i32, i32
  }
  func.func @transform_7(%arg0: i32) -> (i32, i32, i32) {
    %c0_i32 = arith.constant 0 : i32
    %c0_i32_0 = arith.constant 0 : i32
    %c0_i32_1 = arith.constant 0 : i32
    return %c0_i32, %arg0, %c0_i32_0 : i32, i32, i32
  }
  func.func @transform_8(%arg0: i32) -> (i32, i32, i32) {
    %c0_i32 = arith.constant 0 : i32
    %c0_i32_0 = arith.constant 0 : i32
    %c0_i32_1 = arith.constant 0 : i32
    return %c0_i32, %arg0, %c0_i32_0 : i32, i32, i32
  }
  func.func @transform_9(%arg0: i32) -> (i32, i32, i32) {
    %c0_i32 = arith.constant 0 : i32
    %c0_i32_0 = arith.constant 0 : i32
    %c0_i32_1 = arith.constant 0 : i32
    return %c0_i32, %arg0, %c0_i32_0 : i32, i32, i32
  }
}

module attributes {stable_mosaic.version = 11 : i64} {
  func.func @_ff_kernel(%arg0: i32, %arg1: i32, %arg2: memref<64x32xbf16, #tpu.memory_space<vmem>>, %arg3: memref<1x32xf32, #tpu.memory_space<vmem>>, %arg4: memref<1x32xf32, #tpu.memory_space<vmem>>, %arg5: memref<32x128xbf16, #tpu.memory_space<vmem>>, %arg6: memref<1x128xf32, #tpu.memory_space<vmem>>, %arg7: memref<32x128xbf16, #tpu.memory_space<vmem>>, %arg8: memref<1x128xf32, #tpu.memory_space<vmem>>, %arg9: memref<128x32xbf16, #tpu.memory_space<vmem>>, %arg10: memref<1x32xf32, #tpu.memory_space<vmem>>, %arg11: memref<64x32xbf16, #tpu.memory_space<vmem>>, %arg12: memref<64x32xbf16, #tpu.memory_space<vmem>>, %arg13: memref<64x32xf32, #tpu.memory_space<vmem>>) attributes {dimension_semantics = [#tpu.dimension_semantics<parallel>, #tpu.dimension_semantics<arbitrary>], iteration_bounds = array<i64: 1, 1>, scalar_prefetch = 0 : i64, scratch_operands = 2 : i64, tpu.core_type = #tpu.core_type<tc>, window_params = [{transform_indices = @transform_0, window_bounds = array<i64: 64, 32>}, {pipeline_mode = #tpu.pipeline_mode<synchronous>, transform_indices = @transform_1, window_bounds = array<i64: 1, 32>}, {pipeline_mode = #tpu.pipeline_mode<synchronous>, transform_indices = @transform_2, window_bounds = array<i64: 1, 32>}, {transform_indices = @transform_3, window_bounds = array<i64: 32, 128>}, {transform_indices = @transform_4, window_bounds = array<i64: 1, 128>}, {transform_indices = @transform_5, window_bounds = array<i64: 32, 128>}, {transform_indices = @transform_6, window_bounds = array<i64: 1, 128>}, {transform_indices = @transform_7, window_bounds = array<i64: 128, 32>}, {pipeline_mode = #tpu.pipeline_mode<synchronous>, transform_indices = @transform_8, window_bounds = array<i64: 1, 32>}, {transform_indices = @transform_9, window_bounds = array<i64: 64, 32>}]} {
    %c0_i32 = arith.constant 0 : i32
    %0 = arith.cmpi eq, %arg1, %c0_i32 : i32
    %1 = arith.extui %0 : i1 to i32
    %c0_i32_0 = arith.constant 0 : i32
    %2 = arith.cmpi ne, %1, %c0_i32_0 : i32
    scf.if %2 {
      %c0_24 = arith.constant 0 : index
      %c0_25 = arith.constant 0 : index
      %37 = vector.load %arg2[%c0_24, %c0_25] : memref<64x32xbf16, #tpu.memory_space<vmem>>, vector<64x32xbf16>
      %38 = arith.extf %37 : vector<64x32xbf16> to vector<64x32xf32>
      %cst_26 = arith.constant dense<0.000000e+00> : vector<64xf32>
      %39 = vector.multi_reduction <add>, %38, %cst_26 [1] : vector<64x32xf32> to vector<64xf32>
      %40 = vector.shape_cast %39 : vector<64xf32> to vector<64x1xf32>
      %cst_27 = arith.constant 3.200000e+01 : f32
      %41 = vector.broadcast %cst_27 : f32 to vector<64x1xf32>
      %42 = arith.divf %40, %41 : vector<64x1xf32>
      %43 = vector.broadcast %42 : vector<64x1xf32> to vector<64x32xf32>
      %44 = arith.subf %38, %43 : vector<64x32xf32>
      %45 = arith.mulf %44, %44 : vector<64x32xf32>
      %cst_28 = arith.constant dense<0.000000e+00> : vector<64xf32>
      %46 = vector.multi_reduction <add>, %45, %cst_28 [1] : vector<64x32xf32> to vector<64xf32>
      %47 = vector.shape_cast %46 : vector<64xf32> to vector<64x1xf32>
      %cst_29 = arith.constant 3.200000e+01 : f32
      %48 = vector.broadcast %cst_29 : f32 to vector<64x1xf32>
      %49 = arith.divf %47, %48 : vector<64x1xf32>
      %50 = vector.broadcast %42 : vector<64x1xf32> to vector<64x32xf32>
      %51 = arith.subf %38, %50 : vector<64x32xf32>
      %cst_30 = arith.constant 9.99999974E-6 : f32
      %52 = vector.broadcast %cst_30 : f32 to vector<64x1xf32>
      %53 = arith.addf %49, %52 : vector<64x1xf32>
      %54 = math.rsqrt %53 : vector<64x1xf32>
      %55 = vector.broadcast %54 : vector<64x1xf32> to vector<64x32xf32>
      %56 = arith.mulf %51, %55 : vector<64x32xf32>
      %c0_31 = arith.constant 0 : index
      %c0_32 = arith.constant 0 : index
      %57 = vector.load %arg3[%c0_31, %c0_32] : memref<1x32xf32, #tpu.memory_space<vmem>>, vector<1x32xf32>
      %58 = vector.broadcast %57 : vector<1x32xf32> to vector<64x32xf32>
      %59 = arith.mulf %56, %58 : vector<64x32xf32>
      %c0_33 = arith.constant 0 : index
      %c0_34 = arith.constant 0 : index
      %60 = vector.load %arg4[%c0_33, %c0_34] : memref<1x32xf32, #tpu.memory_space<vmem>>, vector<1x32xf32>
      %61 = vector.broadcast %60 : vector<1x32xf32> to vector<64x32xf32>
      %62 = arith.addf %59, %61 : vector<64x32xf32>
      %63 = arith.truncf %62 : vector<64x32xf32> to vector<64x32xbf16>
      %c0_35 = arith.constant 0 : index
      %c0_36 = arith.constant 0 : index
      %64 = vector.load %arg12[%c0_35, %c0_36] : memref<64x32xbf16, #tpu.memory_space<vmem>>, vector<64x32xbf16>
      tpu.vector_store %arg12[%c0_35, %c0_36], %63 {strides = array<i32>} : memref<64x32xbf16, #tpu.memory_space<vmem>>, vector<64x32xbf16>,
      %cst_37 = arith.constant 0.000000e+00 : f32
      %65 = vector.broadcast %cst_37 : f32 to vector<64x32xf32>
      %c0_38 = arith.constant 0 : index
      %c0_39 = arith.constant 0 : index
      %66 = vector.load %arg13[%c0_38, %c0_39] : memref<64x32xf32, #tpu.memory_space<vmem>>, vector<64x32xf32>
      tpu.vector_store %arg13[%c0_38, %c0_39], %65 {strides = array<i32>} : memref<64x32xf32, #tpu.memory_space<vmem>>, vector<64x32xf32>,
    } else {
    }
    %c0 = arith.constant 0 : index
    %c0_1 = arith.constant 0 : index
    %3 = vector.load %arg12[%c0, %c0_1] : memref<64x32xbf16, #tpu.memory_space<vmem>>, vector<64x32xbf16>
    %c0_2 = arith.constant 0 : index
    %c0_3 = arith.constant 0 : index
    %4 = vector.load %arg5[%c0_2, %c0_3] : memref<32x128xbf16, #tpu.memory_space<vmem>>, vector<32x128xbf16>
    %cst = arith.constant dense<0.000000e+00> : vector<64x128xf32>
    %5 = tpu.matmul %3, %4, %cst {dimension_numbers = #tpu.dot_dimension_numbers<[1], [0], [0], [1], [0, 0, 1, 1], [], []>} : vector<64x32xbf16>, vector<32x128xbf16>, vector<64x128xf32> -> vector<64x128xf32>
    %c0_4 = arith.constant 0 : index
    %c0_5 = arith.constant 0 : index
    %6 = vector.load %arg6[%c0_4, %c0_5] : memref<1x128xf32, #tpu.memory_space<vmem>>, vector<1x128xf32>
    %7 = vector.broadcast %6 : vector<1x128xf32> to vector<64x128xf32>
    %8 = arith.addf %5, %7 : vector<64x128xf32>
    %c0_6 = arith.constant 0 : index
    %c0_7 = arith.constant 0 : index
    %9 = vector.load %arg7[%c0_6, %c0_7] : memref<32x128xbf16, #tpu.memory_space<vmem>>, vector<32x128xbf16>
    %cst_8 = arith.constant dense<0.000000e+00> : vector<64x128xf32>
    %10 = tpu.matmul %3, %9, %cst_8 {dimension_numbers = #tpu.dot_dimension_numbers<[1], [0], [0], [1], [0, 0, 1, 1], [], []>} : vector<64x32xbf16>, vector<32x128xbf16>, vector<64x128xf32> -> vector<64x128xf32>
    %c0_9 = arith.constant 0 : index
    %c0_10 = arith.constant 0 : index
    %11 = vector.load %arg8[%c0_9, %c0_10] : memref<1x128xf32, #tpu.memory_space<vmem>>, vector<1x128xf32>
    %12 = vector.broadcast %11 : vector<1x128xf32> to vector<64x128xf32>
    %13 = arith.addf %10, %12 : vector<64x128xf32>
    %c0_11 = arith.constant 0 : index
    %c0_12 = arith.constant 0 : index
    %14 = vector.load %arg13[%c0_11, %c0_12] : memref<64x32xf32, #tpu.memory_space<vmem>>, vector<64x32xf32>
    %cst_13 = arith.constant 5.000000e-01 : f32
    %15 = vector.broadcast %cst_13 : f32 to vector<64x128xf32>
    %16 = arith.mulf %15, %13 : vector<64x128xf32>
    %cst_14 = arith.constant 4.471500e-02 : f32
    %17 = vector.broadcast %cst_14 : f32 to vector<64x128xf32>
    %18 = arith.mulf %17, %13 : vector<64x128xf32>
    %19 = arith.mulf %18, %13 : vector<64x128xf32>
    %20 = arith.mulf %19, %13 : vector<64x128xf32>
    %21 = arith.addf %13, %20 : vector<64x128xf32>
    %cst_15 = arith.constant 0.797884583 : f32
    %22 = vector.broadcast %cst_15 : f32 to vector<64x128xf32>
    %23 = arith.mulf %22, %21 : vector<64x128xf32>
    %24 = math.tanh %23 : vector<64x128xf32>
    %cst_16 = arith.constant 1.000000e+00 : f32
    %25 = vector.broadcast %cst_16 : f32 to vector<64x128xf32>
    %26 = arith.addf %25, %24 : vector<64x128xf32>
    %27 = arith.mulf %16, %26 : vector<64x128xf32>
    %28 = arith.mulf %8, %27 : vector<64x128xf32>
    %29 = arith.truncf %28 : vector<64x128xf32> to vector<64x128xbf16>
    %c0_17 = arith.constant 0 : index
    %c0_18 = arith.constant 0 : index
    %30 = vector.load %arg9[%c0_17, %c0_18] : memref<128x32xbf16, #tpu.memory_space<vmem>>, vector<128x32xbf16>
    %cst_19 = arith.constant dense<0.000000e+00> : vector<64x32xf32>
    %31 = tpu.matmul %29, %30, %cst_19 {dimension_numbers = #tpu.dot_dimension_numbers<[1], [0], [0], [1], [0, 0, 1, 1], [], []>} : vector<64x128xbf16>, vector<128x32xbf16>, vector<64x32xf32> -> vector<64x32xf32>
    %32 = arith.addf %14, %31 : vector<64x32xf32>
    %c0_20 = arith.constant 0 : index
    %c0_21 = arith.constant 0 : index
    %33 = vector.load %arg13[%c0_20, %c0_21] : memref<64x32xf32, #tpu.memory_space<vmem>>, vector<64x32xf32>
    tpu.vector_store %arg13[%c0_20, %c0_21], %32 {strides = array<i32>} : memref<64x32xf32, #tpu.memory_space<vmem>>, vector<64x32xf32>,
    %c0_i32_22 = arith.constant 0 : i32
    %34 = arith.cmpi eq, %arg1, %c0_i32_22 : i32
    %35 = arith.extui %34 : i1 to i32
    %c0_i32_23 = arith.constant 0 : i32
    %36 = arith.cmpi ne, %35, %c0_i32_23 : i32
    scf.if %36 {
      %c0_24 = arith.constant 0 : index
      %c0_25 = arith.constant 0 : index
      %37 = vector.load %arg2[%c0_24, %c0_25] : memref<64x32xbf16, #tpu.memory_space<vmem>>, vector<64x32xbf16>
      %38 = arith.extf %37 : vector<64x32xbf16> to vector<64x32xf32>
      %c0_26 = arith.constant 0 : index
      %c0_27 = arith.constant 0 : index
      %39 = vector.load %arg13[%c0_26, %c0_27] : memref<64x32xf32, #tpu.memory_space<vmem>>, vector<64x32xf32>
      %40 = arith.addf %38, %39 : vector<64x32xf32>
      %c0_28 = arith.constant 0 : index
      %c0_29 = arith.constant 0 : index
      %41 = vector.load %arg10[%c0_28, %c0_29] : memref<1x32xf32, #tpu.memory_space<vmem>>, vector<1x32xf32>
      %42 = vector.broadcast %41 : vector<1x32xf32> to vector<64x32xf32>
      %43 = arith.addf %40, %42 : vector<64x32xf32>
      %44 = arith.truncf %43 : vector<64x32xf32> to vector<64x32xbf16>
      %c0_30 = arith.constant 0 : index
      %c0_31 = arith.constant 0 : index
      %45 = vector.load %arg11[%c0_30, %c0_31] : memref<64x32xbf16, #tpu.memory_space<vmem>>, vector<64x32xbf16>
      tpu.vector_store %arg11[%c0_30, %c0_31], %44 {strides = array<i32>} : memref<64x32xbf16, #tpu.memory_space<vmem>>, vector<64x32xbf16>,
    } else {
    }
    return
  }
  func.func @transform_0(%arg0: i32, %arg1: i32) -> (i32, i32) {
    %c0_i32 = arith.constant 0 : i32
    %c0_i32_0 = arith.constant 0 : i32
    return %arg0, %c0_i32 : i32, i32
  }
  func.func @transform_1(%arg0: i32, %arg1: i32) -> (i32, i32) {
    %c0_i32 = arith.constant 0 : i32
    %c0_i32_0 = arith.constant 0 : i32
    %c0_i32_1 = arith.constant 0 : i32
    return %c0_i32, %c0_i32_0 : i32, i32
  }
  func.func @transform_2(%arg0: i32, %arg1: i32) -> (i32, i32) {
    %c0_i32 = arith.constant 0 : i32
    %c0_i32_0 = arith.constant 0 : i32
    %c0_i32_1 = arith.constant 0 : i32
    return %c0_i32, %c0_i32_0 : i32, i32
  }
  func.func @transform_3(%arg0: i32, %arg1: i32) -> (i32, i32) {
    %c0_i32 = arith.constant 0 : i32
    %c0_i32_0 = arith.constant 0 : i32
    return %c0_i32, %arg1 : i32, i32
  }
  func.func @transform_4(%arg0: i32, %arg1: i32) -> (i32, i32) {
    %c0_i32 = arith.constant 0 : i32
    %c0_i32_0 = arith.constant 0 : i32
    return %c0_i32, %arg1 : i32, i32
  }
  func.func @transform_5(%arg0: i32, %arg1: i32) -> (i32, i32) {
    %c0_i32 = arith.constant 0 : i32
    %c0_i32_0 = arith.constant 0 : i32
    return %c0_i32, %arg1 : i32, i32
  }
  func.func @transform_6(%arg0: i32, %arg1: i32) -> (i32, i32) {
    %c0_i32 = arith.constant 0 : i32
    %c0_i32_0 = arith.constant 0 : i32
    return %c0_i32, %arg1 : i32, i32
  }
  func.func @transform_7(%arg0: i32, %arg1: i32) -> (i32, i32) {
    %c0_i32 = arith.constant 0 : i32
    %c0_i32_0 = arith.constant 0 : i32
    return %arg1, %c0_i32 : i32, i32
  }
  func.func @transform_8(%arg0: i32, %arg1: i32) -> (i32, i32) {
    %c0_i32 = arith.constant 0 : i32
    %c0_i32_0 = arith.constant 0 : i32
    %c0_i32_1 = arith.constant 0 : i32
    return %c0_i32, %c0_i32_0 : i32, i32
  }
  func.func @transform_9(%arg0: i32, %arg1: i32) -> (i32, i32) {
    %c0_i32 = arith.constant 0 : i32
    %c0_i32_0 = arith.constant 0 : i32
    return %arg0, %c0_i32 : i32, i32
  }
}

</mosaic_0001>

<llo_original>
// kernel: custom-call.2
$region0: #{custom-call.2}
  %s0 = inlined_call_operand.vmem [shape: u32[64], index: 0, kind: output, shape index: {}]

// kernel: dit_layer_forward.9
$region0: #{dit_layer_forward.9}
  #allocation0 [shape = 'u32[]', space=smem, size = 0x4, offset = 0x4, fixed_abs, tag = 'smem constant byte address 0x4 - core index']
  #allocation1 [shape = 'u32[144,128]{1,0:T(1,128)}', space=vmem, size = 0x12000, scoped, tag = 'internal scratch']
  #allocation2 [shape = 'bf16[64,32]{1,0:T(16,128)(2,1)}', space=vmem, size = 0x4000, scoped, tag = 'scratch operand']
  #allocation3 [shape = 'f32[64,32]{1,0:T(8,128)}', space=vmem, size = 0x8000, scoped, tag = 'scratch operand']
  %s0 = inlined_call_operand.vmem [shape: bf16[64,32], index: 0, kind: input, shape index: {}]
  %s1 = inlined_call_operand.vmem [shape: f32[1,32], index: 1, kind: input, shape index: {}]
  %s2 = inlined_call_operand.vmem [shape: f32[1,32], index: 2, kind: input, shape index: {}]
  %s3 = inlined_call_operand.vmem [shape: bf16[32,128], index: 3, kind: input, shape index: {}]
  %s4 = inlined_call_operand.vmem [shape: f32[1,128], index: 4, kind: input, shape index: {}]
  %s5 = inlined_call_operand.vmem [shape: bf16[32,128], index: 5, kind: input, shape index: {}]
  %s6 = inlined_call_operand.vmem [shape: f32[1,128], index: 6, kind: input, shape index: {}]
  %s7 = inlined_call_operand.vmem [shape: bf16[128,32], index: 7, kind: input, shape index: {}]
  %s8 = inlined_call_operand.vmem [shape: f32[1,32], index: 8, kind: input, shape index: {}]
  %s9 = inlined_call_operand.vmem [shape: bf16[64,32], index: 9, kind: output, shape index: {}]
  %s10 = sld [smem:[#allocation0]]
  $region54: #{dit_layer_forward.9} parent=0
    _
  %s12 = ssub.s32 1, %s10
  %s13 = scalar_select 0, %s12, %s10
  // Predicated region
  $region2: #{dit_layer_forward.9} parent=0 // pred_check
    _
  $region3: #{dit_layer_forward.9} parent=0 // pred_check_branch
    %15 = sbr.rel (0) target = $region5
  $region4: #{dit_layer_forward.9} parent=0 // pred_region
    _
  $region5: #{dit_layer_forward.9} parent=0 // pred_fallthru
    _
  // Predicated region
  $region6: #{dit_layer_forward.9} parent=0 // pred_check
    _
  $region7: #{dit_layer_forward.9} parent=0 // pred_check_branch
    %17 = sbr.rel (0) target = $region9
  $region8: #{dit_layer_forward.9} parent=0 // pred_region
    _
  $region9: #{dit_layer_forward.9} parent=0 // pred_fallthru
    _
  // Predicated region
  $region10: #{dit_layer_forward.9} parent=0 // pred_check
    _
  $region11: #{dit_layer_forward.9} parent=0 // pred_check_branch
    %19 = sbr.rel (0) target = $region13
  $region12: #{dit_layer_forward.9} parent=0 // pred_region
    _
  $region13: #{dit_layer_forward.9} parent=0 // pred_fallthru
    _
  // Predicated region
  $region14: #{dit_layer_forward.9} parent=0 // pred_check
    _
  $region15: #{dit_layer_forward.9} parent=0 // pred_check_branch
    %21 = sbr.rel (0) target = $region17
  $region16: #{dit_layer_forward.9} parent=0 // pred_region
    _
  $region17: #{dit_layer_forward.9} parent=0 // pred_fallthru
    _
  // Predicated region
  $region18: #{dit_layer_forward.9} parent=0 // pred_check
    _
  $region19: #{dit_layer_forward.9} parent=0 // pred_check_branch
    %23 = sbr.rel (0) target = $region21
  $region20: #{dit_layer_forward.9} parent=0 // pred_region
    _
  $region21: #{dit_layer_forward.9} parent=0 // pred_fallthru
    _
  // Predicated region
  $region22: #{dit_layer_forward.9} parent=0 // pred_check
    _
  $region23: #{dit_layer_forward.9} parent=0 // pred_check_branch
    %25 = sbr.rel (0) target = $region25
  $region24: #{dit_layer_forward.9} parent=0 // pred_region
    _
  $region25: #{dit_layer_forward.9} parent=0 // pred_fallthru
    _
  // Predicated region
  $region26: #{dit_layer_forward.9} parent=0 // pred_check
    _
  $region27: #{dit_layer_forward.9} parent=0 // pred_check_branch
    %27 = sbr.rel (0) target = $region29
  $region28: #{dit_layer_forward.9} parent=0 // pred_region
    _
  $region29: #{dit_layer_forward.9} parent=0 // pred_fallthru
    _
  // Predicated region
  $region30: #{dit_layer_forward.9} parent=0 // pred_check
    _
  $region31: #{dit_layer_forward.9} parent=0 // pred_check_branch
    %29 = sbr.rel (0) target = $region33
  $region32: #{dit_layer_forward.9} parent=0 // pred_region
    _
  $region33: #{dit_layer_forward.9} parent=0 // pred_fallthru
    _
  // Predicated region
  $region34: #{dit_layer_forward.9} parent=0 // pred_check
    _
  $region35: #{dit_layer_forward.9} parent=0 // pred_check_branch
    %31 = sbr.rel (0) target = $region37
  $region36: #{dit_layer_forward.9} parent=0 // pred_region
    _
  $region37: #{dit_layer_forward.9} parent=0 // pred_fallthru
    _
  %p33 = scmp.eq.s32.totalorder 0, 0
  // Predicated region
  $region38: #{dit_layer_forward.9} parent=0 // pred_check
    %p34 = pneg %p33
  $region39: #{dit_layer_forward.9} parent=0 // pred_check_branch
    %36 = sbr.rel (%p34) target = $region41
  $region40: #{dit_layer_forward.9} parent=0 // pred_region
    %v37 = vld [vmem:[%s0] sm:$0xf]
    %v38 = vld [vmem:[%s0 + $0x4] sm:$0xf]
    %v39 = vld [vmem:[%s0 + $0x8] sm:$0xf]
    %v40 = vld [vmem:[%s0 + $0xc] sm:$0xf]
    %v41 = vld [vmem:[%s0 + $0x10] sm:$0xf]
    %v42 = vld [vmem:[%s0 + $0x14] sm:$0xf]
    %v43 = vld [vmem:[%s0 + $0x18] sm:$0xf]
    %v44 = vld [vmem:[%s0 + $0x1c] sm:$0xf]
    %v45 = vunpack.c.l.bf16 %v37
    %v46 = vunpack.c.l.bf16 %v38
    %v47 = vunpack.c.l.bf16 %v39
    %v48 = vunpack.c.l.bf16 %v40
    %v49 = vunpack.c.l.bf16 %v41
    %v50 = vunpack.c.l.bf16 %v42
    %v51 = vunpack.c.l.bf16 %v43
    %v52 = vunpack.c.l.bf16 %v44
    %vm53 = vcmask 261120
    %v54 = vsel %vm53, %v45, 0.0
    %55 = vadd.xlane.f32.xlu0 %v54
    %v56 = vpop.xlane.xlu0 %55
    %v57 = vsel %vm53, %v46, 0.0
    %58 = vadd.xlane.f32.xlu0 %v57
    %v59 = vpop.xlane.xlu0 %58
    %v60 = vsel %vm53, %v47, 0.0
    %61 = vadd.xlane.f32.xlu0 %v60
    %v62 = vpop.xlane.xlu0 %61
    %v63 = vsel %vm53, %v48, 0.0
    %64 = vadd.xlane.f32.xlu0 %v63
    %v65 = vpop.xlane.xlu0 %64
    %v66 = vsel %vm53, %v49, 0.0
    %67 = vadd.xlane.f32.xlu0 %v66
    %v68 = vpop.xlane.xlu0 %67
    %v69 = vsel %vm53, %v50, 0.0
    %70 = vadd.xlane.f32.xlu0 %v69
    %v71 = vpop.xlane.xlu0 %70
    %v72 = vsel %vm53, %v51, 0.0
    %73 = vadd.xlane.f32.xlu0 %v72
    %v74 = vpop.xlane.xlu0 %73
    %v75 = vsel %vm53, %v52, 0.0
    %76 = vadd.xlane.f32.xlu0 %v75
    %v77 = vpop.xlane.xlu0 %76
    %v78 = vrcp.pop 32.0
    %v79 = vmul.f32 %v56, %v78
    %v80 = vmul.f32 %v59, %v78
    %v81 = vmul.f32 %v62, %v78
    %v82 = vmul.f32 %v65, %v78
    %v83 = vmul.f32 %v68, %v78
    %v84 = vmul.f32 %v71, %v78
    %v85 = vmul.f32 %v74, %v78
    %v86 = vmul.f32 %v77, %v78
    %v87 = vsub.f32 %v45, %v79
    %v88 = vsub.f32 %v46, %v80
    %v89 = vsub.f32 %v47, %v81
    %v90 = vsub.f32 %v48, %v82
    %v91 = vsub.f32 %v49, %v83
    %v92 = vsub.f32 %v50, %v84
    %v93 = vsub.f32 %v51, %v85
    %v94 = vsub.f32 %v52, %v86
    %v95 = vmul.f32 %v87, %v87
    %v96 = vmul.f32 %v88, %v88
    %v97 = vmul.f32 %v89, %v89
    %v98 = vmul.f32 %v90, %v90
    %v99 = vmul.f32 %v91, %v91
    %v100 = vmul.f32 %v92, %v92
    %v101 = vmul.f32 %v93, %v93
    %v102 = vmul.f32 %v94, %v94
    %v103 = vsel %vm53, %v95, 0.0
    %104 = vadd.xlane.f32.xlu0 %v103
    %v105 = vpop.xlane.xlu0 %104
    %v106 = vsel %vm53, %v96, 0.0
    %107 = vadd.xlane.f32.xlu0 %v106
    %v108 = vpop.xlane.xlu0 %107
    %v109 = vsel %vm53, %v97, 0.0
    %110 = vadd.xlane.f32.xlu0 %v109
    %v111 = vpop.xlane.xlu0 %110
    %v112 = vsel %vm53, %v98, 0.0
    %113 = vadd.xlane.f32.xlu0 %v112
    %v114 = vpop.xlane.xlu0 %113
    %v115 = vsel %vm53, %v99, 0.0
    %116 = vadd.xlane.f32.xlu0 %v115
    %v117 = vpop.xlane.xlu0 %116
    %v118 = vsel %vm53, %v100, 0.0
    %119 = vadd.xlane.f32.xlu0 %v118
    %v120 = vpop.xlane.xlu0 %119
    %v121 = vsel %vm53, %v101, 0.0
    %122 = vadd.xlane.f32.xlu0 %v121
    %v123 = vpop.xlane.xlu0 %122
    %v124 = vsel %vm53, %v102, 0.0
    %125 = vadd.xlane.f32.xlu0 %v124
    %v126 = vpop.xlane.xlu0 %125
    %v127 = vmul.f32 %v105, %v78
    %v128 = vmul.f32 %v108, %v78
    %v129 = vmul.f32 %v111, %v78
    %v130 = vmul.f32 %v114, %v78
    %v131 = vmul.f32 %v117, %v78
    %v132 = vmul.f32 %v120, %v78
    %v133 = vmul.f32 %v123, %v78
    %v134 = vmul.f32 %v126, %v78
    %v135 = vadd.f32 %v127, 1e-05
    %v136 = vadd.f32 %v128, 1e-05
    %v137 = vadd.f32 %v129, 1e-05
    %v138 = vadd.f32 %v130, 1e-05
    %v139 = vadd.f32 %v131, 1e-05
    %v140 = vadd.f32 %v132, 1e-05
    %v141 = vadd.f32 %v133, 1e-05
    %v142 = vadd.f32 %v134, 1e-05
    %v143 = vrsqrt.pop %v135
    %v144 = vrsqrt.pop %v136
    %v145 = vrsqrt.pop %v137
    %v146 = vrsqrt.pop %v138
    %v147 = vrsqrt.pop %v139
    %v148 = vrsqrt.pop %v140
    %v149 = vrsqrt.pop %v141
    %v150 = vrsqrt.pop %v142
    %v151 = vmul.f32 %v87, %v143
    %v152 = vmul.f32 %v88, %v144
    %v153 = vmul.f32 %v89, %v145
    %v154 = vmul.f32 %v90, %v146
    %v155 = vmul.f32 %v91, %v147
    %v156 = vmul.f32 %v92, %v148
    %v157 = vmul.f32 %v93, %v149
    %v158 = vmul.f32 %v94, %v150
    %v159 = vld [vmem:[%s1] sm:$0x1]
    %v161 = vlaneseq
    %v162 = vshrl.u32 %v161, 7
    %v163 = vsub.s32 0, %v162
    %v164 = vrot.slane %v159, %v163
    %v166 = vmul.f32 %v151, %v164
    %v167 = vmul.f32 %v152, %v164
    %v168 = vmul.f32 %v153, %v164
    %v169 = vmul.f32 %v154, %v164
    %v170 = vmul.f32 %v155, %v164
    %v171 = vmul.f32 %v156, %v164
    %v172 = vmul.f32 %v157, %v164
    %v173 = vmul.f32 %v158, %v164
    %v174 = vld [vmem:[%s2] sm:$0x1]
    %v176 = vlaneseq
    %v177 = vshrl.u32 %v176, 7
    %v178 = vsub.s32 0, %v177
    %v179 = vrot.slane %v174, %v178
    %v181 = vadd.f32 %v166, %v179
    %v182 = vadd.f32 %v167, %v179
    %v183 = vadd.f32 %v168, %v179
    %v184 = vadd.f32 %v169, %v179
    %v185 = vadd.f32 %v170, %v179
    %v186 = vadd.f32 %v171, %v179
    %v187 = vadd.f32 %v172, %v179
    %v188 = vadd.f32 %v173, %v179
    %v189 = vpack.c.bf16 %v182, %v181
    %v190 = vpack.c.bf16 %v184, %v183
    %v191 = vpack.c.bf16 %v186, %v185
    %v192 = vpack.c.bf16 %v188, %v187
    %193 = vst.msk [vmem:[#allocation2] sm:$0xff] %vm53, %v189
    %194 = vst.msk [vmem:[#allocation2 + $0x8] sm:$0xff] %vm53, %v190
    %195 = vst.msk [vmem:[#allocation2 + $0x10] sm:$0xff] %vm53, %v191
    %196 = vst.msk [vmem:[#allocation2 + $0x18] sm:$0xff] %vm53, %v192
    %197 = vst.msk [vmem:[#allocation3] sm:$0xff] %vm53, 0.0
    %198 = vst.msk [vmem:[#allocation3 + $0x8] sm:$0xff] %vm53, 0.0
    %199 = vst.msk [vmem:[#allocation3 + $0x10] sm:$0xff] %vm53, 0.0
    %200 = vst.msk [vmem:[#allocation3 + $0x18] sm:$0xff] %vm53, 0.0
    %201 = vst.msk [vmem:[#allocation3 + $0x20] sm:$0xff] %vm53, 0.0
    %202 = vst.msk [vmem:[#allocation3 + $0x28] sm:$0xff] %vm53, 0.0
    %203 = vst.msk [vmem:[#allocation3 + $0x30] sm:$0xff] %vm53, 0.0
    %204 = vst.msk [vmem:[#allocation3 + $0x38] sm:$0xff] %vm53, 0.0
  $region41: #{dit_layer_forward.9} parent=0 // pred_fallthru
    _
  %v205 = vld [vmem:[#allocation2] sm:$0xff]
  %v206 = vld [vmem:[#allocation2 + $0x8] sm:$0xff]
  %v207 = vld [vmem:[#allocation2 + $0x10] sm:$0xff]
  %v208 = vld [vmem:[#allocation2 + $0x18] sm:$0xff]
  %v209 = vld [vmem:[%s3] sm:$0xf]
  %v210 = vld [vmem:[%s3 + $0x4] sm:$0xf]
  %v211 = vld [vmem:[%s3 + $0x8] sm:$0xf]
  %v212 = vld [vmem:[%s3 + $0xc] sm:$0xf]
  %v213 = vld [vmem:[%s4] sm:$0x1]
  %v215 = vlaneseq
  %v216 = vshrl.u32 %v215, 7
  %v217 = vsub.s32 0, %v216
  %v218 = vrot.slane %v213, %v217
  %v224 = vunpack.c.l.b16 %v209
  %v225 = vunpack.c.l.b16 %v210
  %v226 = vunpack.c.l.b16 %v211
  %v227 = vunpack.c.l.b16 %v212
  %v228 = vpack.c.b16 %v225, %v224
  %v229 = vpack.c.b16 %v227, %v226
  %vm232 = vcmask 261120
  %v234 = vsel %vm232, %v205, 0
  %v237 = vsel %vm232, %v206, 0
  %v240 = vsel %vm232, %v207, 0
  %v243 = vsel %vm232, %v208, 0
  %245 = vmatprep.subr.bf16.mxu0 0
  %246 = vmatpush1.bf16.msra.mxu0 %v228
  %247 = vmatprep.subr.bf16.mxu0 0
  %248 = vmatpush1.bf16.msra.mxu0 %v229
  %249 = vmatprep.subr.bf16.mxu0 0
  %250 = vmatpush1.bf16.msra.mxu0 0
  %251 = vmatprep.subr.bf16.mxu0 0
  %252 = vmatpush1.bf16.msra.mxu0 0
  %253 = vmatprep.subr.bf16.mxu0 0
  %254 = vmatpush1.bf16.msra.mxu0 0
  %255 = vmatprep.subr.bf16.mxu0 0
  %256 = vmatpush1.bf16.msra.mxu0 0
  %257 = vmatprep.subr.bf16.mxu0 0
  %258 = vmatpush1.bf16.msra.mxu0 0
  %259 = vmatprep.subr.bf16.mxu0 0
  %260 = vmatpush1.bf16.msra.mxu0 0
  %261 = vmatprep.subr.bf16.mxu0 0
  %262 = vmatpush1.bf16.msra.mxu0 0
  %263 = vmatprep.subr.bf16.mxu0 0
  %264 = vmatpush1.bf16.msra.mxu0 0
  %265 = vmatprep.subr.bf16.mxu0 0
  %266 = vmatpush1.bf16.msra.mxu0 0
  %267 = vmatprep.subr.bf16.mxu0 0
  %268 = vmatpush1.bf16.msra.mxu0 0
  %269 = vmatprep.subr.bf16.mxu0 0
  %270 = vmatpush1.bf16.msra.mxu0 0
  %271 = vmatprep.subr.bf16.mxu0 0
  %272 = vmatpush1.bf16.msra.mxu0 0
  %273 = vmatprep.subr.bf16.mxu0 0
  %274 = vmatpush1.bf16.msra.mxu0 0
  %275 = vmatprep.subr.bf16.mxu0 0
  %276 = vmatpush1.bf16.msra.mxu0 0
  %277 = vmatprep.mubr.bf16.mxu0 0
  %278 = vmatmul.mubr.bf16.gmra.mrb[0].mxu0 %v234
  %v279 = vpop.f32.mrb[0].mxu0
  %v280 = vadd.f32 %v218, %v279
  %v281 = vpop.f32.mrb[0].mxu0
  %v282 = vpop.f32.mrb[0].mxu0
  %v283 = vadd.f32 %v218, %v282
  %v284 = vpop.f32.mrb[0].mxu0
  %285 = vmatprep.mubr.bf16.mxu0 0
  %286 = vmatmul.mubr.bf16.gmra.mrb[0].mxu0 %v237
  %v287 = vpop.f32.mrb[0].mxu0
  %v288 = vadd.f32 %v218, %v287
  %v289 = vpop.f32.mrb[0].mxu0
  %v290 = vpop.f32.mrb[0].mxu0
  %v291 = vadd.f32 %v218, %v290
  %v292 = vpop.f32.mrb[0].mxu0
  %293 = vmatprep.mubr.bf16.mxu0 0
  %294 = vmatmul.mubr.bf16.gmra.mrb[0].mxu0 %v240
  %v295 = vpop.f32.mrb[0].mxu0
  %v296 = vadd.f32 %v218, %v295
  %v297 = vpop.f32.mrb[0].mxu0
  %v298 = vpop.f32.mrb[0].mxu0
  %v299 = vadd.f32 %v218, %v298
  %v300 = vpop.f32.mrb[0].mxu0
  %301 = vmatprep.mubr.bf16.mxu0 0
  %302 = vmatmul.mubr.bf16.gmra.mrb[0].mxu0 %v243
  %v303 = vpop.f32.mrb[0].mxu0
  %v304 = vadd.f32 %v218, %v303
  %v305 = vpop.f32.mrb[0].mxu0
  %v306 = vpop.f32.mrb[0].mxu0
  %v307 = vadd.f32 %v218, %v306
  %v308 = vpop.f32.mrb[0].mxu0
  %309 = vdwg.mxu0
  %v310 = vld [vmem:[%s5] sm:$0xf]
  %v311 = vld [vmem:[%s5 + $0x4] sm:$0xf]
  %v312 = vld [vmem:[%s5 + $0x8] sm:$0xf]
  %v313 = vld [vmem:[%s5 + $0xc] sm:$0xf]
  %v314 = vld [vmem:[%s6] sm:$0x1]
  %v316 = vlaneseq
  %v317 = vshrl.u32 %v316, 7
  %v318 = vsub.s32 0, %v317
  %v319 = vrot.slane %v314, %v318
  %v325 = vunpack.c.l.b16 %v310
  %v326 = vunpack.c.l.b16 %v311
  %v327 = vunpack.c.l.b16 %v312
  %v328 = vunpack.c.l.b16 %v313
  %v329 = vpack.c.b16 %v326, %v325
  %v330 = vpack.c.b16 %v328, %v327
  %333 = vmatprep.subr.bf16.mxu0 0
  %334 = vmatpush1.bf16.msra.mxu0 %v329
  %335 = vmatprep.subr.bf16.mxu0 0
  %336 = vmatpush1.bf16.msra.mxu0 %v330
  %337 = vmatprep.subr.bf16.mxu0 0
  %338 = vmatpush1.bf16.msra.mxu0 0
  %339 = vmatprep.subr.bf16.mxu0 0
  %340 = vmatpush1.bf16.msra.mxu0 0
  %341 = vmatprep.subr.bf16.mxu0 0
  %342 = vmatpush1.bf16.msra.mxu0 0
  %343 = vmatprep.subr.bf16.mxu0 0
  %344 = vmatpush1.bf16.msra.mxu0 0
  %345 = vmatprep.subr.bf16.mxu0 0
  %346 = vmatpush1.bf16.msra.mxu0 0
  %347 = vmatprep.subr.bf16.mxu0 0
  %348 = vmatpush1.bf16.msra.mxu0 0
  %349 = vmatprep.subr.bf16.mxu0 0
  %350 = vmatpush1.bf16.msra.mxu0 0
  %351 = vmatprep.subr.bf16.mxu0 0
  %352 = vmatpush1.bf16.msra.mxu0 0
  %353 = vmatprep.subr.bf16.mxu0 0
  %354 = vmatpush1.bf16.msra.mxu0 0
  %355 = vmatprep.subr.bf16.mxu0 0
  %356 = vmatpush1.bf16.msra.mxu0 0
  %357 = vmatprep.subr.bf16.mxu0 0
  %358 = vmatpush1.bf16.msra.mxu0 0
  %359 = vmatprep.subr.bf16.mxu0 0
  %360 = vmatpush1.bf16.msra.mxu0 0
  %361 = vmatprep.subr.bf16.mxu0 0
  %362 = vmatpush1.bf16.msra.mxu0 0
  %363 = vmatprep.subr.bf16.mxu0 0
  %364 = vmatpush1.bf16.msra.mxu0 0
  %365 = vmatprep.mubr.bf16.mxu0 0
  %366 = vmatmul.mubr.bf16.gmra.mrb[0].mxu0 %v234
  %v367 = vpop.f32.mrb[0].mxu0
  %v368 = vadd.f32 %v319, %v367
  %v369 = vpop.f32.mrb[0].mxu0
  %v370 = vpop.f32.mrb[0].mxu0
  %v371 = vadd.f32 %v319, %v370
  %v372 = vpop.f32.mrb[0].mxu0
  %373 = vmatprep.mubr.bf16.mxu0 0
  %374 = vmatmul.mubr.bf16.gmra.mrb[0].mxu0 %v237
  %v375 = vpop.f32.mrb[0].mxu0
  %v376 = vadd.f32 %v319, %v375
  %v377 = vpop.f32.mrb[0].mxu0
  %v378 = vpop.f32.mrb[0].mxu0
  %v379 = vadd.f32 %v319, %v378
  %v380 = vpop.f32.mrb[0].mxu0
  %381 = vmatprep.mubr.bf16.mxu0 0
  %382 = vmatmul.mubr.bf16.gmra.mrb[0].mxu0 %v240
  %v383 = vpop.f32.mrb[0].mxu0
  %v384 = vadd.f32 %v319, %v383
  %v385 = vpop.f32.mrb[0].mxu0
  %v386 = vpop.f32.mrb[0].mxu0
  %v387 = vadd.f32 %v319, %v386
  %v388 = vpop.f32.mrb[0].mxu0
  %389 = vmatprep.mubr.bf16.mxu0 0
  %390 = vmatmul.mubr.bf16.gmra.mrb[0].mxu0 %v243
  %v391 = vpop.f32.mrb[0].mxu0
  %v392 = vadd.f32 %v319, %v391
  %v393 = vpop.f32.mrb[0].mxu0
  %v394 = vpop.f32.mrb[0].mxu0
  %v395 = vadd.f32 %v319, %v394
  %v396 = vpop.f32.mrb[0].mxu0
  %397 = vdwg.mxu0
  %v398 = vld [vmem:[#allocation3] sm:$0xff]
  %v399 = vld [vmem:[#allocation3 + $0x8] sm:$0xff]
  %v400 = vld [vmem:[#allocation3 + $0x10] sm:$0xff]
  %v401 = vld [vmem:[#allocation3 + $0x18] sm:$0xff]
  %v402 = vld [vmem:[#allocation3 + $0x20] sm:$0xff]
  %v403 = vld [vmem:[#allocation3 + $0x28] sm:$0xff]
  %v404 = vld [vmem:[#allocation3 + $0x30] sm:$0xff]
  %v405 = vld [vmem:[#allocation3 + $0x38] sm:$0xff]
  %v406 = vmul.f32 %v368, 0.5
  %v407 = vmul.f32 %v371, 0.5
  %v408 = vmul.f32 %v376, 0.5
  %v409 = vmul.f32 %v379, 0.5
  %v410 = vmul.f32 %v384, 0.5
  %v411 = vmul.f32 %v387, 0.5
  %v412 = vmul.f32 %v392, 0.5
  %v413 = vmul.f32 %v395, 0.5
  %v414 = vmul.f32 %v368, 0.044715
  %v415 = vmul.f32 %v371, 0.044715
  %v416 = vmul.f32 %v376, 0.044715
  %v417 = vmul.f32 %v379, 0.044715
  %v418 = vmul.f32 %v384, 0.044715
  %v419 = vmul.f32 %v387, 0.044715
  %v420 = vmul.f32 %v392, 0.044715
  %v421 = vmul.f32 %v395, 0.044715
  %v422 = vmul.f32 %v414, %v368
  %v423 = vmul.f32 %v415, %v371
  %v424 = vmul.f32 %v416, %v376
  %v425 = vmul.f32 %v417, %v379
  %v426 = vmul.f32 %v418, %v384
  %v427 = vmul.f32 %v419, %v387
  %v428 = vmul.f32 %v420, %v392
  %v429 = vmul.f32 %v421, %v395
  %v430 = vmul.f32 %v422, %v368
  %v431 = vmul.f32 %v423, %v371
  %v432 = vmul.f32 %v424, %v376
  %v433 = vmul.f32 %v425, %v379
  %v434 = vmul.f32 %v426, %v384
  %v435 = vmul.f32 %v427, %v387
  %v436 = vmul.f32 %v428, %v392
  %v437 = vmul.f32 %v429, %v395
  %v438 = vadd.f32 %v368, %v430
  %v439 = vadd.f32 %v371, %v431
  %v440 = vadd.f32 %v376, %v432
  %v441 = vadd.f32 %v379, %v433
  %v442 = vadd.f32 %v384, %v434
  %v443 = vadd.f32 %v387, %v435
  %v444 = vadd.f32 %v392, %v436
  %v445 = vadd.f32 %v395, %v437
  %v446 = vmul.f32 %v438, 0.7978846
  %v447 = vmul.f32 %v439, 0.7978846
  %v448 = vmul.f32 %v440, 0.7978846
  %v449 = vmul.f32 %v441, 0.7978846
  %v450 = vmul.f32 %v442, 0.7978846
  %v451 = vmul.f32 %v443, 0.7978846
  %v452 = vmul.f32 %v444, 0.7978846
  %v453 = vmul.f32 %v445, 0.7978846
  %v454 = vtanh.pop %v446
  %v455 = vtanh.pop %v447
  %v456 = vtanh.pop %v448
  %v457 = vtanh.pop %v449
  %v458 = vtanh.pop %v450
  %v459 = vtanh.pop %v451
  %v460 = vtanh.pop %v452
  %v461 = vtanh.pop %v453
  %v462 = vadd.f32 %v454, 1.0
  %v463 = vadd.f32 %v455, 1.0
  %v464 = vadd.f32 %v456, 1.0
  %v465 = vadd.f32 %v457, 1.0
  %v466 = vadd.f32 %v458, 1.0
  %v467 = vadd.f32 %v459, 1.0
  %v468 = vadd.f32 %v460, 1.0
  %v469 = vadd.f32 %v461, 1.0
  %v470 = vmul.f32 %v406, %v462
  %v471 = vmul.f32 %v407, %v463
  %v472 = vmul.f32 %v408, %v464
  %v473 = vmul.f32 %v409, %v465
  %v474 = vmul.f32 %v410, %v466
  %v475 = vmul.f32 %v411, %v467
  %v476 = vmul.f32 %v412, %v468
  %v477 = vmul.f32 %v413, %v469
  %v478 = vmul.f32 %v280, %v470
  %v479 = vmul.f32 %v283, %v471
  %v480 = vmul.f32 %v288, %v472
  %v481 = vmul.f32 %v291, %v473
  %v482 = vmul.f32 %v296, %v474
  %v483 = vmul.f32 %v299, %v475
  %v484 = vmul.f32 %v304, %v476
  %v485 = vmul.f32 %v307, %v477
  %v486 = vpack.c.bf16 %v479, %v478
  %v487 = vpack.c.bf16 %v481, %v480
  %v488 = vpack.c.bf16 %v483, %v482
  %v489 = vpack.c.bf16 %v485, %v484
  %v490 = vld [vmem:[%s7] sm:$0xf]
  %v491 = vld [vmem:[%s7 + $0x4] sm:$0xf]
  %v492 = vld [vmem:[%s7 + $0x8] sm:$0xf]
  %v493 = vld [vmem:[%s7 + $0xc] sm:$0xf]
  %v494 = vld [vmem:[%s7 + $0x10] sm:$0xf]
  %v495 = vld [vmem:[%s7 + $0x14] sm:$0xf]
  %v496 = vld [vmem:[%s7 + $0x18] sm:$0xf]
  %v497 = vld [vmem:[%s7 + $0x1c] sm:$0xf]
  %v498 = vld [vmem:[%s7 + $0x20] sm:$0xf]
  %v499 = vld [vmem:[%s7 + $0x24] sm:$0xf]
  %v500 = vld [vmem:[%s7 + $0x28] sm:$0xf]
  %v501 = vld [vmem:[%s7 + $0x2c] sm:$0xf]
  %v502 = vld [vmem:[%s7 + $0x30] sm:$0xf]
  %v503 = vld [vmem:[%s7 + $0x34] sm:$0xf]
  %v504 = vld [vmem:[%s7 + $0x38] sm:$0xf]
  %v505 = vld [vmem:[%s7 + $0x3c] sm:$0xf]
  %v522 = vunpack.c.l.b16 %v490
  %v523 = vunpack.c.l.b16 %v491
  %v524 = vunpack.c.l.b16 %v492
  %v525 = vunpack.c.l.b16 %v493
  %v526 = vunpack.c.l.b16 %v494
  %v527 = vunpack.c.l.b16 %v495
  %v528 = vunpack.c.l.b16 %v496
  %v529 = vunpack.c.l.b16 %v497
  %v530 = vunpack.c.l.b16 %v498
  %v531 = vunpack.c.l.b16 %v499
  %v532 = vunpack.c.l.b16 %v500
  %v533 = vunpack.c.l.b16 %v501
  %v534 = vunpack.c.l.b16 %v502
  %v535 = vunpack.c.l.b16 %v503
  %v536 = vunpack.c.l.b16 %v504
  %v537 = vunpack.c.l.b16 %v505
  %v538 = vpack.c.b16 %v523, %v522
  %v539 = vpack.c.b16 %v525, %v524
  %v540 = vpack.c.b16 %v527, %v526
  %v541 = vpack.c.b16 %v529, %v528
  %v542 = vpack.c.b16 %v531, %v530
  %v543 = vpack.c.b16 %v533, %v532
  %v544 = vpack.c.b16 %v535, %v534
  %v545 = vpack.c.b16 %v537, %v536
  %554 = vmatprep.subr.bf16.mxu0 0
  %555 = vmatpush1.bf16.msra.mxu0 %v538
  %556 = vmatprep.subr.bf16.mxu0 0
  %557 = vmatpush1.bf16.msra.mxu0 %v539
  %558 = vmatprep.subr.bf16.mxu0 0
  %559 = vmatpush1.bf16.msra.mxu0 %v540
  %560 = vmatprep.subr.bf16.mxu0 0
  %561 = vmatpush1.bf16.msra.mxu0 %v541
  %562 = vmatprep.subr.bf16.mxu0 0
  %563 = vmatpush1.bf16.msra.mxu0 %v542
  %564 = vmatprep.subr.bf16.mxu0 0
  %565 = vmatpush1.bf16.msra.mxu0 %v543
  %566 = vmatprep.subr.bf16.mxu0 0
  %567 = vmatpush1.bf16.msra.mxu0 %v544
  %568 = vmatprep.subr.bf16.mxu0 0
  %569 = vmatpush1.bf16.msra.mxu0 %v545
  %570 = vmatprep.subr.bf16.mxu0 0
  %571 = vmatpush1.bf16.msra.mxu0 0
  %572 = vmatprep.subr.bf16.mxu0 0
  %573 = vmatpush1.bf16.msra.mxu0 0
  %574 = vmatprep.subr.bf16.mxu0 0
  %575 = vmatpush1.bf16.msra.mxu0 0
  %576 = vmatprep.subr.bf16.mxu0 0
  %577 = vmatpush1.bf16.msra.mxu0 0
  %578 = vmatprep.subr.bf16.mxu0 0
  %579 = vmatpush1.bf16.msra.mxu0 0
  %580 = vmatprep.subr.bf16.mxu0 0
  %581 = vmatpush1.bf16.msra.mxu0 0
  %582 = vmatprep.subr.bf16.mxu0 0
  %583 = vmatpush1.bf16.msra.mxu0 0
  %584 = vmatprep.subr.bf16.mxu0 0
  %585 = vmatpush1.bf16.msra.mxu0 0
  %586 = vmatprep.mubr.bf16.mxu0 0
  %587 = vmatmul.mubr.bf16.gmra.mrb[0].mxu0 %v486
  %v588 = vpop.f32.mrb[0].mxu0
  %v589 = vadd.f32 0.0, %v588
  %v590 = vpop.f32.mrb[0].mxu0
  %v591 = vpop.f32.mrb[0].mxu0
  %v592 = vadd.f32 0.0, %v591
  %v593 = vpop.f32.mrb[0].mxu0
  %594 = vmatprep.mubr.bf16.mxu0 0
  %595 = vmatmul.mubr.bf16.gmra.mrb[0].mxu0 %v487
  %v596 = vpop.f32.mrb[0].mxu0
  %v597 = vadd.f32 0.0, %v596
  %v598 = vpop.f32.mrb[0].mxu0
  %v599 = vpop.f32.mrb[0].mxu0
  %v600 = vadd.f32 0.0, %v599
  %v601 = vpop.f32.mrb[0].mxu0
  %602 = vmatprep.mubr.bf16.mxu0 0
  %603 = vmatmul.mubr.bf16.gmra.mrb[0].mxu0 %v488
  %v604 = vpop.f32.mrb[0].mxu0
  %v605 = vadd.f32 0.0, %v604
  %v606 = vpop.f32.mrb[0].mxu0
  %v607 = vpop.f32.mrb[0].mxu0
  %v608 = vadd.f32 0.0, %v607
  %v609 = vpop.f32.mrb[0].mxu0
  %610 = vmatprep.mubr.bf16.mxu0 0
  %611 = vmatmul.mubr.bf16.gmra.mrb[0].mxu0 %v489
  %v612 = vpop.f32.mrb[0].mxu0
  %v613 = vadd.f32 0.0, %v612
  %v614 = vpop.f32.mrb[0].mxu0
  %v615 = vpop.f32.mrb[0].mxu0
  %v616 = vadd.f32 0.0, %v615
  %v617 = vpop.f32.mrb[0].mxu0
  %618 = vdwg.mxu0
  %v619 = vadd.f32 %v398, %v589
  %v620 = vadd.f32 %v399, %v592
  %v621 = vadd.f32 %v400, %v597
  %v622 = vadd.f32 %v401, %v600
  %v623 = vadd.f32 %v402, %v605
  %v624 = vadd.f32 %v403, %v608
  %v625 = vadd.f32 %v404, %v613
  %v626 = vadd.f32 %v405, %v616
  %627 = vst.msk [vmem:[#allocation3] sm:$0xff] %vm232, %v619
  %628 = vst.msk [vmem:[#allocation3 + $0x8] sm:$0xff] %vm232, %v620
  %629 = vst.msk [vmem:[#allocation3 + $0x10] sm:$0xff] %vm232, %v621
  %630 = vst.msk [vmem:[#allocation3 + $0x18] sm:$0xff] %vm232, %v622
  %631 = vst.msk [vmem:[#allocation3 + $0x20] sm:$0xff] %vm232, %v623
  %632 = vst.msk [vmem:[#allocation3 + $0x28] sm:$0xff] %vm232, %v624
  %633 = vst.msk [vmem:[#allocation3 + $0x30] sm:$0xff] %vm232, %v625
  %634 = vst.msk [vmem:[#allocation3 + $0x38] sm:$0xff] %vm232, %v626
  // Predicated region
  $region42: #{dit_layer_forward.9} parent=0 // pred_check
    %p635 = pneg %p33
  $region43: #{dit_layer_forward.9} parent=0 // pred_check_branch
    %637 = sbr.rel (%p635) target = $region45
  $region44: #{dit_layer_forward.9} parent=0 // pred_region
    %v638 = vld [vmem:[%s0] sm:$0xf]
    %v639 = vld [vmem:[%s0 + $0x4] sm:$0xf]
    %v640 = vld [vmem:[%s0 + $0x8] sm:$0xf]
    %v641 = vld [vmem:[%s0 + $0xc] sm:$0xf]
    %v642 = vld [vmem:[%s0 + $0x10] sm:$0xf]
    %v643 = vld [vmem:[%s0 + $0x14] sm:$0xf]
    %v644 = vld [vmem:[%s0 + $0x18] sm:$0xf]
    %v645 = vld [vmem:[%s0 + $0x1c] sm:$0xf]
    %v646 = vunpack.c.l.bf16 %v638
    %v647 = vunpack.c.l.bf16 %v639
    %v648 = vunpack.c.l.bf16 %v640
    %v649 = vunpack.c.l.bf16 %v641
    %v650 = vunpack.c.l.bf16 %v642
    %v651 = vunpack.c.l.bf16 %v643
    %v652 = vunpack.c.l.bf16 %v644
    %v653 = vunpack.c.l.bf16 %v645
    %v654 = vld [vmem:[#allocation3] sm:$0xff]
    %v655 = vld [vmem:[#allocation3 + $0x8] sm:$0xff]
    %v656 = vld [vmem:[#allocation3 + $0x10] sm:$0xff]
    %v657 = vld [vmem:[#allocation3 + $0x18] sm:$0xff]
    %v658 = vld [vmem:[#allocation3 + $0x20] sm:$0xff]
    %v659 = vld [vmem:[#allocation3 + $0x28] sm:$0xff]
    %v660 = vld [vmem:[#allocation3 + $0x30] sm:$0xff]
    %v661 = vld [vmem:[#allocation3 + $0x38] sm:$0xff]
    %v662 = vadd.f32 %v646, %v654
    %v663 = vadd.f32 %v647, %v655
    %v664 = vadd.f32 %v648, %v656
    %v665 = vadd.f32 %v649, %v657
    %v666 = vadd.f32 %v650, %v658
    %v667 = vadd.f32 %v651, %v659
    %v668 = vadd.f32 %v652, %v660
    %v669 = vadd.f32 %v653, %v661
    %v670 = vld [vmem:[%s8] sm:$0x1]
    %v672 = vlaneseq
    %v673 = vshrl.u32 %v672, 7
    %v674 = vsub.s32 0, %v673
    %v675 = vrot.slane %v670, %v674
    %v677 = vadd.f32 %v662, %v675
    %v678 = vadd.f32 %v663, %v675
    %v679 = vadd.f32 %v664, %v675
    %v680 = vadd.f32 %v665, %v675
    %v681 = vadd.f32 %v666, %v675
    %v682 = vadd.f32 %v667, %v675
    %v683 = vadd.f32 %v668, %v675
    %v684 = vadd.f32 %v669, %v675
    %v685 = vpack.c.bf16 %v678, %v677
    %v686 = vpack.c.bf16 %v680, %v679
    %v687 = vpack.c.bf16 %v682, %v681
    %v688 = vpack.c.bf16 %v684, %v683
    %v693 = vunpack.c.l.b16 %v685
    %v694 = vunpack.c.h.b16 %v685
    %v695 = vunpack.c.l.b16 %v686
    %v696 = vunpack.c.h.b16 %v686
    %v697 = vunpack.c.l.b16 %v687
    %v698 = vunpack.c.h.b16 %v687
    %v699 = vunpack.c.l.b16 %v688
    %v700 = vunpack.c.h.b16 %v688
    %v701 = vpack.c.b16 %v693, %v693
    %v702 = vpack.c.b16 %v694, %v694
    %v703 = vpack.c.b16 %v695, %v695
    %v704 = vpack.c.b16 %v696, %v696
    %v705 = vpack.c.b16 %v697, %v697
    %v706 = vpack.c.b16 %v698, %v698
    %v707 = vpack.c.b16 %v699, %v699
    %v708 = vpack.c.b16 %v700, %v700
    %vm717 = vcmask 257024
    %718 = vst.msk [vmem:[%s9] sm:$0xf] %vm717, %v701
    %719 = vst.msk [vmem:[%s9 + $0x4] sm:$0xf] %vm717, %v702
    %720 = vst.msk [vmem:[%s9 + $0x8] sm:$0xf] %vm717, %v703
    %721 = vst.msk [vmem:[%s9 + $0xc] sm:$0xf] %vm717, %v704
    %722 = vst.msk [vmem:[%s9 + $0x10] sm:$0xf] %vm717, %v705
    %723 = vst.msk [vmem:[%s9 + $0x14] sm:$0xf] %vm717, %v706
    %724 = vst.msk [vmem:[%s9 + $0x18] sm:$0xf] %vm717, %v707
    %725 = vst.msk [vmem:[%s9 + $0x1c] sm:$0xf] %vm717, %v708
  $region45: #{dit_layer_forward.9} parent=0 // pred_fallthru
    _
  // Predicated region
  $region46: #{dit_layer_forward.9} parent=0 // pred_check
    _
  $region47: #{dit_layer_forward.9} parent=0 // pred_check_branch
    %727 = sbr.rel (0) target = $region49
  $region48: #{dit_layer_forward.9} parent=0 // pred_region
    _
  $region49: #{dit_layer_forward.9} parent=0 // pred_fallthru
    _
  // Predicated region
  $region50: #{dit_layer_forward.9} parent=0 // pred_check
    _
  $region51: #{dit_layer_forward.9} parent=0 // pred_check_branch
    %729 = sbr.rel (0) target = $region53
  $region52: #{dit_layer_forward.9} parent=0 // pred_region
    _
  $region53: #{dit_layer_forward.9} parent=0 // pred_fallthru
    _

// kernel: dit_layer_forward.5
$region0: #{dit_layer_forward.5}
  #allocation0 [shape = 'u32[]', space=smem, size = 0x4, offset = 0x4, fixed_abs, tag = 'smem constant byte address 0x4 - core index']
  #allocation1 [shape = 'u32[144,128]{1,0:T(1,128)}', space=vmem, size = 0x12000, scoped, tag = 'internal scratch']
  %s0 = inlined_call_operand.vmem [shape: bf16[64,32], index: 0, kind: input, shape index: {}]
  %s1 = inlined_call_operand.vmem [shape: s32[64,1], index: 1, kind: input, shape index: {}]
  %s2 = inlined_call_operand.vmem [shape: f32[8,64], index: 2, kind: input, shape index: {}]
  %s3 = inlined_call_operand.vmem [shape: bf16[32,96], index: 3, kind: input, shape index: {}]
  %s4 = inlined_call_operand.vmem [shape: f32[1,96], index: 4, kind: input, shape index: {}]
  %s5 = inlined_call_operand.vmem [shape: f32[4,1,8], index: 5, kind: input, shape index: {}]
  %s6 = inlined_call_operand.vmem [shape: f32[4,1,8], index: 6, kind: input, shape index: {}]
  %s7 = inlined_call_operand.vmem [shape: bf16[4,64,8], index: 7, kind: output, shape index: {0}]
  %s8 = inlined_call_operand.vmem [shape: bf16[4,64,8], index: 8, kind: output, shape index: {1}]
  %s9 = inlined_call_operand.vmem [shape: bf16[4,64,8], index: 9, kind: output, shape index: {2}]
  %10 = xla_tuple %s7, %s8, %s9
  %s11 = sld [smem:[#allocation0]]
  $region54: #{dit_layer_forward.5} parent=0
    _
  %s13 = ssub.s32 1, %s11
  %s14 = scalar_select 0, %s13, %s11
  // Predicated region
  $region2: #{dit_layer_forward.5} parent=0 // pred_check
    _
  $region3: #{dit_layer_forward.5} parent=0 // pred_check_branch
    %16 = sbr.rel (0) target = $region5
  $region4: #{dit_layer_forward.5} parent=0 // pred_region
    _
  $region5: #{dit_layer_forward.5} parent=0 // pred_fallthru
    _
  // Predicated region
  $region6: #{dit_layer_forward.5} parent=0 // pred_check
    _
  $region7: #{dit_layer_forward.5} parent=0 // pred_check_branch
    %18 = sbr.rel (0) target = $region9
  $region8: #{dit_layer_forward.5} parent=0 // pred_region
    _
  $region9: #{dit_layer_forward.5} parent=0 // pred_fallthru
    _
  // Predicated region
  $region10: #{dit_layer_forward.5} parent=0 // pred_check
    _
  $region11: #{dit_layer_forward.5} parent=0 // pred_check_branch
    %20 = sbr.rel (0) target = $region13
  $region12: #{dit_layer_forward.5} parent=0 // pred_region
    _
  $region13: #{dit_layer_forward.5} parent=0 // pred_fallthru
    _
  // Predicated region
  $region14: #{dit_layer_forward.5} parent=0 // pred_check
    _
  $region15: #{dit_layer_forward.5} parent=0 // pred_check_branch
    %22 = sbr.rel (0) target = $region17
  $region16: #{dit_layer_forward.5} parent=0 // pred_region
    _
  $region17: #{dit_layer_forward.5} parent=0 // pred_fallthru
    _
  // Predicated region
  $region18: #{dit_layer_forward.5} parent=0 // pred_check
    _
  $region19: #{dit_layer_forward.5} parent=0 // pred_check_branch
    %24 = sbr.rel (0) target = $region21
  $region20: #{dit_layer_forward.5} parent=0 // pred_region
    _
  $region21: #{dit_layer_forward.5} parent=0 // pred_fallthru
    _
  // Predicated region
  $region22: #{dit_layer_forward.5} parent=0 // pred_check
    _
  $region23: #{dit_layer_forward.5} parent=0 // pred_check_branch
    %26 = sbr.rel (0) target = $region25
  $region24: #{dit_layer_forward.5} parent=0 // pred_region
    _
  $region25: #{dit_layer_forward.5} parent=0 // pred_fallthru
    _
  // Predicated region
  $region26: #{dit_layer_forward.5} parent=0 // pred_check
    _
  $region27: #{dit_layer_forward.5} parent=0 // pred_check_branch
    %28 = sbr.rel (0) target = $region29
  $region28: #{dit_layer_forward.5} parent=0 // pred_region
    _
  $region29: #{dit_layer_forward.5} parent=0 // pred_fallthru
    _
  %v30 = vld [vmem:[%s0] sm:$0xf]
  %v31 = vld [vmem:[%s0 + $0x4] sm:$0xf]
  %v32 = vld [vmem:[%s0 + $0x8] sm:$0xf]
  %v33 = vld [vmem:[%s0 + $0xc] sm:$0xf]
  %v34 = vld [vmem:[%s0 + $0x10] sm:$0xf]
  %v35 = vld [vmem:[%s0 + $0x14] sm:$0xf]
  %v36 = vld [vmem:[%s0 + $0x18] sm:$0xf]
  %v37 = vld [vmem:[%s0 + $0x1c] sm:$0xf]
  %v38 = vunpack.c.l.bf16 %v30
  %v39 = vunpack.c.l.bf16 %v31
  %v40 = vunpack.c.l.bf16 %v32
  %v41 = vunpack.c.l.bf16 %v33
  %v42 = vunpack.c.l.bf16 %v34
  %v43 = vunpack.c.l.bf16 %v35
  %v44 = vunpack.c.l.bf16 %v36
  %v45 = vunpack.c.l.bf16 %v37
  %vm46 = vcmask 261120
  %v47 = vsel %vm46, %v38, 0.0
  %48 = vadd.xlane.f32.xlu0 %v47
  %v49 = vpop.xlane.xlu0 %48
  %v50 = vsel %vm46, %v39, 0.0
  %51 = vadd.xlane.f32.xlu0 %v50
  %v52 = vpop.xlane.xlu0 %51
  %v53 = vsel %vm46, %v40, 0.0
  %54 = vadd.xlane.f32.xlu0 %v53
  %v55 = vpop.xlane.xlu0 %54
  %v56 = vsel %vm46, %v41, 0.0
  %57 = vadd.xlane.f32.xlu0 %v56
  %v58 = vpop.xlane.xlu0 %57
  %v59 = vsel %vm46, %v42, 0.0
  %60 = vadd.xlane.f32.xlu0 %v59
  %v61 = vpop.xlane.xlu0 %60
  %v62 = vsel %vm46, %v43, 0.0
  %63 = vadd.xlane.f32.xlu0 %v62
  %v64 = vpop.xlane.xlu0 %63
  %v65 = vsel %vm46, %v44, 0.0
  %66 = vadd.xlane.f32.xlu0 %v65
  %v67 = vpop.xlane.xlu0 %66
  %v68 = vsel %vm46, %v45, 0.0
  %69 = vadd.xlane.f32.xlu0 %v68
  %v70 = vpop.xlane.xlu0 %69
  %v71 = vrcp.pop 32.0
  %v72 = vmul.f32 %v49, %v71
  %v73 = vmul.f32 %v52, %v71
  %v74 = vmul.f32 %v55, %v71
  %v75 = vmul.f32 %v58, %v71
  %v76 = vmul.f32 %v61, %v71
  %v77 = vmul.f32 %v64, %v71
  %v78 = vmul.f32 %v67, %v71
  %v79 = vmul.f32 %v70, %v71
  %v80 = vsub.f32 %v38, %v72
  %v81 = vsub.f32 %v39, %v73
  %v82 = vsub.f32 %v40, %v74
  %v83 = vsub.f32 %v41, %v75
  %v84 = vsub.f32 %v42, %v76
  %v85 = vsub.f32 %v43, %v77
  %v86 = vsub.f32 %v44, %v78
  %v87 = vsub.f32 %v45, %v79
  %v88 = vmul.f32 %v80, %v80
  %v89 = vmul.f32 %v81, %v81
  %v90 = vmul.f32 %v82, %v82
  %v91 = vmul.f32 %v83, %v83
  %v92 = vmul.f32 %v84, %v84
  %v93 = vmul.f32 %v85, %v85
  %v94 = vmul.f32 %v86, %v86
  %v95 = vmul.f32 %v87, %v87
  %v96 = vsel %vm46, %v88, 0.0
  %97 = vadd.xlane.f32.xlu0 %v96
  %v98 = vpop.xlane.xlu0 %97
  %v99 = vsel %vm46, %v89, 0.0
  %100 = vadd.xlane.f32.xlu0 %v99
  %v101 = vpop.xlane.xlu0 %100
  %v102 = vsel %vm46, %v90, 0.0
  %103 = vadd.xlane.f32.xlu0 %v102
  %v104 = vpop.xlane.xlu0 %103
  %v105 = vsel %vm46, %v91, 0.0
  %106 = vadd.xlane.f32.xlu0 %v105
  %v107 = vpop.xlane.xlu0 %106
  %v108 = vsel %vm46, %v92, 0.0
  %109 = vadd.xlane.f32.xlu0 %v108
  %v110 = vpop.xlane.xlu0 %109
  %v111 = vsel %vm46, %v93, 0.0
  %112 = vadd.xlane.f32.xlu0 %v111
  %v113 = vpop.xlane.xlu0 %112
  %v114 = vsel %vm46, %v94, 0.0
  %115 = vadd.xlane.f32.xlu0 %v114
  %v116 = vpop.xlane.xlu0 %115
  %v117 = vsel %vm46, %v95, 0.0
  %118 = vadd.xlane.f32.xlu0 %v117
  %v119 = vpop.xlane.xlu0 %118
  %v120 = vmul.f32 %v98, %v71
  %v121 = vmul.f32 %v101, %v71
  %v122 = vmul.f32 %v104, %v71
  %v123 = vmul.f32 %v107, %v71
  %v124 = vmul.f32 %v110, %v71
  %v125 = vmul.f32 %v113, %v71
  %v126 = vmul.f32 %v116, %v71
  %v127 = vmul.f32 %v119, %v71
  %v128 = vadd.f32 %v120, 1e-05
  %v129 = vadd.f32 %v121, 1e-05
  %v130 = vadd.f32 %v122, 1e-05
  %v131 = vadd.f32 %v123, 1e-05
  %v132 = vadd.f32 %v124, 1e-05
  %v133 = vadd.f32 %v125, 1e-05
  %v134 = vadd.f32 %v126, 1e-05
  %v135 = vadd.f32 %v127, 1e-05
  %v136 = vrsqrt.pop %v128
  %v137 = vrsqrt.pop %v129
  %v138 = vrsqrt.pop %v130
  %v139 = vrsqrt.pop %v131
  %v140 = vrsqrt.pop %v132
  %v141 = vrsqrt.pop %v133
  %v142 = vrsqrt.pop %v134
  %v143 = vrsqrt.pop %v135
  %v144 = vmul.f32 %v80, %v136
  %v145 = vmul.f32 %v81, %v137
  %v146 = vmul.f32 %v82, %v138
  %v147 = vmul.f32 %v83, %v139
  %v148 = vmul.f32 %v84, %v140
  %v149 = vmul.f32 %v85, %v141
  %v150 = vmul.f32 %v86, %v142
  %v151 = vmul.f32 %v87, %v143
  %v152 = vlaneseq
  %v153 = vand.u32 %v152, 127
  %v154 = vld [vmem:[%s1] sm:$0xff]
  %v155 = vld [vmem:[%s1 + $0x8] sm:$0xff]
  %v156 = vld [vmem:[%s1 + $0x10] sm:$0xff]
  %v157 = vld [vmem:[%s1 + $0x18] sm:$0xff]
  %v158 = vld [vmem:[%s1 + $0x20] sm:$0xff]
  %v159 = vld [vmem:[%s1 + $0x28] sm:$0xff]
  %v160 = vld [vmem:[%s1 + $0x30] sm:$0xff]
  %v161 = vld [vmem:[%s1 + $0x38] sm:$0xff]
  %162 = vset.pattern.permute.xlu0 0
  %163 = vperm.xlu0 %162, %v154
  %v164 = vpop.permute.xlu0 %163
  %165 = vset.pattern.permute.xlu0 0
  %166 = vperm.xlu0 %165, %v155
  %v167 = vpop.permute.xlu0 %166
  %168 = vset.pattern.permute.xlu0 0
  %169 = vperm.xlu0 %168, %v156
  %v170 = vpop.permute.xlu0 %169
  %171 = vset.pattern.permute.xlu0 0
  %172 = vperm.xlu0 %171, %v157
  %v173 = vpop.permute.xlu0 %172
  %174 = vset.pattern.permute.xlu0 0
  %175 = vperm.xlu0 %174, %v158
  %v176 = vpop.permute.xlu0 %175
  %177 = vset.pattern.permute.xlu0 0
  %178 = vperm.xlu0 %177, %v159
  %v179 = vpop.permute.xlu0 %178
  %180 = vset.pattern.permute.xlu0 0
  %181 = vperm.xlu0 %180, %v160
  %v182 = vpop.permute.xlu0 %181
  %183 = vset.pattern.permute.xlu0 0
  %184 = vperm.xlu0 %183, %v161
  %v185 = vpop.permute.xlu0 %184
  %vm186 = vcmp.eq.s32.totalorder %v164, %v153
  %vm187 = vcmp.eq.s32.totalorder %v167, %v153
  %vm188 = vcmp.eq.s32.totalorder %v170, %v153
  %vm189 = vcmp.eq.s32.totalorder %v173, %v153
  %vm190 = vcmp.eq.s32.totalorder %v176, %v153
  %vm191 = vcmp.eq.s32.totalorder %v179, %v153
  %vm192 = vcmp.eq.s32.totalorder %v182, %v153
  %vm193 = vcmp.eq.s32.totalorder %v185, %v153
  %v194 = vsel %vm186, 1, 0
  %v195 = vsel %vm187, 1, 0
  %v196 = vsel %vm188, 1, 0
  %v197 = vsel %vm189, 1, 0
  %v198 = vsel %vm190, 1, 0
  %v199 = vsel %vm191, 1, 0
  %v200 = vsel %vm192, 1, 0
  %v201 = vsel %vm193, 1, 0
  %v202 = vcvt.s32.f32 %v194
  %v203 = vcvt.s32.f32 %v195
  %v204 = vcvt.s32.f32 %v196
  %v205 = vcvt.s32.f32 %v197
  %v206 = vcvt.s32.f32 %v198
  %v207 = vcvt.s32.f32 %v199
  %v208 = vcvt.s32.f32 %v200
  %v209 = vcvt.s32.f32 %v201
  %v210 = vld [vmem:[%s2] sm:$0xff]
  %vm211 = vcmask 64512
  %v213 = vsel %vm211, %v202, 0
  %v216 = vsel %vm211, %v203, 0
  %v219 = vsel %vm211, %v204, 0
  %v222 = vsel %vm211, %v205, 0
  %v225 = vsel %vm211, %v206, 0
  %v228 = vsel %vm211, %v207, 0
  %v231 = vsel %vm211, %v208, 0
  %v234 = vsel %vm211, %v209, 0
  %236 = vmatprep.subr.mxu0 0.0
  %237 = vmatpush1.msra.mxu0 %v210
  %238 = vmatprep.subr.mxu0 0.0
  %239 = vmatpush1.msra.mxu0 0.0
  %240 = vmatprep.subr.mxu0 0.0
  %241 = vmatpush1.msra.mxu0 0.0
  %242 = vmatprep.subr.mxu0 0.0
  %243 = vmatpush1.msra.mxu0 0.0
  %244 = vmatprep.subr.mxu0 0.0
  %245 = vmatpush1.msra.mxu0 0.0
  %246 = vmatprep.subr.mxu0 0.0
  %247 = vmatpush1.msra.mxu0 0.0
  %248 = vmatprep.subr.mxu0 0.0
  %249 = vmatpush1.msra.mxu0 0.0
  %250 = vmatprep.subr.mxu0 0.0
  %251 = vmatpush1.msra.mxu0 0.0
  %252 = vmatprep.subr.mxu0 0.0
  %253 = vmatpush1.msra.mxu0 0.0
  %254 = vmatprep.subr.mxu0 0.0
  %255 = vmatpush1.msra.mxu0 0.0
  %256 = vmatprep.subr.mxu0 0.0
  %257 = vmatpush1.msra.mxu0 0.0
  %258 = vmatprep.subr.mxu0 0.0
  %259 = vmatpush1.msra.mxu0 0.0
  %260 = vmatprep.subr.mxu0 0.0
  %261 = vmatpush1.msra.mxu0 0.0
  %262 = vmatprep.subr.mxu0 0.0
  %263 = vmatpush1.msra.mxu0 0.0
  %264 = vmatprep.subr.mxu0 0.0
  %265 = vmatpush1.msra.mxu0 0.0
  %266 = vmatprep.subr.mxu0 0.0
  %267 = vmatpush1.msra.mxu0 0.0
  %268 = vmatprep.subr.mxu0 0.0
  %269 = vmatpush1.msra.mxu0 0.0
  %270 = vmatprep.subr.mxu0 0.0
  %271 = vmatpush1.msra.mxu0 0.0
  %272 = vmatprep.subr.mxu0 0.0
  %273 = vmatpush1.msra.mxu0 0.0
  %274 = vmatprep.subr.mxu0 0.0
  %275 = vmatpush1.msra.mxu0 0.0
  %276 = vmatprep.subr.mxu0 0.0
  %277 = vmatpush1.msra.mxu0 0.0
  %278 = vmatprep.subr.mxu0 0.0
  %279 = vmatpush1.msra.mxu0 0.0
  %280 = vmatprep.subr.mxu0 0.0
  %281 = vmatpush1.msra.mxu0 0.0
  %282 = vmatprep.subr.mxu0 0.0
  %283 = vmatpush1.msra.mxu0 0.0
  %284 = vmatprep.subr.mxu0 0.0
  %285 = vmatpush1.msra.mxu0 0.0
  %286 = vmatprep.subr.mxu0 0.0
  %287 = vmatpush1.msra.mxu0 0.0
  %288 = vmatprep.subr.mxu0 0.0
  %289 = vmatpush1.msra.mxu0 0.0
  %290 = vmatprep.subr.mxu0 0.0
  %291 = vmatpush1.msra.mxu0 0.0
  %292 = vmatprep.subr.mxu0 0.0
  %293 = vmatpush1.msra.mxu0 0.0
  %294 = vmatprep.subr.mxu0 0.0
  %295 = vmatpush1.msra.mxu0 0.0
  %296 = vmatprep.subr.mxu0 0.0
  %297 = vmatpush1.msra.mxu0 0.0
  %298 = vmatprep.subr.mxu0 0.0
  %299 = vmatpush1.msra.mxu0 0.0
  %300 = vmatprep.mubr.f32.mxu0 0.0
  %301 = vmatmul.mubr.f32.gmra.mrb[0].mxu0 %v213
  %v302 = vpop.f32.mrb[0].mxu0
  %v303 = vadd.f32 0.0, %v302
  %v304 = vpop.f32.mrb[0].mxu0
  %305 = vmatprep.mubr.f32.mxu0 0.0
  %306 = vmatmul.mubr.f32.gmra.mrb[0].mxu0 %v216
  %v307 = vpop.f32.mrb[0].mxu0
  %v308 = vadd.f32 0.0, %v307
  %v309 = vpop.f32.mrb[0].mxu0
  %310 = vmatprep.mubr.f32.mxu0 0.0
  %311 = vmatmul.mubr.f32.gmra.mrb[0].mxu0 %v219
  %v312 = vpop.f32.mrb[0].mxu0
  %v313 = vadd.f32 0.0, %v312
  %v314 = vpop.f32.mrb[0].mxu0
  %315 = vmatprep.mubr.f32.mxu0 0.0
  %316 = vmatmul.mubr.f32.gmra.mrb[0].mxu0 %v222
  %v317 = vpop.f32.mrb[0].mxu0
  %v318 = vadd.f32 0.0, %v317
  %v319 = vpop.f32.mrb[0].mxu0
  %320 = vmatprep.mubr.f32.mxu0 0.0
  %321 = vmatmul.mubr.f32.gmra.mrb[0].mxu0 %v225
  %v322 = vpop.f32.mrb[0].mxu0
  %v323 = vadd.f32 0.0, %v322
  %v324 = vpop.f32.mrb[0].mxu0
  %325 = vmatprep.mubr.f32.mxu0 0.0
  %326 = vmatmul.mubr.f32.gmra.mrb[0].mxu0 %v228
  %v327 = vpop.f32.mrb[0].mxu0
  %v328 = vadd.f32 0.0, %v327
  %v329 = vpop.f32.mrb[0].mxu0
  %330 = vmatprep.mubr.f32.mxu0 0.0
  %331 = vmatmul.mubr.f32.gmra.mrb[0].mxu0 %v231
  %v332 = vpop.f32.mrb[0].mxu0
  %v333 = vadd.f32 0.0, %v332
  %v334 = vpop.f32.mrb[0].mxu0
  %335 = vmatprep.mubr.f32.mxu0 0.0
  %336 = vmatmul.mubr.f32.gmra.mrb[0].mxu0 %v234
  %v337 = vpop.f32.mrb[0].mxu0
  %v338 = vadd.f32 0.0, %v337
  %v339 = vpop.f32.mrb[0].mxu0
  %340 = vdwg.mxu0
  %v341 = vmul.f32 %v144, %v303
  %v342 = vmul.f32 %v145, %v308
  %v343 = vmul.f32 %v146, %v313
  %v344 = vmul.f32 %v147, %v318
  %v345 = vmul.f32 %v148, %v323
  %v346 = vmul.f32 %v149, %v328
  %v347 = vmul.f32 %v150, %v333
  %v348 = vmul.f32 %v151, %v338
  %357 = vrot.lane.b32.xlu0 %v303, 96
  %v358 = vpop.permute.xlu0 %357
  %359 = vrot.lane.b32.xlu0 %v308, 96
  %v360 = vpop.permute.xlu0 %359
  %361 = vrot.lane.b32.xlu0 %v313, 96
  %v362 = vpop.permute.xlu0 %361
  %363 = vrot.lane.b32.xlu0 %v318, 96
  %v364 = vpop.permute.xlu0 %363
  %365 = vrot.lane.b32.xlu0 %v323, 96
  %v366 = vpop.permute.xlu0 %365
  %367 = vrot.lane.b32.xlu0 %v328, 96
  %v368 = vpop.permute.xlu0 %367
  %369 = vrot.lane.b32.xlu0 %v333, 96
  %v370 = vpop.permute.xlu0 %369
  %371 = vrot.lane.b32.xlu0 %v338, 96
  %v372 = vpop.permute.xlu0 %371
  %v381 = vadd.f32 %v341, %v358
  %v382 = vadd.f32 %v342, %v360
  %v383 = vadd.f32 %v343, %v362
  %v384 = vadd.f32 %v344, %v364
  %v385 = vadd.f32 %v345, %v366
  %v386 = vadd.f32 %v346, %v368
  %v387 = vadd.f32 %v347, %v370
  %v388 = vadd.f32 %v348, %v372
  %v389 = vpack.c.bf16 %v382, %v381
  %v390 = vpack.c.bf16 %v384, %v383
  %v391 = vpack.c.bf16 %v386, %v385
  %v392 = vpack.c.bf16 %v388, %v387
  %v393 = vld [vmem:[%s3] sm:$0xf]
  %v394 = vld [vmem:[%s3 + $0x4] sm:$0xf]
  %v395 = vld [vmem:[%s3 + $0x8] sm:$0xf]
  %v396 = vld [vmem:[%s3 + $0xc] sm:$0xf]
  %v397 = vld [vmem:[%s4] sm:$0x1]
  %v399 = vlaneseq
  %v400 = vshrl.u32 %v399, 7
  %v401 = vsub.s32 0, %v400
  %v402 = vrot.slane %v397, %v401
  %v408 = vunpack.c.l.b16 %v393
  %v409 = vunpack.c.l.b16 %v394
  %v410 = vunpack.c.l.b16 %v395
  %v411 = vunpack.c.l.b16 %v396
  %v412 = vpack.c.b16 %v409, %v408
  %v413 = vpack.c.b16 %v411, %v410
  %v417 = vsel %vm46, %v389, 0
  %v420 = vsel %vm46, %v390, 0
  %v423 = vsel %vm46, %v391, 0
  %v426 = vsel %vm46, %v392, 0
  %428 = vmatprep.subr.bf16.mxu0 0
  %429 = vmatpush1.bf16.msra.mxu0 %v412
  %430 = vmatprep.subr.bf16.mxu0 0
  %431 = vmatpush1.bf16.msra.mxu0 %v413
  %432 = vmatprep.subr.bf16.mxu0 0
  %433 = vmatpush1.bf16.msra.mxu0 0
  %434 = vmatprep.subr.bf16.mxu0 0
  %435 = vmatpush1.bf16.msra.mxu0 0
  %436 = vmatprep.subr.bf16.mxu0 0
  %437 = vmatpush1.bf16.msra.mxu0 0
  %438 = vmatprep.subr.bf16.mxu0 0
  %439 = vmatpush1.bf16.msra.mxu0 0
  %440 = vmatprep.subr.bf16.mxu0 0
  %441 = vmatpush1.bf16.msra.mxu0 0
  %442 = vmatprep.subr.bf16.mxu0 0
  %443 = vmatpush1.bf16.msra.mxu0 0
  %444 = vmatprep.subr.bf16.mxu0 0
  %445 = vmatpush1.bf16.msra.mxu0 0
  %446 = vmatprep.subr.bf16.mxu0 0
  %447 = vmatpush1.bf16.msra.mxu0 0
  %448 = vmatprep.subr.bf16.mxu0 0
  %449 = vmatpush1.bf16.msra.mxu0 0
  %450 = vmatprep.subr.bf16.mxu0 0
  %451 = vmatpush1.bf16.msra.mxu0 0
  %452 = vmatprep.subr.bf16.mxu0 0
  %453 = vmatpush1.bf16.msra.mxu0 0
  %454 = vmatprep.subr.bf16.mxu0 0
  %455 = vmatpush1.bf16.msra.mxu0 0
  %456 = vmatprep.subr.bf16.mxu0 0
  %457 = vmatpush1.bf16.msra.mxu0 0
  %458 = vmatprep.subr.bf16.mxu0 0
  %459 = vmatpush1.bf16.msra.mxu0 0
  %460 = vmatprep.mubr.bf16.mxu0 0
  %461 = vmatmul.mubr.bf16.gmra.mrb[0].mxu0 %v417
  %v462 = vpop.f32.mrb[0].mxu0
  %v463 = vadd.f32 %v402, %v462
  %v464 = vpop.f32.mrb[0].mxu0
  %v465 = vpop.f32.mrb[0].mxu0
  %v466 = vadd.f32 %v402, %v465
  %v467 = vpop.f32.mrb[0].mxu0
  %468 = vmatprep.mubr.bf16.mxu0 0
  %469 = vmatmul.mubr.bf16.gmra.mrb[0].mxu0 %v420
  %v470 = vpop.f32.mrb[0].mxu0
  %v471 = vadd.f32 %v402, %v470
  %v472 = vpop.f32.mrb[0].mxu0
  %v473 = vpop.f32.mrb[0].mxu0
  %v474 = vadd.f32 %v402, %v473
  %v475 = vpop.f32.mrb[0].mxu0
  %476 = vmatprep.mubr.bf16.mxu0 0
  %477 = vmatmul.mubr.bf16.gmra.mrb[0].mxu0 %v423
  %v478 = vpop.f32.mrb[0].mxu0
  %v479 = vadd.f32 %v402, %v478
  %v480 = vpop.f32.mrb[0].mxu0
  %v481 = vpop.f32.mrb[0].mxu0
  %v482 = vadd.f32 %v402, %v481
  %v483 = vpop.f32.mrb[0].mxu0
  %484 = vmatprep.mubr.bf16.mxu0 0
  %485 = vmatmul.mubr.bf16.gmra.mrb[0].mxu0 %v426
  %v486 = vpop.f32.mrb[0].mxu0
  %v487 = vadd.f32 %v402, %v486
  %v488 = vpop.f32.mrb[0].mxu0
  %v489 = vpop.f32.mrb[0].mxu0
  %v490 = vadd.f32 %v402, %v489
  %v491 = vpop.f32.mrb[0].mxu0
  %492 = vdwg.mxu0
  %v493 = vmul.f32 %v463, %v463
  %v494 = vmul.f32 %v466, %v466
  %v495 = vmul.f32 %v471, %v471
  %v496 = vmul.f32 %v474, %v474
  %v497 = vmul.f32 %v479, %v479
  %v498 = vmul.f32 %v482, %v482
  %v499 = vmul.f32 %v487, %v487
  %v500 = vmul.f32 %v490, %v490
  %v501 = vsel %vm211, %v493, 0.0
  %502 = vadd.xlane.f32.xlu0 %v501
  %v503 = vpop.xlane.xlu0 %502
  %v504 = vsel %vm211, %v494, 0.0
  %505 = vadd.xlane.f32.xlu0 %v504
  %v506 = vpop.xlane.xlu0 %505
  %v507 = vsel %vm211, %v495, 0.0
  %508 = vadd.xlane.f32.xlu0 %v507
  %v509 = vpop.xlane.xlu0 %508
  %v510 = vsel %vm211, %v496, 0.0
  %511 = vadd.xlane.f32.xlu0 %v510
  %v512 = vpop.xlane.xlu0 %511
  %v513 = vsel %vm211, %v497, 0.0
  %514 = vadd.xlane.f32.xlu0 %v513
  %v515 = vpop.xlane.xlu0 %514
  %v516 = vsel %vm211, %v498, 0.0
  %517 = vadd.xlane.f32.xlu0 %v516
  %v518 = vpop.xlane.xlu0 %517
  %v519 = vsel %vm211, %v499, 0.0
  %520 = vadd.xlane.f32.xlu0 %v519
  %v521 = vpop.xlane.xlu0 %520
  %v522 = vsel %vm211, %v500, 0.0
  %523 = vadd.xlane.f32.xlu0 %v522
  %v524 = vpop.xlane.xlu0 %523
  %v525 = vrcp.pop 8.0
  %v526 = vmul.f32 %v503, %v525
  %v527 = vmul.f32 %v506, %v525
  %v528 = vmul.f32 %v509, %v525
  %v529 = vmul.f32 %v512, %v525
  %v530 = vmul.f32 %v515, %v525
  %v531 = vmul.f32 %v518, %v525
  %v532 = vmul.f32 %v521, %v525
  %v533 = vmul.f32 %v524, %v525
  %v534 = vadd.f32 %v526, 1e-06
  %v535 = vadd.f32 %v527, 1e-06
  %v536 = vadd.f32 %v528, 1e-06
  %v537 = vadd.f32 %v529, 1e-06
  %v538 = vadd.f32 %v530, 1e-06
  %v539 = vadd.f32 %v531, 1e-06
  %v540 = vadd.f32 %v532, 1e-06
  %v541 = vadd.f32 %v533, 1e-06
  %v542 = vrsqrt.pop %v534
  %v543 = vrsqrt.pop %v535
  %v544 = vrsqrt.pop %v536
  %v545 = vrsqrt.pop %v537
  %v546 = vrsqrt.pop %v538
  %v547 = vrsqrt.pop %v539
  %v548 = vrsqrt.pop %v540
  %v549 = vrsqrt.pop %v541
  %558 = vrot.lane.b32.xlu0 %v493, 96
  %v559 = vpop.permute.xlu0 %558
  %560 = vrot.lane.b32.xlu0 %v494, 96
  %v561 = vpop.permute.xlu0 %560
  %562 = vrot.lane.b32.xlu0 %v495, 96
  %v563 = vpop.permute.xlu0 %562
  %564 = vrot.lane.b32.xlu0 %v496, 96
  %v565 = vpop.permute.xlu0 %564
  %566 = vrot.lane.b32.xlu0 %v497, 96
  %v567 = vpop.permute.xlu0 %566
  %568 = vrot.lane.b32.xlu0 %v498, 96
  %v569 = vpop.permute.xlu0 %568
  %570 = vrot.lane.b32.xlu0 %v499, 96
  %v571 = vpop.permute.xlu0 %570
  %572 = vrot.lane.b32.xlu0 %v500, 96
  %v573 = vpop.permute.xlu0 %572
  %v582 = vsel %vm211, %v559, 0.0
  %583 = vadd.xlane.f32.xlu0 %v582
  %v584 = vpop.xlane.xlu0 %583
  %v585 = vsel %vm211, %v561, 0.0
  %586 = vadd.xlane.f32.xlu0 %v585
  %v587 = vpop.xlane.xlu0 %586
  %v588 = vsel %vm211, %v563, 0.0
  %589 = vadd.xlane.f32.xlu0 %v588
  %v590 = vpop.xlane.xlu0 %589
  %v591 = vsel %vm211, %v565, 0.0
  %592 = vadd.xlane.f32.xlu0 %v591
  %v593 = vpop.xlane.xlu0 %592
  %v594 = vsel %vm211, %v567, 0.0
  %595 = vadd.xlane.f32.xlu0 %v594
  %v596 = vpop.xlane.xlu0 %595
  %v597 = vsel %vm211, %v569, 0.0
  %598 = vadd.xlane.f32.xlu0 %v597
  %v599 = vpop.xlane.xlu0 %598
  %v600 = vsel %vm211, %v571, 0.0
  %601 = vadd.xlane.f32.xlu0 %v600
  %v602 = vpop.xlane.xlu0 %601
  %v603 = vsel %vm211, %v573, 0.0
  %604 = vadd.xlane.f32.xlu0 %v603
  %v605 = vpop.xlane.xlu0 %604
  %v606 = vmul.f32 %v584, %v525
  %v607 = vmul.f32 %v587, %v525
  %v608 = vmul.f32 %v590, %v525
  %v609 = vmul.f32 %v593, %v525
  %v610 = vmul.f32 %v596, %v525
  %v611 = vmul.f32 %v599, %v525
  %v612 = vmul.f32 %v602, %v525
  %v613 = vmul.f32 %v605, %v525
  %v614 = vadd.f32 %v606, 1e-06
  %v615 = vadd.f32 %v607, 1e-06
  %v616 = vadd.f32 %v608, 1e-06
  %v617 = vadd.f32 %v609, 1e-06
  %v618 = vadd.f32 %v610, 1e-06
  %v619 = vadd.f32 %v611, 1e-06
  %v620 = vadd.f32 %v612, 1e-06
  %v621 = vadd.f32 %v613, 1e-06
  %v622 = vrsqrt.pop %v614
  %v623 = vrsqrt.pop %v615
  %v624 = vrsqrt.pop %v616
  %v625 = vrsqrt.pop %v617
  %v626 = vrsqrt.pop %v618
  %v627 = vrsqrt.pop %v619
  %v628 = vrsqrt.pop %v620
  %v629 = vrsqrt.pop %v621
  %v630 = vmul.f32 %v463, %v542
  %v631 = vmul.f32 %v466, %v543
  %v632 = vmul.f32 %v471, %v544
  %v633 = vmul.f32 %v474, %v545
  %v634 = vmul.f32 %v479, %v546
  %v635 = vmul.f32 %v482, %v547
  %v636 = vmul.f32 %v487, %v548
  %v637 = vmul.f32 %v490, %v549
  %v638 = vld [vmem:[%s5] sm:$0x1]
  %v640 = vlaneseq
  %v641 = vshrl.u32 %v640, 7
  %v642 = vsub.s32 0, %v641
  %v643 = vrot.slane %v638, %v642
  %v645 = vmul.f32 %v630, %v643
  %v646 = vmul.f32 %v631, %v643
  %v647 = vmul.f32 %v632, %v643
  %v648 = vmul.f32 %v633, %v643
  %v649 = vmul.f32 %v634, %v643
  %v650 = vmul.f32 %v635, %v643
  %v651 = vmul.f32 %v636, %v643
  %v652 = vmul.f32 %v637, %v643
  %v653 = vpack.c.bf16 %v646, %v645
  %v654 = vpack.c.bf16 %v648, %v647
  %v655 = vpack.c.bf16 %v650, %v649
  %v656 = vpack.c.bf16 %v652, %v651
  %v661 = vunpack.c.l.b16 %v653
  %v662 = vunpack.c.h.b16 %v653
  %v663 = vunpack.c.l.b16 %v654
  %v664 = vunpack.c.h.b16 %v654
  %v665 = vunpack.c.l.b16 %v655
  %v666 = vunpack.c.h.b16 %v655
  %v667 = vunpack.c.l.b16 %v656
  %v668 = vunpack.c.h.b16 %v656
  %v669 = vpack.c.b16 %v661, %v661
  %v670 = vpack.c.b16 %v662, %v662
  %v671 = vpack.c.b16 %v663, %v663
  %v672 = vpack.c.b16 %v664, %v664
  %v673 = vpack.c.b16 %v665, %v665
  %v674 = vpack.c.b16 %v666, %v666
  %v675 = vpack.c.b16 %v667, %v667
  %v676 = vpack.c.b16 %v668, %v668
  %vm685 = vcmask 60416
  %686 = vst.msk [vmem:[%s7] sm:$0xf] %vm685, %v669
  %687 = vst.msk [vmem:[%s7 + $0x4] sm:$0xf] %vm685, %v670
  %688 = vst.msk [vmem:[%s7 + $0x8] sm:$0xf] %vm685, %v671
  %689 = vst.msk [vmem:[%s7 + $0xc] sm:$0xf] %vm685, %v672
  %690 = vst.msk [vmem:[%s7 + $0x10] sm:$0xf] %vm685, %v673
  %691 = vst.msk [vmem:[%s7 + $0x14] sm:$0xf] %vm685, %v674
  %692 = vst.msk [vmem:[%s7 + $0x18] sm:$0xf] %vm685, %v675
  %693 = vst.msk [vmem:[%s7 + $0x1c] sm:$0xf] %vm685, %v676
  %v694 = vmul.f32 %v463, %v622
  %v695 = vmul.f32 %v466, %v623
  %v696 = vmul.f32 %v471, %v624
  %v697 = vmul.f32 %v474, %v625
  %v698 = vmul.f32 %v479, %v626
  %v699 = vmul.f32 %v482, %v627
  %v700 = vmul.f32 %v487, %v628
  %v701 = vmul.f32 %v490, %v629
  %v702 = vld [vmem:[%s6] sm:$0x1]
  %v704 = vlaneseq
  %v705 = vshrl.u32 %v704, 7
  %v706 = vsub.s32 0, %v705
  %v707 = vrot.slane %v702, %v706
  %708 = vrot.lane.b32.xlu0 %v707, 32
  %v709 = vpop.permute.xlu0 %708
  %v711 = vmul.f32 %v694, %v709
  %v712 = vmul.f32 %v695, %v709
  %v713 = vmul.f32 %v696, %v709
  %v714 = vmul.f32 %v697, %v709
  %v715 = vmul.f32 %v698, %v709
  %v716 = vmul.f32 %v699, %v709
  %v717 = vmul.f32 %v700, %v709
  %v718 = vmul.f32 %v701, %v709
  %v719 = vpack.c.bf16 %v712, %v711
  %v720 = vpack.c.bf16 %v714, %v713
  %v721 = vpack.c.bf16 %v716, %v715
  %v722 = vpack.c.bf16 %v718, %v717
  %v727 = vunpack.c.l.b16 %v719
  %v728 = vunpack.c.h.b16 %v719
  %v729 = vunpack.c.l.b16 %v720
  %v730 = vunpack.c.h.b16 %v720
  %v731 = vunpack.c.l.b16 %v721
  %v732 = vunpack.c.h.b16 %v721
  %v733 = vunpack.c.l.b16 %v722
  %v734 = vunpack.c.h.b16 %v722
  %v735 = vpack.c.b16 %v727, %v727
  %v736 = vpack.c.b16 %v728, %v728
  %v737 = vpack.c.b16 %v729, %v729
  %v738 = vpack.c.b16 %v730, %v730
  %v739 = vpack.c.b16 %v731, %v731
  %v740 = vpack.c.b16 %v732, %v732
  %v741 = vpack.c.b16 %v733, %v733
  %v742 = vpack.c.b16 %v734, %v734
  %743 = vrot.lane.b32.xlu0 %v735, 96
  %v744 = vpop.permute.xlu0 %743
  %745 = vrot.lane.b32.xlu0 %v736, 96
  %v746 = vpop.permute.xlu0 %745
  %747 = vrot.lane.b32.xlu0 %v737, 96
  %v748 = vpop.permute.xlu0 %747
  %749 = vrot.lane.b32.xlu0 %v738, 96
  %v750 = vpop.permute.xlu0 %749
  %751 = vrot.lane.b32.xlu0 %v739, 96
  %v752 = vpop.permute.xlu0 %751
  %753 = vrot.lane.b32.xlu0 %v740, 96
  %v754 = vpop.permute.xlu0 %753
  %755 = vrot.lane.b32.xlu0 %v741, 96
  %v756 = vpop.permute.xlu0 %755
  %757 = vrot.lane.b32.xlu0 %v742, 96
  %v758 = vpop.permute.xlu0 %757
  %767 = vst.msk [vmem:[%s8] sm:$0xf] %vm685, %v744
  %768 = vst.msk [vmem:[%s8 + $0x4] sm:$0xf] %vm685, %v746
  %769 = vst.msk [vmem:[%s8 + $0x8] sm:$0xf] %vm685, %v748
  %770 = vst.msk [vmem:[%s8 + $0xc] sm:$0xf] %vm685, %v750
  %771 = vst.msk [vmem:[%s8 + $0x10] sm:$0xf] %vm685, %v752
  %772 = vst.msk [vmem:[%s8 + $0x14] sm:$0xf] %vm685, %v754
  %773 = vst.msk [vmem:[%s8 + $0x18] sm:$0xf] %vm685, %v756
  %774 = vst.msk [vmem:[%s8 + $0x1c] sm:$0xf] %vm685, %v758
  %v775 = vpack.c.bf16 %v466, %v463
  %v776 = vpack.c.bf16 %v474, %v471
  %v777 = vpack.c.bf16 %v482, %v479
  %v778 = vpack.c.bf16 %v490, %v487
  %v783 = vunpack.c.l.b16 %v775
  %v784 = vunpack.c.h.b16 %v775
  %v785 = vunpack.c.l.b16 %v776
  %v786 = vunpack.c.h.b16 %v776
  %v787 = vunpack.c.l.b16 %v777
  %v788 = vunpack.c.h.b16 %v777
  %v789 = vunpack.c.l.b16 %v778
  %v790 = vunpack.c.h.b16 %v778
  %v791 = vpack.c.b16 %v783, %v783
  %v792 = vpack.c.b16 %v784, %v784
  %v793 = vpack.c.b16 %v785, %v785
  %v794 = vpack.c.b16 %v786, %v786
  %v795 = vpack.c.b16 %v787, %v787
  %v796 = vpack.c.b16 %v788, %v788
  %v797 = vpack.c.b16 %v789, %v789
  %v798 = vpack.c.b16 %v790, %v790
  %799 = vrot.lane.b32.xlu0 %v791, 64
  %v800 = vpop.permute.xlu0 %799
  %801 = vrot.lane.b32.xlu0 %v792, 64
  %v802 = vpop.permute.xlu0 %801
  %803 = vrot.lane.b32.xlu0 %v793, 64
  %v804 = vpop.permute.xlu0 %803
  %805 = vrot.lane.b32.xlu0 %v794, 64
  %v806 = vpop.permute.xlu0 %805
  %807 = vrot.lane.b32.xlu0 %v795, 64
  %v808 = vpop.permute.xlu0 %807
  %809 = vrot.lane.b32.xlu0 %v796, 64
  %v810 = vpop.permute.xlu0 %809
  %811 = vrot.lane.b32.xlu0 %v797, 64
  %v812 = vpop.permute.xlu0 %811
  %813 = vrot.lane.b32.xlu0 %v798, 64
  %v814 = vpop.permute.xlu0 %813
  %823 = vst.msk [vmem:[%s9] sm:$0xf] %vm685, %v800
  %824 = vst.msk [vmem:[%s9 + $0x4] sm:$0xf] %vm685, %v802
  %825 = vst.msk [vmem:[%s9 + $0x8] sm:$0xf] %vm685, %v804
  %826 = vst.msk [vmem:[%s9 + $0xc] sm:$0xf] %vm685, %v806
  %827 = vst.msk [vmem:[%s9 + $0x10] sm:$0xf] %vm685, %v808
  %828 = vst.msk [vmem:[%s9 + $0x14] sm:$0xf] %vm685, %v810
  %829 = vst.msk [vmem:[%s9 + $0x18] sm:$0xf] %vm685, %v812
  %830 = vst.msk [vmem:[%s9 + $0x1c] sm:$0xf] %vm685, %v814
  %831 = vrot.lane.b32.xlu0 %v493, 120
  %v832 = vpop.permute.xlu0 %831
  %833 = vrot.lane.b32.xlu0 %v494, 120
  %v834 = vpop.permute.xlu0 %833
  %835 = vrot.lane.b32.xlu0 %v495, 120
  %v836 = vpop.permute.xlu0 %835
  %837 = vrot.lane.b32.xlu0 %v496, 120
  %v838 = vpop.permute.xlu0 %837
  %839 = vrot.lane.b32.xlu0 %v497, 120
  %v840 = vpop.permute.xlu0 %839
  %841 = vrot.lane.b32.xlu0 %v498, 120
  %v842 = vpop.permute.xlu0 %841
  %843 = vrot.lane.b32.xlu0 %v499, 120
  %v844 = vpop.permute.xlu0 %843
  %845 = vrot.lane.b32.xlu0 %v500, 120
  %v846 = vpop.permute.xlu0 %845
  %v855 = vsel %vm211, %v832, 0.0
  %856 = vadd.xlane.f32.xlu0 %v855
  %v857 = vpop.xlane.xlu0 %856
  %v858 = vsel %vm211, %v834, 0.0
  %859 = vadd.xlane.f32.xlu0 %v858
  %v860 = vpop.xlane.xlu0 %859
  %v861 = vsel %vm211, %v836, 0.0
  %862 = vadd.xlane.f32.xlu0 %v861
  %v863 = vpop.xlane.xlu0 %862
  %v864 = vsel %vm211, %v838, 0.0
  %865 = vadd.xlane.f32.xlu0 %v864
  %v866 = vpop.xlane.xlu0 %865
  %v867 = vsel %vm211, %v840, 0.0
  %868 = vadd.xlane.f32.xlu0 %v867
  %v869 = vpop.xlane.xlu0 %868
  %v870 = vsel %vm211, %v842, 0.0
  %871 = vadd.xlane.f32.xlu0 %v870
  %v872 = vpop.xlane.xlu0 %871
  %v873 = vsel %vm211, %v844, 0.0
  %874 = vadd.xlane.f32.xlu0 %v873
  %v875 = vpop.xlane.xlu0 %874
  %v876 = vsel %vm211, %v846, 0.0
  %877 = vadd.xlane.f32.xlu0 %v876
  %v878 = vpop.xlane.xlu0 %877
  %v879 = vmul.f32 %v857, %v525
  %v880 = vmul.f32 %v860, %v525
  %v881 = vmul.f32 %v863, %v525
  %v882 = vmul.f32 %v866, %v525
  %v883 = vmul.f32 %v869, %v525
  %v884 = vmul.f32 %v872, %v525
  %v885 = vmul.f32 %v875, %v525
  %v886 = vmul.f32 %v878, %v525
  %v887 = vadd.f32 %v879, 1e-06
  %v888 = vadd.f32 %v880, 1e-06
  %v889 = vadd.f32 %v881, 1e-06
  %v890 = vadd.f32 %v882, 1e-06
  %v891 = vadd.f32 %v883, 1e-06
  %v892 = vadd.f32 %v884, 1e-06
  %v893 = vadd.f32 %v885, 1e-06
  %v894 = vadd.f32 %v886, 1e-06
  %v895 = vrsqrt.pop %v887
  %v896 = vrsqrt.pop %v888
  %v897 = vrsqrt.pop %v889
  %v898 = vrsqrt.pop %v890
  %v899 = vrsqrt.pop %v891
  %v900 = vrsqrt.pop %v892
  %v901 = vrsqrt.pop %v893
  %v902 = vrsqrt.pop %v894
  %903 = vrot.lane.b32.xlu0 %v493, 88
  %v904 = vpop.permute.xlu0 %903
  %905 = vrot.lane.b32.xlu0 %v494, 88
  %v906 = vpop.permute.xlu0 %905
  %907 = vrot.lane.b32.xlu0 %v495, 88
  %v908 = vpop.permute.xlu0 %907
  %909 = vrot.lane.b32.xlu0 %v496, 88
  %v910 = vpop.permute.xlu0 %909
  %911 = vrot.lane.b32.xlu0 %v497, 88
  %v912 = vpop.permute.xlu0 %911
  %913 = vrot.lane.b32.xlu0 %v498, 88
  %v914 = vpop.permute.xlu0 %913
  %915 = vrot.lane.b32.xlu0 %v499, 88
  %v916 = vpop.permute.xlu0 %915
  %917 = vrot.lane.b32.xlu0 %v500, 88
  %v918 = vpop.permute.xlu0 %917
  %v927 = vsel %vm211, %v904, 0.0
  %928 = vadd.xlane.f32.xlu0 %v927
  %v929 = vpop.xlane.xlu0 %928
  %v930 = vsel %vm211, %v906, 0.0
  %931 = vadd.xlane.f32.xlu0 %v930
  %v932 = vpop.xlane.xlu0 %931
  %v933 = vsel %vm211, %v908, 0.0
  %934 = vadd.xlane.f32.xlu0 %v933
  %v935 = vpop.xlane.xlu0 %934
  %v936 = vsel %vm211, %v910, 0.0
  %937 = vadd.xlane.f32.xlu0 %v936
  %v938 = vpop.xlane.xlu0 %937
  %v939 = vsel %vm211, %v912, 0.0
  %940 = vadd.xlane.f32.xlu0 %v939
  %v941 = vpop.xlane.xlu0 %940
  %v942 = vsel %vm211, %v914, 0.0
  %943 = vadd.xlane.f32.xlu0 %v942
  %v944 = vpop.xlane.xlu0 %943
  %v945 = vsel %vm211, %v916, 0.0
  %946 = vadd.xlane.f32.xlu0 %v945
  %v947 = vpop.xlane.xlu0 %946
  %v948 = vsel %vm211, %v918, 0.0
  %949 = vadd.xlane.f32.xlu0 %v948
  %v950 = vpop.xlane.xlu0 %949
  %v951 = vmul.f32 %v929, %v525
  %v952 = vmul.f32 %v932, %v525
  %v953 = vmul.f32 %v935, %v525
  %v954 = vmul.f32 %v938, %v525
  %v955 = vmul.f32 %v941, %v525
  %v956 = vmul.f32 %v944, %v525
  %v957 = vmul.f32 %v947, %v525
  %v958 = vmul.f32 %v950, %v525
  %v959 = vadd.f32 %v951, 1e-06
  %v960 = vadd.f32 %v952, 1e-06
  %v961 = vadd.f32 %v953, 1e-06
  %v962 = vadd.f32 %v954, 1e-06
  %v963 = vadd.f32 %v955, 1e-06
  %v964 = vadd.f32 %v956, 1e-06
  %v965 = vadd.f32 %v957, 1e-06
  %v966 = vadd.f32 %v958, 1e-06
  %v967 = vrsqrt.pop %v959
  %v968 = vrsqrt.pop %v960
  %v969 = vrsqrt.pop %v961
  %v970 = vrsqrt.pop %v962
  %v971 = vrsqrt.pop %v963
  %v972 = vrsqrt.pop %v964
  %v973 = vrsqrt.pop %v965
  %v974 = vrsqrt.pop %v966
  %v975 = vmul.f32 %v463, %v895
  %v976 = vmul.f32 %v466, %v896
  %v977 = vmul.f32 %v471, %v897
  %v978 = vmul.f32 %v474, %v898
  %v979 = vmul.f32 %v479, %v899
  %v980 = vmul.f32 %v482, %v900
  %v981 = vmul.f32 %v487, %v901
  %v982 = vmul.f32 %v490, %v902
  %s983 = scalar_lea.vmem %s5, 1
  %v984 = vld [vmem:[%s983] sm:$0x1]
  %v986 = vlaneseq
  %v987 = vshrl.u32 %v986, 7
  %v988 = vsub.s32 0, %v987
  %v989 = vrot.slane %v984, %v988
  %990 = vrot.lane.b32.xlu0 %v989, 8
  %v991 = vpop.permute.xlu0 %990
  %v993 = vmul.f32 %v975, %v991
  %v994 = vmul.f32 %v976, %v991
  %v995 = vmul.f32 %v977, %v991
  %v996 = vmul.f32 %v978, %v991
  %v997 = vmul.f32 %v979, %v991
  %v998 = vmul.f32 %v980, %v991
  %v999 = vmul.f32 %v981, %v991
  %v1000 = vmul.f32 %v982, %v991
  %v1001 = vpack.c.bf16 %v994, %v993
  %v1002 = vpack.c.bf16 %v996, %v995
  %v1003 = vpack.c.bf16 %v998, %v997
  %v1004 = vpack.c.bf16 %v1000, %v999
  %v1009 = vunpack.c.l.b16 %v1001
  %v1010 = vunpack.c.h.b16 %v1001
  %v1011 = vunpack.c.l.b16 %v1002
  %v1012 = vunpack.c.h.b16 %v1002
  %v1013 = vunpack.c.l.b16 %v1003
  %v1014 = vunpack.c.h.b16 %v1003
  %v1015 = vunpack.c.l.b16 %v1004
  %v1016 = vunpack.c.h.b16 %v1004
  %v1017 = vpack.c.b16 %v1009, %v1009
  %v1018 = vpack.c.b16 %v1010, %v1010
  %v1019 = vpack.c.b16 %v1011, %v1011
  %v1020 = vpack.c.b16 %v1012, %v1012
  %v1021 = vpack.c.b16 %v1013, %v1013
  %v1022 = vpack.c.b16 %v1014, %v1014
  %v1023 = vpack.c.b16 %v1015, %v1015
  %v1024 = vpack.c.b16 %v1016, %v1016
  %1025 = vrot.lane.b32.xlu0 %v1017, 120
  %v1026 = vpop.permute.xlu0 %1025
  %1027 = vrot.lane.b32.xlu0 %v1018, 120
  %v1028 = vpop.permute.xlu0 %1027
  %1029 = vrot.lane.b32.xlu0 %v1019, 120
  %v1030 = vpop.permute.xlu0 %1029
  %1031 = vrot.lane.b32.xlu0 %v1020, 120
  %v1032 = vpop.permute.xlu0 %1031
  %1033 = vrot.lane.b32.xlu0 %v1021, 120
  %v1034 = vpop.permute.xlu0 %1033
  %1035 = vrot.lane.b32.xlu0 %v1022, 120
  %v1036 = vpop.permute.xlu0 %1035
  %1037 = vrot.lane.b32.xlu0 %v1023, 120
  %v1038 = vpop.permute.xlu0 %1037
  %1039 = vrot.lane.b32.xlu0 %v1024, 120
  %v1040 = vpop.permute.xlu0 %1039
  %s1049 = scalar_lea.vmem %s7, 32
  %1050 = vst.msk [vmem:[%s1049] sm:$0xf] %vm685, %v1026
  %1051 = vst.msk [vmem:[%s1049 + $0x4] sm:$0xf] %vm685, %v1028
  %1052 = vst.msk [vmem:[%s1049 + $0x8] sm:$0xf] %vm685, %v1030
  %1053 = vst.msk [vmem:[%s1049 + $0xc] sm:$0xf] %vm685, %v1032
  %1054 = vst.msk [vmem:[%s1049 + $0x10] sm:$0xf] %vm685, %v1034
  %1055 = vst.msk [vmem:[%s1049 + $0x14] sm:$0xf] %vm685, %v1036
  %1056 = vst.msk [vmem:[%s1049 + $0x18] sm:$0xf] %vm685, %v1038
  %1057 = vst.msk [vmem:[%s1049 + $0x1c] sm:$0xf] %vm685, %v1040
  %v1058 = vmul.f32 %v463, %v967
  %v1059 = vmul.f32 %v466, %v968
  %v1060 = vmul.f32 %v471, %v969
  %v1061 = vmul.f32 %v474, %v970
  %v1062 = vmul.f32 %v479, %v971
  %v1063 = vmul.f32 %v482, %v972
  %v1064 = vmul.f32 %v487, %v973
  %v1065 = vmul.f32 %v490, %v974
  %s1066 = scalar_lea.vmem %s6, 1
  %v1067 = vld [vmem:[%s1066] sm:$0x1]
  %v1069 = vlaneseq
  %v1070 = vshrl.u32 %v1069, 7
  %v1071 = vsub.s32 0, %v1070
  %v1072 = vrot.slane %v1067, %v1071
  %1073 = vrot.lane.b32.xlu0 %v1072, 40
  %v1074 = vpop.permute.xlu0 %1073
  %v1076 = vmul.f32 %v1058, %v1074
  %v1077 = vmul.f32 %v1059, %v1074
  %v1078 = vmul.f32 %v1060, %v1074
  %v1079 = vmul.f32 %v1061, %v1074
  %v1080 = vmul.f32 %v1062, %v1074
  %v1081 = vmul.f32 %v1063, %v1074
  %v1082 = vmul.f32 %v1064, %v1074
  %v1083 = vmul.f32 %v1065, %v1074
  %v1084 = vpack.c.bf16 %v1077, %v1076
  %v1085 = vpack.c.bf16 %v1079, %v1078
  %v1086 = vpack.c.bf16 %v1081, %v1080
  %v1087 = vpack.c.bf16 %v1083, %v1082
  %v1092 = vunpack.c.l.b16 %v1084
  %v1093 = vunpack.c.h.b16 %v1084
  %v1094 = vunpack.c.l.b16 %v1085
  %v1095 = vunpack.c.h.b16 %v1085
  %v1096 = vunpack.c.l.b16 %v1086
  %v1097 = vunpack.c.h.b16 %v1086
  %v1098 = vunpack.c.l.b16 %v1087
  %v1099 = vunpack.c.h.b16 %v1087
  %v1100 = vpack.c.b16 %v1092, %v1092
  %v1101 = vpack.c.b16 %v1093, %v1093
  %v1102 = vpack.c.b16 %v1094, %v1094
  %v1103 = vpack.c.b16 %v1095, %v1095
  %v1104 = vpack.c.b16 %v1096, %v1096
  %v1105 = vpack.c.b16 %v1097, %v1097
  %v1106 = vpack.c.b16 %v1098, %v1098
  %v1107 = vpack.c.b16 %v1099, %v1099
  %1108 = vrot.lane.b32.xlu0 %v1100, 88
  %v1109 = vpop.permute.xlu0 %1108
  %1110 = vrot.lane.b32.xlu0 %v1101, 88
  %v1111 = vpop.permute.xlu0 %1110
  %1112 = vrot.lane.b32.xlu0 %v1102, 88
  %v1113 = vpop.permute.xlu0 %1112
  %1114 = vrot.lane.b32.xlu0 %v1103, 88
  %v1115 = vpop.permute.xlu0 %1114
  %1116 = vrot.lane.b32.xlu0 %v1104, 88
  %v1117 = vpop.permute.xlu0 %1116
  %1118 = vrot.lane.b32.xlu0 %v1105, 88
  %v1119 = vpop.permute.xlu0 %1118
  %1120 = vrot.lane.b32.xlu0 %v1106, 88
  %v1121 = vpop.permute.xlu0 %1120
  %1122 = vrot.lane.b32.xlu0 %v1107, 88
  %v1123 = vpop.permute.xlu0 %1122
  %s1132 = scalar_lea.vmem %s8, 32
  %1133 = vst.msk [vmem:[%s1132] sm:$0xf] %vm685, %v1109
  %1134 = vst.msk [vmem:[%s1132 + $0x4] sm:$0xf] %vm685, %v1111
  %1135 = vst.msk [vmem:[%s1132 + $0x8] sm:$0xf] %vm685, %v1113
  %1136 = vst.msk [vmem:[%s1132 + $0xc] sm:$0xf] %vm685, %v1115
  %1137 = vst.msk [vmem:[%s1132 + $0x10] sm:$0xf] %vm685, %v1117
  %1138 = vst.msk [vmem:[%s1132 + $0x14] sm:$0xf] %vm685, %v1119
  %1139 = vst.msk [vmem:[%s1132 + $0x18] sm:$0xf] %vm685, %v1121
  %1140 = vst.msk [vmem:[%s1132 + $0x1c] sm:$0xf] %vm685, %v1123
  %1141 = vrot.lane.b32.xlu0 %v791, 56
  %v1142 = vpop.permute.xlu0 %1141
  %1143 = vrot.lane.b32.xlu0 %v792, 56
  %v1144 = vpop.permute.xlu0 %1143
  %1145 = vrot.lane.b32.xlu0 %v793, 56
  %v1146 = vpop.permute.xlu0 %1145
  %1147 = vrot.lane.b32.xlu0 %v794, 56
  %v1148 = vpop.permute.xlu0 %1147
  %1149 = vrot.lane.b32.xlu0 %v795, 56
  %v1150 = vpop.permute.xlu0 %1149
  %1151 = vrot.lane.b32.xlu0 %v796, 56
  %v1152 = vpop.permute.xlu0 %1151
  %1153 = vrot.lane.b32.xlu0 %v797, 56
  %v1154 = vpop.permute.xlu0 %1153
  %1155 = vrot.lane.b32.xlu0 %v798, 56
  %v1156 = vpop.permute.xlu0 %1155
  %s1165 = scalar_lea.vmem %s9, 32
  %1166 = vst.msk [vmem:[%s1165] sm:$0xf] %vm685, %v1142
  %1167 = vst.msk [vmem:[%s1165 + $0x4] sm:$0xf] %vm685, %v1144
  %1168 = vst.msk [vmem:[%s1165 + $0x8] sm:$0xf] %vm685, %v1146
  %1169 = vst.msk [vmem:[%s1165 + $0xc] sm:$0xf] %vm685, %v1148
  %1170 = vst.msk [vmem:[%s1165 + $0x10] sm:$0xf] %vm685, %v1150
  %1171 = vst.msk [vmem:[%s1165 + $0x14] sm:$0xf] %vm685, %v1152
  %1172 = vst.msk [vmem:[%s1165 + $0x18] sm:$0xf] %vm685, %v1154
  %1173 = vst.msk [vmem:[%s1165 + $0x1c] sm:$0xf] %vm685, %v1156
  %1174 = vrot.lane.b32.xlu0 %v493, 112
  %v1175 = vpop.permute.xlu0 %1174
  %1176 = vrot.lane.b32.xlu0 %v494, 112
  %v1177 = vpop.permute.xlu0 %1176
  %1178 = vrot.lane.b32.xlu0 %v495, 112
  %v1179 = vpop.permute.xlu0 %1178
  %1180 = vrot.lane.b32.xlu0 %v496, 112
  %v1181 = vpop.permute.xlu0 %1180
  %1182 = vrot.lane.b32.xlu0 %v497, 112
  %v1183 = vpop.permute.xlu0 %1182
  %1184 = vrot.lane.b32.xlu0 %v498, 112
  %v1185 = vpop.permute.xlu0 %1184
  %1186 = vrot.lane.b32.xlu0 %v499, 112
  %v1187 = vpop.permute.xlu0 %1186
  %1188 = vrot.lane.b32.xlu0 %v500, 112
  %v1189 = vpop.permute.xlu0 %1188
  %v1198 = vsel %vm211, %v1175, 0.0
  %1199 = vadd.xlane.f32.xlu0 %v1198
  %v1200 = vpop.xlane.xlu0 %1199
  %v1201 = vsel %vm211, %v1177, 0.0
  %1202 = vadd.xlane.f32.xlu0 %v1201
  %v1203 = vpop.xlane.xlu0 %1202
  %v1204 = vsel %vm211, %v1179, 0.0
  %1205 = vadd.xlane.f32.xlu0 %v1204
  %v1206 = vpop.xlane.xlu0 %1205
  %v1207 = vsel %vm211, %v1181, 0.0
  %1208 = vadd.xlane.f32.xlu0 %v1207
  %v1209 = vpop.xlane.xlu0 %1208
  %v1210 = vsel %vm211, %v1183, 0.0
  %1211 = vadd.xlane.f32.xlu0 %v1210
  %v1212 = vpop.xlane.xlu0 %1211
  %v1213 = vsel %vm211, %v1185, 0.0
  %1214 = vadd.xlane.f32.xlu0 %v1213
  %v1215 = vpop.xlane.xlu0 %1214
  %v1216 = vsel %vm211, %v1187, 0.0
  %1217 = vadd.xlane.f32.xlu0 %v1216
  %v1218 = vpop.xlane.xlu0 %1217
  %v1219 = vsel %vm211, %v1189, 0.0
  %1220 = vadd.xlane.f32.xlu0 %v1219
  %v1221 = vpop.xlane.xlu0 %1220
  %v1222 = vmul.f32 %v1200, %v525
  %v1223 = vmul.f32 %v1203, %v525
  %v1224 = vmul.f32 %v1206, %v525
  %v1225 = vmul.f32 %v1209, %v525
  %v1226 = vmul.f32 %v1212, %v525
  %v1227 = vmul.f32 %v1215, %v525
  %v1228 = vmul.f32 %v1218, %v525
  %v1229 = vmul.f32 %v1221, %v525
  %v1230 = vadd.f32 %v1222, 1e-06
  %v1231 = vadd.f32 %v1223, 1e-06
  %v1232 = vadd.f32 %v1224, 1e-06
  %v1233 = vadd.f32 %v1225, 1e-06
  %v1234 = vadd.f32 %v1226, 1e-06
  %v1235 = vadd.f32 %v1227, 1e-06
  %v1236 = vadd.f32 %v1228, 1e-06
  %v1237 = vadd.f32 %v1229, 1e-06
  %v1238 = vrsqrt.pop %v1230
  %v1239 = vrsqrt.pop %v1231
  %v1240 = vrsqrt.pop %v1232
  %v1241 = vrsqrt.pop %v1233
  %v1242 = vrsqrt.pop %v1234
  %v1243 = vrsqrt.pop %v1235
  %v1244 = vrsqrt.pop %v1236
  %v1245 = vrsqrt.pop %v1237
  %1246 = vrot.lane.b32.xlu0 %v493, 80
  %v1247 = vpop.permute.xlu0 %1246
  %1248 = vrot.lane.b32.xlu0 %v494, 80
  %v1249 = vpop.permute.xlu0 %1248
  %1250 = vrot.lane.b32.xlu0 %v495, 80
  %v1251 = vpop.permute.xlu0 %1250
  %1252 = vrot.lane.b32.xlu0 %v496, 80
  %v1253 = vpop.permute.xlu0 %1252
  %1254 = vrot.lane.b32.xlu0 %v497, 80
  %v1255 = vpop.permute.xlu0 %1254
  %1256 = vrot.lane.b32.xlu0 %v498, 80
  %v1257 = vpop.permute.xlu0 %1256
  %1258 = vrot.lane.b32.xlu0 %v499, 80
  %v1259 = vpop.permute.xlu0 %1258
  %1260 = vrot.lane.b32.xlu0 %v500, 80
  %v1261 = vpop.permute.xlu0 %1260
  %v1270 = vsel %vm211, %v1247, 0.0
  %1271 = vadd.xlane.f32.xlu0 %v1270
  %v1272 = vpop.xlane.xlu0 %1271
  %v1273 = vsel %vm211, %v1249, 0.0
  %1274 = vadd.xlane.f32.xlu0 %v1273
  %v1275 = vpop.xlane.xlu0 %1274
  %v1276 = vsel %vm211, %v1251, 0.0
  %1277 = vadd.xlane.f32.xlu0 %v1276
  %v1278 = vpop.xlane.xlu0 %1277
  %v1279 = vsel %vm211, %v1253, 0.0
  %1280 = vadd.xlane.f32.xlu0 %v1279
  %v1281 = vpop.xlane.xlu0 %1280
  %v1282 = vsel %vm211, %v1255, 0.0
  %1283 = vadd.xlane.f32.xlu0 %v1282
  %v1284 = vpop.xlane.xlu0 %1283
  %v1285 = vsel %vm211, %v1257, 0.0
  %1286 = vadd.xlane.f32.xlu0 %v1285
  %v1287 = vpop.xlane.xlu0 %1286
  %v1288 = vsel %vm211, %v1259, 0.0
  %1289 = vadd.xlane.f32.xlu0 %v1288
  %v1290 = vpop.xlane.xlu0 %1289
  %v1291 = vsel %vm211, %v1261, 0.0
  %1292 = vadd.xlane.f32.xlu0 %v1291
  %v1293 = vpop.xlane.xlu0 %1292
  %v1294 = vmul.f32 %v1272, %v525
  %v1295 = vmul.f32 %v1275, %v525
  %v1296 = vmul.f32 %v1278, %v525
  %v1297 = vmul.f32 %v1281, %v525
  %v1298 = vmul.f32 %v1284, %v525
  %v1299 = vmul.f32 %v1287, %v525
  %v1300 = vmul.f32 %v1290, %v525
  %v1301 = vmul.f32 %v1293, %v525
  %v1302 = vadd.f32 %v1294, 1e-06
  %v1303 = vadd.f32 %v1295, 1e-06
  %v1304 = vadd.f32 %v1296, 1e-06
  %v1305 = vadd.f32 %v1297, 1e-06
  %v1306 = vadd.f32 %v1298, 1e-06
  %v1307 = vadd.f32 %v1299, 1e-06
  %v1308 = vadd.f32 %v1300, 1e-06
  %v1309 = vadd.f32 %v1301, 1e-06
  %v1310 = vrsqrt.pop %v1302
  %v1311 = vrsqrt.pop %v1303
  %v1312 = vrsqrt.pop %v1304
  %v1313 = vrsqrt.pop %v1305
  %v1314 = vrsqrt.pop %v1306
  %v1315 = vrsqrt.pop %v1307
  %v1316 = vrsqrt.pop %v1308
  %v1317 = vrsqrt.pop %v1309
  %v1318 = vmul.f32 %v463, %v1238
  %v1319 = vmul.f32 %v466, %v1239
  %v1320 = vmul.f32 %v471, %v1240
  %v1321 = vmul.f32 %v474, %v1241
  %v1322 = vmul.f32 %v479, %v1242
  %v1323 = vmul.f32 %v482, %v1243
  %v1324 = vmul.f32 %v487, %v1244
  %v1325 = vmul.f32 %v490, %v1245
  %s1326 = scalar_lea.vmem %s5, 2
  %v1327 = vld [vmem:[%s1326] sm:$0x1]
  %v1329 = vlaneseq
  %v1330 = vshrl.u32 %v1329, 7
  %v1331 = vsub.s32 0, %v1330
  %v1332 = vrot.slane %v1327, %v1331
  %1333 = vrot.lane.b32.xlu0 %v1332, 16
  %v1334 = vpop.permute.xlu0 %1333
  %v1336 = vmul.f32 %v1318, %v1334
  %v1337 = vmul.f32 %v1319, %v1334
  %v1338 = vmul.f32 %v1320, %v1334
  %v1339 = vmul.f32 %v1321, %v1334
  %v1340 = vmul.f32 %v1322, %v1334
  %v1341 = vmul.f32 %v1323, %v1334
  %v1342 = vmul.f32 %v1324, %v1334
  %v1343 = vmul.f32 %v1325, %v1334
  %v1344 = vpack.c.bf16 %v1337, %v1336
  %v1345 = vpack.c.bf16 %v1339, %v1338
  %v1346 = vpack.c.bf16 %v1341, %v1340
  %v1347 = vpack.c.bf16 %v1343, %v1342
  %v1352 = vunpack.c.l.b16 %v1344
  %v1353 = vunpack.c.h.b16 %v1344
  %v1354 = vunpack.c.l.b16 %v1345
  %v1355 = vunpack.c.h.b16 %v1345
  %v1356 = vunpack.c.l.b16 %v1346
  %v1357 = vunpack.c.h.b16 %v1346
  %v1358 = vunpack.c.l.b16 %v1347
  %v1359 = vunpack.c.h.b16 %v1347
  %v1360 = vpack.c.b16 %v1352, %v1352
  %v1361 = vpack.c.b16 %v1353, %v1353
  %v1362 = vpack.c.b16 %v1354, %v1354
  %v1363 = vpack.c.b16 %v1355, %v1355
  %v1364 = vpack.c.b16 %v1356, %v1356
  %v1365 = vpack.c.b16 %v1357, %v1357
  %v1366 = vpack.c.b16 %v1358, %v1358
  %v1367 = vpack.c.b16 %v1359, %v1359
  %1368 = vrot.lane.b32.xlu0 %v1360, 112
  %v1369 = vpop.permute.xlu0 %1368
  %1370 = vrot.lane.b32.xlu0 %v1361, 112
  %v1371 = vpop.permute.xlu0 %1370
  %1372 = vrot.lane.b32.xlu0 %v1362, 112
  %v1373 = vpop.permute.xlu0 %1372
  %1374 = vrot.lane.b32.xlu0 %v1363, 112
  %v1375 = vpop.permute.xlu0 %1374
  %1376 = vrot.lane.b32.xlu0 %v1364, 112
  %v1377 = vpop.permute.xlu0 %1376
  %1378 = vrot.lane.b32.xlu0 %v1365, 112
  %v1379 = vpop.permute.xlu0 %1378
  %1380 = vrot.lane.b32.xlu0 %v1366, 112
  %v1381 = vpop.permute.xlu0 %1380
  %1382 = vrot.lane.b32.xlu0 %v1367, 112
  %v1383 = vpop.permute.xlu0 %1382
  %s1392 = scalar_lea.vmem %s7, 64
  %1393 = vst.msk [vmem:[%s1392] sm:$0xf] %vm685, %v1369
  %1394 = vst.msk [vmem:[%s1392 + $0x4] sm:$0xf] %vm685, %v1371
  %1395 = vst.msk [vmem:[%s1392 + $0x8] sm:$0xf] %vm685, %v1373
  %1396 = vst.msk [vmem:[%s1392 + $0xc] sm:$0xf] %vm685, %v1375
  %1397 = vst.msk [vmem:[%s1392 + $0x10] sm:$0xf] %vm685, %v1377
  %1398 = vst.msk [vmem:[%s1392 + $0x14] sm:$0xf] %vm685, %v1379
  %1399 = vst.msk [vmem:[%s1392 + $0x18] sm:$0xf] %vm685, %v1381
  %1400 = vst.msk [vmem:[%s1392 + $0x1c] sm:$0xf] %vm685, %v1383
  %v1401 = vmul.f32 %v463, %v1310
  %v1402 = vmul.f32 %v466, %v1311
  %v1403 = vmul.f32 %v471, %v1312
  %v1404 = vmul.f32 %v474, %v1313
  %v1405 = vmul.f32 %v479, %v1314
  %v1406 = vmul.f32 %v482, %v1315
  %v1407 = vmul.f32 %v487, %v1316
  %v1408 = vmul.f32 %v490, %v1317
  %s1409 = scalar_lea.vmem %s6, 2
  %v1410 = vld [vmem:[%s1409] sm:$0x1]
  %v1412 = vlaneseq
  %v1413 = vshrl.u32 %v1412, 7
  %v1414 = vsub.s32 0, %v1413
  %v1415 = vrot.slane %v1410, %v1414
  %1416 = vrot.lane.b32.xlu0 %v1415, 48
  %v1417 = vpop.permute.xlu0 %1416
  %v1419 = vmul.f32 %v1401, %v1417
  %v1420 = vmul.f32 %v1402, %v1417
  %v1421 = vmul.f32 %v1403, %v1417
  %v1422 = vmul.f32 %v1404, %v1417
  %v1423 = vmul.f32 %v1405, %v1417
  %v1424 = vmul.f32 %v1406, %v1417
  %v1425 = vmul.f32 %v1407, %v1417
  %v1426 = vmul.f32 %v1408, %v1417
  %v1427 = vpack.c.bf16 %v1420, %v1419
  %v1428 = vpack.c.bf16 %v1422, %v1421
  %v1429 = vpack.c.bf16 %v1424, %v1423
  %v1430 = vpack.c.bf16 %v1426, %v1425
  %v1435 = vunpack.c.l.b16 %v1427
  %v1436 = vunpack.c.h.b16 %v1427
  %v1437 = vunpack.c.l.b16 %v1428
  %v1438 = vunpack.c.h.b16 %v1428
  %v1439 = vunpack.c.l.b16 %v1429
  %v1440 = vunpack.c.h.b16 %v1429
  %v1441 = vunpack.c.l.b16 %v1430
  %v1442 = vunpack.c.h.b16 %v1430
  %v1443 = vpack.c.b16 %v1435, %v1435
  %v1444 = vpack.c.b16 %v1436, %v1436
  %v1445 = vpack.c.b16 %v1437, %v1437
  %v1446 = vpack.c.b16 %v1438, %v1438
  %v1447 = vpack.c.b16 %v1439, %v1439
  %v1448 = vpack.c.b16 %v1440, %v1440
  %v1449 = vpack.c.b16 %v1441, %v1441
  %v1450 = vpack.c.b16 %v1442, %v1442
  %1451 = vrot.lane.b32.xlu0 %v1443, 80
  %v1452 = vpop.permute.xlu0 %1451
  %1453 = vrot.lane.b32.xlu0 %v1444, 80
  %v1454 = vpop.permute.xlu0 %1453
  %1455 = vrot.lane.b32.xlu0 %v1445, 80
  %v1456 = vpop.permute.xlu0 %1455
  %1457 = vrot.lane.b32.xlu0 %v1446, 80
  %v1458 = vpop.permute.xlu0 %1457
  %1459 = vrot.lane.b32.xlu0 %v1447, 80
  %v1460 = vpop.permute.xlu0 %1459
  %1461 = vrot.lane.b32.xlu0 %v1448, 80
  %v1462 = vpop.permute.xlu0 %1461
  %1463 = vrot.lane.b32.xlu0 %v1449, 80
  %v1464 = vpop.permute.xlu0 %1463
  %1465 = vrot.lane.b32.xlu0 %v1450, 80
  %v1466 = vpop.permute.xlu0 %1465
  %s1475 = scalar_lea.vmem %s8, 64
  %1476 = vst.msk [vmem:[%s1475] sm:$0xf] %vm685, %v1452
  %1477 = vst.msk [vmem:[%s1475 + $0x4] sm:$0xf] %vm685, %v1454
  %1478 = vst.msk [vmem:[%s1475 + $0x8] sm:$0xf] %vm685, %v1456
  %1479 = vst.msk [vmem:[%s1475 + $0xc] sm:$0xf] %vm685, %v1458
  %1480 = vst.msk [vmem:[%s1475 + $0x10] sm:$0xf] %vm685, %v1460
  %1481 = vst.msk [vmem:[%s1475 + $0x14] sm:$0xf] %vm685, %v1462
  %1482 = vst.msk [vmem:[%s1475 + $0x18] sm:$0xf] %vm685, %v1464
  %1483 = vst.msk [vmem:[%s1475 + $0x1c] sm:$0xf] %vm685, %v1466
  %1484 = vrot.lane.b32.xlu0 %v791, 48
  %v1485 = vpop.permute.xlu0 %1484
  %1486 = vrot.lane.b32.xlu0 %v792, 48
  %v1487 = vpop.permute.xlu0 %1486
  %1488 = vrot.lane.b32.xlu0 %v793, 48
  %v1489 = vpop.permute.xlu0 %1488
  %1490 = vrot.lane.b32.xlu0 %v794, 48
  %v1491 = vpop.permute.xlu0 %1490
  %1492 = vrot.lane.b32.xlu0 %v795, 48
  %v1493 = vpop.permute.xlu0 %1492
  %1494 = vrot.lane.b32.xlu0 %v796, 48
  %v1495 = vpop.permute.xlu0 %1494
  %1496 = vrot.lane.b32.xlu0 %v797, 48
  %v1497 = vpop.permute.xlu0 %1496
  %1498 = vrot.lane.b32.xlu0 %v798, 48
  %v1499 = vpop.permute.xlu0 %1498
  %s1508 = scalar_lea.vmem %s9, 64
  %1509 = vst.msk [vmem:[%s1508] sm:$0xf] %vm685, %v1485
  %1510 = vst.msk [vmem:[%s1508 + $0x4] sm:$0xf] %vm685, %v1487
  %1511 = vst.msk [vmem:[%s1508 + $0x8] sm:$0xf] %vm685, %v1489
  %1512 = vst.msk [vmem:[%s1508 + $0xc] sm:$0xf] %vm685, %v1491
  %1513 = vst.msk [vmem:[%s1508 + $0x10] sm:$0xf] %vm685, %v1493
  %1514 = vst.msk [vmem:[%s1508 + $0x14] sm:$0xf] %vm685, %v1495
  %1515 = vst.msk [vmem:[%s1508 + $0x18] sm:$0xf] %vm685, %v1497
  %1516 = vst.msk [vmem:[%s1508 + $0x1c] sm:$0xf] %vm685, %v1499
  %1517 = vrot.lane.b32.xlu0 %v493, 104
  %v1518 = vpop.permute.xlu0 %1517
  %1519 = vrot.lane.b32.xlu0 %v494, 104
  %v1520 = vpop.permute.xlu0 %1519
  %1521 = vrot.lane.b32.xlu0 %v495, 104
  %v1522 = vpop.permute.xlu0 %1521
  %1523 = vrot.lane.b32.xlu0 %v496, 104
  %v1524 = vpop.permute.xlu0 %1523
  %1525 = vrot.lane.b32.xlu0 %v497, 104
  %v1526 = vpop.permute.xlu0 %1525
  %1527 = vrot.lane.b32.xlu0 %v498, 104
  %v1528 = vpop.permute.xlu0 %1527
  %1529 = vrot.lane.b32.xlu0 %v499, 104
  %v1530 = vpop.permute.xlu0 %1529
  %1531 = vrot.lane.b32.xlu0 %v500, 104
  %v1532 = vpop.permute.xlu0 %1531
  %v1541 = vsel %vm211, %v1518, 0.0
  %1542 = vadd.xlane.f32.xlu0 %v1541
  %v1543 = vpop.xlane.xlu0 %1542
  %v1544 = vsel %vm211, %v1520, 0.0
  %1545 = vadd.xlane.f32.xlu0 %v1544
  %v1546 = vpop.xlane.xlu0 %1545
  %v1547 = vsel %vm211, %v1522, 0.0
  %1548 = vadd.xlane.f32.xlu0 %v1547
  %v1549 = vpop.xlane.xlu0 %1548
  %v1550 = vsel %vm211, %v1524, 0.0
  %1551 = vadd.xlane.f32.xlu0 %v1550
  %v1552 = vpop.xlane.xlu0 %1551
  %v1553 = vsel %vm211, %v1526, 0.0
  %1554 = vadd.xlane.f32.xlu0 %v1553
  %v1555 = vpop.xlane.xlu0 %1554
  %v1556 = vsel %vm211, %v1528, 0.0
  %1557 = vadd.xlane.f32.xlu0 %v1556
  %v1558 = vpop.xlane.xlu0 %1557
  %v1559 = vsel %vm211, %v1530, 0.0
  %1560 = vadd.xlane.f32.xlu0 %v1559
  %v1561 = vpop.xlane.xlu0 %1560
  %v1562 = vsel %vm211, %v1532, 0.0
  %1563 = vadd.xlane.f32.xlu0 %v1562
  %v1564 = vpop.xlane.xlu0 %1563
  %v1565 = vmul.f32 %v1543, %v525
  %v1566 = vmul.f32 %v1546, %v525
  %v1567 = vmul.f32 %v1549, %v525
  %v1568 = vmul.f32 %v1552, %v525
  %v1569 = vmul.f32 %v1555, %v525
  %v1570 = vmul.f32 %v1558, %v525
  %v1571 = vmul.f32 %v1561, %v525
  %v1572 = vmul.f32 %v1564, %v525
  %v1573 = vadd.f32 %v1565, 1e-06
  %v1574 = vadd.f32 %v1566, 1e-06
  %v1575 = vadd.f32 %v1567, 1e-06
  %v1576 = vadd.f32 %v1568, 1e-06
  %v1577 = vadd.f32 %v1569, 1e-06
  %v1578 = vadd.f32 %v1570, 1e-06
  %v1579 = vadd.f32 %v1571, 1e-06
  %v1580 = vadd.f32 %v1572, 1e-06
  %v1581 = vrsqrt.pop %v1573
  %v1582 = vrsqrt.pop %v1574
  %v1583 = vrsqrt.pop %v1575
  %v1584 = vrsqrt.pop %v1576
  %v1585 = vrsqrt.pop %v1577
  %v1586 = vrsqrt.pop %v1578
  %v1587 = vrsqrt.pop %v1579
  %v1588 = vrsqrt.pop %v1580
  %1589 = vrot.lane.b32.xlu0 %v493, 72
  %v1590 = vpop.permute.xlu0 %1589
  %1591 = vrot.lane.b32.xlu0 %v494, 72
  %v1592 = vpop.permute.xlu0 %1591
  %1593 = vrot.lane.b32.xlu0 %v495, 72
  %v1594 = vpop.permute.xlu0 %1593
  %1595 = vrot.lane.b32.xlu0 %v496, 72
  %v1596 = vpop.permute.xlu0 %1595
  %1597 = vrot.lane.b32.xlu0 %v497, 72
  %v1598 = vpop.permute.xlu0 %1597
  %1599 = vrot.lane.b32.xlu0 %v498, 72
  %v1600 = vpop.permute.xlu0 %1599
  %1601 = vrot.lane.b32.xlu0 %v499, 72
  %v1602 = vpop.permute.xlu0 %1601
  %1603 = vrot.lane.b32.xlu0 %v500, 72
  %v1604 = vpop.permute.xlu0 %1603
  %v1613 = vsel %vm211, %v1590, 0.0
  %1614 = vadd.xlane.f32.xlu0 %v1613
  %v1615 = vpop.xlane.xlu0 %1614
  %v1616 = vsel %vm211, %v1592, 0.0
  %1617 = vadd.xlane.f32.xlu0 %v1616
  %v1618 = vpop.xlane.xlu0 %1617
  %v1619 = vsel %vm211, %v1594, 0.0
  %1620 = vadd.xlane.f32.xlu0 %v1619
  %v1621 = vpop.xlane.xlu0 %1620
  %v1622 = vsel %vm211, %v1596, 0.0
  %1623 = vadd.xlane.f32.xlu0 %v1622
  %v1624 = vpop.xlane.xlu0 %1623
  %v1625 = vsel %vm211, %v1598, 0.0
  %1626 = vadd.xlane.f32.xlu0 %v1625
  %v1627 = vpop.xlane.xlu0 %1626
  %v1628 = vsel %vm211, %v1600, 0.0
  %1629 = vadd.xlane.f32.xlu0 %v1628
  %v1630 = vpop.xlane.xlu0 %1629
  %v1631 = vsel %vm211, %v1602, 0.0
  %1632 = vadd.xlane.f32.xlu0 %v1631
  %v1633 = vpop.xlane.xlu0 %1632
  %v1634 = vsel %vm211, %v1604, 0.0
  %1635 = vadd.xlane.f32.xlu0 %v1634
  %v1636 = vpop.xlane.xlu0 %1635
  %v1637 = vmul.f32 %v1615, %v525
  %v1638 = vmul.f32 %v1618, %v525
  %v1639 = vmul.f32 %v1621, %v525
  %v1640 = vmul.f32 %v1624, %v525
  %v1641 = vmul.f32 %v1627, %v525
  %v1642 = vmul.f32 %v1630, %v525
  %v1643 = vmul.f32 %v1633, %v525
  %v1644 = vmul.f32 %v1636, %v525
  %v1645 = vadd.f32 %v1637, 1e-06
  %v1646 = vadd.f32 %v1638, 1e-06
  %v1647 = vadd.f32 %v1639, 1e-06
  %v1648 = vadd.f32 %v1640, 1e-06
  %v1649 = vadd.f32 %v1641, 1e-06
  %v1650 = vadd.f32 %v1642, 1e-06
  %v1651 = vadd.f32 %v1643, 1e-06
  %v1652 = vadd.f32 %v1644, 1e-06
  %v1653 = vrsqrt.pop %v1645
  %v1654 = vrsqrt.pop %v1646
  %v1655 = vrsqrt.pop %v1647
  %v1656 = vrsqrt.pop %v1648
  %v1657 = vrsqrt.pop %v1649
  %v1658 = vrsqrt.pop %v1650
  %v1659 = vrsqrt.pop %v1651
  %v1660 = vrsqrt.pop %v1652
  %v1661 = vmul.f32 %v463, %v1581
  %v1662 = vmul.f32 %v466, %v1582
  %v1663 = vmul.f32 %v471, %v1583
  %v1664 = vmul.f32 %v474, %v1584
  %v1665 = vmul.f32 %v479, %v1585
  %v1666 = vmul.f32 %v482, %v1586
  %v1667 = vmul.f32 %v487, %v1587
  %v1668 = vmul.f32 %v490, %v1588
  %s1669 = scalar_lea.vmem %s5, 3
  %v1670 = vld [vmem:[%s1669] sm:$0x1]
  %v1672 = vlaneseq
  %v1673 = vshrl.u32 %v1672, 7
  %v1674 = vsub.s32 0, %v1673
  %v1675 = vrot.slane %v1670, %v1674
  %1676 = vrot.lane.b32.xlu0 %v1675, 24
  %v1677 = vpop.permute.xlu0 %1676
  %v1679 = vmul.f32 %v1661, %v1677
  %v1680 = vmul.f32 %v1662, %v1677
  %v1681 = vmul.f32 %v1663, %v1677
  %v1682 = vmul.f32 %v1664, %v1677
  %v1683 = vmul.f32 %v1665, %v1677
  %v1684 = vmul.f32 %v1666, %v1677
  %v1685 = vmul.f32 %v1667, %v1677
  %v1686 = vmul.f32 %v1668, %v1677
  %v1687 = vpack.c.bf16 %v1680, %v1679
  %v1688 = vpack.c.bf16 %v1682, %v1681
  %v1689 = vpack.c.bf16 %v1684, %v1683
  %v1690 = vpack.c.bf16 %v1686, %v1685
  %v1695 = vunpack.c.l.b16 %v1687
  %v1696 = vunpack.c.h.b16 %v1687
  %v1697 = vunpack.c.l.b16 %v1688
  %v1698 = vunpack.c.h.b16 %v1688
  %v1699 = vunpack.c.l.b16 %v1689
  %v1700 = vunpack.c.h.b16 %v1689
  %v1701 = vunpack.c.l.b16 %v1690
  %v1702 = vunpack.c.h.b16 %v1690
  %v1703 = vpack.c.b16 %v1695, %v1695
  %v1704 = vpack.c.b16 %v1696, %v1696
  %v1705 = vpack.c.b16 %v1697, %v1697
  %v1706 = vpack.c.b16 %v1698, %v1698
  %v1707 = vpack.c.b16 %v1699, %v1699
  %v1708 = vpack.c.b16 %v1700, %v1700
  %v1709 = vpack.c.b16 %v1701, %v1701
  %v1710 = vpack.c.b16 %v1702, %v1702
  %1711 = vrot.lane.b32.xlu0 %v1703, 104
  %v1712 = vpop.permute.xlu0 %1711
  %1713 = vrot.lane.b32.xlu0 %v1704, 104
  %v1714 = vpop.permute.xlu0 %1713
  %1715 = vrot.lane.b32.xlu0 %v1705, 104
  %v1716 = vpop.permute.xlu0 %1715
  %1717 = vrot.lane.b32.xlu0 %v1706, 104
  %v1718 = vpop.permute.xlu0 %1717
  %1719 = vrot.lane.b32.xlu0 %v1707, 104
  %v1720 = vpop.permute.xlu0 %1719
  %1721 = vrot.lane.b32.xlu0 %v1708, 104
  %v1722 = vpop.permute.xlu0 %1721
  %1723 = vrot.lane.b32.xlu0 %v1709, 104
  %v1724 = vpop.permute.xlu0 %1723
  %1725 = vrot.lane.b32.xlu0 %v1710, 104
  %v1726 = vpop.permute.xlu0 %1725
  %s1735 = scalar_lea.vmem %s7, 96
  %1736 = vst.msk [vmem:[%s1735] sm:$0xf] %vm685, %v1712
  %1737 = vst.msk [vmem:[%s1735 + $0x4] sm:$0xf] %vm685, %v1714
  %1738 = vst.msk [vmem:[%s1735 + $0x8] sm:$0xf] %vm685, %v1716
  %1739 = vst.msk [vmem:[%s1735 + $0xc] sm:$0xf] %vm685, %v1718
  %1740 = vst.msk [vmem:[%s1735 + $0x10] sm:$0xf] %vm685, %v1720
  %1741 = vst.msk [vmem:[%s1735 + $0x14] sm:$0xf] %vm685, %v1722
  %1742 = vst.msk [vmem:[%s1735 + $0x18] sm:$0xf] %vm685, %v1724
  %1743 = vst.msk [vmem:[%s1735 + $0x1c] sm:$0xf] %vm685, %v1726
  %v1744 = vmul.f32 %v463, %v1653
  %v1745 = vmul.f32 %v466, %v1654
  %v1746 = vmul.f32 %v471, %v1655
  %v1747 = vmul.f32 %v474, %v1656
  %v1748 = vmul.f32 %v479, %v1657
  %v1749 = vmul.f32 %v482, %v1658
  %v1750 = vmul.f32 %v487, %v1659
  %v1751 = vmul.f32 %v490, %v1660
  %s1752 = scalar_lea.vmem %s6, 3
  %v1753 = vld [vmem:[%s1752] sm:$0x1]
  %v1755 = vlaneseq
  %v1756 = vshrl.u32 %v1755, 7
  %v1757 = vsub.s32 0, %v1756
  %v1758 = vrot.slane %v1753, %v1757
  %1759 = vrot.lane.b32.xlu0 %v1758, 56
  %v1760 = vpop.permute.xlu0 %1759
  %v1762 = vmul.f32 %v1744, %v1760
  %v1763 = vmul.f32 %v1745, %v1760
  %v1764 = vmul.f32 %v1746, %v1760
  %v1765 = vmul.f32 %v1747, %v1760
  %v1766 = vmul.f32 %v1748, %v1760
  %v1767 = vmul.f32 %v1749, %v1760
  %v1768 = vmul.f32 %v1750, %v1760
  %v1769 = vmul.f32 %v1751, %v1760
  %v1770 = vpack.c.bf16 %v1763, %v1762
  %v1771 = vpack.c.bf16 %v1765, %v1764
  %v1772 = vpack.c.bf16 %v1767, %v1766
  %v1773 = vpack.c.bf16 %v1769, %v1768
  %v1778 = vunpack.c.l.b16 %v1770
  %v1779 = vunpack.c.h.b16 %v1770
  %v1780 = vunpack.c.l.b16 %v1771
  %v1781 = vunpack.c.h.b16 %v1771
  %v1782 = vunpack.c.l.b16 %v1772
  %v1783 = vunpack.c.h.b16 %v1772
  %v1784 = vunpack.c.l.b16 %v1773
  %v1785 = vunpack.c.h.b16 %v1773
  %v1786 = vpack.c.b16 %v1778, %v1778
  %v1787 = vpack.c.b16 %v1779, %v1779
  %v1788 = vpack.c.b16 %v1780, %v1780
  %v1789 = vpack.c.b16 %v1781, %v1781
  %v1790 = vpack.c.b16 %v1782, %v1782
  %v1791 = vpack.c.b16 %v1783, %v1783
  %v1792 = vpack.c.b16 %v1784, %v1784
  %v1793 = vpack.c.b16 %v1785, %v1785
  %1794 = vrot.lane.b32.xlu0 %v1786, 72
  %v1795 = vpop.permute.xlu0 %1794
  %1796 = vrot.lane.b32.xlu0 %v1787, 72
  %v1797 = vpop.permute.xlu0 %1796
  %1798 = vrot.lane.b32.xlu0 %v1788, 72
  %v1799 = vpop.permute.xlu0 %1798
  %1800 = vrot.lane.b32.xlu0 %v1789, 72
  %v1801 = vpop.permute.xlu0 %1800
  %1802 = vrot.lane.b32.xlu0 %v1790, 72
  %v1803 = vpop.permute.xlu0 %1802
  %1804 = vrot.lane.b32.xlu0 %v1791, 72
  %v1805 = vpop.permute.xlu0 %1804
  %1806 = vrot.lane.b32.xlu0 %v1792, 72
  %v1807 = vpop.permute.xlu0 %1806
  %1808 = vrot.lane.b32.xlu0 %v1793, 72
  %v1809 = vpop.permute.xlu0 %1808
  %s1818 = scalar_lea.vmem %s8, 96
  %1819 = vst.msk [vmem:[%s1818] sm:$0xf] %vm685, %v1795
  %1820 = vst.msk [vmem:[%s1818 + $0x4] sm:$0xf] %vm685, %v1797
  %1821 = vst.msk [vmem:[%s1818 + $0x8] sm:$0xf] %vm685, %v1799
  %1822 = vst.msk [vmem:[%s1818 + $0xc] sm:$0xf] %vm685, %v1801
  %1823 = vst.msk [vmem:[%s1818 + $0x10] sm:$0xf] %vm685, %v1803
  %1824 = vst.msk [vmem:[%s1818 + $0x14] sm:$0xf] %vm685, %v1805
  %1825 = vst.msk [vmem:[%s1818 + $0x18] sm:$0xf] %vm685, %v1807
  %1826 = vst.msk [vmem:[%s1818 + $0x1c] sm:$0xf] %vm685, %v1809
  %1827 = vrot.lane.b32.xlu0 %v791, 40
  %v1828 = vpop.permute.xlu0 %1827
  %1829 = vrot.lane.b32.xlu0 %v792, 40
  %v1830 = vpop.permute.xlu0 %1829
  %1831 = vrot.lane.b32.xlu0 %v793, 40
  %v1832 = vpop.permute.xlu0 %1831
  %1833 = vrot.lane.b32.xlu0 %v794, 40
  %v1834 = vpop.permute.xlu0 %1833
  %1835 = vrot.lane.b32.xlu0 %v795, 40
  %v1836 = vpop.permute.xlu0 %1835
  %1837 = vrot.lane.b32.xlu0 %v796, 40
  %v1838 = vpop.permute.xlu0 %1837
  %1839 = vrot.lane.b32.xlu0 %v797, 40
  %v1840 = vpop.permute.xlu0 %1839
  %1841 = vrot.lane.b32.xlu0 %v798, 40
  %v1842 = vpop.permute.xlu0 %1841
  %s1851 = scalar_lea.vmem %s9, 96
  %1852 = vst.msk [vmem:[%s1851] sm:$0xf] %vm685, %v1828
  %1853 = vst.msk [vmem:[%s1851 + $0x4] sm:$0xf] %vm685, %v1830
  %1854 = vst.msk [vmem:[%s1851 + $0x8] sm:$0xf] %vm685, %v1832
  %1855 = vst.msk [vmem:[%s1851 + $0xc] sm:$0xf] %vm685, %v1834
  %1856 = vst.msk [vmem:[%s1851 + $0x10] sm:$0xf] %vm685, %v1836
  %1857 = vst.msk [vmem:[%s1851 + $0x14] sm:$0xf] %vm685, %v1838
  %1858 = vst.msk [vmem:[%s1851 + $0x18] sm:$0xf] %vm685, %v1840
  %1859 = vst.msk [vmem:[%s1851 + $0x1c] sm:$0xf] %vm685, %v1842
  // Predicated region
  $region30: #{dit_layer_forward.5} parent=0 // pred_check
    _
  $region31: #{dit_layer_forward.5} parent=0 // pred_check_branch
    %1861 = sbr.rel (0) target = $region33
  $region32: #{dit_layer_forward.5} parent=0 // pred_region
    _
  $region33: #{dit_layer_forward.5} parent=0 // pred_fallthru
    _
  // Predicated region
  $region34: #{dit_layer_forward.5} parent=0 // pred_check
    _
  $region35: #{dit_layer_forward.5} parent=0 // pred_check_branch
    %1863 = sbr.rel (0) target = $region37
  $region36: #{dit_layer_forward.5} parent=0 // pred_region
    _
  $region37: #{dit_layer_forward.5} parent=0 // pred_fallthru
    _
  // Predicated region
  $region38: #{dit_layer_forward.5} parent=0 // pred_check
    _
  $region39: #{dit_layer_forward.5} parent=0 // pred_check_branch
    %1865 = sbr.rel (0) target = $region41
  $region40: #{dit_layer_forward.5} parent=0 // pred_region
    _
  $region41: #{dit_layer_forward.5} parent=0 // pred_fallthru
    _
  // Predicated region
  $region42: #{dit_layer_forward.5} parent=0 // pred_check
    _
  $region43: #{dit_layer_forward.5} parent=0 // pred_check_branch
    %1867 = sbr.rel (0) target = $region45
  $region44: #{dit_layer_forward.5} parent=0 // pred_region
    _
  $region45: #{dit_layer_forward.5} parent=0 // pred_fallthru
    _
  // Predicated region
  $region46: #{dit_layer_forward.5} parent=0 // pred_check
    _
  $region47: #{dit_layer_forward.5} parent=0 // pred_check_branch
    %1869 = sbr.rel (0) target = $region49
  $region48: #{dit_layer_forward.5} parent=0 // pred_region
    _
  $region49: #{dit_layer_forward.5} parent=0 // pred_fallthru
    _
  // Predicated region
  $region50: #{dit_layer_forward.5} parent=0 // pred_check
    _
  $region51: #{dit_layer_forward.5} parent=0 // pred_check_branch
    %1871 = sbr.rel (0) target = $region53
  $region52: #{dit_layer_forward.5} parent=0 // pred_region
    _
  $region53: #{dit_layer_forward.5} parent=0 // pred_fallthru
    _

// kernel: dit_layer_forward.6
$region0: #{dit_layer_forward.6}
  #allocation0 [shape = 'u32[]', space=smem, size = 0x4, offset = 0x4, fixed_abs, tag = 'smem constant byte address 0x4 - core index']
  #allocation1 [shape = 'u32[144,128]{1,0:T(1,128)}', space=vmem, size = 0x12000, scoped, tag = 'internal scratch']
  #allocation2 [shape = 'f32[4,64,1]{2,1,0:T(8,128)}', space=vmem, size = 0x20000, scoped, tag = 'scratch operand']
  #allocation3 [shape = 'f32[4,64,1]{2,1,0:T(8,128)}', space=vmem, size = 0x20000, scoped, tag = 'scratch operand']
  #allocation4 [shape = 'f32[4,64,8]{2,1,0:T(8,128)}', space=vmem, size = 0x20000, scoped, tag = 'scratch operand']
  #allocation5 [shape = 's32[1]{0}', space=sflag, size = 0x4, scoped, tag = 'scoped memory for dit_layer_forward.6']
  #allocation6 [shape = 's32[1,1]{1,0:T(1,128)S(6)}', space=smem, size = 0x200, scoped, tag = 'prefetched SMEM operand 0']
  #allocation7 [shape = 's32[1]{0:T(128)S(6)}', space=smem, size = 0x200, scoped, tag = 'prefetched SMEM operand 1']
  %s0 = inlined_call_operand.<no memory space> [shape: s32[1,1], index: 0, kind: input, shape index: {}]
  %s1 = inlined_call_operand.<no memory space> [shape: s32[1], index: 1, kind: input, shape index: {}]
  %s2 = inlined_call_operand.vmem [shape: s32[64,1], index: 2, kind: input, shape index: {}]
  %s3 = inlined_call_operand.vmem [shape: s32[1,64], index: 3, kind: input, shape index: {}]
  %s4 = inlined_call_operand.vmem [shape: bf16[4,64,8], index: 4, kind: input, shape index: {}]
  %s5 = inlined_call_operand.vmem [shape: bf16[4,64,8], index: 5, kind: input, shape index: {}]
  %s6 = inlined_call_operand.vmem [shape: bf16[4,64,8], index: 6, kind: input, shape index: {}]
  %s7 = inlined_call_operand.vmem [shape: bf16[64,32], index: 7, kind: input, shape index: {}]
  %s8 = inlined_call_operand.vmem [shape: bf16[4,8,32], index: 8, kind: input, shape index: {}]
  %s9 = inlined_call_operand.vmem [shape: f32[1,32], index: 9, kind: input, shape index: {}]
  %s10 = inlined_call_operand.vmem [shape: bf16[64,32], index: 10, kind: output, shape index: {}]
  %s11 = sld [smem:[#allocation0]]
  $region54: #{dit_layer_forward.6} parent=0
    _
  %s13 = ssub.s32 1, %s11
  %s14 = scalar_select 0, %s13, %s11
  %15 = sst [smem:[#allocation6]] %s0
  %16 = sst [smem:[#allocation7]] %s1
  // Predicated region
  $region2: #{dit_layer_forward.6} parent=0 // pred_check
    _
  $region3: #{dit_layer_forward.6} parent=0 // pred_check_branch
    %18 = sbr.rel (0) target = $region5
  $region4: #{dit_layer_forward.6} parent=0 // pred_region
    _
  $region5: #{dit_layer_forward.6} parent=0 // pred_fallthru
    _
  // Predicated region
  $region6: #{dit_layer_forward.6} parent=0 // pred_check
    _
  $region7: #{dit_layer_forward.6} parent=0 // pred_check_branch
    %20 = sbr.rel (0) target = $region9
  $region8: #{dit_layer_forward.6} parent=0 // pred_region
    %s21 = sadd.s32 0, 0
    %s22 = smul.u32 %s21, 128
    %s23 = sadd.s32 %s22, 0
    %s24 = sld [smem:[#allocation6 + %s23]]
    %p25 = scmp.lt.s32.totalorder %s24, 0
    %s26 = scalar_select %p25, %s24, 0
    %s27 = scalar_lea.vmem %s3, %s26
    %s28 = sadd.s32 0, 0
    %s29 = smul.u32 %s28, 128
    %s30 = sadd.s32 %s29, 0
    %s31 = sld [smem:[#allocation6 + %s30]]
  $region9: #{dit_layer_forward.6} parent=0 // pred_fallthru
    _
  // Predicated region
  $region10: #{dit_layer_forward.6} parent=0 // pred_check
    _
  $region11: #{dit_layer_forward.6} parent=0 // pred_check_branch
    %33 = sbr.rel (0) target = $region13
  $region12: #{dit_layer_forward.6} parent=0 // pred_region
    _
  $region13: #{dit_layer_forward.6} parent=0 // pred_fallthru
    _
  // Predicated region
  $region14: #{dit_layer_forward.6} parent=0 // pred_check
    _
  $region15: #{dit_layer_forward.6} parent=0 // pred_check_branch
    %35 = sbr.rel (0) target = $region17
  $region16: #{dit_layer_forward.6} parent=0 // pred_region
    %s36 = sadd.s32 0, 0
    %s37 = smul.u32 %s36, 128
    %s38 = sadd.s32 %s37, 0
    %s39 = sld [smem:[#allocation6 + %s38]]
    %s40 = smul.u32 8, %s39
    %p41 = scmp.lt.s32.totalorder %s40, 7
    %s42 = scalar_select %p41, %s40, 7
    %s43 = smul.addr %s42, 4
    %s44 = scalar_lea.vmem %s5, %s43
    %s45 = sadd.s32 0, 0
    %s46 = smul.u32 %s45, 128
    %s47 = sadd.s32 %s46, 0
    %s48 = sld [smem:[#allocation6 + %s47]]
    %s49 = smul.u32 8, %s48
  $region17: #{dit_layer_forward.6} parent=0 // pred_fallthru
    _
  // Predicated region
  $region18: #{dit_layer_forward.6} parent=0 // pred_check
    _
  $region19: #{dit_layer_forward.6} parent=0 // pred_check_branch
    %51 = sbr.rel (0) target = $region21
  $region20: #{dit_layer_forward.6} parent=0 // pred_region
    %s52 = sadd.s32 0, 0
    %s53 = smul.u32 %s52, 128
    %s54 = sadd.s32 %s53, 0
    %s55 = sld [smem:[#allocation6 + %s54]]
    %s56 = smul.u32 8, %s55
    %p57 = scmp.lt.s32.totalorder %s56, 7
    %s58 = scalar_select %p57, %s56, 7
    %s59 = smul.addr %s58, 4
    %s60 = scalar_lea.vmem %s6, %s59
    %s61 = sadd.s32 0, 0
    %s62 = smul.u32 %s61, 128
    %s63 = sadd.s32 %s62, 0
    %s64 = sld [smem:[#allocation6 + %s63]]
    %s65 = smul.u32 8, %s64
  $region21: #{dit_layer_forward.6} parent=0 // pred_fallthru
    _
  // Predicated region
  $region22: #{dit_layer_forward.6} parent=0 // pred_check
    _
  $region23: #{dit_layer_forward.6} parent=0 // pred_check_branch
    %67 = sbr.rel (0) target = $region25
  $region24: #{dit_layer_forward.6} parent=0 // pred_region
    _
  $region25: #{dit_layer_forward.6} parent=0 // pred_fallthru
    _
  // Predicated region
  $region26: #{dit_layer_forward.6} parent=0 // pred_check
    _
  $region27: #{dit_layer_forward.6} parent=0 // pred_check_branch
    %69 = sbr.rel (0) target = $region29
  $region28: #{dit_layer_forward.6} parent=0 // pred_region
    _
  $region29: #{dit_layer_forward.6} parent=0 // pred_fallthru
    _
  // Predicated region
  $region30: #{dit_layer_forward.6} parent=0 // pred_check
    _
  $region31: #{dit_layer_forward.6} parent=0 // pred_check_branch
    %71 = sbr.rel (0) target = $region33
  $region32: #{dit_layer_forward.6} parent=0 // pred_region
    _
  $region33: #{dit_layer_forward.6} parent=0 // pred_fallthru
    _
  %s72 = sadd.s32 0, 0
  %s73 = smul.u32 %s72, 128
  %s74 = sadd.s32 %s73, 0
  %s75 = sld [smem:[#allocation6 + %s74]]
  %p76 = scmp.lt.s32.totalorder %s75, 0
  %s77 = scalar_select %p76, %s75, 0
  %s78 = scalar_lea.vmem %s3, %s77
  %s79 = sadd.s32 0, 0
  %s80 = smul.u32 %s79, 128
  %s81 = sadd.s32 %s80, 0
  %s82 = sld [smem:[#allocation6 + %s81]]
  %s83 = smul.u32 8, %s82
  %p84 = scmp.lt.s32.totalorder %s83, 7
  %s85 = scalar_select %p84, %s83, 7
  %s86 = smul.addr %s85, 4
  %s87 = scalar_lea.vmem %s5, %s86
  %s88 = sadd.s32 0, 0
  %s89 = smul.u32 %s88, 128
  %s90 = sadd.s32 %s89, 0
  %s91 = sld [smem:[#allocation6 + %s90]]
  %s92 = smul.u32 8, %s91
  %p93 = scmp.lt.s32.totalorder %s92, 7
  %s94 = scalar_select %p93, %s92, 7
  %s95 = smul.addr %s94, 4
  %s96 = scalar_lea.vmem %s6, %s95
  %s97 = sadd.s32 0, 0
  %s98 = smul.u32 %s97, 128
  %s99 = sadd.s32 %s98, 0
  %s100 = sld [smem:[#allocation6 + %s99]]
  %p101 = scmp.lt.s32.totalorder %s100, 0
  %s102 = scalar_select %p101, %s100, 0
  %s103 = scalar_lea.vmem %s3, %s102
  %s104 = sadd.s32 0, 0
  %s105 = smul.u32 %s104, 128
  %s106 = sadd.s32 %s105, 0
  %s107 = sld [smem:[#allocation6 + %s106]]
  %s108 = sadd.s32 0, 0
  %s109 = smul.u32 %s108, 128
  %s110 = sadd.s32 %s109, 0
  %s111 = sld [smem:[#allocation6 + %s110]]
  %s112 = smul.u32 8, %s111
  %p113 = scmp.lt.s32.totalorder %s112, 7
  %s114 = scalar_select %p113, %s112, 7
  %s115 = smul.addr %s114, 4
  %s116 = scalar_lea.vmem %s5, %s115
  %s117 = sadd.s32 0, 0
  %s118 = smul.u32 %s117, 128
  %s119 = sadd.s32 %s118, 0
  %s120 = sld [smem:[#allocation6 + %s119]]
  %s121 = smul.u32 8, %s120
  %s122 = sadd.s32 0, 0
  %s123 = smul.u32 %s122, 128
  %s124 = sadd.s32 %s123, 0
  %s125 = sld [smem:[#allocation6 + %s124]]
  %s126 = smul.u32 8, %s125
  %p127 = scmp.lt.s32.totalorder %s126, 7
  %s128 = scalar_select %p127, %s126, 7
  %s129 = smul.addr %s128, 4
  %s130 = scalar_lea.vmem %s6, %s129
  %s131 = sadd.s32 0, 0
  %s132 = smul.u32 %s131, 128
  %s133 = sadd.s32 %s132, 0
  %s134 = sld [smem:[#allocation6 + %s133]]
  %s135 = smul.u32 8, %s134
  %p137 = scmp.eq.s32.totalorder 0, 0
  // Predicated region
  $region34: #{dit_layer_forward.6} parent=0 // pred_check
    %p138 = pneg %p137
  $region35: #{dit_layer_forward.6} parent=0 // pred_check_branch
    %140 = sbr.rel (%p138) target = $region37
  $region36: #{dit_layer_forward.6} parent=0 // pred_region
    %vm141 = vcmask 7168
    %142 = vst.msk [vmem:[#allocation2] sm:$0xff] %vm141, -1e+30
    %143 = vst.msk [vmem:[#allocation2 + $0x8] sm:$0xff] %vm141, -1e+30
    %144 = vst.msk [vmem:[#allocation2 + $0x10] sm:$0xff] %vm141, -1e+30
    %145 = vst.msk [vmem:[#allocation2 + $0x18] sm:$0xff] %vm141, -1e+30
    %146 = vst.msk [vmem:[#allocation2 + $0x20] sm:$0xff] %vm141, -1e+30
    %147 = vst.msk [vmem:[#allocation2 + $0x28] sm:$0xff] %vm141, -1e+30
    %148 = vst.msk [vmem:[#allocation2 + $0x30] sm:$0xff] %vm141, -1e+30
    %149 = vst.msk [vmem:[#allocation2 + $0x38] sm:$0xff] %vm141, -1e+30
    %150 = vst.msk [vmem:[#allocation2 + $0x40] sm:$0xff] %vm141, -1e+30
    %151 = vst.msk [vmem:[#allocation2 + $0x48] sm:$0xff] %vm141, -1e+30
    %152 = vst.msk [vmem:[#allocation2 + $0x50] sm:$0xff] %vm141, -1e+30
    %153 = vst.msk [vmem:[#allocation2 + $0x58] sm:$0xff] %vm141, -1e+30
    %154 = vst.msk [vmem:[#allocation2 + $0x60] sm:$0xff] %vm141, -1e+30
    %155 = vst.msk [vmem:[#allocation2 + $0x68] sm:$0xff] %vm141, -1e+30
    %156 = vst.msk [vmem:[#allocation2 + $0x70] sm:$0xff] %vm141, -1e+30
    %157 = vst.msk [vmem:[#allocation2 + $0x78] sm:$0xff] %vm141, -1e+30
    %158 = vst.msk [vmem:[#allocation2 + $0x80] sm:$0xff] %vm141, -1e+30
    %159 = vst.msk [vmem:[#allocation2 + $0x88] sm:$0xff] %vm141, -1e+30
    %160 = vst.msk [vmem:[#allocation2 + $0x90] sm:$0xff] %vm141, -1e+30
    %161 = vst.msk [vmem:[#allocation2 + $0x98] sm:$0xff] %vm141, -1e+30
    %162 = vst.msk [vmem:[#allocation2 + $0xa0] sm:$0xff] %vm141, -1e+30
    %163 = vst.msk [vmem:[#allocation2 + $0xa8] sm:$0xff] %vm141, -1e+30
    %164 = vst.msk [vmem:[#allocation2 + $0xb0] sm:$0xff] %vm141, -1e+30
    %165 = vst.msk [vmem:[#allocation2 + $0xb8] sm:$0xff] %vm141, -1e+30
    %166 = vst.msk [vmem:[#allocation2 + $0xc0] sm:$0xff] %vm141, -1e+30
    %167 = vst.msk [vmem:[#allocation2 + $0xc8] sm:$0xff] %vm141, -1e+30
    %168 = vst.msk [vmem:[#allocation2 + $0xd0] sm:$0xff] %vm141, -1e+30
    %169 = vst.msk [vmem:[#allocation2 + $0xd8] sm:$0xff] %vm141, -1e+30
    %170 = vst.msk [vmem:[#allocation2 + $0xe0] sm:$0xff] %vm141, -1e+30
    %171 = vst.msk [vmem:[#allocation2 + $0xe8] sm:$0xff] %vm141, -1e+30
    %172 = vst.msk [vmem:[#allocation2 + $0xf0] sm:$0xff] %vm141, -1e+30
    %173 = vst.msk [vmem:[#allocation2 + $0xf8] sm:$0xff] %vm141, -1e+30
    %174 = vst.msk [vmem:[#allocation3] sm:$0xff] %vm141, 0.0
    %175 = vst.msk [vmem:[#allocation3 + $0x8] sm:$0xff] %vm141, 0.0
    %176 = vst.msk [vmem:[#allocation3 + $0x10] sm:$0xff] %vm141, 0.0
    %177 = vst.msk [vmem:[#allocation3 + $0x18] sm:$0xff] %vm141, 0.0
    %178 = vst.msk [vmem:[#allocation3 + $0x20] sm:$0xff] %vm141, 0.0
    %179 = vst.msk [vmem:[#allocation3 + $0x28] sm:$0xff] %vm141, 0.0
    %180 = vst.msk [vmem:[#allocation3 + $0x30] sm:$0xff] %vm141, 0.0
    %181 = vst.msk [vmem:[#allocation3 + $0x38] sm:$0xff] %vm141, 0.0
    %182 = vst.msk [vmem:[#allocation3 + $0x40] sm:$0xff] %vm141, 0.0
    %183 = vst.msk [vmem:[#allocation3 + $0x48] sm:$0xff] %vm141, 0.0
    %184 = vst.msk [vmem:[#allocation3 + $0x50] sm:$0xff] %vm141, 0.0
    %185 = vst.msk [vmem:[#allocation3 + $0x58] sm:$0xff] %vm141, 0.0
    %186 = vst.msk [vmem:[#allocation3 + $0x60] sm:$0xff] %vm141, 0.0
    %187 = vst.msk [vmem:[#allocation3 + $0x68] sm:$0xff] %vm141, 0.0
    %188 = vst.msk [vmem:[#allocation3 + $0x70] sm:$0xff] %vm141, 0.0
    %189 = vst.msk [vmem:[#allocation3 + $0x78] sm:$0xff] %vm141, 0.0
    %190 = vst.msk [vmem:[#allocation3 + $0x80] sm:$0xff] %vm141, 0.0
    %191 = vst.msk [vmem:[#allocation3 + $0x88] sm:$0xff] %vm141, 0.0
    %192 = vst.msk [vmem:[#allocation3 + $0x90] sm:$0xff] %vm141, 0.0
    %193 = vst.msk [vmem:[#allocation3 + $0x98] sm:$0xff] %vm141, 0.0
    %194 = vst.msk [vmem:[#allocation3 + $0xa0] sm:$0xff] %vm141, 0.0
    %195 = vst.msk [vmem:[#allocation3 + $0xa8] sm:$0xff] %vm141, 0.0
    %196 = vst.msk [vmem:[#allocation3 + $0xb0] sm:$0xff] %vm141, 0.0
    %197 = vst.msk [vmem:[#allocation3 + $0xb8] sm:$0xff] %vm141, 0.0
    %198 = vst.msk [vmem:[#allocation3 + $0xc0] sm:$0xff] %vm141, 0.0
    %199 = vst.msk [vmem:[#allocation3 + $0xc8] sm:$0xff] %vm141, 0.0
    %200 = vst.msk [vmem:[#allocation3 + $0xd0] sm:$0xff] %vm141, 0.0
    %201 = vst.msk [vmem:[#allocation3 + $0xd8] sm:$0xff] %vm141, 0.0
    %202 = vst.msk [vmem:[#allocation3 + $0xe0] sm:$0xff] %vm141, 0.0
    %203 = vst.msk [vmem:[#allocation3 + $0xe8] sm:$0xff] %vm141, 0.0
    %204 = vst.msk [vmem:[#allocation3 + $0xf0] sm:$0xff] %vm141, 0.0
    %205 = vst.msk [vmem:[#allocation3 + $0xf8] sm:$0xff] %vm141, 0.0
    %vm206 = vcmask 64512
    %207 = vst.msk [vmem:[#allocation4] sm:$0xff] %vm206, 0.0
    %208 = vst.msk [vmem:[#allocation4 + $0x8] sm:$0xff] %vm206, 0.0
    %209 = vst.msk [vmem:[#allocation4 + $0x10] sm:$0xff] %vm206, 0.0
    %210 = vst.msk [vmem:[#allocation4 + $0x18] sm:$0xff] %vm206, 0.0
    %211 = vst.msk [vmem:[#allocation4 + $0x20] sm:$0xff] %vm206, 0.0
    %212 = vst.msk [vmem:[#allocation4 + $0x28] sm:$0xff] %vm206, 0.0
    %213 = vst.msk [vmem:[#allocation4 + $0x30] sm:$0xff] %vm206, 0.0
    %214 = vst.msk [vmem:[#allocation4 + $0x38] sm:$0xff] %vm206, 0.0
    %215 = vst.msk [vmem:[#allocation4 + $0x40] sm:$0xff] %vm206, 0.0
    %216 = vst.msk [vmem:[#allocation4 + $0x48] sm:$0xff] %vm206, 0.0
    %217 = vst.msk [vmem:[#allocation4 + $0x50] sm:$0xff] %vm206, 0.0
    %218 = vst.msk [vmem:[#allocation4 + $0x58] sm:$0xff] %vm206, 0.0
    %219 = vst.msk [vmem:[#allocation4 + $0x60] sm:$0xff] %vm206, 0.0
    %220 = vst.msk [vmem:[#allocation4 + $0x68] sm:$0xff] %vm206, 0.0
    %221 = vst.msk [vmem:[#allocation4 + $0x70] sm:$0xff] %vm206, 0.0
    %222 = vst.msk [vmem:[#allocation4 + $0x78] sm:$0xff] %vm206, 0.0
    %223 = vst.msk [vmem:[#allocation4 + $0x80] sm:$0xff] %vm206, 0.0
    %224 = vst.msk [vmem:[#allocation4 + $0x88] sm:$0xff] %vm206, 0.0
    %225 = vst.msk [vmem:[#allocation4 + $0x90] sm:$0xff] %vm206, 0.0
    %226 = vst.msk [vmem:[#allocation4 + $0x98] sm:$0xff] %vm206, 0.0
    %227 = vst.msk [vmem:[#allocation4 + $0xa0] sm:$0xff] %vm206, 0.0
    %228 = vst.msk [vmem:[#allocation4 + $0xa8] sm:$0xff] %vm206, 0.0
    %229 = vst.msk [vmem:[#allocation4 + $0xb0] sm:$0xff] %vm206, 0.0
    %230 = vst.msk [vmem:[#allocation4 + $0xb8] sm:$0xff] %vm206, 0.0
    %231 = vst.msk [vmem:[#allocation4 + $0xc0] sm:$0xff] %vm206, 0.0
    %232 = vst.msk [vmem:[#allocation4 + $0xc8] sm:$0xff] %vm206, 0.0
    %233 = vst.msk [vmem:[#allocation4 + $0xd0] sm:$0xff] %vm206, 0.0
    %234 = vst.msk [vmem:[#allocation4 + $0xd8] sm:$0xff] %vm206, 0.0
    %235 = vst.msk [vmem:[#allocation4 + $0xe0] sm:$0xff] %vm206, 0.0
    %236 = vst.msk [vmem:[#allocation4 + $0xe8] sm:$0xff] %vm206, 0.0
    %237 = vst.msk [vmem:[#allocation4 + $0xf0] sm:$0xff] %vm206, 0.0
    %238 = vst.msk [vmem:[#allocation4 + $0xf8] sm:$0xff] %vm206, 0.0
  $region37: #{dit_layer_forward.6} parent=0 // pred_fallthru
    _
  %s239 = sld [smem:[#allocation7]]
  %p240 = scmp.lt.s32.totalorder 0, %s239
  // Predicated region
  $region38: #{dit_layer_forward.6} parent=0 // pred_check
    %p241 = pneg %p240
  $region39: #{dit_layer_forward.6} parent=0 // pred_check_branch
    %243 = sbr.rel (%p241) target = $region41
  $region40: #{dit_layer_forward.6} parent=0 // pred_region
    %v244 = vld [vmem:[%s4] sm:$0xf]
    %v245 = vld [vmem:[%s4 + $0x4] sm:$0xf]
    %v246 = vld [vmem:[%s4 + $0x8] sm:$0xf]
    %v247 = vld [vmem:[%s4 + $0xc] sm:$0xf]
    %v248 = vld [vmem:[%s4 + $0x10] sm:$0xf]
    %v249 = vld [vmem:[%s4 + $0x14] sm:$0xf]
    %v250 = vld [vmem:[%s4 + $0x18] sm:$0xf]
    %v251 = vld [vmem:[%s4 + $0x1c] sm:$0xf]
    %v252 = vld [vmem:[%s4 + $0x20] sm:$0xf]
    %v253 = vld [vmem:[%s4 + $0x24] sm:$0xf]
    %v254 = vld [vmem:[%s4 + $0x28] sm:$0xf]
    %v255 = vld [vmem:[%s4 + $0x2c] sm:$0xf]
    %v256 = vld [vmem:[%s4 + $0x30] sm:$0xf]
    %v257 = vld [vmem:[%s4 + $0x34] sm:$0xf]
    %v258 = vld [vmem:[%s4 + $0x38] sm:$0xf]
    %v259 = vld [vmem:[%s4 + $0x3c] sm:$0xf]
    %v260 = vld [vmem:[%s4 + $0x40] sm:$0xf]
    %v261 = vld [vmem:[%s4 + $0x44] sm:$0xf]
    %v262 = vld [vmem:[%s4 + $0x48] sm:$0xf]
    %v263 = vld [vmem:[%s4 + $0x4c] sm:$0xf]
    %v264 = vld [vmem:[%s4 + $0x50] sm:$0xf]
    %v265 = vld [vmem:[%s4 + $0x54] sm:$0xf]
    %v266 = vld [vmem:[%s4 + $0x58] sm:$0xf]
    %v267 = vld [vmem:[%s4 + $0x5c] sm:$0xf]
    %v268 = vld [vmem:[%s4 + $0x60] sm:$0xf]
    %v269 = vld [vmem:[%s4 + $0x64] sm:$0xf]
    %v270 = vld [vmem:[%s4 + $0x68] sm:$0xf]
    %v271 = vld [vmem:[%s4 + $0x6c] sm:$0xf]
    %v272 = vld [vmem:[%s4 + $0x70] sm:$0xf]
    %v273 = vld [vmem:[%s4 + $0x74] sm:$0xf]
    %v274 = vld [vmem:[%s4 + $0x78] sm:$0xf]
    %v275 = vld [vmem:[%s4 + $0x7c] sm:$0xf]
    %v276 = vld [vmem:[%s116] sm:$0xf]
    %v277 = vld [vmem:[%s116 + $0x4] sm:$0xf]
    %v278 = vld [vmem:[%s116 + $0x8] sm:$0xf]
    %v279 = vld [vmem:[%s116 + $0xc] sm:$0xf]
    %v280 = vld [vmem:[%s116 + $0x10] sm:$0xf]
    %v281 = vld [vmem:[%s116 + $0x14] sm:$0xf]
    %v282 = vld [vmem:[%s116 + $0x18] sm:$0xf]
    %v283 = vld [vmem:[%s116 + $0x1c] sm:$0xf]
    %v284 = vld [vmem:[%s116 + $0x20] sm:$0xf]
    %v285 = vld [vmem:[%s116 + $0x24] sm:$0xf]
    %v286 = vld [vmem:[%s116 + $0x28] sm:$0xf]
    %v287 = vld [vmem:[%s116 + $0x2c] sm:$0xf]
    %v288 = vld [vmem:[%s116 + $0x30] sm:$0xf]
    %v289 = vld [vmem:[%s116 + $0x34] sm:$0xf]
    %v290 = vld [vmem:[%s116 + $0x38] sm:$0xf]
    %v291 = vld [vmem:[%s116 + $0x3c] sm:$0xf]
    %v292 = vld [vmem:[%s116 + $0x40] sm:$0xf]
    %v293 = vld [vmem:[%s116 + $0x44] sm:$0xf]
    %v294 = vld [vmem:[%s116 + $0x48] sm:$0xf]
    %v295 = vld [vmem:[%s116 + $0x4c] sm:$0xf]
    %v296 = vld [vmem:[%s116 + $0x50] sm:$0xf]
    %v297 = vld [vmem:[%s116 + $0x54] sm:$0xf]
    %v298 = vld [vmem:[%s116 + $0x58] sm:$0xf]
    %v299 = vld [vmem:[%s116 + $0x5c] sm:$0xf]
    %v300 = vld [vmem:[%s116 + $0x60] sm:$0xf]
    %v301 = vld [vmem:[%s116 + $0x64] sm:$0xf]
    %v302 = vld [vmem:[%s116 + $0x68] sm:$0xf]
    %v303 = vld [vmem:[%s116 + $0x6c] sm:$0xf]
    %v304 = vld [vmem:[%s116 + $0x70] sm:$0xf]
    %v305 = vld [vmem:[%s116 + $0x74] sm:$0xf]
    %v306 = vld [vmem:[%s116 + $0x78] sm:$0xf]
    %v307 = vld [vmem:[%s116 + $0x7c] sm:$0xf]
    %v308 = vld [vmem:[%s2] sm:$0xff]
    %v309 = vld [vmem:[%s2 + $0x8] sm:$0xff]
    %v310 = vld [vmem:[%s2 + $0x10] sm:$0xff]
    %v311 = vld [vmem:[%s2 + $0x18] sm:$0xff]
    %v312 = vld [vmem:[%s2 + $0x20] sm:$0xff]
    %v313 = vld [vmem:[%s2 + $0x28] sm:$0xff]
    %v314 = vld [vmem:[%s2 + $0x30] sm:$0xff]
    %v315 = vld [vmem:[%s2 + $0x38] sm:$0xff]
    %v316 = vld [vmem:[%s103] sm:$0x1]
    %317 = vset.pattern.permute.xlu0 0
    %318 = vperm.xlu0 %317, %v308
    %v319 = vpop.permute.xlu0 %318
    %320 = vset.pattern.permute.xlu0 0
    %321 = vperm.xlu0 %320, %v309
    %v322 = vpop.permute.xlu0 %321
    %323 = vset.pattern.permute.xlu0 0
    %324 = vperm.xlu0 %323, %v310
    %v325 = vpop.permute.xlu0 %324
    %326 = vset.pattern.permute.xlu0 0
    %327 = vperm.xlu0 %326, %v311
    %v328 = vpop.permute.xlu0 %327
    %329 = vset.pattern.permute.xlu0 0
    %330 = vperm.xlu0 %329, %v312
    %v331 = vpop.permute.xlu0 %330
    %332 = vset.pattern.permute.xlu0 0
    %333 = vperm.xlu0 %332, %v313
    %v334 = vpop.permute.xlu0 %333
    %335 = vset.pattern.permute.xlu0 0
    %336 = vperm.xlu0 %335, %v314
    %v337 = vpop.permute.xlu0 %336
    %338 = vset.pattern.permute.xlu0 0
    %339 = vperm.xlu0 %338, %v315
    %v340 = vpop.permute.xlu0 %339
    %v341 = vlaneseq
    %v342 = vshrl.u32 %v341, 7
    %v343 = vsub.s32 0, %v342
    %v344 = vrot.slane %v316, %v343
    %vm345 = vcmp.eq.s32.totalorder %v319, %v344
    %vm346 = vcmp.eq.s32.totalorder %v322, %v344
    %vm347 = vcmp.eq.s32.totalorder %v325, %v344
    %vm348 = vcmp.eq.s32.totalorder %v328, %v344
    %vm349 = vcmp.eq.s32.totalorder %v331, %v344
    %vm350 = vcmp.eq.s32.totalorder %v334, %v344
    %vm351 = vcmp.eq.s32.totalorder %v337, %v344
    %vm352 = vcmp.eq.s32.totalorder %v340, %v344
    %v353 = vsel %vm345, 0.0, -1e+30
    %v354 = vsel %vm346, 0.0, -1e+30
    %v355 = vsel %vm347, 0.0, -1e+30
    %v356 = vsel %vm348, 0.0, -1e+30
    %v357 = vsel %vm349, 0.0, -1e+30
    %v358 = vsel %vm350, 0.0, -1e+30
    %v359 = vsel %vm351, 0.0, -1e+30
    %v360 = vsel %vm352, 0.0, -1e+30
    %v369 = vunpack.c.l.b16 %v244
    %v370 = vunpack.c.l.b16 %v245
    %v371 = vunpack.c.l.b16 %v246
    %v372 = vunpack.c.l.b16 %v247
    %v373 = vunpack.c.l.b16 %v248
    %v374 = vunpack.c.l.b16 %v249
    %v375 = vunpack.c.l.b16 %v250
    %v376 = vunpack.c.l.b16 %v251
    %v377 = vpack.c.b16 %v370, %v369
    %v378 = vpack.c.b16 %v372, %v371
    %v379 = vpack.c.b16 %v374, %v373
    %v380 = vpack.c.b16 %v376, %v375
    %v389 = vunpack.c.l.b16 %v276
    %v390 = vunpack.c.l.b16 %v277
    %v391 = vunpack.c.l.b16 %v278
    %v392 = vunpack.c.l.b16 %v279
    %v393 = vunpack.c.l.b16 %v280
    %v394 = vunpack.c.l.b16 %v281
    %v395 = vunpack.c.l.b16 %v282
    %v396 = vunpack.c.l.b16 %v283
    %v397 = vpack.c.b16 %v390, %v389
    %v398 = vpack.c.b16 %v392, %v391
    %v399 = vpack.c.b16 %v394, %v393
    %v400 = vpack.c.b16 %v396, %v395
    %vm401 = vcmask 64512
    %v403 = vsel %vm401, %v377, 0
    %v406 = vsel %vm401, %v378, 0
    %v409 = vsel %vm401, %v379, 0
    %v412 = vsel %vm401, %v380, 0
    %v415 = vsel %vm401, %v397, 0
    %v418 = vsel %vm401, %v398, 0
    %v421 = vsel %vm401, %v399, 0
    %v424 = vsel %vm401, %v400, 0
    %426 = vmatprep.subr.bf16.mxu0 0
    %427 = vmatpush1.bf16.xpose.msra.mxu0 %v415
    %428 = vmatprep.subr.bf16.mxu0 0
    %429 = vmatpush1.bf16.xpose.msra.mxu0 %v418
    %430 = vmatprep.subr.bf16.mxu0 0
    %431 = vmatpush1.bf16.xpose.msra.mxu0 %v421
    %432 = vmatprep.subr.bf16.mxu0 0
    %433 = vmatpush1.bf16.xpose.msra.mxu0 %v424
    %434 = vmatprep.subr.bf16.mxu0 0
    %435 = vmatpush1.bf16.xpose.msra.mxu0 0
    %436 = vmatprep.subr.bf16.mxu0 0
    %437 = vmatpush1.bf16.xpose.msra.mxu0 0
    %438 = vmatprep.subr.bf16.mxu0 0
    %439 = vmatpush1.bf16.xpose.msra.mxu0 0
    %440 = vmatprep.subr.bf16.mxu0 0
    %441 = vmatpush1.bf16.xpose.msra.mxu0 0
    %442 = vmatprep.subr.bf16.mxu0 0
    %443 = vmatpush1.bf16.xpose.msra.mxu0 0
    %444 = vmatprep.subr.bf16.mxu0 0
    %445 = vmatpush1.bf16.xpose.msra.mxu0 0
    %446 = vmatprep.subr.bf16.mxu0 0
    %447 = vmatpush1.bf16.xpose.msra.mxu0 0
    %448 = vmatprep.subr.bf16.mxu0 0
    %449 = vmatpush1.bf16.xpose.msra.mxu0 0
    %450 = vmatprep.subr.bf16.mxu0 0
    %451 = vmatpush1.bf16.xpose.msra.mxu0 0
    %452 = vmatprep.subr.bf16.mxu0 0
    %453 = vmatpush1.bf16.xpose.msra.mxu0 0
    %454 = vmatprep.subr.bf16.mxu0 0
    %455 = vmatpush1.bf16.xpose.msra.mxu0 0
    %456 = vmatprep.subr.bf16.mxu0 0
    %457 = vmatpush1.bf16.xpose.msra.mxu0 0
    %458 = vmatprep.mubr.bf16.mxu0 0
    %459 = vmatmul.mubr.bf16.gmra.mrb[0].mxu0 %v403
    %v460 = vpop.f32.mrb[0].mxu0
    %v461 = vadd.f32 %v353, %v460
    %v462 = vpop.f32.mrb[0].mxu0
    %v463 = vpop.f32.mrb[0].mxu0
    %v464 = vadd.f32 %v354, %v463
    %v465 = vpop.f32.mrb[0].mxu0
    %466 = vmatprep.mubr.bf16.mxu0 0
    %467 = vmatmul.mubr.bf16.gmra.mrb[0].mxu0 %v406
    %v468 = vpop.f32.mrb[0].mxu0
    %v469 = vadd.f32 %v355, %v468
    %v470 = vpop.f32.mrb[0].mxu0
    %v471 = vpop.f32.mrb[0].mxu0
    %v472 = vadd.f32 %v356, %v471
    %v473 = vpop.f32.mrb[0].mxu0
    %474 = vmatprep.mubr.bf16.mxu0 0
    %475 = vmatmul.mubr.bf16.gmra.mrb[0].mxu0 %v409
    %v476 = vpop.f32.mrb[0].mxu0
    %v477 = vadd.f32 %v357, %v476
    %v478 = vpop.f32.mrb[0].mxu0
    %v479 = vpop.f32.mrb[0].mxu0
    %v480 = vadd.f32 %v358, %v479
    %v481 = vpop.f32.mrb[0].mxu0
    %482 = vmatprep.mubr.bf16.mxu0 0
    %483 = vmatmul.mubr.bf16.gmra.mrb[0].mxu0 %v412
    %v484 = vpop.f32.mrb[0].mxu0
    %v485 = vadd.f32 %v359, %v484
    %v486 = vpop.f32.mrb[0].mxu0
    %v487 = vpop.f32.mrb[0].mxu0
    %v488 = vadd.f32 %v360, %v487
    %v489 = vpop.f32.mrb[0].mxu0
    %490 = vdwg.mxu0
    %v499 = vunpack.c.l.b16 %v252
    %v500 = vunpack.c.l.b16 %v253
    %v501 = vunpack.c.l.b16 %v254
    %v502 = vunpack.c.l.b16 %v255
    %v503 = vunpack.c.l.b16 %v256
    %v504 = vunpack.c.l.b16 %v257
    %v505 = vunpack.c.l.b16 %v258
    %v506 = vunpack.c.l.b16 %v259
    %v507 = vpack.c.b16 %v500, %v499
    %v508 = vpack.c.b16 %v502, %v501
    %v509 = vpack.c.b16 %v504, %v503
    %v510 = vpack.c.b16 %v506, %v505
    %v519 = vunpack.c.l.b16 %v284
    %v520 = vunpack.c.l.b16 %v285
    %v521 = vunpack.c.l.b16 %v286
    %v522 = vunpack.c.l.b16 %v287
    %v523 = vunpack.c.l.b16 %v288
    %v524 = vunpack.c.l.b16 %v289
    %v525 = vunpack.c.l.b16 %v290
    %v526 = vunpack.c.l.b16 %v291
    %v527 = vpack.c.b16 %v520, %v519
    %v528 = vpack.c.b16 %v522, %v521
    %v529 = vpack.c.b16 %v524, %v523
    %v530 = vpack.c.b16 %v526, %v525
    %v532 = vsel %vm401, %v507, 0
    %v535 = vsel %vm401, %v508, 0
    %v538 = vsel %vm401, %v509, 0
    %v541 = vsel %vm401, %v510, 0
    %v544 = vsel %vm401, %v527, 0
    %v547 = vsel %vm401, %v528, 0
    %v550 = vsel %vm401, %v529, 0
    %v553 = vsel %vm401, %v530, 0
    %555 = vmatprep.subr.bf16.mxu0 0
    %556 = vmatpush1.bf16.xpose.msra.mxu0 %v544
    %557 = vmatprep.subr.bf16.mxu0 0
    %558 = vmatpush1.bf16.xpose.msra.mxu0 %v547
    %559 = vmatprep.subr.bf16.mxu0 0
    %560 = vmatpush1.bf16.xpose.msra.mxu0 %v550
    %561 = vmatprep.subr.bf16.mxu0 0
    %562 = vmatpush1.bf16.xpose.msra.mxu0 %v553
    %563 = vmatprep.subr.bf16.mxu0 0
    %564 = vmatpush1.bf16.xpose.msra.mxu0 0
    %565 = vmatprep.subr.bf16.mxu0 0
    %566 = vmatpush1.bf16.xpose.msra.mxu0 0
    %567 = vmatprep.subr.bf16.mxu0 0
    %568 = vmatpush1.bf16.xpose.msra.mxu0 0
    %569 = vmatprep.subr.bf16.mxu0 0
    %570 = vmatpush1.bf16.xpose.msra.mxu0 0
    %571 = vmatprep.subr.bf16.mxu0 0
    %572 = vmatpush1.bf16.xpose.msra.mxu0 0
    %573 = vmatprep.subr.bf16.mxu0 0
    %574 = vmatpush1.bf16.xpose.msra.mxu0 0
    %575 = vmatprep.subr.bf16.mxu0 0
    %576 = vmatpush1.bf16.xpose.msra.mxu0 0
    %577 = vmatprep.subr.bf16.mxu0 0
    %578 = vmatpush1.bf16.xpose.msra.mxu0 0
    %579 = vmatprep.subr.bf16.mxu0 0
    %580 = vmatpush1.bf16.xpose.msra.mxu0 0
    %581 = vmatprep.subr.bf16.mxu0 0
    %582 = vmatpush1.bf16.xpose.msra.mxu0 0
    %583 = vmatprep.subr.bf16.mxu0 0
    %584 = vmatpush1.bf16.xpose.msra.mxu0 0
    %585 = vmatprep.subr.bf16.mxu0 0
    %586 = vmatpush1.bf16.xpose.msra.mxu0 0
    %587 = vmatprep.mubr.bf16.mxu0 0
    %588 = vmatmul.mubr.bf16.gmra.mrb[0].mxu0 %v532
    %v589 = vpop.f32.mrb[0].mxu0
    %v590 = vadd.f32 %v353, %v589
    %v591 = vpop.f32.mrb[0].mxu0
    %v592 = vpop.f32.mrb[0].mxu0
    %v593 = vadd.f32 %v354, %v592
    %v594 = vpop.f32.mrb[0].mxu0
    %595 = vmatprep.mubr.bf16.mxu0 0
    %596 = vmatmul.mubr.bf16.gmra.mrb[0].mxu0 %v535
    %v597 = vpop.f32.mrb[0].mxu0
    %v598 = vadd.f32 %v355, %v597
    %v599 = vpop.f32.mrb[0].mxu0
    %v600 = vpop.f32.mrb[0].mxu0
    %v601 = vadd.f32 %v356, %v600
    %v602 = vpop.f32.mrb[0].mxu0
    %603 = vmatprep.mubr.bf16.mxu0 0
    %604 = vmatmul.mubr.bf16.gmra.mrb[0].mxu0 %v538
    %v605 = vpop.f32.mrb[0].mxu0
    %v606 = vadd.f32 %v357, %v605
    %v607 = vpop.f32.mrb[0].mxu0
    %v608 = vpop.f32.mrb[0].mxu0
    %v609 = vadd.f32 %v358, %v608
    %v610 = vpop.f32.mrb[0].mxu0
    %611 = vmatprep.mubr.bf16.mxu0 0
    %612 = vmatmul.mubr.bf16.gmra.mrb[0].mxu0 %v541
    %v613 = vpop.f32.mrb[0].mxu0
    %v614 = vadd.f32 %v359, %v613
    %v615 = vpop.f32.mrb[0].mxu0
    %v616 = vpop.f32.mrb[0].mxu0
    %v617 = vadd.f32 %v360, %v616
    %v618 = vpop.f32.mrb[0].mxu0
    %619 = vdwg.mxu0
    %v628 = vunpack.c.l.b16 %v260
    %v629 = vunpack.c.l.b16 %v261
    %v630 = vunpack.c.l.b16 %v262
    %v631 = vunpack.c.l.b16 %v263
    %v632 = vunpack.c.l.b16 %v264
    %v633 = vunpack.c.l.b16 %v265
    %v634 = vunpack.c.l.b16 %v266
    %v635 = vunpack.c.l.b16 %v267
    %v636 = vpack.c.b16 %v629, %v628
    %v637 = vpack.c.b16 %v631, %v630
    %v638 = vpack.c.b16 %v633, %v632
    %v639 = vpack.c.b16 %v635, %v634
    %v648 = vunpack.c.l.b16 %v292
    %v649 = vunpack.c.l.b16 %v293
    %v650 = vunpack.c.l.b16 %v294
    %v651 = vunpack.c.l.b16 %v295
    %v652 = vunpack.c.l.b16 %v296
    %v653 = vunpack.c.l.b16 %v297
    %v654 = vunpack.c.l.b16 %v298
    %v655 = vunpack.c.l.b16 %v299
    %v656 = vpack.c.b16 %v649, %v648
    %v657 = vpack.c.b16 %v651, %v650
    %v658 = vpack.c.b16 %v653, %v652
    %v659 = vpack.c.b16 %v655, %v654
    %v661 = vsel %vm401, %v636, 0
    %v664 = vsel %vm401, %v637, 0
    %v667 = vsel %vm401, %v638, 0
    %v670 = vsel %vm401, %v639, 0
    %v673 = vsel %vm401, %v656, 0
    %v676 = vsel %vm401, %v657, 0
    %v679 = vsel %vm401, %v658, 0
    %v682 = vsel %vm401, %v659, 0
    %684 = vmatprep.subr.bf16.mxu0 0
    %685 = vmatpush1.bf16.xpose.msra.mxu0 %v673
    %686 = vmatprep.subr.bf16.mxu0 0
    %687 = vmatpush1.bf16.xpose.msra.mxu0 %v676
    %688 = vmatprep.subr.bf16.mxu0 0
    %689 = vmatpush1.bf16.xpose.msra.mxu0 %v679
    %690 = vmatprep.subr.bf16.mxu0 0
    %691 = vmatpush1.bf16.xpose.msra.mxu0 %v682
    %692 = vmatprep.subr.bf16.mxu0 0
    %693 = vmatpush1.bf16.xpose.msra.mxu0 0
    %694 = vmatprep.subr.bf16.mxu0 0
    %695 = vmatpush1.bf16.xpose.msra.mxu0 0
    %696 = vmatprep.subr.bf16.mxu0 0
    %697 = vmatpush1.bf16.xpose.msra.mxu0 0
    %698 = vmatprep.subr.bf16.mxu0 0
    %699 = vmatpush1.bf16.xpose.msra.mxu0 0
    %700 = vmatprep.subr.bf16.mxu0 0
    %701 = vmatpush1.bf16.xpose.msra.mxu0 0
    %702 = vmatprep.subr.bf16.mxu0 0
    %703 = vmatpush1.bf16.xpose.msra.mxu0 0
    %704 = vmatprep.subr.bf16.mxu0 0
    %705 = vmatpush1.bf16.xpose.msra.mxu0 0
    %706 = vmatprep.subr.bf16.mxu0 0
    %707 = vmatpush1.bf16.xpose.msra.mxu0 0
    %708 = vmatprep.subr.bf16.mxu0 0
    %709 = vmatpush1.bf16.xpose.msra.mxu0 0
    %710 = vmatprep.subr.bf16.mxu0 0
    %711 = vmatpush1.bf16.xpose.msra.mxu0 0
    %712 = vmatprep.subr.bf16.mxu0 0
    %713 = vmatpush1.bf16.xpose.msra.mxu0 0
    %714 = vmatprep.subr.bf16.mxu0 0
    %715 = vmatpush1.bf16.xpose.msra.mxu0 0
    %716 = vmatprep.mubr.bf16.mxu0 0
    %717 = vmatmul.mubr.bf16.gmra.mrb[0].mxu0 %v661
    %v718 = vpop.f32.mrb[0].mxu0
    %v719 = vadd.f32 %v353, %v718
    %v720 = vpop.f32.mrb[0].mxu0
    %v721 = vpop.f32.mrb[0].mxu0
    %v722 = vadd.f32 %v354, %v721
    %v723 = vpop.f32.mrb[0].mxu0
    %724 = vmatprep.mubr.bf16.mxu0 0
    %725 = vmatmul.mubr.bf16.gmra.mrb[0].mxu0 %v664
    %v726 = vpop.f32.mrb[0].mxu0
    %v727 = vadd.f32 %v355, %v726
    %v728 = vpop.f32.mrb[0].mxu0
    %v729 = vpop.f32.mrb[0].mxu0
    %v730 = vadd.f32 %v356, %v729
    %v731 = vpop.f32.mrb[0].mxu0
    %732 = vmatprep.mubr.bf16.mxu0 0
    %733 = vmatmul.mubr.bf16.gmra.mrb[0].mxu0 %v667
    %v734 = vpop.f32.mrb[0].mxu0
    %v735 = vadd.f32 %v357, %v734
    %v736 = vpop.f32.mrb[0].mxu0
    %v737 = vpop.f32.mrb[0].mxu0
    %v738 = vadd.f32 %v358, %v737
    %v739 = vpop.f32.mrb[0].mxu0
    %740 = vmatprep.mubr.bf16.mxu0 0
    %741 = vmatmul.mubr.bf16.gmra.mrb[0].mxu0 %v670
    %v742 = vpop.f32.mrb[0].mxu0
    %v743 = vadd.f32 %v359, %v742
    %v744 = vpop.f32.mrb[0].mxu0
    %v745 = vpop.f32.mrb[0].mxu0
    %v746 = vadd.f32 %v360, %v745
    %v747 = vpop.f32.mrb[0].mxu0
    %748 = vdwg.mxu0
    %v757 = vunpack.c.l.b16 %v268
    %v758 = vunpack.c.l.b16 %v269
    %v759 = vunpack.c.l.b16 %v270
    %v760 = vunpack.c.l.b16 %v271
    %v761 = vunpack.c.l.b16 %v272
    %v762 = vunpack.c.l.b16 %v273
    %v763 = vunpack.c.l.b16 %v274
    %v764 = vunpack.c.l.b16 %v275
    %v765 = vpack.c.b16 %v758, %v757
    %v766 = vpack.c.b16 %v760, %v759
    %v767 = vpack.c.b16 %v762, %v761
    %v768 = vpack.c.b16 %v764, %v763
    %v777 = vunpack.c.l.b16 %v300
    %v778 = vunpack.c.l.b16 %v301
    %v779 = vunpack.c.l.b16 %v302
    %v780 = vunpack.c.l.b16 %v303
    %v781 = vunpack.c.l.b16 %v304
    %v782 = vunpack.c.l.b16 %v305
    %v783 = vunpack.c.l.b16 %v306
    %v784 = vunpack.c.l.b16 %v307
    %v785 = vpack.c.b16 %v778, %v777
    %v786 = vpack.c.b16 %v780, %v779
    %v787 = vpack.c.b16 %v782, %v781
    %v788 = vpack.c.b16 %v784, %v783
    %v790 = vsel %vm401, %v765, 0
    %v793 = vsel %vm401, %v766, 0
    %v796 = vsel %vm401, %v767, 0
    %v799 = vsel %vm401, %v768, 0
    %v802 = vsel %vm401, %v785, 0
    %v805 = vsel %vm401, %v786, 0
    %v808 = vsel %vm401, %v787, 0
    %v811 = vsel %vm401, %v788, 0
    %813 = vmatprep.subr.bf16.mxu0 0
    %814 = vmatpush1.bf16.xpose.msra.mxu0 %v802
    %815 = vmatprep.subr.bf16.mxu0 0
    %816 = vmatpush1.bf16.xpose.msra.mxu0 %v805
    %817 = vmatprep.subr.bf16.mxu0 0
    %818 = vmatpush1.bf16.xpose.msra.mxu0 %v808
    %819 = vmatprep.subr.bf16.mxu0 0
    %820 = vmatpush1.bf16.xpose.msra.mxu0 %v811
    %821 = vmatprep.subr.bf16.mxu0 0
    %822 = vmatpush1.bf16.xpose.msra.mxu0 0
    %823 = vmatprep.subr.bf16.mxu0 0
    %824 = vmatpush1.bf16.xpose.msra.mxu0 0
    %825 = vmatprep.subr.bf16.mxu0 0
    %826 = vmatpush1.bf16.xpose.msra.mxu0 0
    %827 = vmatprep.subr.bf16.mxu0 0
    %828 = vmatpush1.bf16.xpose.msra.mxu0 0
    %829 = vmatprep.subr.bf16.mxu0 0
    %830 = vmatpush1.bf16.xpose.msra.mxu0 0
    %831 = vmatprep.subr.bf16.mxu0 0
    %832 = vmatpush1.bf16.xpose.msra.mxu0 0
    %833 = vmatprep.subr.bf16.mxu0 0
    %834 = vmatpush1.bf16.xpose.msra.mxu0 0
    %835 = vmatprep.subr.bf16.mxu0 0
    %836 = vmatpush1.bf16.xpose.msra.mxu0 0
    %837 = vmatprep.subr.bf16.mxu0 0
    %838 = vmatpush1.bf16.xpose.msra.mxu0 0
    %839 = vmatprep.subr.bf16.mxu0 0
    %840 = vmatpush1.bf16.xpose.msra.mxu0 0
    %841 = vmatprep.subr.bf16.mxu0 0
    %842 = vmatpush1.bf16.xpose.msra.mxu0 0
    %843 = vmatprep.subr.bf16.mxu0 0
    %844 = vmatpush1.bf16.xpose.msra.mxu0 0
    %845 = vmatprep.mubr.bf16.mxu0 0
    %846 = vmatmul.mubr.bf16.gmra.mrb[0].mxu0 %v790
    %v847 = vpop.f32.mrb[0].mxu0
    %v848 = vadd.f32 %v353, %v847
    %v849 = vpop.f32.mrb[0].mxu0
    %v850 = vpop.f32.mrb[0].mxu0
    %v851 = vadd.f32 %v354, %v850
    %v852 = vpop.f32.mrb[0].mxu0
    %853 = vmatprep.mubr.bf16.mxu0 0
    %854 = vmatmul.mubr.bf16.gmra.mrb[0].mxu0 %v793
    %v855 = vpop.f32.mrb[0].mxu0
    %v856 = vadd.f32 %v355, %v855
    %v857 = vpop.f32.mrb[0].mxu0
    %v858 = vpop.f32.mrb[0].mxu0
    %v859 = vadd.f32 %v356, %v858
    %v860 = vpop.f32.mrb[0].mxu0
    %861 = vmatprep.mubr.bf16.mxu0 0
    %862 = vmatmul.mubr.bf16.gmra.mrb[0].mxu0 %v796
    %v863 = vpop.f32.mrb[0].mxu0
    %v864 = vadd.f32 %v357, %v863
    %v865 = vpop.f32.mrb[0].mxu0
    %v866 = vpop.f32.mrb[0].mxu0
    %v867 = vadd.f32 %v358, %v866
    %v868 = vpop.f32.mrb[0].mxu0
    %869 = vmatprep.mubr.bf16.mxu0 0
    %870 = vmatmul.mubr.bf16.gmra.mrb[0].mxu0 %v799
    %v871 = vpop.f32.mrb[0].mxu0
    %v872 = vadd.f32 %v359, %v871
    %v873 = vpop.f32.mrb[0].mxu0
    %v874 = vpop.f32.mrb[0].mxu0
    %v875 = vadd.f32 %v360, %v874
    %v876 = vpop.f32.mrb[0].mxu0
    %877 = vdwg.mxu0
    %v878 = vld [vmem:[#allocation2] sm:$0xff]
    %v879 = vld [vmem:[#allocation2 + $0x8] sm:$0xff]
    %v880 = vld [vmem:[#allocation2 + $0x10] sm:$0xff]
    %v881 = vld [vmem:[#allocation2 + $0x18] sm:$0xff]
    %v882 = vld [vmem:[#allocation2 + $0x20] sm:$0xff]
    %v883 = vld [vmem:[#allocation2 + $0x28] sm:$0xff]
    %v884 = vld [vmem:[#allocation2 + $0x30] sm:$0xff]
    %v885 = vld [vmem:[#allocation2 + $0x38] sm:$0xff]
    %v886 = vld [vmem:[#allocation2 + $0x40] sm:$0xff]
    %v887 = vld [vmem:[#allocation2 + $0x48] sm:$0xff]
    %v888 = vld [vmem:[#allocation2 + $0x50] sm:$0xff]
    %v889 = vld [vmem:[#allocation2 + $0x58] sm:$0xff]
    %v890 = vld [vmem:[#allocation2 + $0x60] sm:$0xff]
    %v891 = vld [vmem:[#allocation2 + $0x68] sm:$0xff]
    %v892 = vld [vmem:[#allocation2 + $0x70] sm:$0xff]
    %v893 = vld [vmem:[#allocation2 + $0x78] sm:$0xff]
    %v894 = vld [vmem:[#allocation2 + $0x80] sm:$0xff]
    %v895 = vld [vmem:[#allocation2 + $0x88] sm:$0xff]
    %v896 = vld [vmem:[#allocation2 + $0x90] sm:$0xff]
    %v897 = vld [vmem:[#allocation2 + $0x98] sm:$0xff]
    %v898 = vld [vmem:[#allocation2 + $0xa0] sm:$0xff]
    %v899 = vld [vmem:[#allocation2 + $0xa8] sm:$0xff]
    %v900 = vld [vmem:[#allocation2 + $0xb0] sm:$0xff]
    %v901 = vld [vmem:[#allocation2 + $0xb8] sm:$0xff]
    %v902 = vld [vmem:[#allocation2 + $0xc0] sm:$0xff]
    %v903 = vld [vmem:[#allocation2 + $0xc8] sm:$0xff]
    %v904 = vld [vmem:[#allocation2 + $0xd0] sm:$0xff]
    %v905 = vld [vmem:[#allocation2 + $0xd8] sm:$0xff]
    %v906 = vld [vmem:[#allocation2 + $0xe0] sm:$0xff]
    %v907 = vld [vmem:[#allocation2 + $0xe8] sm:$0xff]
    %v908 = vld [vmem:[#allocation2 + $0xf0] sm:$0xff]
    %v909 = vld [vmem:[#allocation2 + $0xf8] sm:$0xff]
    %vm910 = vcmask 523264
    %v911 = vsel %vm910, %v461, -inf
    %912 = vmax.xlane.f32.xlu0 %v911
    %v913 = vpop.xlane.xlu0 %912
    %v914 = vsel %vm910, %v464, -inf
    %915 = vmax.xlane.f32.xlu0 %v914
    %v916 = vpop.xlane.xlu0 %915
    %v917 = vsel %vm910, %v469, -inf
    %918 = vmax.xlane.f32.xlu0 %v917
    %v919 = vpop.xlane.xlu0 %918
    %v920 = vsel %vm910, %v472, -inf
    %921 = vmax.xlane.f32.xlu0 %v920
    %v922 = vpop.xlane.xlu0 %921
    %v923 = vsel %vm910, %v477, -inf
    %924 = vmax.xlane.f32.xlu0 %v923
    %v925 = vpop.xlane.xlu0 %924
    %v926 = vsel %vm910, %v480, -inf
    %927 = vmax.xlane.f32.xlu0 %v926
    %v928 = vpop.xlane.xlu0 %927
    %v929 = vsel %vm910, %v485, -inf
    %930 = vmax.xlane.f32.xlu0 %v929
    %v931 = vpop.xlane.xlu0 %930
    %v932 = vsel %vm910, %v488, -inf
    %933 = vmax.xlane.f32.xlu0 %v932
    %v934 = vpop.xlane.xlu0 %933
    %v935 = vsel %vm910, %v590, -inf
    %936 = vmax.xlane.f32.xlu0 %v935
    %v937 = vpop.xlane.xlu0 %936
    %v938 = vsel %vm910, %v593, -inf
    %939 = vmax.xlane.f32.xlu0 %v938
    %v940 = vpop.xlane.xlu0 %939
    %v941 = vsel %vm910, %v598, -inf
    %942 = vmax.xlane.f32.xlu0 %v941
    %v943 = vpop.xlane.xlu0 %942
    %v944 = vsel %vm910, %v601, -inf
    %945 = vmax.xlane.f32.xlu0 %v944
    %v946 = vpop.xlane.xlu0 %945
    %v947 = vsel %vm910, %v606, -inf
    %948 = vmax.xlane.f32.xlu0 %v947
    %v949 = vpop.xlane.xlu0 %948
    %v950 = vsel %vm910, %v609, -inf
    %951 = vmax.xlane.f32.xlu0 %v950
    %v952 = vpop.xlane.xlu0 %951
    %v953 = vsel %vm910, %v614, -inf
    %954 = vmax.xlane.f32.xlu0 %v953
    %v955 = vpop.xlane.xlu0 %954
    %v956 = vsel %vm910, %v617, -inf
    %957 = vmax.xlane.f32.xlu0 %v956
    %v958 = vpop.xlane.xlu0 %957
    %v959 = vsel %vm910, %v719, -inf
    %960 = vmax.xlane.f32.xlu0 %v959
    %v961 = vpop.xlane.xlu0 %960
    %v962 = vsel %vm910, %v722, -inf
    %963 = vmax.xlane.f32.xlu0 %v962
    %v964 = vpop.xlane.xlu0 %963
    %v965 = vsel %vm910, %v727, -inf
    %966 = vmax.xlane.f32.xlu0 %v965
    %v967 = vpop.xlane.xlu0 %966
    %v968 = vsel %vm910, %v730, -inf
    %969 = vmax.xlane.f32.xlu0 %v968
    %v970 = vpop.xlane.xlu0 %969
    %v971 = vsel %vm910, %v735, -inf
    %972 = vmax.xlane.f32.xlu0 %v971
    %v973 = vpop.xlane.xlu0 %972
    %v974 = vsel %vm910, %v738, -inf
    %975 = vmax.xlane.f32.xlu0 %v974
    %v976 = vpop.xlane.xlu0 %975
    %v977 = vsel %vm910, %v743, -inf
    %978 = vmax.xlane.f32.xlu0 %v977
    %v979 = vpop.xlane.xlu0 %978
    %v980 = vsel %vm910, %v746, -inf
    %981 = vmax.xlane.f32.xlu0 %v980
    %v982 = vpop.xlane.xlu0 %981
    %v983 = vsel %vm910, %v848, -inf
    %984 = vmax.xlane.f32.xlu0 %v983
    %v985 = vpop.xlane.xlu0 %984
    %v986 = vsel %vm910, %v851, -inf
    %987 = vmax.xlane.f32.xlu0 %v986
    %v988 = vpop.xlane.xlu0 %987
    %v989 = vsel %vm910, %v856, -inf
    %990 = vmax.xlane.f32.xlu0 %v989
    %v991 = vpop.xlane.xlu0 %990
    %v992 = vsel %vm910, %v859, -inf
    %993 = vmax.xlane.f32.xlu0 %v992
    %v994 = vpop.xlane.xlu0 %993
    %v995 = vsel %vm910, %v864, -inf
    %996 = vmax.xlane.f32.xlu0 %v995
    %v997 = vpop.xlane.xlu0 %996
    %v998 = vsel %vm910, %v867, -inf
    %999 = vmax.xlane.f32.xlu0 %v998
    %v1000 = vpop.xlane.xlu0 %999
    %v1001 = vsel %vm910, %v872, -inf
    %1002 = vmax.xlane.f32.xlu0 %v1001
    %v1003 = vpop.xlane.xlu0 %1002
    %v1004 = vsel %vm910, %v875, -inf
    %1005 = vmax.xlane.f32.xlu0 %v1004
    %v1006 = vpop.xlane.xlu0 %1005
    %v1007 = vmax.f32 %v878, %v913
    %v1008 = vmax.f32 %v879, %v916
    %v1009 = vmax.f32 %v880, %v919
    %v1010 = vmax.f32 %v881, %v922
    %v1011 = vmax.f32 %v882, %v925
    %v1012 = vmax.f32 %v883, %v928
    %v1013 = vmax.f32 %v884, %v931
    %v1014 = vmax.f32 %v885, %v934
    %v1015 = vmax.f32 %v886, %v937
    %v1016 = vmax.f32 %v887, %v940
    %v1017 = vmax.f32 %v888, %v943
    %v1018 = vmax.f32 %v889, %v946
    %v1019 = vmax.f32 %v890, %v949
    %v1020 = vmax.f32 %v891, %v952
    %v1021 = vmax.f32 %v892, %v955
    %v1022 = vmax.f32 %v893, %v958
    %v1023 = vmax.f32 %v894, %v961
    %v1024 = vmax.f32 %v895, %v964
    %v1025 = vmax.f32 %v896, %v967
    %v1026 = vmax.f32 %v897, %v970
    %v1027 = vmax.f32 %v898, %v973
    %v1028 = vmax.f32 %v899, %v976
    %v1029 = vmax.f32 %v900, %v979
    %v1030 = vmax.f32 %v901, %v982
    %v1031 = vmax.f32 %v902, %v985
    %v1032 = vmax.f32 %v903, %v988
    %v1033 = vmax.f32 %v904, %v991
    %v1034 = vmax.f32 %v905, %v994
    %v1035 = vmax.f32 %v906, %v997
    %v1036 = vmax.f32 %v907, %v1000
    %v1037 = vmax.f32 %v908, %v1003
    %v1038 = vmax.f32 %v909, %v1006
    %v1039 = vsub.f32 %v878, %v1007
    %v1040 = vsub.f32 %v879, %v1008
    %v1041 = vsub.f32 %v880, %v1009
    %v1042 = vsub.f32 %v881, %v1010
    %v1043 = vsub.f32 %v882, %v1011
    %v1044 = vsub.f32 %v883, %v1012
    %v1045 = vsub.f32 %v884, %v1013
    %v1046 = vsub.f32 %v885, %v1014
    %v1047 = vsub.f32 %v886, %v1015
    %v1048 = vsub.f32 %v887, %v1016
    %v1049 = vsub.f32 %v888, %v1017
    %v1050 = vsub.f32 %v889, %v1018
    %v1051 = vsub.f32 %v890, %v1019
    %v1052 = vsub.f32 %v891, %v1020
    %v1053 = vsub.f32 %v892, %v1021
    %v1054 = vsub.f32 %v893, %v1022
    %v1055 = vsub.f32 %v894, %v1023
    %v1056 = vsub.f32 %v895, %v1024
    %v1057 = vsub.f32 %v896, %v1025
    %v1058 = vsub.f32 %v897, %v1026
    %v1059 = vsub.f32 %v898, %v1027
    %v1060 = vsub.f32 %v899, %v1028
    %v1061 = vsub.f32 %v900, %v1029
    %v1062 = vsub.f32 %v901, %v1030
    %v1063 = vsub.f32 %v902, %v1031
    %v1064 = vsub.f32 %v903, %v1032
    %v1065 = vsub.f32 %v904, %v1033
    %v1066 = vsub.f32 %v905, %v1034
    %v1067 = vsub.f32 %v906, %v1035
    %v1068 = vsub.f32 %v907, %v1036
    %v1069 = vsub.f32 %v908, %v1037
    %v1070 = vsub.f32 %v909, %v1038
    %v1071 = vmul.f32 %v1039, 1.442695
    %v1072 = vpow.pop %v1071
    %v1073 = vmul.f32 %v1040, 1.442695
    %v1074 = vpow.pop %v1073
    %v1075 = vmul.f32 %v1041, 1.442695
    %v1076 = vpow.pop %v1075
    %v1077 = vmul.f32 %v1042, 1.442695
    %v1078 = vpow.pop %v1077
    %v1079 = vmul.f32 %v1043, 1.442695
    %v1080 = vpow.pop %v1079
    %v1081 = vmul.f32 %v1044, 1.442695
    %v1082 = vpow.pop %v1081
    %v1083 = vmul.f32 %v1045, 1.442695
    %v1084 = vpow.pop %v1083
    %v1085 = vmul.f32 %v1046, 1.442695
    %v1086 = vpow.pop %v1085
    %v1087 = vmul.f32 %v1047, 1.442695
    %v1088 = vpow.pop %v1087
    %v1089 = vmul.f32 %v1048, 1.442695
    %v1090 = vpow.pop %v1089
    %v1091 = vmul.f32 %v1049, 1.442695
    %v1092 = vpow.pop %v1091
    %v1093 = vmul.f32 %v1050, 1.442695
    %v1094 = vpow.pop %v1093
    %v1095 = vmul.f32 %v1051, 1.442695
    %v1096 = vpow.pop %v1095
    %v1097 = vmul.f32 %v1052, 1.442695
    %v1098 = vpow.pop %v1097
    %v1099 = vmul.f32 %v1053, 1.442695
    %v1100 = vpow.pop %v1099
    %v1101 = vmul.f32 %v1054, 1.442695
    %v1102 = vpow.pop %v1101
    %v1103 = vmul.f32 %v1055, 1.442695
    %v1104 = vpow.pop %v1103
    %v1105 = vmul.f32 %v1056, 1.442695
    %v1106 = vpow.pop %v1105
    %v1107 = vmul.f32 %v1057, 1.442695
    %v1108 = vpow.pop %v1107
    %v1109 = vmul.f32 %v1058, 1.442695
    %v1110 = vpow.pop %v1109
    %v1111 = vmul.f32 %v1059, 1.442695
    %v1112 = vpow.pop %v1111
    %v1113 = vmul.f32 %v1060, 1.442695
    %v1114 = vpow.pop %v1113
    %v1115 = vmul.f32 %v1061, 1.442695
    %v1116 = vpow.pop %v1115
    %v1117 = vmul.f32 %v1062, 1.442695
    %v1118 = vpow.pop %v1117
    %v1119 = vmul.f32 %v1063, 1.442695
    %v1120 = vpow.pop %v1119
    %v1121 = vmul.f32 %v1064, 1.442695
    %v1122 = vpow.pop %v1121
    %v1123 = vmul.f32 %v1065, 1.442695
    %v1124 = vpow.pop %v1123
    %v1125 = vmul.f32 %v1066, 1.442695
    %v1126 = vpow.pop %v1125
    %v1127 = vmul.f32 %v1067, 1.442695
    %v1128 = vpow.pop %v1127
    %v1129 = vmul.f32 %v1068, 1.442695
    %v1130 = vpow.pop %v1129
    %v1131 = vmul.f32 %v1069, 1.442695
    %v1132 = vpow.pop %v1131
    %v1133 = vmul.f32 %v1070, 1.442695
    %v1134 = vpow.pop %v1133
    %1136 = vset.pattern.permute.xlu0 0
    %1137 = vperm.xlu0 %1136, %v1007
    %v1138 = vpop.permute.xlu0 %1137
    %1141 = vset.pattern.permute.xlu0 0
    %1142 = vperm.xlu0 %1141, %v1008
    %v1143 = vpop.permute.xlu0 %1142
    %1146 = vset.pattern.permute.xlu0 0
    %1147 = vperm.xlu0 %1146, %v1009
    %v1148 = vpop.permute.xlu0 %1147
    %1151 = vset.pattern.permute.xlu0 0
    %1152 = vperm.xlu0 %1151, %v1010
    %v1153 = vpop.permute.xlu0 %1152
    %1156 = vset.pattern.permute.xlu0 0
    %1157 = vperm.xlu0 %1156, %v1011
    %v1158 = vpop.permute.xlu0 %1157
    %1161 = vset.pattern.permute.xlu0 0
    %1162 = vperm.xlu0 %1161, %v1012
    %v1163 = vpop.permute.xlu0 %1162
    %1166 = vset.pattern.permute.xlu0 0
    %1167 = vperm.xlu0 %1166, %v1013
    %v1168 = vpop.permute.xlu0 %1167
    %1171 = vset.pattern.permute.xlu0 0
    %1172 = vperm.xlu0 %1171, %v1014
    %v1173 = vpop.permute.xlu0 %1172
    %1176 = vset.pattern.permute.xlu0 0
    %1177 = vperm.xlu0 %1176, %v1015
    %v1178 = vpop.permute.xlu0 %1177
    %1181 = vset.pattern.permute.xlu0 0
    %1182 = vperm.xlu0 %1181, %v1016
    %v1183 = vpop.permute.xlu0 %1182
    %1186 = vset.pattern.permute.xlu0 0
    %1187 = vperm.xlu0 %1186, %v1017
    %v1188 = vpop.permute.xlu0 %1187
    %1191 = vset.pattern.permute.xlu0 0
    %1192 = vperm.xlu0 %1191, %v1018
    %v1193 = vpop.permute.xlu0 %1192
    %1196 = vset.pattern.permute.xlu0 0
    %1197 = vperm.xlu0 %1196, %v1019
    %v1198 = vpop.permute.xlu0 %1197
    %1201 = vset.pattern.permute.xlu0 0
    %1202 = vperm.xlu0 %1201, %v1020
    %v1203 = vpop.permute.xlu0 %1202
    %1206 = vset.pattern.permute.xlu0 0
    %1207 = vperm.xlu0 %1206, %v1021
    %v1208 = vpop.permute.xlu0 %1207
    %1211 = vset.pattern.permute.xlu0 0
    %1212 = vperm.xlu0 %1211, %v1022
    %v1213 = vpop.permute.xlu0 %1212
    %1216 = vset.pattern.permute.xlu0 0
    %1217 = vperm.xlu0 %1216, %v1023
    %v1218 = vpop.permute.xlu0 %1217
    %1221 = vset.pattern.permute.xlu0 0
    %1222 = vperm.xlu0 %1221, %v1024
    %v1223 = vpop.permute.xlu0 %1222
    %1226 = vset.pattern.permute.xlu0 0
    %1227 = vperm.xlu0 %1226, %v1025
    %v1228 = vpop.permute.xlu0 %1227
    %1231 = vset.pattern.permute.xlu0 0
    %1232 = vperm.xlu0 %1231, %v1026
    %v1233 = vpop.permute.xlu0 %1232
    %1236 = vset.pattern.permute.xlu0 0
    %1237 = vperm.xlu0 %1236, %v1027
    %v1238 = vpop.permute.xlu0 %1237
    %1241 = vset.pattern.permute.xlu0 0
    %1242 = vperm.xlu0 %1241, %v1028
    %v1243 = vpop.permute.xlu0 %1242
    %1246 = vset.pattern.permute.xlu0 0
    %1247 = vperm.xlu0 %1246, %v1029
    %v1248 = vpop.permute.xlu0 %1247
    %1251 = vset.pattern.permute.xlu0 0
    %1252 = vperm.xlu0 %1251, %v1030
    %v1253 = vpop.permute.xlu0 %1252
    %1256 = vset.pattern.permute.xlu0 0
    %1257 = vperm.xlu0 %1256, %v1031
    %v1258 = vpop.permute.xlu0 %1257
    %1261 = vset.pattern.permute.xlu0 0
    %1262 = vperm.xlu0 %1261, %v1032
    %v1263 = vpop.permute.xlu0 %1262
    %1266 = vset.pattern.permute.xlu0 0
    %1267 = vperm.xlu0 %1266, %v1033
    %v1268 = vpop.permute.xlu0 %1267
    %1271 = vset.pattern.permute.xlu0 0
    %1272 = vperm.xlu0 %1271, %v1034
    %v1273 = vpop.permute.xlu0 %1272
    %1276 = vset.pattern.permute.xlu0 0
    %1277 = vperm.xlu0 %1276, %v1035
    %v1278 = vpop.permute.xlu0 %1277
    %1281 = vset.pattern.permute.xlu0 0
    %1282 = vperm.xlu0 %1281, %v1036
    %v1283 = vpop.permute.xlu0 %1282
    %1286 = vset.pattern.permute.xlu0 0
    %1287 = vperm.xlu0 %1286, %v1037
    %v1288 = vpop.permute.xlu0 %1287
    %1291 = vset.pattern.permute.xlu0 0
    %1292 = vperm.xlu0 %1291, %v1038
    %v1293 = vpop.permute.xlu0 %1292
    %v1295 = vsub.f32 %v461, %v1138
    %v1296 = vsub.f32 %v464, %v1143
    %v1297 = vsub.f32 %v469, %v1148
    %v1298 = vsub.f32 %v472, %v1153
    %v1299 = vsub.f32 %v477, %v1158
    %v1300 = vsub.f32 %v480, %v1163
    %v1301 = vsub.f32 %v485, %v1168
    %v1302 = vsub.f32 %v488, %v1173
    %v1303 = vsub.f32 %v590, %v1178
    %v1304 = vsub.f32 %v593, %v1183
    %v1305 = vsub.f32 %v598, %v1188
    %v1306 = vsub.f32 %v601, %v1193
    %v1307 = vsub.f32 %v606, %v1198
    %v1308 = vsub.f32 %v609, %v1203
    %v1309 = vsub.f32 %v614, %v1208
    %v1310 = vsub.f32 %v617, %v1213
    %v1311 = vsub.f32 %v719, %v1218
    %v1312 = vsub.f32 %v722, %v1223
    %v1313 = vsub.f32 %v727, %v1228
    %v1314 = vsub.f32 %v730, %v1233
    %v1315 = vsub.f32 %v735, %v1238
    %v1316 = vsub.f32 %v738, %v1243
    %v1317 = vsub.f32 %v743, %v1248
    %v1318 = vsub.f32 %v746, %v1253
    %v1319 = vsub.f32 %v848, %v1258
    %v1320 = vsub.f32 %v851, %v1263
    %v1321 = vsub.f32 %v856, %v1268
    %v1322 = vsub.f32 %v859, %v1273
    %v1323 = vsub.f32 %v864, %v1278
    %v1324 = vsub.f32 %v867, %v1283
    %v1325 = vsub.f32 %v872, %v1288
    %v1326 = vsub.f32 %v875, %v1293
    %v1327 = vmul.f32 %v1295, 1.442695
    %v1328 = vpow.pop %v1327
    %v1329 = vmul.f32 %v1296, 1.442695
    %v1330 = vpow.pop %v1329
    %v1331 = vmul.f32 %v1297, 1.442695
    %v1332 = vpow.pop %v1331
    %v1333 = vmul.f32 %v1298, 1.442695
    %v1334 = vpow.pop %v1333
    %v1335 = vmul.f32 %v1299, 1.442695
    %v1336 = vpow.pop %v1335
    %v1337 = vmul.f32 %v1300, 1.442695
    %v1338 = vpow.pop %v1337
    %v1339 = vmul.f32 %v1301, 1.442695
    %v1340 = vpow.pop %v1339
    %v1341 = vmul.f32 %v1302, 1.442695
    %v1342 = vpow.pop %v1341
    %v1343 = vmul.f32 %v1303, 1.442695
    %v1344 = vpow.pop %v1343
    %v1345 = vmul.f32 %v1304, 1.442695
    %v1346 = vpow.pop %v1345
    %v1347 = vmul.f32 %v1305, 1.442695
    %v1348 = vpow.pop %v1347
    %v1349 = vmul.f32 %v1306, 1.442695
    %v1350 = vpow.pop %v1349
    %v1351 = vmul.f32 %v1307, 1.442695
    %v1352 = vpow.pop %v1351
    %v1353 = vmul.f32 %v1308, 1.442695
    %v1354 = vpow.pop %v1353
    %v1355 = vmul.f32 %v1309, 1.442695
    %v1356 = vpow.pop %v1355
    %v1357 = vmul.f32 %v1310, 1.442695
    %v1358 = vpow.pop %v1357
    %v1359 = vmul.f32 %v1311, 1.442695
    %v1360 = vpow.pop %v1359
    %v1361 = vmul.f32 %v1312, 1.442695
    %v1362 = vpow.pop %v1361
    %v1363 = vmul.f32 %v1313, 1.442695
    %v1364 = vpow.pop %v1363
    %v1365 = vmul.f32 %v1314, 1.442695
    %v1366 = vpow.pop %v1365
    %v1367 = vmul.f32 %v1315, 1.442695
    %v1368 = vpow.pop %v1367
    %v1369 = vmul.f32 %v1316, 1.442695
    %v1370 = vpow.pop %v1369
    %v1371 = vmul.f32 %v1317, 1.442695
    %v1372 = vpow.pop %v1371
    %v1373 = vmul.f32 %v1318, 1.442695
    %v1374 = vpow.pop %v1373
    %v1375 = vmul.f32 %v1319, 1.442695
    %v1376 = vpow.pop %v1375
    %v1377 = vmul.f32 %v1320, 1.442695
    %v1378 = vpow.pop %v1377
    %v1379 = vmul.f32 %v1321, 1.442695
    %v1380 = vpow.pop %v1379
    %v1381 = vmul.f32 %v1322, 1.442695
    %v1382 = vpow.pop %v1381
    %v1383 = vmul.f32 %v1323, 1.442695
    %v1384 = vpow.pop %v1383
    %v1385 = vmul.f32 %v1324, 1.442695
    %v1386 = vpow.pop %v1385
    %v1387 = vmul.f32 %v1325, 1.442695
    %v1388 = vpow.pop %v1387
    %v1389 = vmul.f32 %v1326, 1.442695
    %v1390 = vpow.pop %v1389
    %v1391 = vld [vmem:[#allocation3] sm:$0xff]
    %v1392 = vld [vmem:[#allocation3 + $0x8] sm:$0xff]
    %v1393 = vld [vmem:[#allocation3 + $0x10] sm:$0xff]
    %v1394 = vld [vmem:[#allocation3 + $0x18] sm:$0xff]
    %v1395 = vld [vmem:[#allocation3 + $0x20] sm:$0xff]
    %v1396 = vld [vmem:[#allocation3 + $0x28] sm:$0xff]
    %v1397 = vld [vmem:[#allocation3 + $0x30] sm:$0xff]
    %v1398 = vld [vmem:[#allocation3 + $0x38] sm:$0xff]
    %v1399 = vld [vmem:[#allocation3 + $0x40] sm:$0xff]
    %v1400 = vld [vmem:[#allocation3 + $0x48] sm:$0xff]
    %v1401 = vld [vmem:[#allocation3 + $0x50] sm:$0xff]
    %v1402 = vld [vmem:[#allocation3 + $0x58] sm:$0xff]
    %v1403 = vld [vmem:[#allocation3 + $0x60] sm:$0xff]
    %v1404 = vld [vmem:[#allocation3 + $0x68] sm:$0xff]
    %v1405 = vld [vmem:[#allocation3 + $0x70] sm:$0xff]
    %v1406 = vld [vmem:[#allocation3 + $0x78] sm:$0xff]
    %v1407 = vld [vmem:[#allocation3 + $0x80] sm:$0xff]
    %v1408 = vld [vmem:[#allocation3 + $0x88] sm:$0xff]
    %v1409 = vld [vmem:[#allocation3 + $0x90] sm:$0xff]
    %v1410 = vld [vmem:[#allocation3 + $0x98] sm:$0xff]
    %v1411 = vld [vmem:[#allocation3 + $0xa0] sm:$0xff]
    %v1412 = vld [vmem:[#allocation3 + $0xa8] sm:$0xff]
    %v1413 = vld [vmem:[#allocation3 + $0xb0] sm:$0xff]
    %v1414 = vld [vmem:[#allocation3 + $0xb8] sm:$0xff]
    %v1415 = vld [vmem:[#allocation3 + $0xc0] sm:$0xff]
    %v1416 = vld [vmem:[#allocation3 + $0xc8] sm:$0xff]
    %v1417 = vld [vmem:[#allocation3 + $0xd0] sm:$0xff]
    %v1418 = vld [vmem:[#allocation3 + $0xd8] sm:$0xff]
    %v1419 = vld [vmem:[#allocation3 + $0xe0] sm:$0xff]
    %v1420 = vld [vmem:[#allocation3 + $0xe8] sm:$0xff]
    %v1421 = vld [vmem:[#allocation3 + $0xf0] sm:$0xff]
    %v1422 = vld [vmem:[#allocation3 + $0xf8] sm:$0xff]
    %v1423 = vmul.f32 %v1072, %v1391
    %v1424 = vmul.f32 %v1074, %v1392
    %v1425 = vmul.f32 %v1076, %v1393
    %v1426 = vmul.f32 %v1078, %v1394
    %v1427 = vmul.f32 %v1080, %v1395
    %v1428 = vmul.f32 %v1082, %v1396
    %v1429 = vmul.f32 %v1084, %v1397
    %v1430 = vmul.f32 %v1086, %v1398
    %v1431 = vmul.f32 %v1088, %v1399
    %v1432 = vmul.f32 %v1090, %v1400
    %v1433 = vmul.f32 %v1092, %v1401
    %v1434 = vmul.f32 %v1094, %v1402
    %v1435 = vmul.f32 %v1096, %v1403
    %v1436 = vmul.f32 %v1098, %v1404
    %v1437 = vmul.f32 %v1100, %v1405
    %v1438 = vmul.f32 %v1102, %v1406
    %v1439 = vmul.f32 %v1104, %v1407
    %v1440 = vmul.f32 %v1106, %v1408
    %v1441 = vmul.f32 %v1108, %v1409
    %v1442 = vmul.f32 %v1110, %v1410
    %v1443 = vmul.f32 %v1112, %v1411
    %v1444 = vmul.f32 %v1114, %v1412
    %v1445 = vmul.f32 %v1116, %v1413
    %v1446 = vmul.f32 %v1118, %v1414
    %v1447 = vmul.f32 %v1120, %v1415
    %v1448 = vmul.f32 %v1122, %v1416
    %v1449 = vmul.f32 %v1124, %v1417
    %v1450 = vmul.f32 %v1126, %v1418
    %v1451 = vmul.f32 %v1128, %v1419
    %v1452 = vmul.f32 %v1130, %v1420
    %v1453 = vmul.f32 %v1132, %v1421
    %v1454 = vmul.f32 %v1134, %v1422
    %v1455 = vsel %vm910, %v1328, 0.0
    %1456 = vadd.xlane.f32.xlu0 %v1455
    %v1457 = vpop.xlane.xlu0 %1456
    %v1458 = vsel %vm910, %v1330, 0.0
    %1459 = vadd.xlane.f32.xlu0 %v1458
    %v1460 = vpop.xlane.xlu0 %1459
    %v1461 = vsel %vm910, %v1332, 0.0
    %1462 = vadd.xlane.f32.xlu0 %v1461
    %v1463 = vpop.xlane.xlu0 %1462
    %v1464 = vsel %vm910, %v1334, 0.0
    %1465 = vadd.xlane.f32.xlu0 %v1464
    %v1466 = vpop.xlane.xlu0 %1465
    %v1467 = vsel %vm910, %v1336, 0.0
    %1468 = vadd.xlane.f32.xlu0 %v1467
    %v1469 = vpop.xlane.xlu0 %1468
    %v1470 = vsel %vm910, %v1338, 0.0
    %1471 = vadd.xlane.f32.xlu0 %v1470
    %v1472 = vpop.xlane.xlu0 %1471
    %v1473 = vsel %vm910, %v1340, 0.0
    %1474 = vadd.xlane.f32.xlu0 %v1473
    %v1475 = vpop.xlane.xlu0 %1474
    %v1476 = vsel %vm910, %v1342, 0.0
    %1477 = vadd.xlane.f32.xlu0 %v1476
    %v1478 = vpop.xlane.xlu0 %1477
    %v1479 = vsel %vm910, %v1344, 0.0
    %1480 = vadd.xlane.f32.xlu0 %v1479
    %v1481 = vpop.xlane.xlu0 %1480
    %v1482 = vsel %vm910, %v1346, 0.0
    %1483 = vadd.xlane.f32.xlu0 %v1482
    %v1484 = vpop.xlane.xlu0 %1483
    %v1485 = vsel %vm910, %v1348, 0.0
    %1486 = vadd.xlane.f32.xlu0 %v1485
    %v1487 = vpop.xlane.xlu0 %1486
    %v1488 = vsel %vm910, %v1350, 0.0
    %1489 = vadd.xlane.f32.xlu0 %v1488
    %v1490 = vpop.xlane.xlu0 %1489
    %v1491 = vsel %vm910, %v1352, 0.0
    %1492 = vadd.xlane.f32.xlu0 %v1491
    %v1493 = vpop.xlane.xlu0 %1492
    %v1494 = vsel %vm910, %v1354, 0.0
    %1495 = vadd.xlane.f32.xlu0 %v1494
    %v1496 = vpop.xlane.xlu0 %1495
    %v1497 = vsel %vm910, %v1356, 0.0
    %1498 = vadd.xlane.f32.xlu0 %v1497
    %v1499 = vpop.xlane.xlu0 %1498
    %v1500 = vsel %vm910, %v1358, 0.0
    %1501 = vadd.xlane.f32.xlu0 %v1500
    %v1502 = vpop.xlane.xlu0 %1501
    %v1503 = vsel %vm910, %v1360, 0.0
    %1504 = vadd.xlane.f32.xlu0 %v1503
    %v1505 = vpop.xlane.xlu0 %1504
    %v1506 = vsel %vm910, %v1362, 0.0
    %1507 = vadd.xlane.f32.xlu0 %v1506
    %v1508 = vpop.xlane.xlu0 %1507
    %v1509 = vsel %vm910, %v1364, 0.0
    %1510 = vadd.xlane.f32.xlu0 %v1509
    %v1511 = vpop.xlane.xlu0 %1510
    %v1512 = vsel %vm910, %v1366, 0.0
    %1513 = vadd.xlane.f32.xlu0 %v1512
    %v1514 = vpop.xlane.xlu0 %1513
    %v1515 = vsel %vm910, %v1368, 0.0
    %1516 = vadd.xlane.f32.xlu0 %v1515
    %v1517 = vpop.xlane.xlu0 %1516
    %v1518 = vsel %vm910, %v1370, 0.0
    %1519 = vadd.xlane.f32.xlu0 %v1518
    %v1520 = vpop.xlane.xlu0 %1519
    %v1521 = vsel %vm910, %v1372, 0.0
    %1522 = vadd.xlane.f32.xlu0 %v1521
    %v1523 = vpop.xlane.xlu0 %1522
    %v1524 = vsel %vm910, %v1374, 0.0
    %1525 = vadd.xlane.f32.xlu0 %v1524
    %v1526 = vpop.xlane.xlu0 %1525
    %v1527 = vsel %vm910, %v1376, 0.0
    %1528 = vadd.xlane.f32.xlu0 %v1527
    %v1529 = vpop.xlane.xlu0 %1528
    %v1530 = vsel %vm910, %v1378, 0.0
    %1531 = vadd.xlane.f32.xlu0 %v1530
    %v1532 = vpop.xlane.xlu0 %1531
    %v1533 = vsel %vm910, %v1380, 0.0
    %1534 = vadd.xlane.f32.xlu0 %v1533
    %v1535 = vpop.xlane.xlu0 %1534
    %v1536 = vsel %vm910, %v1382, 0.0
    %1537 = vadd.xlane.f32.xlu0 %v1536
    %v1538 = vpop.xlane.xlu0 %1537
    %v1539 = vsel %vm910, %v1384, 0.0
    %1540 = vadd.xlane.f32.xlu0 %v1539
    %v1541 = vpop.xlane.xlu0 %1540
    %v1542 = vsel %vm910, %v1386, 0.0
    %1543 = vadd.xlane.f32.xlu0 %v1542
    %v1544 = vpop.xlane.xlu0 %1543
    %v1545 = vsel %vm910, %v1388, 0.0
    %1546 = vadd.xlane.f32.xlu0 %v1545
    %v1547 = vpop.xlane.xlu0 %1546
    %v1548 = vsel %vm910, %v1390, 0.0
    %1549 = vadd.xlane.f32.xlu0 %v1548
    %v1550 = vpop.xlane.xlu0 %1549
    %v1551 = vadd.f32 %v1423, %v1457
    %v1552 = vadd.f32 %v1424, %v1460
    %v1553 = vadd.f32 %v1425, %v1463
    %v1554 = vadd.f32 %v1426, %v1466
    %v1555 = vadd.f32 %v1427, %v1469
    %v1556 = vadd.f32 %v1428, %v1472
    %v1557 = vadd.f32 %v1429, %v1475
    %v1558 = vadd.f32 %v1430, %v1478
    %v1559 = vadd.f32 %v1431, %v1481
    %v1560 = vadd.f32 %v1432, %v1484
    %v1561 = vadd.f32 %v1433, %v1487
    %v1562 = vadd.f32 %v1434, %v1490
    %v1563 = vadd.f32 %v1435, %v1493
    %v1564 = vadd.f32 %v1436, %v1496
    %v1565 = vadd.f32 %v1437, %v1499
    %v1566 = vadd.f32 %v1438, %v1502
    %v1567 = vadd.f32 %v1439, %v1505
    %v1568 = vadd.f32 %v1440, %v1508
    %v1569 = vadd.f32 %v1441, %v1511
    %v1570 = vadd.f32 %v1442, %v1514
    %v1571 = vadd.f32 %v1443, %v1517
    %v1572 = vadd.f32 %v1444, %v1520
    %v1573 = vadd.f32 %v1445, %v1523
    %v1574 = vadd.f32 %v1446, %v1526
    %v1575 = vadd.f32 %v1447, %v1529
    %v1576 = vadd.f32 %v1448, %v1532
    %v1577 = vadd.f32 %v1449, %v1535
    %v1578 = vadd.f32 %v1450, %v1538
    %v1579 = vadd.f32 %v1451, %v1541
    %v1580 = vadd.f32 %v1452, %v1544
    %v1581 = vadd.f32 %v1453, %v1547
    %v1582 = vadd.f32 %v1454, %v1550
    %vm1583 = vcmask 7168
    %1584 = vst.msk [vmem:[#allocation3] sm:$0xff] %vm1583, %v1551
    %1585 = vst.msk [vmem:[#allocation3 + $0x8] sm:$0xff] %vm1583, %v1552
    %1586 = vst.msk [vmem:[#allocation3 + $0x10] sm:$0xff] %vm1583, %v1553
    %1587 = vst.msk [vmem:[#allocation3 + $0x18] sm:$0xff] %vm1583, %v1554
    %1588 = vst.msk [vmem:[#allocation3 + $0x20] sm:$0xff] %vm1583, %v1555
    %1589 = vst.msk [vmem:[#allocation3 + $0x28] sm:$0xff] %vm1583, %v1556
    %1590 = vst.msk [vmem:[#allocation3 + $0x30] sm:$0xff] %vm1583, %v1557
    %1591 = vst.msk [vmem:[#allocation3 + $0x38] sm:$0xff] %vm1583, %v1558
    %1592 = vst.msk [vmem:[#allocation3 + $0x40] sm:$0xff] %vm1583, %v1559
    %1593 = vst.msk [vmem:[#allocation3 + $0x48] sm:$0xff] %vm1583, %v1560
    %1594 = vst.msk [vmem:[#allocation3 + $0x50] sm:$0xff] %vm1583, %v1561
    %1595 = vst.msk [vmem:[#allocation3 + $0x58] sm:$0xff] %vm1583, %v1562
    %1596 = vst.msk [vmem:[#allocation3 + $0x60] sm:$0xff] %vm1583, %v1563
    %1597 = vst.msk [vmem:[#allocation3 + $0x68] sm:$0xff] %vm1583, %v1564
    %1598 = vst.msk [vmem:[#allocation3 + $0x70] sm:$0xff] %vm1583, %v1565
    %1599 = vst.msk [vmem:[#allocation3 + $0x78] sm:$0xff] %vm1583, %v1566
    %1600 = vst.msk [vmem:[#allocation3 + $0x80] sm:$0xff] %vm1583, %v1567
    %1601 = vst.msk [vmem:[#allocation3 + $0x88] sm:$0xff] %vm1583, %v1568
    %1602 = vst.msk [vmem:[#allocation3 + $0x90] sm:$0xff] %vm1583, %v1569
    %1603 = vst.msk [vmem:[#allocation3 + $0x98] sm:$0xff] %vm1583, %v1570
    %1604 = vst.msk [vmem:[#allocation3 + $0xa0] sm:$0xff] %vm1583, %v1571
    %1605 = vst.msk [vmem:[#allocation3 + $0xa8] sm:$0xff] %vm1583, %v1572
    %1606 = vst.msk [vmem:[#allocation3 + $0xb0] sm:$0xff] %vm1583, %v1573
    %1607 = vst.msk [vmem:[#allocation3 + $0xb8] sm:$0xff] %vm1583, %v1574
    %1608 = vst.msk [vmem:[#allocation3 + $0xc0] sm:$0xff] %vm1583, %v1575
    %1609 = vst.msk [vmem:[#allocation3 + $0xc8] sm:$0xff] %vm1583, %v1576
    %1610 = vst.msk [vmem:[#allocation3 + $0xd0] sm:$0xff] %vm1583, %v1577
    %1611 = vst.msk [vmem:[#allocation3 + $0xd8] sm:$0xff] %vm1583, %v1578
    %1612 = vst.msk [vmem:[#allocation3 + $0xe0] sm:$0xff] %vm1583, %v1579
    %1613 = vst.msk [vmem:[#allocation3 + $0xe8] sm:$0xff] %vm1583, %v1580
    %1614 = vst.msk [vmem:[#allocation3 + $0xf0] sm:$0xff] %vm1583, %v1581
    %1615 = vst.msk [vmem:[#allocation3 + $0xf8] sm:$0xff] %vm1583, %v1582
    %v1616 = vld [vmem:[#allocation4] sm:$0xff]
    %v1617 = vld [vmem:[#allocation4 + $0x8] sm:$0xff]
    %v1618 = vld [vmem:[#allocation4 + $0x10] sm:$0xff]
    %v1619 = vld [vmem:[#allocation4 + $0x18] sm:$0xff]
    %v1620 = vld [vmem:[#allocation4 + $0x20] sm:$0xff]
    %v1621 = vld [vmem:[#allocation4 + $0x28] sm:$0xff]
    %v1622 = vld [vmem:[#allocation4 + $0x30] sm:$0xff]
    %v1623 = vld [vmem:[#allocation4 + $0x38] sm:$0xff]
    %v1624 = vld [vmem:[#allocation4 + $0x40] sm:$0xff]
    %v1625 = vld [vmem:[#allocation4 + $0x48] sm:$0xff]
    %v1626 = vld [vmem:[#allocation4 + $0x50] sm:$0xff]
    %v1627 = vld [vmem:[#allocation4 + $0x58] sm:$0xff]
    %v1628 = vld [vmem:[#allocation4 + $0x60] sm:$0xff]
    %v1629 = vld [vmem:[#allocation4 + $0x68] sm:$0xff]
    %v1630 = vld [vmem:[#allocation4 + $0x70] sm:$0xff]
    %v1631 = vld [vmem:[#allocation4 + $0x78] sm:$0xff]
    %v1632 = vld [vmem:[#allocation4 + $0x80] sm:$0xff]
    %v1633 = vld [vmem:[#allocation4 + $0x88] sm:$0xff]
    %v1634 = vld [vmem:[#allocation4 + $0x90] sm:$0xff]
    %v1635 = vld [vmem:[#allocation4 + $0x98] sm:$0xff]
    %v1636 = vld [vmem:[#allocation4 + $0xa0] sm:$0xff]
    %v1637 = vld [vmem:[#allocation4 + $0xa8] sm:$0xff]
    %v1638 = vld [vmem:[#allocation4 + $0xb0] sm:$0xff]
    %v1639 = vld [vmem:[#allocation4 + $0xb8] sm:$0xff]
    %v1640 = vld [vmem:[#allocation4 + $0xc0] sm:$0xff]
    %v1641 = vld [vmem:[#allocation4 + $0xc8] sm:$0xff]
    %v1642 = vld [vmem:[#allocation4 + $0xd0] sm:$0xff]
    %v1643 = vld [vmem:[#allocation4 + $0xd8] sm:$0xff]
    %v1644 = vld [vmem:[#allocation4 + $0xe0] sm:$0xff]
    %v1645 = vld [vmem:[#allocation4 + $0xe8] sm:$0xff]
    %v1646 = vld [vmem:[#allocation4 + $0xf0] sm:$0xff]
    %v1647 = vld [vmem:[#allocation4 + $0xf8] sm:$0xff]
    %1649 = vset.pattern.permute.xlu0 0
    %1650 = vperm.xlu0 %1649, %v1072
    %v1651 = vpop.permute.xlu0 %1650
    %1654 = vset.pattern.permute.xlu0 0
    %1655 = vperm.xlu0 %1654, %v1074
    %v1656 = vpop.permute.xlu0 %1655
    %1659 = vset.pattern.permute.xlu0 0
    %1660 = vperm.xlu0 %1659, %v1076
    %v1661 = vpop.permute.xlu0 %1660
    %1664 = vset.pattern.permute.xlu0 0
    %1665 = vperm.xlu0 %1664, %v1078
    %v1666 = vpop.permute.xlu0 %1665
    %1669 = vset.pattern.permute.xlu0 0
    %1670 = vperm.xlu0 %1669, %v1080
    %v1671 = vpop.permute.xlu0 %1670
    %1674 = vset.pattern.permute.xlu0 0
    %1675 = vperm.xlu0 %1674, %v1082
    %v1676 = vpop.permute.xlu0 %1675
    %1679 = vset.pattern.permute.xlu0 0
    %1680 = vperm.xlu0 %1679, %v1084
    %v1681 = vpop.permute.xlu0 %1680
    %1684 = vset.pattern.permute.xlu0 0
    %1685 = vperm.xlu0 %1684, %v1086
    %v1686 = vpop.permute.xlu0 %1685
    %1689 = vset.pattern.permute.xlu0 0
    %1690 = vperm.xlu0 %1689, %v1088
    %v1691 = vpop.permute.xlu0 %1690
    %1694 = vset.pattern.permute.xlu0 0
    %1695 = vperm.xlu0 %1694, %v1090
    %v1696 = vpop.permute.xlu0 %1695
    %1699 = vset.pattern.permute.xlu0 0
    %1700 = vperm.xlu0 %1699, %v1092
    %v1701 = vpop.permute.xlu0 %1700
    %1704 = vset.pattern.permute.xlu0 0
    %1705 = vperm.xlu0 %1704, %v1094
    %v1706 = vpop.permute.xlu0 %1705
    %1709 = vset.pattern.permute.xlu0 0
    %1710 = vperm.xlu0 %1709, %v1096
    %v1711 = vpop.permute.xlu0 %1710
    %1714 = vset.pattern.permute.xlu0 0
    %1715 = vperm.xlu0 %1714, %v1098
    %v1716 = vpop.permute.xlu0 %1715
    %1719 = vset.pattern.permute.xlu0 0
    %1720 = vperm.xlu0 %1719, %v1100
    %v1721 = vpop.permute.xlu0 %1720
    %1724 = vset.pattern.permute.xlu0 0
    %1725 = vperm.xlu0 %1724, %v1102
    %v1726 = vpop.permute.xlu0 %1725
    %1729 = vset.pattern.permute.xlu0 0
    %1730 = vperm.xlu0 %1729, %v1104
    %v1731 = vpop.permute.xlu0 %1730
    %1734 = vset.pattern.permute.xlu0 0
    %1735 = vperm.xlu0 %1734, %v1106
    %v1736 = vpop.permute.xlu0 %1735
    %1739 = vset.pattern.permute.xlu0 0
    %1740 = vperm.xlu0 %1739, %v1108
    %v1741 = vpop.permute.xlu0 %1740
    %1744 = vset.pattern.permute.xlu0 0
    %1745 = vperm.xlu0 %1744, %v1110
    %v1746 = vpop.permute.xlu0 %1745
    %1749 = vset.pattern.permute.xlu0 0
    %1750 = vperm.xlu0 %1749, %v1112
    %v1751 = vpop.permute.xlu0 %1750
    %1754 = vset.pattern.permute.xlu0 0
    %1755 = vperm.xlu0 %1754, %v1114
    %v1756 = vpop.permute.xlu0 %1755
    %1759 = vset.pattern.permute.xlu0 0
    %1760 = vperm.xlu0 %1759, %v1116
    %v1761 = vpop.permute.xlu0 %1760
    %1764 = vset.pattern.permute.xlu0 0
    %1765 = vperm.xlu0 %1764, %v1118
    %v1766 = vpop.permute.xlu0 %1765
    %1769 = vset.pattern.permute.xlu0 0
    %1770 = vperm.xlu0 %1769, %v1120
    %v1771 = vpop.permute.xlu0 %1770
    %1774 = vset.pattern.permute.xlu0 0
    %1775 = vperm.xlu0 %1774, %v1122
    %v1776 = vpop.permute.xlu0 %1775
    %1779 = vset.pattern.permute.xlu0 0
    %1780 = vperm.xlu0 %1779, %v1124
    %v1781 = vpop.permute.xlu0 %1780
    %1784 = vset.pattern.permute.xlu0 0
    %1785 = vperm.xlu0 %1784, %v1126
    %v1786 = vpop.permute.xlu0 %1785
    %1789 = vset.pattern.permute.xlu0 0
    %1790 = vperm.xlu0 %1789, %v1128
    %v1791 = vpop.permute.xlu0 %1790
    %1794 = vset.pattern.permute.xlu0 0
    %1795 = vperm.xlu0 %1794, %v1130
    %v1796 = vpop.permute.xlu0 %1795
    %1799 = vset.pattern.permute.xlu0 0
    %1800 = vperm.xlu0 %1799, %v1132
    %v1801 = vpop.permute.xlu0 %1800
    %1804 = vset.pattern.permute.xlu0 0
    %1805 = vperm.xlu0 %1804, %v1134
    %v1806 = vpop.permute.xlu0 %1805
    %v1808 = vmul.f32 %v1651, %v1616
    %v1809 = vmul.f32 %v1656, %v1617
    %v1810 = vmul.f32 %v1661, %v1618
    %v1811 = vmul.f32 %v1666, %v1619
    %v1812 = vmul.f32 %v1671, %v1620
    %v1813 = vmul.f32 %v1676, %v1621
    %v1814 = vmul.f32 %v1681, %v1622
    %v1815 = vmul.f32 %v1686, %v1623
    %v1816 = vmul.f32 %v1691, %v1624
    %v1817 = vmul.f32 %v1696, %v1625
    %v1818 = vmul.f32 %v1701, %v1626
    %v1819 = vmul.f32 %v1706, %v1627
    %v1820 = vmul.f32 %v1711, %v1628
    %v1821 = vmul.f32 %v1716, %v1629
    %v1822 = vmul.f32 %v1721, %v1630
    %v1823 = vmul.f32 %v1726, %v1631
    %v1824 = vmul.f32 %v1731, %v1632
    %v1825 = vmul.f32 %v1736, %v1633
    %v1826 = vmul.f32 %v1741, %v1634
    %v1827 = vmul.f32 %v1746, %v1635
    %v1828 = vmul.f32 %v1751, %v1636
    %v1829 = vmul.f32 %v1756, %v1637
    %v1830 = vmul.f32 %v1761, %v1638
    %v1831 = vmul.f32 %v1766, %v1639
    %v1832 = vmul.f32 %v1771, %v1640
    %v1833 = vmul.f32 %v1776, %v1641
    %v1834 = vmul.f32 %v1781, %v1642
    %v1835 = vmul.f32 %v1786, %v1643
    %v1836 = vmul.f32 %v1791, %v1644
    %v1837 = vmul.f32 %v1796, %v1645
    %v1838 = vmul.f32 %v1801, %v1646
    %v1839 = vmul.f32 %v1806, %v1647
    %v1840 = vpack.c.bf16 %v1330, %v1328
    %v1841 = vpack.c.bf16 %v1334, %v1332
    %v1842 = vpack.c.bf16 %v1338, %v1336
    %v1843 = vpack.c.bf16 %v1342, %v1340
    %v1844 = vpack.c.bf16 %v1346, %v1344
    %v1845 = vpack.c.bf16 %v1350, %v1348
    %v1846 = vpack.c.bf16 %v1354, %v1352
    %v1847 = vpack.c.bf16 %v1358, %v1356
    %v1848 = vpack.c.bf16 %v1362, %v1360
    %v1849 = vpack.c.bf16 %v1366, %v1364
    %v1850 = vpack.c.bf16 %v1370, %v1368
    %v1851 = vpack.c.bf16 %v1374, %v1372
    %v1852 = vpack.c.bf16 %v1378, %v1376
    %v1853 = vpack.c.bf16 %v1382, %v1380
    %v1854 = vpack.c.bf16 %v1386, %v1384
    %v1855 = vpack.c.bf16 %v1390, %v1388
    %v1856 = vld [vmem:[%s130] sm:$0xf]
    %v1857 = vld [vmem:[%s130 + $0x4] sm:$0xf]
    %v1858 = vld [vmem:[%s130 + $0x8] sm:$0xf]
    %v1859 = vld [vmem:[%s130 + $0xc] sm:$0xf]
    %v1860 = vld [vmem:[%s130 + $0x10] sm:$0xf]
    %v1861 = vld [vmem:[%s130 + $0x14] sm:$0xf]
    %v1862 = vld [vmem:[%s130 + $0x18] sm:$0xf]
    %v1863 = vld [vmem:[%s130 + $0x1c] sm:$0xf]
    %v1864 = vld [vmem:[%s130 + $0x20] sm:$0xf]
    %v1865 = vld [vmem:[%s130 + $0x24] sm:$0xf]
    %v1866 = vld [vmem:[%s130 + $0x28] sm:$0xf]
    %v1867 = vld [vmem:[%s130 + $0x2c] sm:$0xf]
    %v1868 = vld [vmem:[%s130 + $0x30] sm:$0xf]
    %v1869 = vld [vmem:[%s130 + $0x34] sm:$0xf]
    %v1870 = vld [vmem:[%s130 + $0x38] sm:$0xf]
    %v1871 = vld [vmem:[%s130 + $0x3c] sm:$0xf]
    %v1872 = vld [vmem:[%s130 + $0x40] sm:$0xf]
    %v1873 = vld [vmem:[%s130 + $0x44] sm:$0xf]
    %v1874 = vld [vmem:[%s130 + $0x48] sm:$0xf]
    %v1875 = vld [vmem:[%s130 + $0x4c] sm:$0xf]
    %v1876 = vld [vmem:[%s130 + $0x50] sm:$0xf]
    %v1877 = vld [vmem:[%s130 + $0x54] sm:$0xf]
    %v1878 = vld [vmem:[%s130 + $0x58] sm:$0xf]
    %v1879 = vld [vmem:[%s130 + $0x5c] sm:$0xf]
    %v1880 = vld [vmem:[%s130 + $0x60] sm:$0xf]
    %v1881 = vld [vmem:[%s130 + $0x64] sm:$0xf]
    %v1882 = vld [vmem:[%s130 + $0x68] sm:$0xf]
    %v1883 = vld [vmem:[%s130 + $0x6c] sm:$0xf]
    %v1884 = vld [vmem:[%s130 + $0x70] sm:$0xf]
    %v1885 = vld [vmem:[%s130 + $0x74] sm:$0xf]
    %v1886 = vld [vmem:[%s130 + $0x78] sm:$0xf]
    %v1887 = vld [vmem:[%s130 + $0x7c] sm:$0xf]
    %v1896 = vunpack.c.l.b16 %v1856
    %v1897 = vunpack.c.l.b16 %v1857
    %v1898 = vunpack.c.l.b16 %v1858
    %v1899 = vunpack.c.l.b16 %v1859
    %v1900 = vunpack.c.l.b16 %v1860
    %v1901 = vunpack.c.l.b16 %v1861
    %v1902 = vunpack.c.l.b16 %v1862
    %v1903 = vunpack.c.l.b16 %v1863
    %v1904 = vpack.c.b16 %v1897, %v1896
    %v1905 = vpack.c.b16 %v1899, %v1898
    %v1906 = vpack.c.b16 %v1901, %v1900
    %v1907 = vpack.c.b16 %v1903, %v1902
    %v1913 = vsel %vm910, %v1840, 0
    %v1916 = vsel %vm910, %v1841, 0
    %v1919 = vsel %vm910, %v1842, 0
    %v1922 = vsel %vm910, %v1843, 0
    %1924 = vmatprep.subr.bf16.mxu0 0
    %1925 = vmatpush1.bf16.msra.mxu0 %v1904
    %1926 = vmatprep.subr.bf16.mxu0 0
    %1927 = vmatpush1.bf16.msra.mxu0 %v1905
    %1928 = vmatprep.subr.bf16.mxu0 0
    %1929 = vmatpush1.bf16.msra.mxu0 %v1906
    %1930 = vmatprep.subr.bf16.mxu0 0
    %1931 = vmatpush1.bf16.msra.mxu0 %v1907
    %1932 = vmatprep.subr.bf16.mxu0 0
    %1933 = vmatpush1.bf16.msra.mxu0 0
    %1934 = vmatprep.subr.bf16.mxu0 0
    %1935 = vmatpush1.bf16.msra.mxu0 0
    %1936 = vmatprep.subr.bf16.mxu0 0
    %1937 = vmatpush1.bf16.msra.mxu0 0
    %1938 = vmatprep.subr.bf16.mxu0 0
    %1939 = vmatpush1.bf16.msra.mxu0 0
    %1940 = vmatprep.subr.bf16.mxu0 0
    %1941 = vmatpush1.bf16.msra.mxu0 0
    %1942 = vmatprep.subr.bf16.mxu0 0
    %1943 = vmatpush1.bf16.msra.mxu0 0
    %1944 = vmatprep.subr.bf16.mxu0 0
    %1945 = vmatpush1.bf16.msra.mxu0 0
    %1946 = vmatprep.subr.bf16.mxu0 0
    %1947 = vmatpush1.bf16.msra.mxu0 0
    %1948 = vmatprep.subr.bf16.mxu0 0
    %1949 = vmatpush1.bf16.msra.mxu0 0
    %1950 = vmatprep.subr.bf16.mxu0 0
    %1951 = vmatpush1.bf16.msra.mxu0 0
    %1952 = vmatprep.subr.bf16.mxu0 0
    %1953 = vmatpush1.bf16.msra.mxu0 0
    %1954 = vmatprep.subr.bf16.mxu0 0
    %1955 = vmatpush1.bf16.msra.mxu0 0
    %1956 = vmatprep.mubr.bf16.mxu0 0
    %1957 = vmatmul.mubr.bf16.gmra.mrb[0].mxu0 %v1913
    %v1958 = vpop.f32.mrb[0].mxu0
    %v1959 = vadd.f32 0.0, %v1958
    %v1960 = vpop.f32.mrb[0].mxu0
    %v1961 = vpop.f32.mrb[0].mxu0
    %v1962 = vadd.f32 0.0, %v1961
    %v1963 = vpop.f32.mrb[0].mxu0
    %1964 = vmatprep.mubr.bf16.mxu0 0
    %1965 = vmatmul.mubr.bf16.gmra.mrb[0].mxu0 %v1916
    %v1966 = vpop.f32.mrb[0].mxu0
    %v1967 = vadd.f32 0.0, %v1966
    %v1968 = vpop.f32.mrb[0].mxu0
    %v1969 = vpop.f32.mrb[0].mxu0
    %v1970 = vadd.f32 0.0, %v1969
    %v1971 = vpop.f32.mrb[0].mxu0
    %1972 = vmatprep.mubr.bf16.mxu0 0
    %1973 = vmatmul.mubr.bf16.gmra.mrb[0].mxu0 %v1919
    %v1974 = vpop.f32.mrb[0].mxu0
    %v1975 = vadd.f32 0.0, %v1974
    %v1976 = vpop.f32.mrb[0].mxu0
    %v1977 = vpop.f32.mrb[0].mxu0
    %v1978 = vadd.f32 0.0, %v1977
    %v1979 = vpop.f32.mrb[0].mxu0
    %1980 = vmatprep.mubr.bf16.mxu0 0
    %1981 = vmatmul.mubr.bf16.gmra.mrb[0].mxu0 %v1922
    %v1982 = vpop.f32.mrb[0].mxu0
    %v1983 = vadd.f32 0.0, %v1982
    %v1984 = vpop.f32.mrb[0].mxu0
    %v1985 = vpop.f32.mrb[0].mxu0
    %v1986 = vadd.f32 0.0, %v1985
    %v1987 = vpop.f32.mrb[0].mxu0
    %1988 = vdwg.mxu0
    %v1997 = vunpack.c.l.b16 %v1864
    %v1998 = vunpack.c.l.b16 %v1865
    %v1999 = vunpack.c.l.b16 %v1866
    %v2000 = vunpack.c.l.b16 %v1867
    %v2001 = vunpack.c.l.b16 %v1868
    %v2002 = vunpack.c.l.b16 %v1869
    %v2003 = vunpack.c.l.b16 %v1870
    %v2004 = vunpack.c.l.b16 %v1871
    %v2005 = vpack.c.b16 %v1998, %v1997
    %v2006 = vpack.c.b16 %v2000, %v1999
    %v2007 = vpack.c.b16 %v2002, %v2001
    %v2008 = vpack.c.b16 %v2004, %v2003
    %v2014 = vsel %vm910, %v1844, 0
    %v2017 = vsel %vm910, %v1845, 0
    %v2020 = vsel %vm910, %v1846, 0
    %v2023 = vsel %vm910, %v1847, 0
    %2025 = vmatprep.subr.bf16.mxu0 0
    %2026 = vmatpush1.bf16.msra.mxu0 %v2005
    %2027 = vmatprep.subr.bf16.mxu0 0
    %2028 = vmatpush1.bf16.msra.mxu0 %v2006
    %2029 = vmatprep.subr.bf16.mxu0 0
    %2030 = vmatpush1.bf16.msra.mxu0 %v2007
    %2031 = vmatprep.subr.bf16.mxu0 0
    %2032 = vmatpush1.bf16.msra.mxu0 %v2008
    %2033 = vmatprep.subr.bf16.mxu0 0
    %2034 = vmatpush1.bf16.msra.mxu0 0
    %2035 = vmatprep.subr.bf16.mxu0 0
    %2036 = vmatpush1.bf16.msra.mxu0 0
    %2037 = vmatprep.subr.bf16.mxu0 0
    %2038 = vmatpush1.bf16.msra.mxu0 0
    %2039 = vmatprep.subr.bf16.mxu0 0
    %2040 = vmatpush1.bf16.msra.mxu0 0
    %2041 = vmatprep.subr.bf16.mxu0 0
    %2042 = vmatpush1.bf16.msra.mxu0 0
    %2043 = vmatprep.subr.bf16.mxu0 0
    %2044 = vmatpush1.bf16.msra.mxu0 0
    %2045 = vmatprep.subr.bf16.mxu0 0
    %2046 = vmatpush1.bf16.msra.mxu0 0
    %2047 = vmatprep.subr.bf16.mxu0 0
    %2048 = vmatpush1.bf16.msra.mxu0 0
    %2049 = vmatprep.subr.bf16.mxu0 0
    %2050 = vmatpush1.bf16.msra.mxu0 0
    %2051 = vmatprep.subr.bf16.mxu0 0
    %2052 = vmatpush1.bf16.msra.mxu0 0
    %2053 = vmatprep.subr.bf16.mxu0 0
    %2054 = vmatpush1.bf16.msra.mxu0 0
    %2055 = vmatprep.subr.bf16.mxu0 0
    %2056 = vmatpush1.bf16.msra.mxu0 0
    %2057 = vmatprep.mubr.bf16.mxu0 0
    %2058 = vmatmul.mubr.bf16.gmra.mrb[0].mxu0 %v2014
    %v2059 = vpop.f32.mrb[0].mxu0
    %v2060 = vadd.f32 0.0, %v2059
    %v2061 = vpop.f32.mrb[0].mxu0
    %v2062 = vpop.f32.mrb[0].mxu0
    %v2063 = vadd.f32 0.0, %v2062
    %v2064 = vpop.f32.mrb[0].mxu0
    %2065 = vmatprep.mubr.bf16.mxu0 0
    %2066 = vmatmul.mubr.bf16.gmra.mrb[0].mxu0 %v2017
    %v2067 = vpop.f32.mrb[0].mxu0
    %v2068 = vadd.f32 0.0, %v2067
    %v2069 = vpop.f32.mrb[0].mxu0
    %v2070 = vpop.f32.mrb[0].mxu0
    %v2071 = vadd.f32 0.0, %v2070
    %v2072 = vpop.f32.mrb[0].mxu0
    %2073 = vmatprep.mubr.bf16.mxu0 0
    %2074 = vmatmul.mubr.bf16.gmra.mrb[0].mxu0 %v2020
    %v2075 = vpop.f32.mrb[0].mxu0
    %v2076 = vadd.f32 0.0, %v2075
    %v2077 = vpop.f32.mrb[0].mxu0
    %v2078 = vpop.f32.mrb[0].mxu0
    %v2079 = vadd.f32 0.0, %v2078
    %v2080 = vpop.f32.mrb[0].mxu0
    %2081 = vmatprep.mubr.bf16.mxu0 0
    %2082 = vmatmul.mubr.bf16.gmra.mrb[0].mxu0 %v2023
    %v2083 = vpop.f32.mrb[0].mxu0
    %v2084 = vadd.f32 0.0, %v2083
    %v2085 = vpop.f32.mrb[0].mxu0
    %v2086 = vpop.f32.mrb[0].mxu0
    %v2087 = vadd.f32 0.0, %v2086
    %v2088 = vpop.f32.mrb[0].mxu0
    %2089 = vdwg.mxu0
    %v2098 = vunpack.c.l.b16 %v1872
    %v2099 = vunpack.c.l.b16 %v1873
    %v2100 = vunpack.c.l.b16 %v1874
    %v2101 = vunpack.c.l.b16 %v1875
    %v2102 = vunpack.c.l.b16 %v1876
    %v2103 = vunpack.c.l.b16 %v1877
    %v2104 = vunpack.c.l.b16 %v1878
    %v2105 = vunpack.c.l.b16 %v1879
    %v2106 = vpack.c.b16 %v2099, %v2098
    %v2107 = vpack.c.b16 %v2101, %v2100
    %v2108 = vpack.c.b16 %v2103, %v2102
    %v2109 = vpack.c.b16 %v2105, %v2104
    %v2115 = vsel %vm910, %v1848, 0
    %v2118 = vsel %vm910, %v1849, 0
    %v2121 = vsel %vm910, %v1850, 0
    %v2124 = vsel %vm910, %v1851, 0
    %2126 = vmatprep.subr.bf16.mxu0 0
    %2127 = vmatpush1.bf16.msra.mxu0 %v2106
    %2128 = vmatprep.subr.bf16.mxu0 0
    %2129 = vmatpush1.bf16.msra.mxu0 %v2107
    %2130 = vmatprep.subr.bf16.mxu0 0
    %2131 = vmatpush1.bf16.msra.mxu0 %v2108
    %2132 = vmatprep.subr.bf16.mxu0 0
    %2133 = vmatpush1.bf16.msra.mxu0 %v2109
    %2134 = vmatprep.subr.bf16.mxu0 0
    %2135 = vmatpush1.bf16.msra.mxu0 0
    %2136 = vmatprep.subr.bf16.mxu0 0
    %2137 = vmatpush1.bf16.msra.mxu0 0
    %2138 = vmatprep.subr.bf16.mxu0 0
    %2139 = vmatpush1.bf16.msra.mxu0 0
    %2140 = vmatprep.subr.bf16.mxu0 0
    %2141 = vmatpush1.bf16.msra.mxu0 0
    %2142 = vmatprep.subr.bf16.mxu0 0
    %2143 = vmatpush1.bf16.msra.mxu0 0
    %2144 = vmatprep.subr.bf16.mxu0 0
    %2145 = vmatpush1.bf16.msra.mxu0 0
    %2146 = vmatprep.subr.bf16.mxu0 0
    %2147 = vmatpush1.bf16.msra.mxu0 0
    %2148 = vmatprep.subr.bf16.mxu0 0
    %2149 = vmatpush1.bf16.msra.mxu0 0
    %2150 = vmatprep.subr.bf16.mxu0 0
    %2151 = vmatpush1.bf16.msra.mxu0 0
    %2152 = vmatprep.subr.bf16.mxu0 0
    %2153 = vmatpush1.bf16.msra.mxu0 0
    %2154 = vmatprep.subr.bf16.mxu0 0
    %2155 = vmatpush1.bf16.msra.mxu0 0
    %2156 = vmatprep.subr.bf16.mxu0 0
    %2157 = vmatpush1.bf16.msra.mxu0 0
    %2158 = vmatprep.mubr.bf16.mxu0 0
    %2159 = vmatmul.mubr.bf16.gmra.mrb[0].mxu0 %v2115
    %v2160 = vpop.f32.mrb[0].mxu0
    %v2161 = vadd.f32 0.0, %v2160
    %v2162 = vpop.f32.mrb[0].mxu0
    %v2163 = vpop.f32.mrb[0].mxu0
    %v2164 = vadd.f32 0.0, %v2163
    %v2165 = vpop.f32.mrb[0].mxu0
    %2166 = vmatprep.mubr.bf16.mxu0 0
    %2167 = vmatmul.mubr.bf16.gmra.mrb[0].mxu0 %v2118
    %v2168 = vpop.f32.mrb[0].mxu0
    %v2169 = vadd.f32 0.0, %v2168
    %v2170 = vpop.f32.mrb[0].mxu0
    %v2171 = vpop.f32.mrb[0].mxu0
    %v2172 = vadd.f32 0.0, %v2171
    %v2173 = vpop.f32.mrb[0].mxu0
    %2174 = vmatprep.mubr.bf16.mxu0 0
    %2175 = vmatmul.mubr.bf16.gmra.mrb[0].mxu0 %v2121
    %v2176 = vpop.f32.mrb[0].mxu0
    %v2177 = vadd.f32 0.0, %v2176
    %v2178 = vpop.f32.mrb[0].mxu0
    %v2179 = vpop.f32.mrb[0].mxu0
    %v2180 = vadd.f32 0.0, %v2179
    %v2181 = vpop.f32.mrb[0].mxu0
    %2182 = vmatprep.mubr.bf16.mxu0 0
    %2183 = vmatmul.mubr.bf16.gmra.mrb[0].mxu0 %v2124
    %v2184 = vpop.f32.mrb[0].mxu0
    %v2185 = vadd.f32 0.0, %v2184
    %v2186 = vpop.f32.mrb[0].mxu0
    %v2187 = vpop.f32.mrb[0].mxu0
    %v2188 = vadd.f32 0.0, %v2187
    %v2189 = vpop.f32.mrb[0].mxu0
    %2190 = vdwg.mxu0
    %v2199 = vunpack.c.l.b16 %v1880
    %v2200 = vunpack.c.l.b16 %v1881
    %v2201 = vunpack.c.l.b16 %v1882
    %v2202 = vunpack.c.l.b16 %v1883
    %v2203 = vunpack.c.l.b16 %v1884
    %v2204 = vunpack.c.l.b16 %v1885
    %v2205 = vunpack.c.l.b16 %v1886
    %v2206 = vunpack.c.l.b16 %v1887
    %v2207 = vpack.c.b16 %v2200, %v2199
    %v2208 = vpack.c.b16 %v2202, %v2201
    %v2209 = vpack.c.b16 %v2204, %v2203
    %v2210 = vpack.c.b16 %v2206, %v2205
    %v2216 = vsel %vm910, %v1852, 0
    %v2219 = vsel %vm910, %v1853, 0
    %v2222 = vsel %vm910, %v1854, 0
    %v2225 = vsel %vm910, %v1855, 0
    %2227 = vmatprep.subr.bf16.mxu0 0
    %2228 = vmatpush1.bf16.msra.mxu0 %v2207
    %2229 = vmatprep.subr.bf16.mxu0 0
    %2230 = vmatpush1.bf16.msra.mxu0 %v2208
    %2231 = vmatprep.subr.bf16.mxu0 0
    %2232 = vmatpush1.bf16.msra.mxu0 %v2209
    %2233 = vmatprep.subr.bf16.mxu0 0
    %2234 = vmatpush1.bf16.msra.mxu0 %v2210
    %2235 = vmatprep.subr.bf16.mxu0 0
    %2236 = vmatpush1.bf16.msra.mxu0 0
    %2237 = vmatprep.subr.bf16.mxu0 0
    %2238 = vmatpush1.bf16.msra.mxu0 0
    %2239 = vmatprep.subr.bf16.mxu0 0
    %2240 = vmatpush1.bf16.msra.mxu0 0
    %2241 = vmatprep.subr.bf16.mxu0 0
    %2242 = vmatpush1.bf16.msra.mxu0 0
    %2243 = vmatprep.subr.bf16.mxu0 0
    %2244 = vmatpush1.bf16.msra.mxu0 0
    %2245 = vmatprep.subr.bf16.mxu0 0
    %2246 = vmatpush1.bf16.msra.mxu0 0
    %2247 = vmatprep.subr.bf16.mxu0 0
    %2248 = vmatpush1.bf16.msra.mxu0 0
    %2249 = vmatprep.subr.bf16.mxu0 0
    %2250 = vmatpush1.bf16.msra.mxu0 0
    %2251 = vmatprep.subr.bf16.mxu0 0
    %2252 = vmatpush1.bf16.msra.mxu0 0
    %2253 = vmatprep.subr.bf16.mxu0 0
    %2254 = vmatpush1.bf16.msra.mxu0 0
    %2255 = vmatprep.subr.bf16.mxu0 0
    %2256 = vmatpush1.bf16.msra.mxu0 0
    %2257 = vmatprep.subr.bf16.mxu0 0
    %2258 = vmatpush1.bf16.msra.mxu0 0
    %2259 = vmatprep.mubr.bf16.mxu0 0
    %2260 = vmatmul.mubr.bf16.gmra.mrb[0].mxu0 %v2216
    %v2261 = vpop.f32.mrb[0].mxu0
    %v2262 = vadd.f32 0.0, %v2261
    %v2263 = vpop.f32.mrb[0].mxu0
    %v2264 = vpop.f32.mrb[0].mxu0
    %v2265 = vadd.f32 0.0, %v2264
    %v2266 = vpop.f32.mrb[0].mxu0
    %2267 = vmatprep.mubr.bf16.mxu0 0
    %2268 = vmatmul.mubr.bf16.gmra.mrb[0].mxu0 %v2219
    %v2269 = vpop.f32.mrb[0].mxu0
    %v2270 = vadd.f32 0.0, %v2269
    %v2271 = vpop.f32.mrb[0].mxu0
    %v2272 = vpop.f32.mrb[0].mxu0
    %v2273 = vadd.f32 0.0, %v2272
    %v2274 = vpop.f32.mrb[0].mxu0
    %2275 = vmatprep.mubr.bf16.mxu0 0
    %2276 = vmatmul.mubr.bf16.gmra.mrb[0].mxu0 %v2222
    %v2277 = vpop.f32.mrb[0].mxu0
    %v2278 = vadd.f32 0.0, %v2277
    %v2279 = vpop.f32.mrb[0].mxu0
    %v2280 = vpop.f32.mrb[0].mxu0
    %v2281 = vadd.f32 0.0, %v2280
    %v2282 = vpop.f32.mrb[0].mxu0
    %2283 = vmatprep.mubr.bf16.mxu0 0
    %2284 = vmatmul.mubr.bf16.gmra.mrb[0].mxu0 %v2225
    %v2285 = vpop.f32.mrb[0].mxu0
    %v2286 = vadd.f32 0.0, %v2285
    %v2287 = vpop.f32.mrb[0].mxu0
    %v2288 = vpop.f32.mrb[0].mxu0
    %v2289 = vadd.f32 0.0, %v2288
    %v2290 = vpop.f32.mrb[0].mxu0
    %2291 = vdwg.mxu0
    %v2292 = vadd.f32 %v1808, %v1959
    %v2293 = vadd.f32 %v1809, %v1962
    %v2294 = vadd.f32 %v1810, %v1967
    %v2295 = vadd.f32 %v1811, %v1970
    %v2296 = vadd.f32 %v1812, %v1975
    %v2297 = vadd.f32 %v1813, %v1978
    %v2298 = vadd.f32 %v1814, %v1983
    %v2299 = vadd.f32 %v1815, %v1986
    %v2300 = vadd.f32 %v1816, %v2060
    %v2301 = vadd.f32 %v1817, %v2063
    %v2302 = vadd.f32 %v1818, %v2068
    %v2303 = vadd.f32 %v1819, %v2071
    %v2304 = vadd.f32 %v1820, %v2076
    %v2305 = vadd.f32 %v1821, %v2079
    %v2306 = vadd.f32 %v1822, %v2084
    %v2307 = vadd.f32 %v1823, %v2087
    %v2308 = vadd.f32 %v1824, %v2161
    %v2309 = vadd.f32 %v1825, %v2164
    %v2310 = vadd.f32 %v1826, %v2169
    %v2311 = vadd.f32 %v1827, %v2172
    %v2312 = vadd.f32 %v1828, %v2177
    %v2313 = vadd.f32 %v1829, %v2180
    %v2314 = vadd.f32 %v1830, %v2185
    %v2315 = vadd.f32 %v1831, %v2188
    %v2316 = vadd.f32 %v1832, %v2262
    %v2317 = vadd.f32 %v1833, %v2265
    %v2318 = vadd.f32 %v1834, %v2270
    %v2319 = vadd.f32 %v1835, %v2273
    %v2320 = vadd.f32 %v1836, %v2278
    %v2321 = vadd.f32 %v1837, %v2281
    %v2322 = vadd.f32 %v1838, %v2286
    %v2323 = vadd.f32 %v1839, %v2289
    %2324 = vst.msk [vmem:[#allocation4] sm:$0xff] %vm401, %v2292
    %2325 = vst.msk [vmem:[#allocation4 + $0x8] sm:$0xff] %vm401, %v2293
    %2326 = vst.msk [vmem:[#allocation4 + $0x10] sm:$0xff] %vm401, %v2294
    %2327 = vst.msk [vmem:[#allocation4 + $0x18] sm:$0xff] %vm401, %v2295
    %2328 = vst.msk [vmem:[#allocation4 + $0x20] sm:$0xff] %vm401, %v2296
    %2329 = vst.msk [vmem:[#allocation4 + $0x28] sm:$0xff] %vm401, %v2297
    %2330 = vst.msk [vmem:[#allocation4 + $0x30] sm:$0xff] %vm401, %v2298
    %2331 = vst.msk [vmem:[#allocation4 + $0x38] sm:$0xff] %vm401, %v2299
    %2332 = vst.msk [vmem:[#allocation4 + $0x40] sm:$0xff] %vm401, %v2300
    %2333 = vst.msk [vmem:[#allocation4 + $0x48] sm:$0xff] %vm401, %v2301
    %2334 = vst.msk [vmem:[#allocation4 + $0x50] sm:$0xff] %vm401, %v2302
    %2335 = vst.msk [vmem:[#allocation4 + $0x58] sm:$0xff] %vm401, %v2303
    %2336 = vst.msk [vmem:[#allocation4 + $0x60] sm:$0xff] %vm401, %v2304
    %2337 = vst.msk [vmem:[#allocation4 + $0x68] sm:$0xff] %vm401, %v2305
    %2338 = vst.msk [vmem:[#allocation4 + $0x70] sm:$0xff] %vm401, %v2306
    %2339 = vst.msk [vmem:[#allocation4 + $0x78] sm:$0xff] %vm401, %v2307
    %2340 = vst.msk [vmem:[#allocation4 + $0x80] sm:$0xff] %vm401, %v2308
    %2341 = vst.msk [vmem:[#allocation4 + $0x88] sm:$0xff] %vm401, %v2309
    %2342 = vst.msk [vmem:[#allocation4 + $0x90] sm:$0xff] %vm401, %v2310
    %2343 = vst.msk [vmem:[#allocation4 + $0x98] sm:$0xff] %vm401, %v2311
    %2344 = vst.msk [vmem:[#allocation4 + $0xa0] sm:$0xff] %vm401, %v2312
    %2345 = vst.msk [vmem:[#allocation4 + $0xa8] sm:$0xff] %vm401, %v2313
    %2346 = vst.msk [vmem:[#allocation4 + $0xb0] sm:$0xff] %vm401, %v2314
    %2347 = vst.msk [vmem:[#allocation4 + $0xb8] sm:$0xff] %vm401, %v2315
    %2348 = vst.msk [vmem:[#allocation4 + $0xc0] sm:$0xff] %vm401, %v2316
    %2349 = vst.msk [vmem:[#allocation4 + $0xc8] sm:$0xff] %vm401, %v2317
    %2350 = vst.msk [vmem:[#allocation4 + $0xd0] sm:$0xff] %vm401, %v2318
    %2351 = vst.msk [vmem:[#allocation4 + $0xd8] sm:$0xff] %vm401, %v2319
    %2352 = vst.msk [vmem:[#allocation4 + $0xe0] sm:$0xff] %vm401, %v2320
    %2353 = vst.msk [vmem:[#allocation4 + $0xe8] sm:$0xff] %vm401, %v2321
    %2354 = vst.msk [vmem:[#allocation4 + $0xf0] sm:$0xff] %vm401, %v2322
    %2355 = vst.msk [vmem:[#allocation4 + $0xf8] sm:$0xff] %vm401, %v2323
    %2356 = vst.msk [vmem:[#allocation2] sm:$0xff] %vm1583, %v1007
    %2357 = vst.msk [vmem:[#allocation2 + $0x8] sm:$0xff] %vm1583, %v1008
    %2358 = vst.msk [vmem:[#allocation2 + $0x10] sm:$0xff] %vm1583, %v1009
    %2359 = vst.msk [vmem:[#allocation2 + $0x18] sm:$0xff] %vm1583, %v1010
    %2360 = vst.msk [vmem:[#allocation2 + $0x20] sm:$0xff] %vm1583, %v1011
    %2361 = vst.msk [vmem:[#allocation2 + $0x28] sm:$0xff] %vm1583, %v1012
    %2362 = vst.msk [vmem:[#allocation2 + $0x30] sm:$0xff] %vm1583, %v1013
    %2363 = vst.msk [vmem:[#allocation2 + $0x38] sm:$0xff] %vm1583, %v1014
    %2364 = vst.msk [vmem:[#allocation2 + $0x40] sm:$0xff] %vm1583, %v1015
    %2365 = vst.msk [vmem:[#allocation2 + $0x48] sm:$0xff] %vm1583, %v1016
    %2366 = vst.msk [vmem:[#allocation2 + $0x50] sm:$0xff] %vm1583, %v1017
    %2367 = vst.msk [vmem:[#allocation2 + $0x58] sm:$0xff] %vm1583, %v1018
    %2368 = vst.msk [vmem:[#allocation2 + $0x60] sm:$0xff] %vm1583, %v1019
    %2369 = vst.msk [vmem:[#allocation2 + $0x68] sm:$0xff] %vm1583, %v1020
    %2370 = vst.msk [vmem:[#allocation2 + $0x70] sm:$0xff] %vm1583, %v1021
    %2371 = vst.msk [vmem:[#allocation2 + $0x78] sm:$0xff] %vm1583, %v1022
    %2372 = vst.msk [vmem:[#allocation2 + $0x80] sm:$0xff] %vm1583, %v1023
    %2373 = vst.msk [vmem:[#allocation2 + $0x88] sm:$0xff] %vm1583, %v1024
    %2374 = vst.msk [vmem:[#allocation2 + $0x90] sm:$0xff] %vm1583, %v1025
    %2375 = vst.msk [vmem:[#allocation2 + $0x98] sm:$0xff] %vm1583, %v1026
    %2376 = vst.msk [vmem:[#allocation2 + $0xa0] sm:$0xff] %vm1583, %v1027
    %2377 = vst.msk [vmem:[#allocation2 + $0xa8] sm:$0xff] %vm1583, %v1028
    %2378 = vst.msk [vmem:[#allocation2 + $0xb0] sm:$0xff] %vm1583, %v1029
    %2379 = vst.msk [vmem:[#allocation2 + $0xb8] sm:$0xff] %vm1583, %v1030
    %2380 = vst.msk [vmem:[#allocation2 + $0xc0] sm:$0xff] %vm1583, %v1031
    %2381 = vst.msk [vmem:[#allocation2 + $0xc8] sm:$0xff] %vm1583, %v1032
    %2382 = vst.msk [vmem:[#allocation2 + $0xd0] sm:$0xff] %vm1583, %v1033
    %2383 = vst.msk [vmem:[#allocation2 + $0xd8] sm:$0xff] %vm1583, %v1034
    %2384 = vst.msk [vmem:[#allocation2 + $0xe0] sm:$0xff] %vm1583, %v1035
    %2385 = vst.msk [vmem:[#allocation2 + $0xe8] sm:$0xff] %vm1583, %v1036
    %2386 = vst.msk [vmem:[#allocation2 + $0xf0] sm:$0xff] %vm1583, %v1037
    %2387 = vst.msk [vmem:[#allocation2 + $0xf8] sm:$0xff] %vm1583, %v1038
  $region41: #{dit_layer_forward.6} parent=0 // pred_fallthru
    _
  // Predicated region
  $region42: #{dit_layer_forward.6} parent=0 // pred_check
    %p2388 = pneg %p137
  $region43: #{dit_layer_forward.6} parent=0 // pred_check_branch
    %2390 = sbr.rel (%p2388) target = $region45
  $region44: #{dit_layer_forward.6} parent=0 // pred_region
    %v2391 = vld [vmem:[#allocation3] sm:$0xff]
    %v2392 = vld [vmem:[#allocation3 + $0x8] sm:$0xff]
    %v2393 = vld [vmem:[#allocation3 + $0x10] sm:$0xff]
    %v2394 = vld [vmem:[#allocation3 + $0x18] sm:$0xff]
    %v2395 = vld [vmem:[#allocation3 + $0x20] sm:$0xff]
    %v2396 = vld [vmem:[#allocation3 + $0x28] sm:$0xff]
    %v2397 = vld [vmem:[#allocation3 + $0x30] sm:$0xff]
    %v2398 = vld [vmem:[#allocation3 + $0x38] sm:$0xff]
    %v2399 = vld [vmem:[#allocation3 + $0x40] sm:$0xff]
    %v2400 = vld [vmem:[#allocation3 + $0x48] sm:$0xff]
    %v2401 = vld [vmem:[#allocation3 + $0x50] sm:$0xff]
    %v2402 = vld [vmem:[#allocation3 + $0x58] sm:$0xff]
    %v2403 = vld [vmem:[#allocation3 + $0x60] sm:$0xff]
    %v2404 = vld [vmem:[#allocation3 + $0x68] sm:$0xff]
    %v2405 = vld [vmem:[#allocation3 + $0x70] sm:$0xff]
    %v2406 = vld [vmem:[#allocation3 + $0x78] sm:$0xff]
    %v2407 = vld [vmem:[#allocation3 + $0x80] sm:$0xff]
    %v2408 = vld [vmem:[#allocation3 + $0x88] sm:$0xff]
    %v2409 = vld [vmem:[#allocation3 + $0x90] sm:$0xff]
    %v2410 = vld [vmem:[#allocation3 + $0x98] sm:$0xff]
    %v2411 = vld [vmem:[#allocation3 + $0xa0] sm:$0xff]
    %v2412 = vld [vmem:[#allocation3 + $0xa8] sm:$0xff]
    %v2413 = vld [vmem:[#allocation3 + $0xb0] sm:$0xff]
    %v2414 = vld [vmem:[#allocation3 + $0xb8] sm:$0xff]
    %v2415 = vld [vmem:[#allocation3 + $0xc0] sm:$0xff]
    %v2416 = vld [vmem:[#allocation3 + $0xc8] sm:$0xff]
    %v2417 = vld [vmem:[#allocation3 + $0xd0] sm:$0xff]
    %v2418 = vld [vmem:[#allocation3 + $0xd8] sm:$0xff]
    %v2419 = vld [vmem:[#allocation3 + $0xe0] sm:$0xff]
    %v2420 = vld [vmem:[#allocation3 + $0xe8] sm:$0xff]
    %v2421 = vld [vmem:[#allocation3 + $0xf0] sm:$0xff]
    %v2422 = vld [vmem:[#allocation3 + $0xf8] sm:$0xff]
    %v2423 = vmax.f32 %v2391, 1e-30
    %v2424 = vmax.f32 %v2392, 1e-30
    %v2425 = vmax.f32 %v2393, 1e-30
    %v2426 = vmax.f32 %v2394, 1e-30
    %v2427 = vmax.f32 %v2395, 1e-30
    %v2428 = vmax.f32 %v2396, 1e-30
    %v2429 = vmax.f32 %v2397, 1e-30
    %v2430 = vmax.f32 %v2398, 1e-30
    %v2431 = vmax.f32 %v2399, 1e-30
    %v2432 = vmax.f32 %v2400, 1e-30
    %v2433 = vmax.f32 %v2401, 1e-30
    %v2434 = vmax.f32 %v2402, 1e-30
    %v2435 = vmax.f32 %v2403, 1e-30
    %v2436 = vmax.f32 %v2404, 1e-30
    %v2437 = vmax.f32 %v2405, 1e-30
    %v2438 = vmax.f32 %v2406, 1e-30
    %v2439 = vmax.f32 %v2407, 1e-30
    %v2440 = vmax.f32 %v2408, 1e-30
    %v2441 = vmax.f32 %v2409, 1e-30
    %v2442 = vmax.f32 %v2410, 1e-30
    %v2443 = vmax.f32 %v2411, 1e-30
    %v2444 = vmax.f32 %v2412, 1e-30
    %v2445 = vmax.f32 %v2413, 1e-30
    %v2446 = vmax.f32 %v2414, 1e-30
    %v2447 = vmax.f32 %v2415, 1e-30
    %v2448 = vmax.f32 %v2416, 1e-30
    %v2449 = vmax.f32 %v2417, 1e-30
    %v2450 = vmax.f32 %v2418, 1e-30
    %v2451 = vmax.f32 %v2419, 1e-30
    %v2452 = vmax.f32 %v2420, 1e-30
    %v2453 = vmax.f32 %v2421, 1e-30
    %v2454 = vmax.f32 %v2422, 1e-30
    %v2455 = vrcp.pop %v2423
    %v2456 = vrcp.pop %v2424
    %v2457 = vrcp.pop %v2425
    %v2458 = vrcp.pop %v2426
    %v2459 = vrcp.pop %v2427
    %v2460 = vrcp.pop %v2428
    %v2461 = vrcp.pop %v2429
    %v2462 = vrcp.pop %v2430
    %v2463 = vrcp.pop %v2431
    %v2464 = vrcp.pop %v2432
    %v2465 = vrcp.pop %v2433
    %v2466 = vrcp.pop %v2434
    %v2467 = vrcp.pop %v2435
    %v2468 = vrcp.pop %v2436
    %v2469 = vrcp.pop %v2437
    %v2470 = vrcp.pop %v2438
    %v2471 = vrcp.pop %v2439
    %v2472 = vrcp.pop %v2440
    %v2473 = vrcp.pop %v2441
    %v2474 = vrcp.pop %v2442
    %v2475 = vrcp.pop %v2443
    %v2476 = vrcp.pop %v2444
    %v2477 = vrcp.pop %v2445
    %v2478 = vrcp.pop %v2446
    %v2479 = vrcp.pop %v2447
    %v2480 = vrcp.pop %v2448
    %v2481 = vrcp.pop %v2449
    %v2482 = vrcp.pop %v2450
    %v2483 = vrcp.pop %v2451
    %v2484 = vrcp.pop %v2452
    %v2485 = vrcp.pop %v2453
    %v2486 = vrcp.pop %v2454
    %v2487 = vld [vmem:[#allocation4] sm:$0xff]
    %v2488 = vld [vmem:[#allocation4 + $0x8] sm:$0xff]
    %v2489 = vld [vmem:[#allocation4 + $0x10] sm:$0xff]
    %v2490 = vld [vmem:[#allocation4 + $0x18] sm:$0xff]
    %v2491 = vld [vmem:[#allocation4 + $0x20] sm:$0xff]
    %v2492 = vld [vmem:[#allocation4 + $0x28] sm:$0xff]
    %v2493 = vld [vmem:[#allocation4 + $0x30] sm:$0xff]
    %v2494 = vld [vmem:[#allocation4 + $0x38] sm:$0xff]
    %v2495 = vld [vmem:[#allocation4 + $0x40] sm:$0xff]
    %v2496 = vld [vmem:[#allocation4 + $0x48] sm:$0xff]
    %v2497 = vld [vmem:[#allocation4 + $0x50] sm:$0xff]
    %v2498 = vld [vmem:[#allocation4 + $0x58] sm:$0xff]
    %v2499 = vld [vmem:[#allocation4 + $0x60] sm:$0xff]
    %v2500 = vld [vmem:[#allocation4 + $0x68] sm:$0xff]
    %v2501 = vld [vmem:[#allocation4 + $0x70] sm:$0xff]
    %v2502 = vld [vmem:[#allocation4 + $0x78] sm:$0xff]
    %v2503 = vld [vmem:[#allocation4 + $0x80] sm:$0xff]
    %v2504 = vld [vmem:[#allocation4 + $0x88] sm:$0xff]
    %v2505 = vld [vmem:[#allocation4 + $0x90] sm:$0xff]
    %v2506 = vld [vmem:[#allocation4 + $0x98] sm:$0xff]
    %v2507 = vld [vmem:[#allocation4 + $0xa0] sm:$0xff]
    %v2508 = vld [vmem:[#allocation4 + $0xa8] sm:$0xff]
    %v2509 = vld [vmem:[#allocation4 + $0xb0] sm:$0xff]
    %v2510 = vld [vmem:[#allocation4 + $0xb8] sm:$0xff]
    %v2511 = vld [vmem:[#allocation4 + $0xc0] sm:$0xff]
    %v2512 = vld [vmem:[#allocation4 + $0xc8] sm:$0xff]
    %v2513 = vld [vmem:[#allocation4 + $0xd0] sm:$0xff]
    %v2514 = vld [vmem:[#allocation4 + $0xd8] sm:$0xff]
    %v2515 = vld [vmem:[#allocation4 + $0xe0] sm:$0xff]
    %v2516 = vld [vmem:[#allocation4 + $0xe8] sm:$0xff]
    %v2517 = vld [vmem:[#allocation4 + $0xf0] sm:$0xff]
    %v2518 = vld [vmem:[#allocation4 + $0xf8] sm:$0xff]
    %2520 = vset.pattern.permute.xlu0 0
    %2521 = vperm.xlu0 %2520, %v2455
    %v2522 = vpop.permute.xlu0 %2521
    %2525 = vset.pattern.permute.xlu0 0
    %2526 = vperm.xlu0 %2525, %v2456
    %v2527 = vpop.permute.xlu0 %2526
    %2530 = vset.pattern.permute.xlu0 0
    %2531 = vperm.xlu0 %2530, %v2457
    %v2532 = vpop.permute.xlu0 %2531
    %2535 = vset.pattern.permute.xlu0 0
    %2536 = vperm.xlu0 %2535, %v2458
    %v2537 = vpop.permute.xlu0 %2536
    %2540 = vset.pattern.permute.xlu0 0
    %2541 = vperm.xlu0 %2540, %v2459
    %v2542 = vpop.permute.xlu0 %2541
    %2545 = vset.pattern.permute.xlu0 0
    %2546 = vperm.xlu0 %2545, %v2460
    %v2547 = vpop.permute.xlu0 %2546
    %2550 = vset.pattern.permute.xlu0 0
    %2551 = vperm.xlu0 %2550, %v2461
    %v2552 = vpop.permute.xlu0 %2551
    %2555 = vset.pattern.permute.xlu0 0
    %2556 = vperm.xlu0 %2555, %v2462
    %v2557 = vpop.permute.xlu0 %2556
    %2560 = vset.pattern.permute.xlu0 0
    %2561 = vperm.xlu0 %2560, %v2463
    %v2562 = vpop.permute.xlu0 %2561
    %2565 = vset.pattern.permute.xlu0 0
    %2566 = vperm.xlu0 %2565, %v2464
    %v2567 = vpop.permute.xlu0 %2566
    %2570 = vset.pattern.permute.xlu0 0
    %2571 = vperm.xlu0 %2570, %v2465
    %v2572 = vpop.permute.xlu0 %2571
    %2575 = vset.pattern.permute.xlu0 0
    %2576 = vperm.xlu0 %2575, %v2466
    %v2577 = vpop.permute.xlu0 %2576
    %2580 = vset.pattern.permute.xlu0 0
    %2581 = vperm.xlu0 %2580, %v2467
    %v2582 = vpop.permute.xlu0 %2581
    %2585 = vset.pattern.permute.xlu0 0
    %2586 = vperm.xlu0 %2585, %v2468
    %v2587 = vpop.permute.xlu0 %2586
    %2590 = vset.pattern.permute.xlu0 0
    %2591 = vperm.xlu0 %2590, %v2469
    %v2592 = vpop.permute.xlu0 %2591
    %2595 = vset.pattern.permute.xlu0 0
    %2596 = vperm.xlu0 %2595, %v2470
    %v2597 = vpop.permute.xlu0 %2596
    %2600 = vset.pattern.permute.xlu0 0
    %2601 = vperm.xlu0 %2600, %v2471
    %v2602 = vpop.permute.xlu0 %2601
    %2605 = vset.pattern.permute.xlu0 0
    %2606 = vperm.xlu0 %2605, %v2472
    %v2607 = vpop.permute.xlu0 %2606
    %2610 = vset.pattern.permute.xlu0 0
    %2611 = vperm.xlu0 %2610, %v2473
    %v2612 = vpop.permute.xlu0 %2611
    %2615 = vset.pattern.permute.xlu0 0
    %2616 = vperm.xlu0 %2615, %v2474
    %v2617 = vpop.permute.xlu0 %2616
    %2620 = vset.pattern.permute.xlu0 0
    %2621 = vperm.xlu0 %2620, %v2475
    %v2622 = vpop.permute.xlu0 %2621
    %2625 = vset.pattern.permute.xlu0 0
    %2626 = vperm.xlu0 %2625, %v2476
    %v2627 = vpop.permute.xlu0 %2626
    %2630 = vset.pattern.permute.xlu0 0
    %2631 = vperm.xlu0 %2630, %v2477
    %v2632 = vpop.permute.xlu0 %2631
    %2635 = vset.pattern.permute.xlu0 0
    %2636 = vperm.xlu0 %2635, %v2478
    %v2637 = vpop.permute.xlu0 %2636
    %2640 = vset.pattern.permute.xlu0 0
    %2641 = vperm.xlu0 %2640, %v2479
    %v2642 = vpop.permute.xlu0 %2641
    %2645 = vset.pattern.permute.xlu0 0
    %2646 = vperm.xlu0 %2645, %v2480
    %v2647 = vpop.permute.xlu0 %2646
    %2650 = vset.pattern.permute.xlu0 0
    %2651 = vperm.xlu0 %2650, %v2481
    %v2652 = vpop.permute.xlu0 %2651
    %2655 = vset.pattern.permute.xlu0 0
    %2656 = vperm.xlu0 %2655, %v2482
    %v2657 = vpop.permute.xlu0 %2656
    %2660 = vset.pattern.permute.xlu0 0
    %2661 = vperm.xlu0 %2660, %v2483
    %v2662 = vpop.permute.xlu0 %2661
    %2665 = vset.pattern.permute.xlu0 0
    %2666 = vperm.xlu0 %2665, %v2484
    %v2667 = vpop.permute.xlu0 %2666
    %2670 = vset.pattern.permute.xlu0 0
    %2671 = vperm.xlu0 %2670, %v2485
    %v2672 = vpop.permute.xlu0 %2671
    %2675 = vset.pattern.permute.xlu0 0
    %2676 = vperm.xlu0 %2675, %v2486
    %v2677 = vpop.permute.xlu0 %2676
    %v2679 = vmul.f32 %v2487, %v2522
    %v2680 = vmul.f32 %v2488, %v2527
    %v2681 = vmul.f32 %v2489, %v2532
    %v2682 = vmul.f32 %v2490, %v2537
    %v2683 = vmul.f32 %v2491, %v2542
    %v2684 = vmul.f32 %v2492, %v2547
    %v2685 = vmul.f32 %v2493, %v2552
    %v2686 = vmul.f32 %v2494, %v2557
    %v2687 = vmul.f32 %v2495, %v2562
    %v2688 = vmul.f32 %v2496, %v2567
    %v2689 = vmul.f32 %v2497, %v2572
    %v2690 = vmul.f32 %v2498, %v2577
    %v2691 = vmul.f32 %v2499, %v2582
    %v2692 = vmul.f32 %v2500, %v2587
    %v2693 = vmul.f32 %v2501, %v2592
    %v2694 = vmul.f32 %v2502, %v2597
    %v2695 = vmul.f32 %v2503, %v2602
    %v2696 = vmul.f32 %v2504, %v2607
    %v2697 = vmul.f32 %v2505, %v2612
    %v2698 = vmul.f32 %v2506, %v2617
    %v2699 = vmul.f32 %v2507, %v2622
    %v2700 = vmul.f32 %v2508, %v2627
    %v2701 = vmul.f32 %v2509, %v2632
    %v2702 = vmul.f32 %v2510, %v2637
    %v2703 = vmul.f32 %v2511, %v2642
    %v2704 = vmul.f32 %v2512, %v2647
    %v2705 = vmul.f32 %v2513, %v2652
    %v2706 = vmul.f32 %v2514, %v2657
    %v2707 = vmul.f32 %v2515, %v2662
    %v2708 = vmul.f32 %v2516, %v2667
    %v2709 = vmul.f32 %v2517, %v2672
    %v2710 = vmul.f32 %v2518, %v2677
    %v2711 = vpack.c.bf16 %v2680, %v2679
    %v2712 = vpack.c.bf16 %v2682, %v2681
    %v2713 = vpack.c.bf16 %v2684, %v2683
    %v2714 = vpack.c.bf16 %v2686, %v2685
    %v2715 = vpack.c.bf16 %v2688, %v2687
    %v2716 = vpack.c.bf16 %v2690, %v2689
    %v2717 = vpack.c.bf16 %v2692, %v2691
    %v2718 = vpack.c.bf16 %v2694, %v2693
    %v2719 = vpack.c.bf16 %v2696, %v2695
    %v2720 = vpack.c.bf16 %v2698, %v2697
    %v2721 = vpack.c.bf16 %v2700, %v2699
    %v2722 = vpack.c.bf16 %v2702, %v2701
    %v2723 = vpack.c.bf16 %v2704, %v2703
    %v2724 = vpack.c.bf16 %v2706, %v2705
    %v2725 = vpack.c.bf16 %v2708, %v2707
    %v2726 = vpack.c.bf16 %v2710, %v2709
    %v2727 = vld [vmem:[%s7] sm:$0xf]
    %v2728 = vld [vmem:[%s7 + $0x4] sm:$0xf]
    %v2729 = vld [vmem:[%s7 + $0x8] sm:$0xf]
    %v2730 = vld [vmem:[%s7 + $0xc] sm:$0xf]
    %v2731 = vld [vmem:[%s7 + $0x10] sm:$0xf]
    %v2732 = vld [vmem:[%s7 + $0x14] sm:$0xf]
    %v2733 = vld [vmem:[%s7 + $0x18] sm:$0xf]
    %v2734 = vld [vmem:[%s7 + $0x1c] sm:$0xf]
    %v2735 = vunpack.c.l.bf16 %v2727
    %v2736 = vunpack.c.l.bf16 %v2728
    %v2737 = vunpack.c.l.bf16 %v2729
    %v2738 = vunpack.c.l.bf16 %v2730
    %v2739 = vunpack.c.l.bf16 %v2731
    %v2740 = vunpack.c.l.bf16 %v2732
    %v2741 = vunpack.c.l.bf16 %v2733
    %v2742 = vunpack.c.l.bf16 %v2734
    %v2743 = vld [vmem:[%s9] sm:$0x1]
    %v2745 = vlaneseq
    %v2746 = vshrl.u32 %v2745, 7
    %v2747 = vsub.s32 0, %v2746
    %v2748 = vrot.slane %v2743, %v2747
    %v2750 = vadd.f32 %v2735, %v2748
    %v2751 = vadd.f32 %v2736, %v2748
    %v2752 = vadd.f32 %v2737, %v2748
    %v2753 = vadd.f32 %v2738, %v2748
    %v2754 = vadd.f32 %v2739, %v2748
    %v2755 = vadd.f32 %v2740, %v2748
    %v2756 = vadd.f32 %v2741, %v2748
    %v2757 = vadd.f32 %v2742, %v2748
    %v2758 = vld [vmem:[%s8] sm:$0xf]
    %vm2759 = vcmask 64512
    %v2761 = vsel %vm2759, %v2711, 0
    %v2764 = vsel %vm2759, %v2712, 0
    %v2767 = vsel %vm2759, %v2713, 0
    %v2770 = vsel %vm2759, %v2714, 0
    %vm2772 = vcmask 1043456
    %v2774 = vsel %vm2772, %v2758, 0
    %2776 = vmatprep.subr.bf16.mxu0 0
    %2777 = vmatpush1.bf16.msra.mxu0 %v2774
    %2778 = vmatprep.subr.bf16.mxu0 0
    %2779 = vmatpush1.bf16.msra.mxu0 0
    %2780 = vmatprep.subr.bf16.mxu0 0
    %2781 = vmatpush1.bf16.msra.mxu0 0
    %2782 = vmatprep.subr.bf16.mxu0 0
    %2783 = vmatpush1.bf16.msra.mxu0 0
    %2784 = vmatprep.subr.bf16.mxu0 0
    %2785 = vmatpush1.bf16.msra.mxu0 0
    %2786 = vmatprep.subr.bf16.mxu0 0
    %2787 = vmatpush1.bf16.msra.mxu0 0
    %2788 = vmatprep.subr.bf16.mxu0 0
    %2789 = vmatpush1.bf16.msra.mxu0 0
    %2790 = vmatprep.subr.bf16.mxu0 0
    %2791 = vmatpush1.bf16.msra.mxu0 0
    %2792 = vmatprep.subr.bf16.mxu0 0
    %2793 = vmatpush1.bf16.msra.mxu0 0
    %2794 = vmatprep.subr.bf16.mxu0 0
    %2795 = vmatpush1.bf16.msra.mxu0 0
    %2796 = vmatprep.subr.bf16.mxu0 0
    %2797 = vmatpush1.bf16.msra.mxu0 0
    %2798 = vmatprep.subr.bf16.mxu0 0
    %2799 = vmatpush1.bf16.msra.mxu0 0
    %2800 = vmatprep.subr.bf16.mxu0 0
    %2801 = vmatpush1.bf16.msra.mxu0 0
    %2802 = vmatprep.subr.bf16.mxu0 0
    %2803 = vmatpush1.bf16.msra.mxu0 0
    %2804 = vmatprep.subr.bf16.mxu0 0
    %2805 = vmatpush1.bf16.msra.mxu0 0
    %2806 = vmatprep.subr.bf16.mxu0 0
    %2807 = vmatpush1.bf16.msra.mxu0 0
    %2808 = vmatprep.mubr.bf16.mxu0 0
    %2809 = vmatmul.mubr.bf16.gmra.mrb[0].mxu0 %v2761
    %v2810 = vpop.f32.mrb[0].mxu0
    %v2811 = vadd.f32 0.0, %v2810
    %v2812 = vpop.f32.mrb[0].mxu0
    %v2813 = vpop.f32.mrb[0].mxu0
    %v2814 = vadd.f32 0.0, %v2813
    %v2815 = vpop.f32.mrb[0].mxu0
    %2816 = vmatprep.mubr.bf16.mxu0 0
    %2817 = vmatmul.mubr.bf16.gmra.mrb[0].mxu0 %v2764
    %v2818 = vpop.f32.mrb[0].mxu0
    %v2819 = vadd.f32 0.0, %v2818
    %v2820 = vpop.f32.mrb[0].mxu0
    %v2821 = vpop.f32.mrb[0].mxu0
    %v2822 = vadd.f32 0.0, %v2821
    %v2823 = vpop.f32.mrb[0].mxu0
    %2824 = vmatprep.mubr.bf16.mxu0 0
    %2825 = vmatmul.mubr.bf16.gmra.mrb[0].mxu0 %v2767
    %v2826 = vpop.f32.mrb[0].mxu0
    %v2827 = vadd.f32 0.0, %v2826
    %v2828 = vpop.f32.mrb[0].mxu0
    %v2829 = vpop.f32.mrb[0].mxu0
    %v2830 = vadd.f32 0.0, %v2829
    %v2831 = vpop.f32.mrb[0].mxu0
    %2832 = vmatprep.mubr.bf16.mxu0 0
    %2833 = vmatmul.mubr.bf16.gmra.mrb[0].mxu0 %v2770
    %v2834 = vpop.f32.mrb[0].mxu0
    %v2835 = vadd.f32 0.0, %v2834
    %v2836 = vpop.f32.mrb[0].mxu0
    %v2837 = vpop.f32.mrb[0].mxu0
    %v2838 = vadd.f32 0.0, %v2837
    %v2839 = vpop.f32.mrb[0].mxu0
    %2840 = vdwg.mxu0
    %v2841 = vadd.f32 %v2750, %v2811
    %v2842 = vadd.f32 %v2751, %v2814
    %v2843 = vadd.f32 %v2752, %v2819
    %v2844 = vadd.f32 %v2753, %v2822
    %v2845 = vadd.f32 %v2754, %v2827
    %v2846 = vadd.f32 %v2755, %v2830
    %v2847 = vadd.f32 %v2756, %v2835
    %v2848 = vadd.f32 %v2757, %v2838
    %s2849 = scalar_lea.vmem %s8, 4
    %v2850 = vld [vmem:[%s2849] sm:$0xf]
    %v2852 = vsel %vm2759, %v2715, 0
    %v2855 = vsel %vm2759, %v2716, 0
    %v2858 = vsel %vm2759, %v2717, 0
    %v2861 = vsel %vm2759, %v2718, 0
    %v2864 = vsel %vm2772, %v2850, 0
    %2866 = vmatprep.subr.bf16.mxu0 0
    %2867 = vmatpush1.bf16.msra.mxu0 %v2864
    %2868 = vmatprep.subr.bf16.mxu0 0
    %2869 = vmatpush1.bf16.msra.mxu0 0
    %2870 = vmatprep.subr.bf16.mxu0 0
    %2871 = vmatpush1.bf16.msra.mxu0 0
    %2872 = vmatprep.subr.bf16.mxu0 0
    %2873 = vmatpush1.bf16.msra.mxu0 0
    %2874 = vmatprep.subr.bf16.mxu0 0
    %2875 = vmatpush1.bf16.msra.mxu0 0
    %2876 = vmatprep.subr.bf16.mxu0 0
    %2877 = vmatpush1.bf16.msra.mxu0 0
    %2878 = vmatprep.subr.bf16.mxu0 0
    %2879 = vmatpush1.bf16.msra.mxu0 0
    %2880 = vmatprep.subr.bf16.mxu0 0
    %2881 = vmatpush1.bf16.msra.mxu0 0
    %2882 = vmatprep.subr.bf16.mxu0 0
    %2883 = vmatpush1.bf16.msra.mxu0 0
    %2884 = vmatprep.subr.bf16.mxu0 0
    %2885 = vmatpush1.bf16.msra.mxu0 0
    %2886 = vmatprep.subr.bf16.mxu0 0
    %2887 = vmatpush1.bf16.msra.mxu0 0
    %2888 = vmatprep.subr.bf16.mxu0 0
    %2889 = vmatpush1.bf16.msra.mxu0 0
    %2890 = vmatprep.subr.bf16.mxu0 0
    %2891 = vmatpush1.bf16.msra.mxu0 0
    %2892 = vmatprep.subr.bf16.mxu0 0
    %2893 = vmatpush1.bf16.msra.mxu0 0
    %2894 = vmatprep.subr.bf16.mxu0 0
    %2895 = vmatpush1.bf16.msra.mxu0 0
    %2896 = vmatprep.subr.bf16.mxu0 0
    %2897 = vmatpush1.bf16.msra.mxu0 0
    %2898 = vmatprep.mubr.bf16.mxu0 0
    %2899 = vmatmul.mubr.bf16.gmra.mrb[0].mxu0 %v2852
    %v2900 = vpop.f32.mrb[0].mxu0
    %v2901 = vadd.f32 0.0, %v2900
    %v2902 = vpop.f32.mrb[0].mxu0
    %v2903 = vpop.f32.mrb[0].mxu0
    %v2904 = vadd.f32 0.0, %v2903
    %v2905 = vpop.f32.mrb[0].mxu0
    %2906 = vmatprep.mubr.bf16.mxu0 0
    %2907 = vmatmul.mubr.bf16.gmra.mrb[0].mxu0 %v2855
    %v2908 = vpop.f32.mrb[0].mxu0
    %v2909 = vadd.f32 0.0, %v2908
    %v2910 = vpop.f32.mrb[0].mxu0
    %v2911 = vpop.f32.mrb[0].mxu0
    %v2912 = vadd.f32 0.0, %v2911
    %v2913 = vpop.f32.mrb[0].mxu0
    %2914 = vmatprep.mubr.bf16.mxu0 0
    %2915 = vmatmul.mubr.bf16.gmra.mrb[0].mxu0 %v2858
    %v2916 = vpop.f32.mrb[0].mxu0
    %v2917 = vadd.f32 0.0, %v2916
    %v2918 = vpop.f32.mrb[0].mxu0
    %v2919 = vpop.f32.mrb[0].mxu0
    %v2920 = vadd.f32 0.0, %v2919
    %v2921 = vpop.f32.mrb[0].mxu0
    %2922 = vmatprep.mubr.bf16.mxu0 0
    %2923 = vmatmul.mubr.bf16.gmra.mrb[0].mxu0 %v2861
    %v2924 = vpop.f32.mrb[0].mxu0
    %v2925 = vadd.f32 0.0, %v2924
    %v2926 = vpop.f32.mrb[0].mxu0
    %v2927 = vpop.f32.mrb[0].mxu0
    %v2928 = vadd.f32 0.0, %v2927
    %v2929 = vpop.f32.mrb[0].mxu0
    %2930 = vdwg.mxu0
    %v2931 = vadd.f32 %v2841, %v2901
    %v2932 = vadd.f32 %v2842, %v2904
    %v2933 = vadd.f32 %v2843, %v2909
    %v2934 = vadd.f32 %v2844, %v2912
    %v2935 = vadd.f32 %v2845, %v2917
    %v2936 = vadd.f32 %v2846, %v2920
    %v2937 = vadd.f32 %v2847, %v2925
    %v2938 = vadd.f32 %v2848, %v2928
    %s2939 = scalar_lea.vmem %s8, 8
    %v2940 = vld [vmem:[%s2939] sm:$0xf]
    %v2942 = vsel %vm2759, %v2719, 0
    %v2945 = vsel %vm2759, %v2720, 0
    %v2948 = vsel %vm2759, %v2721, 0
    %v2951 = vsel %vm2759, %v2722, 0
    %v2954 = vsel %vm2772, %v2940, 0
    %2956 = vmatprep.subr.bf16.mxu0 0
    %2957 = vmatpush1.bf16.msra.mxu0 %v2954
    %2958 = vmatprep.subr.bf16.mxu0 0
    %2959 = vmatpush1.bf16.msra.mxu0 0
    %2960 = vmatprep.subr.bf16.mxu0 0
    %2961 = vmatpush1.bf16.msra.mxu0 0
    %2962 = vmatprep.subr.bf16.mxu0 0
    %2963 = vmatpush1.bf16.msra.mxu0 0
    %2964 = vmatprep.subr.bf16.mxu0 0
    %2965 = vmatpush1.bf16.msra.mxu0 0
    %2966 = vmatprep.subr.bf16.mxu0 0
    %2967 = vmatpush1.bf16.msra.mxu0 0
    %2968 = vmatprep.subr.bf16.mxu0 0
    %2969 = vmatpush1.bf16.msra.mxu0 0
    %2970 = vmatprep.subr.bf16.mxu0 0
    %2971 = vmatpush1.bf16.msra.mxu0 0
    %2972 = vmatprep.subr.bf16.mxu0 0
    %2973 = vmatpush1.bf16.msra.mxu0 0
    %2974 = vmatprep.subr.bf16.mxu0 0
    %2975 = vmatpush1.bf16.msra.mxu0 0
    %2976 = vmatprep.subr.bf16.mxu0 0
    %2977 = vmatpush1.bf16.msra.mxu0 0
    %2978 = vmatprep.subr.bf16.mxu0 0
    %2979 = vmatpush1.bf16.msra.mxu0 0
    %2980 = vmatprep.subr.bf16.mxu0 0
    %2981 = vmatpush1.bf16.msra.mxu0 0
    %2982 = vmatprep.subr.bf16.mxu0 0
    %2983 = vmatpush1.bf16.msra.mxu0 0
    %2984 = vmatprep.subr.bf16.mxu0 0
    %2985 = vmatpush1.bf16.msra.mxu0 0
    %2986 = vmatprep.subr.bf16.mxu0 0
    %2987 = vmatpush1.bf16.msra.mxu0 0
    %2988 = vmatprep.mubr.bf16.mxu0 0
    %2989 = vmatmul.mubr.bf16.gmra.mrb[0].mxu0 %v2942
    %v2990 = vpop.f32.mrb[0].mxu0
    %v2991 = vadd.f32 0.0, %v2990
    %v2992 = vpop.f32.mrb[0].mxu0
    %v2993 = vpop.f32.mrb[0].mxu0
    %v2994 = vadd.f32 0.0, %v2993
    %v2995 = vpop.f32.mrb[0].mxu0
    %2996 = vmatprep.mubr.bf16.mxu0 0
    %2997 = vmatmul.mubr.bf16.gmra.mrb[0].mxu0 %v2945
    %v2998 = vpop.f32.mrb[0].mxu0
    %v2999 = vadd.f32 0.0, %v2998
    %v3000 = vpop.f32.mrb[0].mxu0
    %v3001 = vpop.f32.mrb[0].mxu0
    %v3002 = vadd.f32 0.0, %v3001
    %v3003 = vpop.f32.mrb[0].mxu0
    %3004 = vmatprep.mubr.bf16.mxu0 0
    %3005 = vmatmul.mubr.bf16.gmra.mrb[0].mxu0 %v2948
    %v3006 = vpop.f32.mrb[0].mxu0
    %v3007 = vadd.f32 0.0, %v3006
    %v3008 = vpop.f32.mrb[0].mxu0
    %v3009 = vpop.f32.mrb[0].mxu0
    %v3010 = vadd.f32 0.0, %v3009
    %v3011 = vpop.f32.mrb[0].mxu0
    %3012 = vmatprep.mubr.bf16.mxu0 0
    %3013 = vmatmul.mubr.bf16.gmra.mrb[0].mxu0 %v2951
    %v3014 = vpop.f32.mrb[0].mxu0
    %v3015 = vadd.f32 0.0, %v3014
    %v3016 = vpop.f32.mrb[0].mxu0
    %v3017 = vpop.f32.mrb[0].mxu0
    %v3018 = vadd.f32 0.0, %v3017
    %v3019 = vpop.f32.mrb[0].mxu0
    %3020 = vdwg.mxu0
    %v3021 = vadd.f32 %v2931, %v2991
    %v3022 = vadd.f32 %v2932, %v2994
    %v3023 = vadd.f32 %v2933, %v2999
    %v3024 = vadd.f32 %v2934, %v3002
    %v3025 = vadd.f32 %v2935, %v3007
    %v3026 = vadd.f32 %v2936, %v3010
    %v3027 = vadd.f32 %v2937, %v3015
    %v3028 = vadd.f32 %v2938, %v3018
    %s3029 = scalar_lea.vmem %s8, 12
    %v3030 = vld [vmem:[%s3029] sm:$0xf]
    %v3032 = vsel %vm2759, %v2723, 0
    %v3035 = vsel %vm2759, %v2724, 0
    %v3038 = vsel %vm2759, %v2725, 0
    %v3041 = vsel %vm2759, %v2726, 0
    %v3044 = vsel %vm2772, %v3030, 0
    %3046 = vmatprep.subr.bf16.mxu0 0
    %3047 = vmatpush1.bf16.msra.mxu0 %v3044
    %3048 = vmatprep.subr.bf16.mxu0 0
    %3049 = vmatpush1.bf16.msra.mxu0 0
    %3050 = vmatprep.subr.bf16.mxu0 0
    %3051 = vmatpush1.bf16.msra.mxu0 0
    %3052 = vmatprep.subr.bf16.mxu0 0
    %3053 = vmatpush1.bf16.msra.mxu0 0
    %3054 = vmatprep.subr.bf16.mxu0 0
    %3055 = vmatpush1.bf16.msra.mxu0 0
    %3056 = vmatprep.subr.bf16.mxu0 0
    %3057 = vmatpush1.bf16.msra.mxu0 0
    %3058 = vmatprep.subr.bf16.mxu0 0
    %3059 = vmatpush1.bf16.msra.mxu0 0
    %3060 = vmatprep.subr.bf16.mxu0 0
    %3061 = vmatpush1.bf16.msra.mxu0 0
    %3062 = vmatprep.subr.bf16.mxu0 0
    %3063 = vmatpush1.bf16.msra.mxu0 0
    %3064 = vmatprep.subr.bf16.mxu0 0
    %3065 = vmatpush1.bf16.msra.mxu0 0
    %3066 = vmatprep.subr.bf16.mxu0 0
    %3067 = vmatpush1.bf16.msra.mxu0 0
    %3068 = vmatprep.subr.bf16.mxu0 0
    %3069 = vmatpush1.bf16.msra.mxu0 0
    %3070 = vmatprep.subr.bf16.mxu0 0
    %3071 = vmatpush1.bf16.msra.mxu0 0
    %3072 = vmatprep.subr.bf16.mxu0 0
    %3073 = vmatpush1.bf16.msra.mxu0 0
    %3074 = vmatprep.subr.bf16.mxu0 0
    %3075 = vmatpush1.bf16.msra.mxu0 0
    %3076 = vmatprep.subr.bf16.mxu0 0
    %3077 = vmatpush1.bf16.msra.mxu0 0
    %3078 = vmatprep.mubr.bf16.mxu0 0
    %3079 = vmatmul.mubr.bf16.gmra.mrb[0].mxu0 %v3032
    %v3080 = vpop.f32.mrb[0].mxu0
    %v3081 = vadd.f32 0.0, %v3080
    %v3082 = vpop.f32.mrb[0].mxu0
    %v3083 = vpop.f32.mrb[0].mxu0
    %v3084 = vadd.f32 0.0, %v3083
    %v3085 = vpop.f32.mrb[0].mxu0
    %3086 = vmatprep.mubr.bf16.mxu0 0
    %3087 = vmatmul.mubr.bf16.gmra.mrb[0].mxu0 %v3035
    %v3088 = vpop.f32.mrb[0].mxu0
    %v3089 = vadd.f32 0.0, %v3088
    %v3090 = vpop.f32.mrb[0].mxu0
    %v3091 = vpop.f32.mrb[0].mxu0
    %v3092 = vadd.f32 0.0, %v3091
    %v3093 = vpop.f32.mrb[0].mxu0
    %3094 = vmatprep.mubr.bf16.mxu0 0
    %3095 = vmatmul.mubr.bf16.gmra.mrb[0].mxu0 %v3038
    %v3096 = vpop.f32.mrb[0].mxu0
    %v3097 = vadd.f32 0.0, %v3096
    %v3098 = vpop.f32.mrb[0].mxu0
    %v3099 = vpop.f32.mrb[0].mxu0
    %v3100 = vadd.f32 0.0, %v3099
    %v3101 = vpop.f32.mrb[0].mxu0
    %3102 = vmatprep.mubr.bf16.mxu0 0
    %3103 = vmatmul.mubr.bf16.gmra.mrb[0].mxu0 %v3041
    %v3104 = vpop.f32.mrb[0].mxu0
    %v3105 = vadd.f32 0.0, %v3104
    %v3106 = vpop.f32.mrb[0].mxu0
    %v3107 = vpop.f32.mrb[0].mxu0
    %v3108 = vadd.f32 0.0, %v3107
    %v3109 = vpop.f32.mrb[0].mxu0
    %3110 = vdwg.mxu0
    %v3111 = vadd.f32 %v3021, %v3081
    %v3112 = vadd.f32 %v3022, %v3084
    %v3113 = vadd.f32 %v3023, %v3089
    %v3114 = vadd.f32 %v3024, %v3092
    %v3115 = vadd.f32 %v3025, %v3097
    %v3116 = vadd.f32 %v3026, %v3100
    %v3117 = vadd.f32 %v3027, %v3105
    %v3118 = vadd.f32 %v3028, %v3108
    %v3119 = vpack.c.bf16 %v3112, %v3111
    %v3120 = vpack.c.bf16 %v3114, %v3113
    %v3121 = vpack.c.bf16 %v3116, %v3115
    %v3122 = vpack.c.bf16 %v3118, %v3117
    %v3127 = vunpack.c.l.b16 %v3119
    %v3128 = vunpack.c.h.b16 %v3119
    %v3129 = vunpack.c.l.b16 %v3120
    %v3130 = vunpack.c.h.b16 %v3120
    %v3131 = vunpack.c.l.b16 %v3121
    %v3132 = vunpack.c.h.b16 %v3121
    %v3133 = vunpack.c.l.b16 %v3122
    %v3134 = vunpack.c.h.b16 %v3122
    %v3135 = vpack.c.b16 %v3127, %v3127
    %v3136 = vpack.c.b16 %v3128, %v3128
    %v3137 = vpack.c.b16 %v3129, %v3129
    %v3138 = vpack.c.b16 %v3130, %v3130
    %v3139 = vpack.c.b16 %v3131, %v3131
    %v3140 = vpack.c.b16 %v3132, %v3132
    %v3141 = vpack.c.b16 %v3133, %v3133
    %v3142 = vpack.c.b16 %v3134, %v3134
    %vm3151 = vcmask 257024
    %3152 = vst.msk [vmem:[%s10] sm:$0xf] %vm3151, %v3135
    %3153 = vst.msk [vmem:[%s10 + $0x4] sm:$0xf] %vm3151, %v3136
    %3154 = vst.msk [vmem:[%s10 + $0x8] sm:$0xf] %vm3151, %v3137
    %3155 = vst.msk [vmem:[%s10 + $0xc] sm:$0xf] %vm3151, %v3138
    %3156 = vst.msk [vmem:[%s10 + $0x10] sm:$0xf] %vm3151, %v3139
    %3157 = vst.msk [vmem:[%s10 + $0x14] sm:$0xf] %vm3151, %v3140
    %3158 = vst.msk [vmem:[%s10 + $0x18] sm:$0xf] %vm3151, %v3141
    %3159 = vst.msk [vmem:[%s10 + $0x1c] sm:$0xf] %vm3151, %v3142
  $region45: #{dit_layer_forward.6} parent=0 // pred_fallthru
    _
  // Predicated region
  $region46: #{dit_layer_forward.6} parent=0 // pred_check
    _
  $region47: #{dit_layer_forward.6} parent=0 // pred_check_branch
    %3161 = sbr.rel (0) target = $region49
  $region48: #{dit_layer_forward.6} parent=0 // pred_region
    _
  $region49: #{dit_layer_forward.6} parent=0 // pred_fallthru
    _
  // Predicated region
  $region50: #{dit_layer_forward.6} parent=0 // pred_check
    _
  $region51: #{dit_layer_forward.6} parent=0 // pred_check_branch
    %3163 = sbr.rel (0) target = $region53
  $region52: #{dit_layer_forward.6} parent=0 // pred_region
    _
  $region53: #{dit_layer_forward.6} parent=0 // pred_fallthru
    _

</llo_original>
